<compile_context>
chip_gen: v6e
topology: v6e:2x2x1
jax: 0.10.0
libtpu: 0.0.40
codegen_flags: <defaults>
</compile_context>

<pallas_src>
import functools
import jax
import jax.numpy as jnp
from jax import lax
from jax.experimental import pallas as pl
from jax.experimental.pallas import tpu as pltpu


def _group_norm_relu(v, gamma, beta, gmat, eps):
    """v: (HW, C) f32; gamma/beta: (1, C); gmat: (C, C) group-averaging matrix.

    Group statistics via one matmul of per-channel sums against gmat
    (gmat[i, j] = 1/(HW*C_per_group) if i, j share a group, else 0), which both
    reduces over the group and broadcasts back to per-channel form.  The affine
    is folded into a per-channel scale/shift so the normalize pass is one FMA
    per element (+ ReLU).
    """
    s = jnp.sum(v, axis=0, keepdims=True)            # (1, C)
    sq = jnp.sum(v * v, axis=0, keepdims=True)       # (1, C)
    mean = jnp.dot(s, gmat, preferred_element_type=jnp.float32)     # (1, C)
    meansq = jnp.dot(sq, gmat, preferred_element_type=jnp.float32)  # (1, C)
    var = jnp.maximum(meansq - mean * mean, 0.0)     # clamp: avoid rsqrt(NaN)
    inv = lax.rsqrt(var + eps)
    scale = inv * gamma                              # (1, C)
    shift = beta - mean * scale                      # (1, C)
    return jnp.maximum(v * scale + shift, 0.0)


def _conv3x3(a, pad_ref, w_ref, acc0, H, W, C):
    """3x3 'same' conv = 9 shifted matmuls accumulated in f32.

    a:       (HW, C) f32 activation.
    pad_ref: (H+2, W+2, Cmax) f32 staging scratch with zeroed 1-wide border.
    w_ref:   (9, C, Cout) bf16 weights, tap index t = kh*3 + kw.
    acc0:    f32 accumulator init broadcastable to (HW, Cout) (bias, and the
             fused residual term for conv_2).
    """
    # Single interior write; border stays zero (zeroed once per grid step).
    pad_ref[1:H + 1, 1:W + 1, 0:C] = a.reshape(H, W, C)
    acc = acc0
    for kh in range(3):
        for kw in range(3):
            t = kh * 3 + kw
            win = pad_ref[kh:kh + H, kw:kw + W, 0:C].reshape(H * W, C)
            acc = acc + jnp.dot(win.astype(jnp.bfloat16), w_ref[t],
                                preferred_element_type=jnp.float32)
    return acc


def residual_block_kernel(H, W, cin, cout, cmax, eps,
                          x_ref, gmat1_ref, g1_ref, b1_ref, w1_ref, c1b_ref,
                          gmat2_ref, g2_ref, b2_ref, w2_ref, c2b_ref,
                          wr_ref, br_ref, o_ref, pad_ref):
    HW = H * W

    # Zero only the 1-wide border of the shared staging buffer.  Done every grid
    # step (megacore-safe: scratch is per-core and the interior is always fully
    # overwritten before being read).
    pad_ref[0:1, :, :] = jnp.zeros((1, W + 2, cmax), jnp.float32)
    pad_ref[H + 1:H + 2, :, :] = jnp.zeros((1, W + 2, cmax), jnp.float32)
    pad_ref[1:H + 1, 0:1, :] = jnp.zeros((H, 1, cmax), jnp.float32)
    pad_ref[1:H + 1, W + 1:W + 2, :] = jnp.zeros((H, 1, cmax), jnp.float32)

    xf = x_ref[0].astype(jnp.float32).reshape(HW, cin)

    # 1x1-conv residual connection first (f32; cheap, ends xf's live range early).
    res = jnp.dot(xf, wr_ref[...], preferred_element_type=jnp.float32) + br_ref[...]

    # norm_1 -> relu -> conv_1
    a1 = _group_norm_relu(xf, g1_ref[...], b1_ref[...], gmat1_ref[...], eps)
    c1 = _conv3x3(a1, pad_ref, w1_ref, c1b_ref[...], H, W, cin)

    # norm_2 -> relu -> (dropout: identity in eval) -> conv_2 (+ fused residual)
    a2 = _group_norm_relu(c1, g2_ref[...], b2_ref[...], gmat2_ref[...], eps)
    out = _conv3x3(a2, pad_ref, w2_ref, res + c2b_ref[...], H, W, cout)

    # Direct (HW, Cout) store — no in-kernel relayout reshape.  For production,
    # Cout should be a multiple of 128 so this vst path is unmasked.
    o_ref[0] = out.astype(o_ref.dtype)


def _group_mean_matrix(C, groups, HW):
    cg = C // groups
    g = jnp.arange(C) // cg
    same = (g[:, None] == g[None, :]).astype(jnp.float32)
    return same / float(HW * cg)


def residual_block(x_nchw, params, *, num_groups):
    """x_nchw: (N, Cin, H, W) -> (N, Cout, H, W)."""
    (g1, b1, w1, c1b, g2, b2, w2, c2b, wr, br) = params
    N, Cin, H, W = x_nchw.shape
    Cout = w1.shape[-1]
    HW = H * W
    Cmax = max(Cin, Cout)

    # Module spec is NCHW; an NHWC-native pipeline would drop these transposes.
    x = jnp.transpose(x_nchw, (0, 2, 3, 1)).astype(jnp.float32)   # -> NHWC

    # conv weights: (3,3,Ci,Co) -> (9,Ci,Co), bf16 for the MXU; 1x1 stays f32.
    w1k = w1.reshape(9, Cin, Cout).astype(jnp.bfloat16)
    w2k = w2.reshape(9, Cout, Cout).astype(jnp.bfloat16)
    wrk = wr.astype(jnp.float32)
    gmat1 = _group_mean_matrix(Cin, num_groups, HW)
    gmat2 = _group_mean_matrix(Cout, num_groups, HW)

    kernel = functools.partial(residual_block_kernel, H, W, Cin, Cout, Cmax, 1e-5)

    full = lambda shape: pl.BlockSpec(shape, lambda n: (0,) * len(shape))

    # VMEM budget: real requirement with headroom (never request full physical
    # VMEM — leave room for pipeline buffers / internal scratch).
    est = (
        2 * HW * Cin * 4                                  # input block x2 buffers
        + 2 * HW * Cout * 4                               # output block x2 buffers
        + 2 * 9 * (Cin + Cout) * Cout * 2                 # bf16 conv weights x2
        + 2 * (Cin * Cin + Cout * Cout + Cin * Cout) * 4  # gmats + 1x1 weight
        + (H + 2) * (W + 2) * Cmax * 4                    # shared staging scratch
        + 8 * HW * Cmax * 4                               # in-kernel f32 temps
    )
    vmem_limit = min(max(2 * est, 32 * 1024 * 1024), 100 * 1024 * 1024)

    out_flat = pl.pallas_call(
        kernel,
        out_shape=jax.ShapeDtypeStruct((N, HW, Cout), jnp.float32),
        grid_spec=pltpu.PrefetchScalarGridSpec(
            num_scalar_prefetch=0,
            grid=(N,),
            in_specs=[
                pl.BlockSpec((1, H, W, Cin), lambda n: (n, 0, 0, 0)),
                full((Cin, Cin)), full((1, Cin)), full((1, Cin)),
                full((9, Cin, Cout)), full((1, Cout)),
                full((Cout, Cout)), full((1, Cout)), full((1, Cout)),
                full((9, Cout, Cout)), full((1, Cout)),
                full((Cin, Cout)), full((1, Cout)),
            ],
            out_specs=pl.BlockSpec((1, HW, Cout), lambda n: (n, 0, 0)),
            scratch_shapes=[
                pltpu.VMEM((H + 2, W + 2, Cmax), jnp.float32),  # shared conv staging
            ],
        ),
        compiler_params=pltpu.CompilerParams(
            dimension_semantics=("parallel",),
            vmem_limit_bytes=vmem_limit,
        ),
    )(x, gmat1, g1, b1, w1k, c1b, gmat2, g2, b2, w2k, c2b, wrk, br)

    out = out_flat.reshape(N, H, W, Cout)
    return jnp.transpose(out, (0, 3, 1, 2))   # back to NCHW


# ---------- pure-JAX f32 reference (for verification) ----------
def _gn_ref(x_nhwc, gamma, beta, groups, eps=1e-5):
    N, H, W, C = x_nhwc.shape
    xg = x_nhwc.reshape(N, H, W, groups, C // groups)
    mean = xg.mean(axis=(1, 2, 4), keepdims=True)
    var = ((xg - mean) ** 2).mean(axis=(1, 2, 4), keepdims=True)
    xn = ((xg - mean) * lax.rsqrt(var + eps)).reshape(N, H, W, C)
    return xn * gamma[0] + beta[0]


def residual_block_ref(x_nchw, params, *, num_groups):
    (g1, b1, w1, c1b, g2, b2, w2, c2b, wr, br) = params
    x = jnp.transpose(x_nchw, (0, 2, 3, 1)).astype(jnp.float32)
    dn = ('NHWC', 'HWIO', 'NHWC')
    a1 = jnp.maximum(_gn_ref(x, g1, b1, num_groups), 0.0)
    c1 = lax.conv_general_dilated(a1, w1, (1, 1), 'SAME',
                                  dimension_numbers=dn) + c1b[0]
    a2 = jnp.maximum(_gn_ref(c1, g2, b2, num_groups), 0.0)
    c2 = lax.conv_general_dilated(a2, w2, (1, 1), 'SAME',
                                  dimension_numbers=dn) + c2b[0]
    res = jnp.einsum('nhwc,cd->nhwd', x, wr) + br[0]
    return jnp.transpose(c2 + res, (0, 3, 1, 2))


if __name__ == "__main__":
    N, Cin, Cout, H, W = 2, 4, 8, 16, 16
    num_groups = 2     # small synthetic config (Cin, Cout divisible by groups)

    key = jax.random.PRNGKey(0)
    ks = jax.random.split(key, 8)
    x = jax.random.normal(ks[0], (N, Cin, H, W), jnp.float32)

    # deterministic synthetic parameters (module __init__ shapes, NHWC/HWIO form)
    g1 = jnp.ones((1, Cin), jnp.float32)
    b1 = jnp.zeros((1, Cin), jnp.float32)
    w1 = 0.1 * jax.random.normal(ks[1], (3, 3, Cin, Cout), jnp.float32)
    c1b = 0.1 * jax.random.normal(ks[2], (1, Cout), jnp.float32)
    g2 = 1.0 + 0.1 * jax.random.normal(ks[3], (1, Cout), jnp.float32)
    b2 = 0.1 * jax.random.normal(ks[4], (1, Cout), jnp.float32)
    w2 = 0.1 * jax.random.normal(ks[5], (3, 3, Cout, Cout), jnp.float32)
    c2b = 0.1 * jax.random.normal(ks[6], (1, Cout), jnp.float32)
    wr = 0.1 * jax.random.normal(ks[7], (Cin, Cout), jnp.float32)   # 1x1 conv
    br = jnp.zeros((1, Cout), jnp.float32)

    params = (g1, b1, w1, c1b, g2, b2, w2, c2b, wr, br)

    out = residual_block(x, params, num_groups=num_groups)
    out = jax.block_until_ready(out)

    ref = residual_block_ref(x, params, num_groups=num_groups)
    assert out.shape == (N, Cout, H, W)
    # bf16 MXU operands (f32 accumulate) vs. pure-f32 reference -> looser tol.
    assert jnp.allclose(out, ref, rtol=5e-2, atol=5e-2), \
        f"max err {jnp.max(jnp.abs(out - ref))}"

    print("KERNEL_OK")
</pallas_src>

<mosaic_0001>
module attributes {stable_mosaic.version = 11 : i64} {
  func.func @residual_block_kernel(%arg0: i32, %arg1: memref<1x16x16x4xf32, #tpu.memory_space<vmem>>, %arg2: memref<4x4xf32, #tpu.memory_space<vmem>>, %arg3: memref<1x4xf32, #tpu.memory_space<vmem>>, %arg4: memref<1x4xf32, #tpu.memory_space<vmem>>, %arg5: memref<9x4x8xbf16, #tpu.memory_space<vmem>>, %arg6: memref<1x8xf32, #tpu.memory_space<vmem>>, %arg7: memref<8x8xf32, #tpu.memory_space<vmem>>, %arg8: memref<1x8xf32, #tpu.memory_space<vmem>>, %arg9: memref<1x8xf32, #tpu.memory_space<vmem>>, %arg10: memref<9x8x8xbf16, #tpu.memory_space<vmem>>, %arg11: memref<1x8xf32, #tpu.memory_space<vmem>>, %arg12: memref<4x8xf32, #tpu.memory_space<vmem>>, %arg13: memref<1x8xf32, #tpu.memory_space<vmem>>, %arg14: memref<1x256x8xf32, #tpu.memory_space<vmem>>, %arg15: memref<18x18x8xf32, #tpu.memory_space<vmem>>) attributes {dimension_semantics = [#tpu.dimension_semantics<parallel>], iteration_bounds = array<i64: 2>, scalar_prefetch = 0 : i64, scratch_operands = 1 : i64, tpu.core_type = #tpu.core_type<tc>, window_params = [{transform_indices = @transform_0, window_bounds = array<i64: 1, 16, 16, 4>}, {pipeline_mode = #tpu.pipeline_mode<synchronous>, transform_indices = @transform_1, window_bounds = array<i64: 4, 4>}, {pipeline_mode = #tpu.pipeline_mode<synchronous>, transform_indices = @transform_2, window_bounds = array<i64: 1, 4>}, {pipeline_mode = #tpu.pipeline_mode<synchronous>, transform_indices = @transform_3, window_bounds = array<i64: 1, 4>}, {pipeline_mode = #tpu.pipeline_mode<synchronous>, transform_indices = @transform_4, window_bounds = array<i64: 9, 4, 8>}, {pipeline_mode = #tpu.pipeline_mode<synchronous>, transform_indices = @transform_5, window_bounds = array<i64: 1, 8>}, {pipeline_mode = #tpu.pipeline_mode<synchronous>, transform_indices = @transform_6, window_bounds = array<i64: 8, 8>}, {pipeline_mode = #tpu.pipeline_mode<synchronous>, transform_indices = @transform_7, window_bounds = array<i64: 1, 8>}, {pipeline_mode = #tpu.pipeline_mode<synchronous>, transform_indices = @transform_8, window_bounds = array<i64: 1, 8>}, {pipeline_mode = #tpu.pipeline_mode<synchronous>, transform_indices = @transform_9, window_bounds = array<i64: 9, 8, 8>}, {pipeline_mode = #tpu.pipeline_mode<synchronous>, transform_indices = @transform_10, window_bounds = array<i64: 1, 8>}, {pipeline_mode = #tpu.pipeline_mode<synchronous>, transform_indices = @transform_11, window_bounds = array<i64: 4, 8>}, {pipeline_mode = #tpu.pipeline_mode<synchronous>, transform_indices = @transform_12, window_bounds = array<i64: 1, 8>}, {transform_indices = @transform_13, window_bounds = array<i64: 1, 256, 8>}]} {
    %cst = arith.constant 0.000000e+00 : f32
    %0 = vector.broadcast %cst : f32 to vector<1x18x8xf32>
    %c0 = arith.constant 0 : index
    %c0_0 = arith.constant 0 : index
    %c0_1 = arith.constant 0 : index
    %1 = vector.load %arg15[%c0, %c0_0, %c0_1] : memref<18x18x8xf32, #tpu.memory_space<vmem>>, vector<1x18x8xf32>
    tpu.vector_store %arg15[%c0, %c0_0, %c0_1], %0 {strides = array<i32>} : memref<18x18x8xf32, #tpu.memory_space<vmem>>, vector<1x18x8xf32>,
    %cst_2 = arith.constant 0.000000e+00 : f32
    %2 = vector.broadcast %cst_2 : f32 to vector<1x18x8xf32>
    %c17 = arith.constant 17 : index
    %c0_3 = arith.constant 0 : index
    %c0_4 = arith.constant 0 : index
    %3 = vector.load %arg15[%c17, %c0_3, %c0_4] : memref<18x18x8xf32, #tpu.memory_space<vmem>>, vector<1x18x8xf32>
    tpu.vector_store %arg15[%c17, %c0_3, %c0_4], %2 {strides = array<i32>} : memref<18x18x8xf32, #tpu.memory_space<vmem>>, vector<1x18x8xf32>,
    %cst_5 = arith.constant 0.000000e+00 : f32
    %4 = vector.broadcast %cst_5 : f32 to vector<16x1x8xf32>
    %c1 = arith.constant 1 : index
    %c0_6 = arith.constant 0 : index
    %c0_7 = arith.constant 0 : index
    %5 = vector.load %arg15[%c1, %c0_6, %c0_7] : memref<18x18x8xf32, #tpu.memory_space<vmem>>, vector<16x1x8xf32>
    tpu.vector_store %arg15[%c1, %c0_6, %c0_7], %4 {strides = array<i32>} : memref<18x18x8xf32, #tpu.memory_space<vmem>>, vector<16x1x8xf32>,
    %cst_8 = arith.constant 0.000000e+00 : f32
    %6 = vector.broadcast %cst_8 : f32 to vector<16x1x8xf32>
    %c1_9 = arith.constant 1 : index
    %c17_10 = arith.constant 17 : index
    %c0_11 = arith.constant 0 : index
    %7 = vector.load %arg15[%c1_9, %c17_10, %c0_11] : memref<18x18x8xf32, #tpu.memory_space<vmem>>, vector<16x1x8xf32>
    tpu.vector_store %arg15[%c1_9, %c17_10, %c0_11], %6 {strides = array<i32>} : memref<18x18x8xf32, #tpu.memory_space<vmem>>, vector<16x1x8xf32>,
    %c0_12 = arith.constant 0 : index
    %c0_13 = arith.constant 0 : index
    %c0_14 = arith.constant 0 : index
    %c0_15 = arith.constant 0 : index
    %8 = vector.load %arg1[%c0_12, %c0_13, %c0_14, %c0_15] : memref<1x16x16x4xf32, #tpu.memory_space<vmem>>, vector<1x16x16x4xf32>
    %9 = vector.shape_cast %8 : vector<1x16x16x4xf32> to vector<16x16x4xf32>
    %10 = vector.shape_cast %9 : vector<16x16x4xf32> to vector<256x4xf32>
    %c0_16 = arith.constant 0 : index
    %c0_17 = arith.constant 0 : index
    %11 = vector.load %arg12[%c0_16, %c0_17] : memref<4x8xf32, #tpu.memory_space<vmem>>, vector<4x8xf32>
    %cst_18 = arith.constant dense<0.000000e+00> : vector<256x8xf32>
    %12 = tpu.matmul %10, %11, %cst_18 {dimension_numbers = #tpu.dot_dimension_numbers<[1], [0], [0], [1], [0, 0, 1, 1], [], []>} : vector<256x4xf32>, vector<4x8xf32>, vector<256x8xf32> -> vector<256x8xf32>
    %c0_19 = arith.constant 0 : index
    %c0_20 = arith.constant 0 : index
    %13 = vector.load %arg13[%c0_19, %c0_20] : memref<1x8xf32, #tpu.memory_space<vmem>>, vector<1x8xf32>
    %14 = vector.broadcast %13 : vector<1x8xf32> to vector<256x8xf32>
    %15 = arith.addf %12, %14 : vector<256x8xf32>
    %c0_21 = arith.constant 0 : index
    %c0_22 = arith.constant 0 : index
    %16 = vector.load %arg3[%c0_21, %c0_22] : memref<1x4xf32, #tpu.memory_space<vmem>>, vector<1x4xf32>
    %c0_23 = arith.constant 0 : index
    %c0_24 = arith.constant 0 : index
    %17 = vector.load %arg4[%c0_23, %c0_24] : memref<1x4xf32, #tpu.memory_space<vmem>>, vector<1x4xf32>
    %c0_25 = arith.constant 0 : index
    %c0_26 = arith.constant 0 : index
    %18 = vector.load %arg2[%c0_25, %c0_26] : memref<4x4xf32, #tpu.memory_space<vmem>>, vector<4x4xf32>
    %cst_27 = arith.constant dense<0.000000e+00> : vector<4xf32>
    %19 = vector.multi_reduction <add>, %10, %cst_27 [0] : vector<256x4xf32> to vector<4xf32>
    %20 = vector.shape_cast %19 : vector<4xf32> to vector<1x4xf32>
    %21 = arith.mulf %10, %10 : vector<256x4xf32>
    %cst_28 = arith.constant dense<0.000000e+00> : vector<4xf32>
    %22 = vector.multi_reduction <add>, %21, %cst_28 [0] : vector<256x4xf32> to vector<4xf32>
    %23 = vector.shape_cast %22 : vector<4xf32> to vector<1x4xf32>
    %cst_29 = arith.constant dense<0.000000e+00> : vector<1x4xf32>
    %24 = tpu.matmul %20, %18, %cst_29 {dimension_numbers = #tpu.dot_dimension_numbers<[1], [0], [0], [1], [0, 0, 1, 1], [], []>} : vector<1x4xf32>, vector<4x4xf32>, vector<1x4xf32> -> vector<1x4xf32>
    %cst_30 = arith.constant dense<0.000000e+00> : vector<1x4xf32>
    %25 = tpu.matmul %23, %18, %cst_30 {dimension_numbers = #tpu.dot_dimension_numbers<[1], [0], [0], [1], [0, 0, 1, 1], [], []>} : vector<1x4xf32>, vector<4x4xf32>, vector<1x4xf32> -> vector<1x4xf32>
    %26 = arith.mulf %24, %24 : vector<1x4xf32>
    %27 = arith.subf %25, %26 : vector<1x4xf32>
    %cst_31 = arith.constant 0.000000e+00 : f32
    %28 = vector.broadcast %cst_31 : f32 to vector<1x4xf32>
    %29 = arith.maximumf %27, %28 : vector<1x4xf32>
    %cst_32 = arith.constant 9.99999974E-6 : f32
    %30 = vector.broadcast %cst_32 : f32 to vector<1x4xf32>
    %31 = arith.addf %29, %30 : vector<1x4xf32>
    %32 = math.rsqrt %31 : vector<1x4xf32>
    %33 = arith.mulf %32, %16 : vector<1x4xf32>
    %34 = arith.mulf %24, %33 : vector<1x4xf32>
    %35 = arith.subf %17, %34 : vector<1x4xf32>
    %36 = vector.broadcast %33 : vector<1x4xf32> to vector<256x4xf32>
    %37 = arith.mulf %10, %36 : vector<256x4xf32>
    %38 = vector.broadcast %35 : vector<1x4xf32> to vector<256x4xf32>
    %39 = arith.addf %37, %38 : vector<256x4xf32>
    %cst_33 = arith.constant 0.000000e+00 : f32
    %40 = vector.broadcast %cst_33 : f32 to vector<256x4xf32>
    %41 = arith.maximumf %39, %40 : vector<256x4xf32>
    %c0_34 = arith.constant 0 : index
    %c0_35 = arith.constant 0 : index
    %42 = vector.load %arg6[%c0_34, %c0_35] : memref<1x8xf32, #tpu.memory_space<vmem>>, vector<1x8xf32>
    %43 = vector.shape_cast %41 : vector<256x4xf32> to vector<16x16x4xf32>
    %c1_36 = arith.constant 1 : index
    %c1_37 = arith.constant 1 : index
    %c0_38 = arith.constant 0 : index
    %44 = vector.load %arg15[%c1_36, %c1_37, %c0_38] : memref<18x18x8xf32, #tpu.memory_space<vmem>>, vector<16x16x4xf32>
    tpu.vector_store %arg15[%c1_36, %c1_37, %c0_38], %43 {strides = array<i32>} : memref<18x18x8xf32, #tpu.memory_space<vmem>>, vector<16x16x4xf32>,
    %c0_39 = arith.constant 0 : index
    %c0_40 = arith.constant 0 : index
    %c0_41 = arith.constant 0 : index
    %45 = vector.load %arg15[%c0_39, %c0_40, %c0_41] : memref<18x18x8xf32, #tpu.memory_space<vmem>>, vector<16x16x4xf32>
    %46 = vector.shape_cast %45 : vector<16x16x4xf32> to vector<256x4xf32>
    %47 = arith.truncf %46 : vector<256x4xf32> to vector<256x4xbf16>
    %c0_42 = arith.constant 0 : index
    %c0_43 = arith.constant 0 : index
    %c0_44 = arith.constant 0 : index
    %48 = vector.load %arg5[%c0_42, %c0_43, %c0_44] : memref<9x4x8xbf16, #tpu.memory_space<vmem>>, vector<1x4x8xbf16>
    %49 = vector.shape_cast %48 : vector<1x4x8xbf16> to vector<4x8xbf16>
    %cst_45 = arith.constant dense<0.000000e+00> : vector<256x8xf32>
    %50 = tpu.matmul %47, %49, %cst_45 {dimension_numbers = #tpu.dot_dimension_numbers<[1], [0], [0], [1], [0, 0, 1, 1], [], []>} : vector<256x4xbf16>, vector<4x8xbf16>, vector<256x8xf32> -> vector<256x8xf32>
    %51 = vector.broadcast %42 : vector<1x8xf32> to vector<256x8xf32>
    %52 = arith.addf %51, %50 : vector<256x8xf32>
    %c0_46 = arith.constant 0 : index
    %c1_47 = arith.constant 1 : index
    %c0_48 = arith.constant 0 : index
    %53 = vector.load %arg15[%c0_46, %c1_47, %c0_48] : memref<18x18x8xf32, #tpu.memory_space<vmem>>, vector<16x16x4xf32>
    %54 = vector.shape_cast %53 : vector<16x16x4xf32> to vector<256x4xf32>
    %55 = arith.truncf %54 : vector<256x4xf32> to vector<256x4xbf16>
    %c1_49 = arith.constant 1 : index
    %c0_50 = arith.constant 0 : index
    %c0_51 = arith.constant 0 : index
    %56 = vector.load %arg5[%c1_49, %c0_50, %c0_51] : memref<9x4x8xbf16, #tpu.memory_space<vmem>>, vector<1x4x8xbf16>
    %57 = vector.shape_cast %56 : vector<1x4x8xbf16> to vector<4x8xbf16>
    %cst_52 = arith.constant dense<0.000000e+00> : vector<256x8xf32>
    %58 = tpu.matmul %55, %57, %cst_52 {dimension_numbers = #tpu.dot_dimension_numbers<[1], [0], [0], [1], [0, 0, 1, 1], [], []>} : vector<256x4xbf16>, vector<4x8xbf16>, vector<256x8xf32> -> vector<256x8xf32>
    %59 = arith.addf %52, %58 : vector<256x8xf32>
    %c0_53 = arith.constant 0 : index
    %c2 = arith.constant 2 : index
    %c0_54 = arith.constant 0 : index
    %60 = vector.load %arg15[%c0_53, %c2, %c0_54] : memref<18x18x8xf32, #tpu.memory_space<vmem>>, vector<16x16x4xf32>
    %61 = vector.shape_cast %60 : vector<16x16x4xf32> to vector<256x4xf32>
    %62 = arith.truncf %61 : vector<256x4xf32> to vector<256x4xbf16>
    %c2_55 = arith.constant 2 : index
    %c0_56 = arith.constant 0 : index
    %c0_57 = arith.constant 0 : index
    %63 = vector.load %arg5[%c2_55, %c0_56, %c0_57] : memref<9x4x8xbf16, #tpu.memory_space<vmem>>, vector<1x4x8xbf16>
    %64 = vector.shape_cast %63 : vector<1x4x8xbf16> to vector<4x8xbf16>
    %cst_58 = arith.constant dense<0.000000e+00> : vector<256x8xf32>
    %65 = tpu.matmul %62, %64, %cst_58 {dimension_numbers = #tpu.dot_dimension_numbers<[1], [0], [0], [1], [0, 0, 1, 1], [], []>} : vector<256x4xbf16>, vector<4x8xbf16>, vector<256x8xf32> -> vector<256x8xf32>
    %66 = arith.addf %59, %65 : vector<256x8xf32>
    %c1_59 = arith.constant 1 : index
    %c0_60 = arith.constant 0 : index
    %c0_61 = arith.constant 0 : index
    %67 = vector.load %arg15[%c1_59, %c0_60, %c0_61] : memref<18x18x8xf32, #tpu.memory_space<vmem>>, vector<16x16x4xf32>
    %68 = vector.shape_cast %67 : vector<16x16x4xf32> to vector<256x4xf32>
    %69 = arith.truncf %68 : vector<256x4xf32> to vector<256x4xbf16>
    %c3 = arith.constant 3 : index
    %c0_62 = arith.constant 0 : index
    %c0_63 = arith.constant 0 : index
    %70 = vector.load %arg5[%c3, %c0_62, %c0_63] : memref<9x4x8xbf16, #tpu.memory_space<vmem>>, vector<1x4x8xbf16>
    %71 = vector.shape_cast %70 : vector<1x4x8xbf16> to vector<4x8xbf16>
    %cst_64 = arith.constant dense<0.000000e+00> : vector<256x8xf32>
    %72 = tpu.matmul %69, %71, %cst_64 {dimension_numbers = #tpu.dot_dimension_numbers<[1], [0], [0], [1], [0, 0, 1, 1], [], []>} : vector<256x4xbf16>, vector<4x8xbf16>, vector<256x8xf32> -> vector<256x8xf32>
    %73 = arith.addf %66, %72 : vector<256x8xf32>
    %c1_65 = arith.constant 1 : index
    %c1_66 = arith.constant 1 : index
    %c0_67 = arith.constant 0 : index
    %74 = vector.load %arg15[%c1_65, %c1_66, %c0_67] : memref<18x18x8xf32, #tpu.memory_space<vmem>>, vector<16x16x4xf32>
    %75 = vector.shape_cast %74 : vector<16x16x4xf32> to vector<256x4xf32>
    %76 = arith.truncf %75 : vector<256x4xf32> to vector<256x4xbf16>
    %c4 = arith.constant 4 : index
    %c0_68 = arith.constant 0 : index
    %c0_69 = arith.constant 0 : index
    %77 = vector.load %arg5[%c4, %c0_68, %c0_69] : memref<9x4x8xbf16, #tpu.memory_space<vmem>>, vector<1x4x8xbf16>
    %78 = vector.shape_cast %77 : vector<1x4x8xbf16> to vector<4x8xbf16>
    %cst_70 = arith.constant dense<0.000000e+00> : vector<256x8xf32>
    %79 = tpu.matmul %76, %78, %cst_70 {dimension_numbers = #tpu.dot_dimension_numbers<[1], [0], [0], [1], [0, 0, 1, 1], [], []>} : vector<256x4xbf16>, vector<4x8xbf16>, vector<256x8xf32> -> vector<256x8xf32>
    %80 = arith.addf %73, %79 : vector<256x8xf32>
    %c1_71 = arith.constant 1 : index
    %c2_72 = arith.constant 2 : index
    %c0_73 = arith.constant 0 : index
    %81 = vector.load %arg15[%c1_71, %c2_72, %c0_73] : memref<18x18x8xf32, #tpu.memory_space<vmem>>, vector<16x16x4xf32>
    %82 = vector.shape_cast %81 : vector<16x16x4xf32> to vector<256x4xf32>
    %83 = arith.truncf %82 : vector<256x4xf32> to vector<256x4xbf16>
    %c5 = arith.constant 5 : index
    %c0_74 = arith.constant 0 : index
    %c0_75 = arith.constant 0 : index
    %84 = vector.load %arg5[%c5, %c0_74, %c0_75] : memref<9x4x8xbf16, #tpu.memory_space<vmem>>, vector<1x4x8xbf16>
    %85 = vector.shape_cast %84 : vector<1x4x8xbf16> to vector<4x8xbf16>
    %cst_76 = arith.constant dense<0.000000e+00> : vector<256x8xf32>
    %86 = tpu.matmul %83, %85, %cst_76 {dimension_numbers = #tpu.dot_dimension_numbers<[1], [0], [0], [1], [0, 0, 1, 1], [], []>} : vector<256x4xbf16>, vector<4x8xbf16>, vector<256x8xf32> -> vector<256x8xf32>
    %87 = arith.addf %80, %86 : vector<256x8xf32>
    %c2_77 = arith.constant 2 : index
    %c0_78 = arith.constant 0 : index
    %c0_79 = arith.constant 0 : index
    %88 = vector.load %arg15[%c2_77, %c0_78, %c0_79] : memref<18x18x8xf32, #tpu.memory_space<vmem>>, vector<16x16x4xf32>
    %89 = vector.shape_cast %88 : vector<16x16x4xf32> to vector<256x4xf32>
    %90 = arith.truncf %89 : vector<256x4xf32> to vector<256x4xbf16>
    %c6 = arith.constant 6 : index
    %c0_80 = arith.constant 0 : index
    %c0_81 = arith.constant 0 : index
    %91 = vector.load %arg5[%c6, %c0_80, %c0_81] : memref<9x4x8xbf16, #tpu.memory_space<vmem>>, vector<1x4x8xbf16>
    %92 = vector.shape_cast %91 : vector<1x4x8xbf16> to vector<4x8xbf16>
    %cst_82 = arith.constant dense<0.000000e+00> : vector<256x8xf32>
    %93 = tpu.matmul %90, %92, %cst_82 {dimension_numbers = #tpu.dot_dimension_numbers<[1], [0], [0], [1], [0, 0, 1, 1], [], []>} : vector<256x4xbf16>, vector<4x8xbf16>, vector<256x8xf32> -> vector<256x8xf32>
    %94 = arith.addf %87, %93 : vector<256x8xf32>
    %c2_83 = arith.constant 2 : index
    %c1_84 = arith.constant 1 : index
    %c0_85 = arith.constant 0 : index
    %95 = vector.load %arg15[%c2_83, %c1_84, %c0_85] : memref<18x18x8xf32, #tpu.memory_space<vmem>>, vector<16x16x4xf32>
    %96 = vector.shape_cast %95 : vector<16x16x4xf32> to vector<256x4xf32>
    %97 = arith.truncf %96 : vector<256x4xf32> to vector<256x4xbf16>
    %c7 = arith.constant 7 : index
    %c0_86 = arith.constant 0 : index
    %c0_87 = arith.constant 0 : index
    %98 = vector.load %arg5[%c7, %c0_86, %c0_87] : memref<9x4x8xbf16, #tpu.memory_space<vmem>>, vector<1x4x8xbf16>
    %99 = vector.shape_cast %98 : vector<1x4x8xbf16> to vector<4x8xbf16>
    %cst_88 = arith.constant dense<0.000000e+00> : vector<256x8xf32>
    %100 = tpu.matmul %97, %99, %cst_88 {dimension_numbers = #tpu.dot_dimension_numbers<[1], [0], [0], [1], [0, 0, 1, 1], [], []>} : vector<256x4xbf16>, vector<4x8xbf16>, vector<256x8xf32> -> vector<256x8xf32>
    %101 = arith.addf %94, %100 : vector<256x8xf32>
    %c2_89 = arith.constant 2 : index
    %c2_90 = arith.constant 2 : index
    %c0_91 = arith.constant 0 : index
    %102 = vector.load %arg15[%c2_89, %c2_90, %c0_91] : memref<18x18x8xf32, #tpu.memory_space<vmem>>, vector<16x16x4xf32>
    %103 = vector.shape_cast %102 : vector<16x16x4xf32> to vector<256x4xf32>
    %104 = arith.truncf %103 : vector<256x4xf32> to vector<256x4xbf16>
    %c8 = arith.constant 8 : index
    %c0_92 = arith.constant 0 : index
    %c0_93 = arith.constant 0 : index
    %105 = vector.load %arg5[%c8, %c0_92, %c0_93] : memref<9x4x8xbf16, #tpu.memory_space<vmem>>, vector<1x4x8xbf16>
    %106 = vector.shape_cast %105 : vector<1x4x8xbf16> to vector<4x8xbf16>
    %cst_94 = arith.constant dense<0.000000e+00> : vector<256x8xf32>
    %107 = tpu.matmul %104, %106, %cst_94 {dimension_numbers = #tpu.dot_dimension_numbers<[1], [0], [0], [1], [0, 0, 1, 1], [], []>} : vector<256x4xbf16>, vector<4x8xbf16>, vector<256x8xf32> -> vector<256x8xf32>
    %108 = arith.addf %101, %107 : vector<256x8xf32>
    %c0_95 = arith.constant 0 : index
    %c0_96 = arith.constant 0 : index
    %109 = vector.load %arg8[%c0_95, %c0_96] : memref<1x8xf32, #tpu.memory_space<vmem>>, vector<1x8xf32>
    %c0_97 = arith.constant 0 : index
    %c0_98 = arith.constant 0 : index
    %110 = vector.load %arg9[%c0_97, %c0_98] : memref<1x8xf32, #tpu.memory_space<vmem>>, vector<1x8xf32>
    %c0_99 = arith.constant 0 : index
    %c0_100 = arith.constant 0 : index
    %111 = vector.load %arg7[%c0_99, %c0_100] : memref<8x8xf32, #tpu.memory_space<vmem>>, vector<8x8xf32>
    %cst_101 = arith.constant dense<0.000000e+00> : vector<8xf32>
    %112 = vector.multi_reduction <add>, %108, %cst_101 [0] : vector<256x8xf32> to vector<8xf32>
    %113 = vector.shape_cast %112 : vector<8xf32> to vector<1x8xf32>
    %114 = arith.mulf %108, %108 : vector<256x8xf32>
    %cst_102 = arith.constant dense<0.000000e+00> : vector<8xf32>
    %115 = vector.multi_reduction <add>, %114, %cst_102 [0] : vector<256x8xf32> to vector<8xf32>
    %116 = vector.shape_cast %115 : vector<8xf32> to vector<1x8xf32>
    %cst_103 = arith.constant dense<0.000000e+00> : vector<1x8xf32>
    %117 = tpu.matmul %113, %111, %cst_103 {dimension_numbers = #tpu.dot_dimension_numbers<[1], [0], [0], [1], [0, 0, 1, 1], [], []>} : vector<1x8xf32>, vector<8x8xf32>, vector<1x8xf32> -> vector<1x8xf32>
    %cst_104 = arith.constant dense<0.000000e+00> : vector<1x8xf32>
    %118 = tpu.matmul %116, %111, %cst_104 {dimension_numbers = #tpu.dot_dimension_numbers<[1], [0], [0], [1], [0, 0, 1, 1], [], []>} : vector<1x8xf32>, vector<8x8xf32>, vector<1x8xf32> -> vector<1x8xf32>
    %119 = arith.mulf %117, %117 : vector<1x8xf32>
    %120 = arith.subf %118, %119 : vector<1x8xf32>
    %cst_105 = arith.constant 0.000000e+00 : f32
    %121 = vector.broadcast %cst_105 : f32 to vector<1x8xf32>
    %122 = arith.maximumf %120, %121 : vector<1x8xf32>
    %cst_106 = arith.constant 9.99999974E-6 : f32
    %123 = vector.broadcast %cst_106 : f32 to vector<1x8xf32>
    %124 = arith.addf %122, %123 : vector<1x8xf32>
    %125 = math.rsqrt %124 : vector<1x8xf32>
    %126 = arith.mulf %125, %109 : vector<1x8xf32>
    %127 = arith.mulf %117, %126 : vector<1x8xf32>
    %128 = arith.subf %110, %127 : vector<1x8xf32>
    %129 = vector.broadcast %126 : vector<1x8xf32> to vector<256x8xf32>
    %130 = arith.mulf %108, %129 : vector<256x8xf32>
    %131 = vector.broadcast %128 : vector<1x8xf32> to vector<256x8xf32>
    %132 = arith.addf %130, %131 : vector<256x8xf32>
    %cst_107 = arith.constant 0.000000e+00 : f32
    %133 = vector.broadcast %cst_107 : f32 to vector<256x8xf32>
    %134 = arith.maximumf %132, %133 : vector<256x8xf32>
    %c0_108 = arith.constant 0 : index
    %c0_109 = arith.constant 0 : index
    %135 = vector.load %arg11[%c0_108, %c0_109] : memref<1x8xf32, #tpu.memory_space<vmem>>, vector<1x8xf32>
    %136 = vector.broadcast %135 : vector<1x8xf32> to vector<256x8xf32>
    %137 = arith.addf %15, %136 : vector<256x8xf32>
    %138 = vector.shape_cast %134 : vector<256x8xf32> to vector<16x16x8xf32>
    %c1_110 = arith.constant 1 : index
    %c1_111 = arith.constant 1 : index
    %c0_112 = arith.constant 0 : index
    %139 = vector.load %arg15[%c1_110, %c1_111, %c0_112] : memref<18x18x8xf32, #tpu.memory_space<vmem>>, vector<16x16x8xf32>
    tpu.vector_store %arg15[%c1_110, %c1_111, %c0_112], %138 {strides = array<i32>} : memref<18x18x8xf32, #tpu.memory_space<vmem>>, vector<16x16x8xf32>,
    %c0_113 = arith.constant 0 : index
    %c0_114 = arith.constant 0 : index
    %c0_115 = arith.constant 0 : index
    %140 = vector.load %arg15[%c0_113, %c0_114, %c0_115] : memref<18x18x8xf32, #tpu.memory_space<vmem>>, vector<16x16x8xf32>
    %141 = vector.shape_cast %140 : vector<16x16x8xf32> to vector<256x8xf32>
    %142 = arith.truncf %141 : vector<256x8xf32> to vector<256x8xbf16>
    %c0_116 = arith.constant 0 : index
    %c0_117 = arith.constant 0 : index
    %c0_118 = arith.constant 0 : index
    %143 = vector.load %arg10[%c0_116, %c0_117, %c0_118] : memref<9x8x8xbf16, #tpu.memory_space<vmem>>, vector<1x8x8xbf16>
    %144 = vector.shape_cast %143 : vector<1x8x8xbf16> to vector<8x8xbf16>
    %cst_119 = arith.constant dense<0.000000e+00> : vector<256x8xf32>
    %145 = tpu.matmul %142, %144, %cst_119 {dimension_numbers = #tpu.dot_dimension_numbers<[1], [0], [0], [1], [0, 0, 1, 1], [], []>} : vector<256x8xbf16>, vector<8x8xbf16>, vector<256x8xf32> -> vector<256x8xf32>
    %146 = arith.addf %137, %145 : vector<256x8xf32>
    %c0_120 = arith.constant 0 : index
    %c1_121 = arith.constant 1 : index
    %c0_122 = arith.constant 0 : index
    %147 = vector.load %arg15[%c0_120, %c1_121, %c0_122] : memref<18x18x8xf32, #tpu.memory_space<vmem>>, vector<16x16x8xf32>
    %148 = vector.shape_cast %147 : vector<16x16x8xf32> to vector<256x8xf32>
    %149 = arith.truncf %148 : vector<256x8xf32> to vector<256x8xbf16>
    %c1_123 = arith.constant 1 : index
    %c0_124 = arith.constant 0 : index
    %c0_125 = arith.constant 0 : index
    %150 = vector.load %arg10[%c1_123, %c0_124, %c0_125] : memref<9x8x8xbf16, #tpu.memory_space<vmem>>, vector<1x8x8xbf16>
    %151 = vector.shape_cast %150 : vector<1x8x8xbf16> to vector<8x8xbf16>
    %cst_126 = arith.constant dense<0.000000e+00> : vector<256x8xf32>
    %152 = tpu.matmul %149, %151, %cst_126 {dimension_numbers = #tpu.dot_dimension_numbers<[1], [0], [0], [1], [0, 0, 1, 1], [], []>} : vector<256x8xbf16>, vector<8x8xbf16>, vector<256x8xf32> -> vector<256x8xf32>
    %153 = arith.addf %146, %152 : vector<256x8xf32>
    %c0_127 = arith.constant 0 : index
    %c2_128 = arith.constant 2 : index
    %c0_129 = arith.constant 0 : index
    %154 = vector.load %arg15[%c0_127, %c2_128, %c0_129] : memref<18x18x8xf32, #tpu.memory_space<vmem>>, vector<16x16x8xf32>
    %155 = vector.shape_cast %154 : vector<16x16x8xf32> to vector<256x8xf32>
    %156 = arith.truncf %155 : vector<256x8xf32> to vector<256x8xbf16>
    %c2_130 = arith.constant 2 : index
    %c0_131 = arith.constant 0 : index
    %c0_132 = arith.constant 0 : index
    %157 = vector.load %arg10[%c2_130, %c0_131, %c0_132] : memref<9x8x8xbf16, #tpu.memory_space<vmem>>, vector<1x8x8xbf16>
    %158 = vector.shape_cast %157 : vector<1x8x8xbf16> to vector<8x8xbf16>
    %cst_133 = arith.constant dense<0.000000e+00> : vector<256x8xf32>
    %159 = tpu.matmul %156, %158, %cst_133 {dimension_numbers = #tpu.dot_dimension_numbers<[1], [0], [0], [1], [0, 0, 1, 1], [], []>} : vector<256x8xbf16>, vector<8x8xbf16>, vector<256x8xf32> -> vector<256x8xf32>
    %160 = arith.addf %153, %159 : vector<256x8xf32>
    %c1_134 = arith.constant 1 : index
    %c0_135 = arith.constant 0 : index
    %c0_136 = arith.constant 0 : index
    %161 = vector.load %arg15[%c1_134, %c0_135, %c0_136] : memref<18x18x8xf32, #tpu.memory_space<vmem>>, vector<16x16x8xf32>
    %162 = vector.shape_cast %161 : vector<16x16x8xf32> to vector<256x8xf32>
    %163 = arith.truncf %162 : vector<256x8xf32> to vector<256x8xbf16>
    %c3_137 = arith.constant 3 : index
    %c0_138 = arith.constant 0 : index
    %c0_139 = arith.constant 0 : index
    %164 = vector.load %arg10[%c3_137, %c0_138, %c0_139] : memref<9x8x8xbf16, #tpu.memory_space<vmem>>, vector<1x8x8xbf16>
    %165 = vector.shape_cast %164 : vector<1x8x8xbf16> to vector<8x8xbf16>
    %cst_140 = arith.constant dense<0.000000e+00> : vector<256x8xf32>
    %166 = tpu.matmul %163, %165, %cst_140 {dimension_numbers = #tpu.dot_dimension_numbers<[1], [0], [0], [1], [0, 0, 1, 1], [], []>} : vector<256x8xbf16>, vector<8x8xbf16>, vector<256x8xf32> -> vector<256x8xf32>
    %167 = arith.addf %160, %166 : vector<256x8xf32>
    %c1_141 = arith.constant 1 : index
    %c1_142 = arith.constant 1 : index
    %c0_143 = arith.constant 0 : index
    %168 = vector.load %arg15[%c1_141, %c1_142, %c0_143] : memref<18x18x8xf32, #tpu.memory_space<vmem>>, vector<16x16x8xf32>
    %169 = vector.shape_cast %168 : vector<16x16x8xf32> to vector<256x8xf32>
    %170 = arith.truncf %169 : vector<256x8xf32> to vector<256x8xbf16>
    %c4_144 = arith.constant 4 : index
    %c0_145 = arith.constant 0 : index
    %c0_146 = arith.constant 0 : index
    %171 = vector.load %arg10[%c4_144, %c0_145, %c0_146] : memref<9x8x8xbf16, #tpu.memory_space<vmem>>, vector<1x8x8xbf16>
    %172 = vector.shape_cast %171 : vector<1x8x8xbf16> to vector<8x8xbf16>
    %cst_147 = arith.constant dense<0.000000e+00> : vector<256x8xf32>
    %173 = tpu.matmul %170, %172, %cst_147 {dimension_numbers = #tpu.dot_dimension_numbers<[1], [0], [0], [1], [0, 0, 1, 1], [], []>} : vector<256x8xbf16>, vector<8x8xbf16>, vector<256x8xf32> -> vector<256x8xf32>
    %174 = arith.addf %167, %173 : vector<256x8xf32>
    %c1_148 = arith.constant 1 : index
    %c2_149 = arith.constant 2 : index
    %c0_150 = arith.constant 0 : index
    %175 = vector.load %arg15[%c1_148, %c2_149, %c0_150] : memref<18x18x8xf32, #tpu.memory_space<vmem>>, vector<16x16x8xf32>
    %176 = vector.shape_cast %175 : vector<16x16x8xf32> to vector<256x8xf32>
    %177 = arith.truncf %176 : vector<256x8xf32> to vector<256x8xbf16>
    %c5_151 = arith.constant 5 : index
    %c0_152 = arith.constant 0 : index
    %c0_153 = arith.constant 0 : index
    %178 = vector.load %arg10[%c5_151, %c0_152, %c0_153] : memref<9x8x8xbf16, #tpu.memory_space<vmem>>, vector<1x8x8xbf16>
    %179 = vector.shape_cast %178 : vector<1x8x8xbf16> to vector<8x8xbf16>
    %cst_154 = arith.constant dense<0.000000e+00> : vector<256x8xf32>
    %180 = tpu.matmul %177, %179, %cst_154 {dimension_numbers = #tpu.dot_dimension_numbers<[1], [0], [0], [1], [0, 0, 1, 1], [], []>} : vector<256x8xbf16>, vector<8x8xbf16>, vector<256x8xf32> -> vector<256x8xf32>
    %181 = arith.addf %174, %180 : vector<256x8xf32>
    %c2_155 = arith.constant 2 : index
    %c0_156 = arith.constant 0 : index
    %c0_157 = arith.constant 0 : index
    %182 = vector.load %arg15[%c2_155, %c0_156, %c0_157] : memref<18x18x8xf32, #tpu.memory_space<vmem>>, vector<16x16x8xf32>
    %183 = vector.shape_cast %182 : vector<16x16x8xf32> to vector<256x8xf32>
    %184 = arith.truncf %183 : vector<256x8xf32> to vector<256x8xbf16>
    %c6_158 = arith.constant 6 : index
    %c0_159 = arith.constant 0 : index
    %c0_160 = arith.constant 0 : index
    %185 = vector.load %arg10[%c6_158, %c0_159, %c0_160] : memref<9x8x8xbf16, #tpu.memory_space<vmem>>, vector<1x8x8xbf16>
    %186 = vector.shape_cast %185 : vector<1x8x8xbf16> to vector<8x8xbf16>
    %cst_161 = arith.constant dense<0.000000e+00> : vector<256x8xf32>
    %187 = tpu.matmul %184, %186, %cst_161 {dimension_numbers = #tpu.dot_dimension_numbers<[1], [0], [0], [1], [0, 0, 1, 1], [], []>} : vector<256x8xbf16>, vector<8x8xbf16>, vector<256x8xf32> -> vector<256x8xf32>
    %188 = arith.addf %181, %187 : vector<256x8xf32>
    %c2_162 = arith.constant 2 : index
    %c1_163 = arith.constant 1 : index
    %c0_164 = arith.constant 0 : index
    %189 = vector.load %arg15[%c2_162, %c1_163, %c0_164] : memref<18x18x8xf32, #tpu.memory_space<vmem>>, vector<16x16x8xf32>
    %190 = vector.shape_cast %189 : vector<16x16x8xf32> to vector<256x8xf32>
    %191 = arith.truncf %190 : vector<256x8xf32> to vector<256x8xbf16>
    %c7_165 = arith.constant 7 : index
    %c0_166 = arith.constant 0 : index
    %c0_167 = arith.constant 0 : index
    %192 = vector.load %arg10[%c7_165, %c0_166, %c0_167] : memref<9x8x8xbf16, #tpu.memory_space<vmem>>, vector<1x8x8xbf16>
    %193 = vector.shape_cast %192 : vector<1x8x8xbf16> to vector<8x8xbf16>
    %cst_168 = arith.constant dense<0.000000e+00> : vector<256x8xf32>
    %194 = tpu.matmul %191, %193, %cst_168 {dimension_numbers = #tpu.dot_dimension_numbers<[1], [0], [0], [1], [0, 0, 1, 1], [], []>} : vector<256x8xbf16>, vector<8x8xbf16>, vector<256x8xf32> -> vector<256x8xf32>
    %195 = arith.addf %188, %194 : vector<256x8xf32>
    %c2_169 = arith.constant 2 : index
    %c2_170 = arith.constant 2 : index
    %c0_171 = arith.constant 0 : index
    %196 = vector.load %arg15[%c2_169, %c2_170, %c0_171] : memref<18x18x8xf32, #tpu.memory_space<vmem>>, vector<16x16x8xf32>
    %197 = vector.shape_cast %196 : vector<16x16x8xf32> to vector<256x8xf32>
    %198 = arith.truncf %197 : vector<256x8xf32> to vector<256x8xbf16>
    %c8_172 = arith.constant 8 : index
    %c0_173 = arith.constant 0 : index
    %c0_174 = arith.constant 0 : index
    %199 = vector.load %arg10[%c8_172, %c0_173, %c0_174] : memref<9x8x8xbf16, #tpu.memory_space<vmem>>, vector<1x8x8xbf16>
    %200 = vector.shape_cast %199 : vector<1x8x8xbf16> to vector<8x8xbf16>
    %cst_175 = arith.constant dense<0.000000e+00> : vector<256x8xf32>
    %201 = tpu.matmul %198, %200, %cst_175 {dimension_numbers = #tpu.dot_dimension_numbers<[1], [0], [0], [1], [0, 0, 1, 1], [], []>} : vector<256x8xbf16>, vector<8x8xbf16>, vector<256x8xf32> -> vector<256x8xf32>
    %202 = arith.addf %195, %201 : vector<256x8xf32>
    %c0_176 = arith.constant 0 : index
    %c0_177 = arith.constant 0 : index
    %c0_178 = arith.constant 0 : index
    %203 = vector.load %arg14[%c0_176, %c0_177, %c0_178] : memref<1x256x8xf32, #tpu.memory_space<vmem>>, vector<1x256x8xf32>
    %204 = vector.shape_cast %203 : vector<1x256x8xf32> to vector<256x8xf32>
    %205 = vector.shape_cast %202 : vector<256x8xf32> to vector<1x256x8xf32>
    tpu.vector_store %arg14[%c0_176, %c0_177, %c0_178], %205 {strides = array<i32>} : memref<1x256x8xf32, #tpu.memory_space<vmem>>, vector<1x256x8xf32>,
    return
  }
  func.func @transform_0(%arg0: i32) -> (i32, i32, i32, i32) {
    %c0_i32 = arith.constant 0 : i32
    %c0_i32_0 = arith.constant 0 : i32
    %c0_i32_1 = arith.constant 0 : i32
    %c0_i32_2 = arith.constant 0 : i32
    return %arg0, %c0_i32, %c0_i32_0, %c0_i32_1 : i32, i32, i32, i32
  }
  func.func @transform_1(%arg0: i32) -> (i32, i32) {
    %c0_i32 = arith.constant 0 : i32
    %c0_i32_0 = arith.constant 0 : i32
    %c0_i32_1 = arith.constant 0 : i32
    return %c0_i32, %c0_i32_0 : i32, i32
  }
  func.func @transform_2(%arg0: i32) -> (i32, i32) {
    %c0_i32 = arith.constant 0 : i32
    %c0_i32_0 = arith.constant 0 : i32
    %c0_i32_1 = arith.constant 0 : i32
    return %c0_i32, %c0_i32_0 : i32, i32
  }
  func.func @transform_3(%arg0: i32) -> (i32, i32) {
    %c0_i32 = arith.constant 0 : i32
    %c0_i32_0 = arith.constant 0 : i32
    %c0_i32_1 = arith.constant 0 : i32
    return %c0_i32, %c0_i32_0 : i32, i32
  }
  func.func @transform_4(%arg0: i32) -> (i32, i32, i32) {
    %c0_i32 = arith.constant 0 : i32
    %c0_i32_0 = arith.constant 0 : i32
    %c0_i32_1 = arith.constant 0 : i32
    %c0_i32_2 = arith.constant 0 : i32
    return %c0_i32, %c0_i32_0, %c0_i32_1 : i32, i32, i32
  }
  func.func @transform_5(%arg0: i32) -> (i32, i32) {
    %c0_i32 = arith.constant 0 : i32
    %c0_i32_0 = arith.constant 0 : i32
    %c0_i32_1 = arith.constant 0 : i32
    return %c0_i32, %c0_i32_0 : i32, i32
  }
  func.func @transform_6(%arg0: i32) -> (i32, i32) {
    %c0_i32 = arith.constant 0 : i32
    %c0_i32_0 = arith.constant 0 : i32
    %c0_i32_1 = arith.constant 0 : i32
    return %c0_i32, %c0_i32_0 : i32, i32
  }
  func.func @transform_7(%arg0: i32) -> (i32, i32) {
    %c0_i32 = arith.constant 0 : i32
    %c0_i32_0 = arith.constant 0 : i32
    %c0_i32_1 = arith.constant 0 : i32
    return %c0_i32, %c0_i32_0 : i32, i32
  }
  func.func @transform_8(%arg0: i32) -> (i32, i32) {
    %c0_i32 = arith.constant 0 : i32
    %c0_i32_0 = arith.constant 0 : i32
    %c0_i32_1 = arith.constant 0 : i32
    return %c0_i32, %c0_i32_0 : i32, i32
  }
  func.func @transform_9(%arg0: i32) -> (i32, i32, i32) {
    %c0_i32 = arith.constant 0 : i32
    %c0_i32_0 = arith.constant 0 : i32
    %c0_i32_1 = arith.constant 0 : i32
    %c0_i32_2 = arith.constant 0 : i32
    return %c0_i32, %c0_i32_0, %c0_i32_1 : i32, i32, i32
  }
  func.func @transform_10(%arg0: i32) -> (i32, i32) {
    %c0_i32 = arith.constant 0 : i32
    %c0_i32_0 = arith.constant 0 : i32
    %c0_i32_1 = arith.constant 0 : i32
    return %c0_i32, %c0_i32_0 : i32, i32
  }
  func.func @transform_11(%arg0: i32) -> (i32, i32) {
    %c0_i32 = arith.constant 0 : i32
    %c0_i32_0 = arith.constant 0 : i32
    %c0_i32_1 = arith.constant 0 : i32
    return %c0_i32, %c0_i32_0 : i32, i32
  }
  func.func @transform_12(%arg0: i32) -> (i32, i32) {
    %c0_i32 = arith.constant 0 : i32
    %c0_i32_0 = arith.constant 0 : i32
    %c0_i32_1 = arith.constant 0 : i32
    return %c0_i32, %c0_i32_0 : i32, i32
  }
  func.func @transform_13(%arg0: i32) -> (i32, i32, i32) {
    %c0_i32 = arith.constant 0 : i32
    %c0_i32_0 = arith.constant 0 : i32
    %c0_i32_1 = arith.constant 0 : i32
    return %arg0, %c0_i32, %c0_i32_0 : i32, i32, i32
  }
}

</mosaic_0001>

<llo_original>
// kernel: tpu_custom_call.1
$region0: #{tpu_custom_call.1}
  #allocation0 [shape = 'u32[]', space=smem, size = 0x4, offset = 0x4, fixed_abs, tag = 'smem constant byte address 0x4 - core index']
  #allocation1 [shape = 'u32[144,128]{1,0:T(1,128)}', space=vmem, size = 0x12000, scoped, tag = 'internal scratch']
  #allocation2 [shape = 'f32[18,18,8]{2,1,0:T(8,128)}', space=vmem, size = 0x36000, scoped, tag = 'scratch operand']
  %s0 = inlined_call_operand.vmem [shape: f32[2,16,16,4], index: 0, kind: input, shape index: {}]
  %s1 = inlined_call_operand.vmem [shape: f32[4,4], index: 1, kind: input, shape index: {}]
  %s2 = inlined_call_operand.vmem [shape: f32[1,4], index: 2, kind: input, shape index: {}]
  %s3 = inlined_call_operand.vmem [shape: f32[1,4], index: 3, kind: input, shape index: {}]
  %s4 = inlined_call_operand.vmem [shape: bf16[9,4,8], index: 4, kind: input, shape index: {}]
  %s5 = inlined_call_operand.vmem [shape: f32[1,8], index: 5, kind: input, shape index: {}]
  %s6 = inlined_call_operand.vmem [shape: f32[8,8], index: 6, kind: input, shape index: {}]
  %s7 = inlined_call_operand.vmem [shape: f32[1,8], index: 7, kind: input, shape index: {}]
  %s8 = inlined_call_operand.vmem [shape: f32[1,8], index: 8, kind: input, shape index: {}]
  %s9 = inlined_call_operand.vmem [shape: bf16[9,8,8], index: 9, kind: input, shape index: {}]
  %s10 = inlined_call_operand.vmem [shape: f32[1,8], index: 10, kind: input, shape index: {}]
  %s11 = inlined_call_operand.vmem [shape: f32[4,8], index: 11, kind: input, shape index: {}]
  %s12 = inlined_call_operand.vmem [shape: f32[1,8], index: 12, kind: input, shape index: {}]
  %s13 = inlined_call_operand.vmem [shape: f32[2,256,8], index: 13, kind: output, shape index: {}]
  %s14 = sld [smem:[#allocation0]]
  $region85: #{tpu_custom_call.1} parent=0
    _
  %s16 = ssub.s32 1, %s14
  %s17 = scalar_select 0, %s16, %s14
  loop: start=0, step=1, limit=4
  $region2: #{tpu_custom_call.1} parent=0 // loop_pre_header
    _
  $region3: #{tpu_custom_call.1} parent=0 // loop_header
    %s19 = sphi 0, %s23
    %p20 = scmp.ge.s32.totalorder %s19, 4
    %s29 = sphi 0, %s31
    %s32 = sphi 0, %s29
    %s33 = sphi 0, %s32
    %s49 = sphi 0, %s33
    %s53 = sphi 0, %s53
    %s55 = sphi 0, %s53
    %s56 = sphi 0, %s55
    %s70 = sphi 0, %s56
    %s74 = sphi 0, %s74
    %s76 = sphi 0, %s74
    %s77 = sphi 0, %s76
    %s91 = sphi 0, %s77
    %s95 = sphi 0, %s95
    %s97 = sphi 0, %s95
    %s98 = sphi 0, %s97
    %s112 = sphi 0, %s98
    %s116 = sphi 0, %s116
    %s118 = sphi 0, %s116
    %s119 = sphi 0, %s118
    %s133 = sphi 0, %s119
    %s137 = sphi 0, %s137
    %s139 = sphi 0, %s137
    %s140 = sphi 0, %s139
    %s154 = sphi 0, %s140
    %s158 = sphi 0, %s158
    %s160 = sphi 0, %s158
    %s161 = sphi 0, %s160
    %s175 = sphi 0, %s161
    %s179 = sphi 0, %s179
    %s181 = sphi 0, %s179
    %s182 = sphi 0, %s181
    %s196 = sphi 0, %s182
    %s200 = sphi 0, %s200
    %s202 = sphi 0, %s200
    %s203 = sphi 0, %s202
    %s217 = sphi 0, %s203
    %s221 = sphi 0, %s221
    %s223 = sphi 0, %s221
    %s224 = sphi 0, %s223
    %s238 = sphi 0, %s224
    %s242 = sphi 0, %s242
    %s244 = sphi 0, %s242
    %s245 = sphi 0, %s244
    %s259 = sphi 0, %s245
    %s263 = sphi 0, %s263
    %s265 = sphi 0, %s263
    %s266 = sphi 0, %s265
    %s280 = sphi 0, %s266
    %s284 = sphi 0, %s284
    %s286 = sphi 0, %s284
    %s287 = sphi 0, %s286
    %s301 = sphi 0, %s287
    %s307 = sphi 0, %s309
    %s310 = sphi 0, %s307
    %s311 = sphi 0, %s310
    %s327 = sphi 0, %s311
  $region4: #{tpu_custom_call.1} parent=0 // loop_header_branch
    %22 = sbr.rel (%p20) target = $region8
  $region5: #{tpu_custom_call.1} parent=0 // loop_body
    %s24 = ssub.s32 %s19, 1
    %s25 = ssub.s32 %s19, 2
    %s26 = sadd.s32 %s19, 1
    %s27 = ssub.s32 %s19, %s26
    %p28 = scmp.eq.s32.totalorder %s27, 0
    %s30 = sadd.s32 %s29, 1
    %s31 = scalar_select %p28, %s29, %s30
    %p34 = pneg %p28
    %p35 = scmp.eq.s32.totalorder %s19, 1
    %p36 = por %p34, %p35
    %p37 = scmp.ne.s32.totalorder %s29, %s32
    %p38 = scmp.eq.s32.totalorder %s19, 0
    %p39 = por %p37, %p38
    %p40 = scmp.ne.s32.totalorder %s29, %s32
    %p41 = scmp.eq.s32.totalorder %s24, 1
    %p42 = por %p40, %p41
    %p43 = scmp.ne.s32.totalorder %s32, %s33
    %p44 = scmp.eq.s32.totalorder %s24, 0
    %p45 = por %p43, %p44
    %p46 = scmp.ne.s32.totalorder %s32, %s33
    %p47 = scmp.eq.s32.totalorder %s25, 1
    %p48 = por %p46, %p47
    %p50 = scmp.ne.s32.totalorder %s33, %s49
    %p51 = scmp.eq.s32.totalorder %s25, 0
    %p52 = por %p50, %p51
    %s54 = sadd.s32 %s53, 1
    %p57 = scmp.eq.s32.totalorder %s19, 1
    %p58 = scmp.ne.s32.totalorder %s53, %s55
    %p59 = scmp.eq.s32.totalorder %s19, 0
    %p60 = por %p58, %p59
    %p61 = scmp.ne.s32.totalorder %s53, %s55
    %p62 = scmp.eq.s32.totalorder %s24, 1
    %p63 = por %p61, %p62
    %p64 = scmp.ne.s32.totalorder %s55, %s56
    %p65 = scmp.eq.s32.totalorder %s24, 0
    %p66 = por %p64, %p65
    %p67 = scmp.ne.s32.totalorder %s55, %s56
    %p68 = scmp.eq.s32.totalorder %s25, 1
    %p69 = por %p67, %p68
    %p71 = scmp.ne.s32.totalorder %s56, %s70
    %p72 = scmp.eq.s32.totalorder %s25, 0
    %p73 = por %p71, %p72
    %s75 = sadd.s32 %s74, 1
    %p78 = scmp.eq.s32.totalorder %s19, 1
    %p79 = scmp.ne.s32.totalorder %s74, %s76
    %p80 = scmp.eq.s32.totalorder %s19, 0
    %p81 = por %p79, %p80
    %p82 = scmp.ne.s32.totalorder %s74, %s76
    %p83 = scmp.eq.s32.totalorder %s24, 1
    %p84 = por %p82, %p83
    %p85 = scmp.ne.s32.totalorder %s76, %s77
    %p86 = scmp.eq.s32.totalorder %s24, 0
    %p87 = por %p85, %p86
    %p88 = scmp.ne.s32.totalorder %s76, %s77
    %p89 = scmp.eq.s32.totalorder %s25, 1
    %p90 = por %p88, %p89
    %p92 = scmp.ne.s32.totalorder %s77, %s91
    %p93 = scmp.eq.s32.totalorder %s25, 0
    %p94 = por %p92, %p93
    %s96 = sadd.s32 %s95, 1
    %p99 = scmp.eq.s32.totalorder %s19, 1
    %p100 = scmp.ne.s32.totalorder %s95, %s97
    %p101 = scmp.eq.s32.totalorder %s19, 0
    %p102 = por %p100, %p101
    %p103 = scmp.ne.s32.totalorder %s95, %s97
    %p104 = scmp.eq.s32.totalorder %s24, 1
    %p105 = por %p103, %p104
    %p106 = scmp.ne.s32.totalorder %s97, %s98
    %p107 = scmp.eq.s32.totalorder %s24, 0
    %p108 = por %p106, %p107
    %p109 = scmp.ne.s32.totalorder %s97, %s98
    %p110 = scmp.eq.s32.totalorder %s25, 1
    %p111 = por %p109, %p110
    %p113 = scmp.ne.s32.totalorder %s98, %s112
    %p114 = scmp.eq.s32.totalorder %s25, 0
    %p115 = por %p113, %p114
    %s117 = sadd.s32 %s116, 1
    %p120 = scmp.eq.s32.totalorder %s19, 1
    %p121 = scmp.ne.s32.totalorder %s116, %s118
    %p122 = scmp.eq.s32.totalorder %s19, 0
    %p123 = por %p121, %p122
    %p124 = scmp.ne.s32.totalorder %s116, %s118
    %p125 = scmp.eq.s32.totalorder %s24, 1
    %p126 = por %p124, %p125
    %p127 = scmp.ne.s32.totalorder %s118, %s119
    %p128 = scmp.eq.s32.totalorder %s24, 0
    %p129 = por %p127, %p128
    %p130 = scmp.ne.s32.totalorder %s118, %s119
    %p131 = scmp.eq.s32.totalorder %s25, 1
    %p132 = por %p130, %p131
    %p134 = scmp.ne.s32.totalorder %s119, %s133
    %p135 = scmp.eq.s32.totalorder %s25, 0
    %p136 = por %p134, %p135
    %s138 = sadd.s32 %s137, 1
    %p141 = scmp.eq.s32.totalorder %s19, 1
    %p142 = scmp.ne.s32.totalorder %s137, %s139
    %p143 = scmp.eq.s32.totalorder %s19, 0
    %p144 = por %p142, %p143
    %p145 = scmp.ne.s32.totalorder %s137, %s139
    %p146 = scmp.eq.s32.totalorder %s24, 1
    %p147 = por %p145, %p146
    %p148 = scmp.ne.s32.totalorder %s139, %s140
    %p149 = scmp.eq.s32.totalorder %s24, 0
    %p150 = por %p148, %p149
    %p151 = scmp.ne.s32.totalorder %s139, %s140
    %p152 = scmp.eq.s32.totalorder %s25, 1
    %p153 = por %p151, %p152
    %p155 = scmp.ne.s32.totalorder %s140, %s154
    %p156 = scmp.eq.s32.totalorder %s25, 0
    %p157 = por %p155, %p156
    %s159 = sadd.s32 %s158, 1
    %p162 = scmp.eq.s32.totalorder %s19, 1
    %p163 = scmp.ne.s32.totalorder %s158, %s160
    %p164 = scmp.eq.s32.totalorder %s19, 0
    %p165 = por %p163, %p164
    %p166 = scmp.ne.s32.totalorder %s158, %s160
    %p167 = scmp.eq.s32.totalorder %s24, 1
    %p168 = por %p166, %p167
    %p169 = scmp.ne.s32.totalorder %s160, %s161
    %p170 = scmp.eq.s32.totalorder %s24, 0
    %p171 = por %p169, %p170
    %p172 = scmp.ne.s32.totalorder %s160, %s161
    %p173 = scmp.eq.s32.totalorder %s25, 1
    %p174 = por %p172, %p173
    %p176 = scmp.ne.s32.totalorder %s161, %s175
    %p177 = scmp.eq.s32.totalorder %s25, 0
    %p178 = por %p176, %p177
    %s180 = sadd.s32 %s179, 1
    %p183 = scmp.eq.s32.totalorder %s19, 1
    %p184 = scmp.ne.s32.totalorder %s179, %s181
    %p185 = scmp.eq.s32.totalorder %s19, 0
    %p186 = por %p184, %p185
    %p187 = scmp.ne.s32.totalorder %s179, %s181
    %p188 = scmp.eq.s32.totalorder %s24, 1
    %p189 = por %p187, %p188
    %p190 = scmp.ne.s32.totalorder %s181, %s182
    %p191 = scmp.eq.s32.totalorder %s24, 0
    %p192 = por %p190, %p191
    %p193 = scmp.ne.s32.totalorder %s181, %s182
    %p194 = scmp.eq.s32.totalorder %s25, 1
    %p195 = por %p193, %p194
    %p197 = scmp.ne.s32.totalorder %s182, %s196
    %p198 = scmp.eq.s32.totalorder %s25, 0
    %p199 = por %p197, %p198
    %s201 = sadd.s32 %s200, 1
    %p204 = scmp.eq.s32.totalorder %s19, 1
    %p205 = scmp.ne.s32.totalorder %s200, %s202
    %p206 = scmp.eq.s32.totalorder %s19, 0
    %p207 = por %p205, %p206
    %p208 = scmp.ne.s32.totalorder %s200, %s202
    %p209 = scmp.eq.s32.totalorder %s24, 1
    %p210 = por %p208, %p209
    %p211 = scmp.ne.s32.totalorder %s202, %s203
    %p212 = scmp.eq.s32.totalorder %s24, 0
    %p213 = por %p211, %p212
    %p214 = scmp.ne.s32.totalorder %s202, %s203
    %p215 = scmp.eq.s32.totalorder %s25, 1
    %p216 = por %p214, %p215
    %p218 = scmp.ne.s32.totalorder %s203, %s217
    %p219 = scmp.eq.s32.totalorder %s25, 0
    %p220 = por %p218, %p219
    %s222 = sadd.s32 %s221, 1
    %p225 = scmp.eq.s32.totalorder %s19, 1
    %p226 = scmp.ne.s32.totalorder %s221, %s223
    %p227 = scmp.eq.s32.totalorder %s19, 0
    %p228 = por %p226, %p227
    %p229 = scmp.ne.s32.totalorder %s221, %s223
    %p230 = scmp.eq.s32.totalorder %s24, 1
    %p231 = por %p229, %p230
    %p232 = scmp.ne.s32.totalorder %s223, %s224
    %p233 = scmp.eq.s32.totalorder %s24, 0
    %p234 = por %p232, %p233
    %p235 = scmp.ne.s32.totalorder %s223, %s224
    %p236 = scmp.eq.s32.totalorder %s25, 1
    %p237 = por %p235, %p236
    %p239 = scmp.ne.s32.totalorder %s224, %s238
    %p240 = scmp.eq.s32.totalorder %s25, 0
    %p241 = por %p239, %p240
    %s243 = sadd.s32 %s242, 1
    %p246 = scmp.eq.s32.totalorder %s19, 1
    %p247 = scmp.ne.s32.totalorder %s242, %s244
    %p248 = scmp.eq.s32.totalorder %s19, 0
    %p249 = por %p247, %p248
    %p250 = scmp.ne.s32.totalorder %s242, %s244
    %p251 = scmp.eq.s32.totalorder %s24, 1
    %p252 = por %p250, %p251
    %p253 = scmp.ne.s32.totalorder %s244, %s245
    %p254 = scmp.eq.s32.totalorder %s24, 0
    %p255 = por %p253, %p254
    %p256 = scmp.ne.s32.totalorder %s244, %s245
    %p257 = scmp.eq.s32.totalorder %s25, 1
    %p258 = por %p256, %p257
    %p260 = scmp.ne.s32.totalorder %s245, %s259
    %p261 = scmp.eq.s32.totalorder %s25, 0
    %p262 = por %p260, %p261
    %s264 = sadd.s32 %s263, 1
    %p267 = scmp.eq.s32.totalorder %s19, 1
    %p268 = scmp.ne.s32.totalorder %s263, %s265
    %p269 = scmp.eq.s32.totalorder %s19, 0
    %p270 = por %p268, %p269
    %p271 = scmp.ne.s32.totalorder %s263, %s265
    %p272 = scmp.eq.s32.totalorder %s24, 1
    %p273 = por %p271, %p272
    %p274 = scmp.ne.s32.totalorder %s265, %s266
    %p275 = scmp.eq.s32.totalorder %s24, 0
    %p276 = por %p274, %p275
    %p277 = scmp.ne.s32.totalorder %s265, %s266
    %p278 = scmp.eq.s32.totalorder %s25, 1
    %p279 = por %p277, %p278
    %p281 = scmp.ne.s32.totalorder %s266, %s280
    %p282 = scmp.eq.s32.totalorder %s25, 0
    %p283 = por %p281, %p282
    %s285 = sadd.s32 %s284, 1
    %p288 = scmp.eq.s32.totalorder %s19, 1
    %p289 = scmp.ne.s32.totalorder %s284, %s286
    %p290 = scmp.eq.s32.totalorder %s19, 0
    %p291 = por %p289, %p290
    %p292 = scmp.ne.s32.totalorder %s284, %s286
    %p293 = scmp.eq.s32.totalorder %s24, 1
    %p294 = por %p292, %p293
    %p295 = scmp.ne.s32.totalorder %s286, %s287
    %p296 = scmp.eq.s32.totalorder %s24, 0
    %p297 = por %p295, %p296
    %p298 = scmp.ne.s32.totalorder %s286, %s287
    %p299 = scmp.eq.s32.totalorder %s25, 1
    %p300 = por %p298, %p299
    %p302 = scmp.ne.s32.totalorder %s287, %s301
    %p303 = scmp.eq.s32.totalorder %s25, 0
    %p304 = por %p302, %p303
    %s305 = ssub.s32 %s19, %s26
    %p306 = scmp.eq.s32.totalorder %s305, 0
    %s308 = sadd.s32 %s307, 1
    %s309 = scalar_select %p306, %s307, %s308
    %p312 = pneg %p306
    %p313 = scmp.eq.s32.totalorder %s19, 1
    %p314 = por %p312, %p313
    %p315 = scmp.ne.s32.totalorder %s307, %s310
    %p316 = scmp.eq.s32.totalorder %s19, 0
    %p317 = por %p315, %p316
    %p318 = scmp.ne.s32.totalorder %s307, %s310
    %p319 = scmp.eq.s32.totalorder %s24, 1
    %p320 = por %p318, %p319
    %p321 = scmp.ne.s32.totalorder %s310, %s311
    %p322 = scmp.eq.s32.totalorder %s24, 0
    %p323 = por %p321, %p322
    %p324 = scmp.ne.s32.totalorder %s310, %s311
    %p325 = scmp.eq.s32.totalorder %s25, 1
    %p326 = por %p324, %p325
    %p328 = scmp.ne.s32.totalorder %s311, %s327
    %p329 = scmp.eq.s32.totalorder %s25, 0
    %p330 = por %p328, %p329
    %p331 = scmp.le.s32.totalorder 1, %s19
    %p332 = scmp.lt.s32.totalorder %s19, 3
    %p333 = pnand %p331, %p332
    %p334 = pneg %p333
    // Predicated region
    $region9: #{tpu_custom_call.1} parent=5 // pred_check
      _
    $region10: #{tpu_custom_call.1} parent=5 // pred_check_branch
      %336 = sbr.rel (%p333) target = $region12
    $region11: #{tpu_custom_call.1} parent=5 // pred_region
      %s337 = ssub.s32 %s19, 1
      // Predicated region
      $region13: #{tpu_custom_call.1} parent=11 // pred_check
        %p338 = pneg %p66
      $region14: #{tpu_custom_call.1} parent=11 // pred_check_branch
        %340 = sbr.rel (%p338) target = $region16
      $region15: #{tpu_custom_call.1} parent=11 // pred_region
        _
      $region16: #{tpu_custom_call.1} parent=11 // pred_fallthru
        _
      // Predicated region
      $region17: #{tpu_custom_call.1} parent=11 // pred_check
        %p341 = pneg %p87
      $region18: #{tpu_custom_call.1} parent=11 // pred_check_branch
        %343 = sbr.rel (%p341) target = $region20
      $region19: #{tpu_custom_call.1} parent=11 // pred_region
        _
      $region20: #{tpu_custom_call.1} parent=11 // pred_fallthru
        _
      // Predicated region
      $region21: #{tpu_custom_call.1} parent=11 // pred_check
        %p344 = pneg %p108
      $region22: #{tpu_custom_call.1} parent=11 // pred_check_branch
        %346 = sbr.rel (%p344) target = $region24
      $region23: #{tpu_custom_call.1} parent=11 // pred_region
        _
      $region24: #{tpu_custom_call.1} parent=11 // pred_fallthru
        _
      // Predicated region
      $region25: #{tpu_custom_call.1} parent=11 // pred_check
        %p347 = pneg %p129
      $region26: #{tpu_custom_call.1} parent=11 // pred_check_branch
        %349 = sbr.rel (%p347) target = $region28
      $region27: #{tpu_custom_call.1} parent=11 // pred_region
        _
      $region28: #{tpu_custom_call.1} parent=11 // pred_fallthru
        _
      // Predicated region
      $region29: #{tpu_custom_call.1} parent=11 // pred_check
        %p350 = pneg %p150
      $region30: #{tpu_custom_call.1} parent=11 // pred_check_branch
        %352 = sbr.rel (%p350) target = $region32
      $region31: #{tpu_custom_call.1} parent=11 // pred_region
        _
      $region32: #{tpu_custom_call.1} parent=11 // pred_fallthru
        _
      // Predicated region
      $region33: #{tpu_custom_call.1} parent=11 // pred_check
        %p353 = pneg %p171
      $region34: #{tpu_custom_call.1} parent=11 // pred_check_branch
        %355 = sbr.rel (%p353) target = $region36
      $region35: #{tpu_custom_call.1} parent=11 // pred_region
        _
      $region36: #{tpu_custom_call.1} parent=11 // pred_fallthru
        _
      // Predicated region
      $region37: #{tpu_custom_call.1} parent=11 // pred_check
        %p356 = pneg %p192
      $region38: #{tpu_custom_call.1} parent=11 // pred_check_branch
        %358 = sbr.rel (%p356) target = $region40
      $region39: #{tpu_custom_call.1} parent=11 // pred_region
        _
      $region40: #{tpu_custom_call.1} parent=11 // pred_fallthru
        _
      // Predicated region
      $region41: #{tpu_custom_call.1} parent=11 // pred_check
        %p359 = pneg %p213
      $region42: #{tpu_custom_call.1} parent=11 // pred_check_branch
        %361 = sbr.rel (%p359) target = $region44
      $region43: #{tpu_custom_call.1} parent=11 // pred_region
        _
      $region44: #{tpu_custom_call.1} parent=11 // pred_fallthru
        _
      // Predicated region
      $region45: #{tpu_custom_call.1} parent=11 // pred_check
        %p362 = pneg %p234
      $region46: #{tpu_custom_call.1} parent=11 // pred_check_branch
        %364 = sbr.rel (%p362) target = $region48
      $region47: #{tpu_custom_call.1} parent=11 // pred_region
        _
      $region48: #{tpu_custom_call.1} parent=11 // pred_fallthru
        _
      // Predicated region
      $region49: #{tpu_custom_call.1} parent=11 // pred_check
        %p365 = pneg %p255
      $region50: #{tpu_custom_call.1} parent=11 // pred_check_branch
        %367 = sbr.rel (%p365) target = $region52
      $region51: #{tpu_custom_call.1} parent=11 // pred_region
        _
      $region52: #{tpu_custom_call.1} parent=11 // pred_fallthru
        _
      // Predicated region
      $region53: #{tpu_custom_call.1} parent=11 // pred_check
        %p368 = pneg %p276
      $region54: #{tpu_custom_call.1} parent=11 // pred_check_branch
        %370 = sbr.rel (%p368) target = $region56
      $region55: #{tpu_custom_call.1} parent=11 // pred_region
        _
      $region56: #{tpu_custom_call.1} parent=11 // pred_fallthru
        _
      // Predicated region
      $region57: #{tpu_custom_call.1} parent=11 // pred_check
        %p371 = pneg %p297
      $region58: #{tpu_custom_call.1} parent=11 // pred_check_branch
        %373 = sbr.rel (%p371) target = $region60
      $region59: #{tpu_custom_call.1} parent=11 // pred_region
        _
      $region60: #{tpu_custom_call.1} parent=11 // pred_fallthru
        _
    $region12: #{tpu_custom_call.1} parent=5 // pred_fallthru
      _
    %p374 = scmp.lt.s32.totalorder %s19, 2
    // Predicated region
    $region61: #{tpu_custom_call.1} parent=5 // pred_check
      %p375 = pneg %p374
    $region62: #{tpu_custom_call.1} parent=5 // pred_check_branch
      %377 = sbr.rel (%p375) target = $region64
    $region63: #{tpu_custom_call.1} parent=5 // pred_region
      // Predicated region
      $region65: #{tpu_custom_call.1} parent=63 // pred_check
        %p378 = pneg %p39
      $region66: #{tpu_custom_call.1} parent=63 // pred_check_branch
        %380 = sbr.rel (%p378) target = $region68
      $region67: #{tpu_custom_call.1} parent=63 // pred_region
        %p381 = scmp.lt.s32.totalorder %s19, 1
        %s382 = scalar_select %p381, %s19, 1
        %s383 = smul.addr %s382, 32
        %s384 = smul.addr %s383, 8
        %s385 = scalar_lea.vmem %s0, %s384
      $region68: #{tpu_custom_call.1} parent=63 // pred_fallthru
        _
    $region64: #{tpu_custom_call.1} parent=5 // pred_fallthru
      _
    %p386 = scmp.le.s32.totalorder 1, %s19
    %p387 = scmp.lt.s32.totalorder %s19, 3
    %p388 = pnand %p386, %p387
    %p389 = pneg %p388
    // Predicated region
    $region69: #{tpu_custom_call.1} parent=5 // pred_check
      _
    $region70: #{tpu_custom_call.1} parent=5 // pred_check_branch
      %391 = sbr.rel (%p388) target = $region72
    $region71: #{tpu_custom_call.1} parent=5 // pred_region
      %s392 = ssub.s32 %s19, 1
      %p393 = scmp.lt.s32.totalorder %s24, 1
      %s394 = scalar_select %p393, %s24, 1
      %s395 = smul.addr %s394, 32
      %s396 = smul.addr %s395, 8
      %s397 = scalar_lea.vmem %s0, %s396
      %p398 = pneg %p45
      %p399 = pneg %p42
      %p400 = pneg %p66
      %p401 = pneg %p63
      %p402 = pneg %p87
      %p403 = pneg %p84
      %p404 = pneg %p108
      %p405 = pneg %p105
      %p406 = pneg %p129
      %p407 = pneg %p126
      %p408 = pneg %p150
      %p409 = pneg %p147
      %p410 = pneg %p171
      %p411 = pneg %p168
      %p412 = pneg %p192
      %p413 = pneg %p189
      %p414 = pneg %p213
      %p415 = pneg %p210
      %p416 = pneg %p234
      %p417 = pneg %p231
      %p418 = pneg %p255
      %p419 = pneg %p252
      %p420 = pneg %p276
      %p421 = pneg %p273
      %p422 = pneg %p297
      %p423 = pneg %p294
      %p424 = pneg %p323
      %p425 = pneg %p320
      %p426 = scmp.lt.s32.totalorder %s24, 1
      %s427 = scalar_select %p426, %s24, 1
      %s428 = smul.addr %s427, 32
      %s429 = smul.addr %s428, 8
      %s430 = scalar_lea.vmem %s13, %s429
      %p431 = scmp.lt.s32.totalorder %s24, 1
      %s432 = scalar_select %p431, %s24, 1
      %s433 = smul.addr %s432, 32
      %s434 = smul.addr %s433, 8
      %s435 = scalar_lea.vmem %s0, %s434
      %p436 = scmp.lt.s32.totalorder %s24, 1
      %s437 = scalar_select %p436, %s24, 1
      %s438 = smul.addr %s437, 32
      %s439 = smul.addr %s438, 8
      %s440 = scalar_lea.vmem %s13, %s439
      %vm442 = vcmask 64512
      %443 = vst.msk [vmem:[#allocation2] sm:$0xff] %vm442, 0.0
      %444 = vst.msk [vmem:[#allocation2 + $0x8] sm:$0xff] %vm442, 0.0
      %vm445 = vcmask 58368
      %446 = vst.msk [vmem:[#allocation2 + $0x10] sm:$0x3] %vm445, 0.0
      %s447 = scalar_lea.vmem [#allocation2], 408
      %448 = vst.msk [vmem:[%s447] sm:$0xff] %vm442, 0.0
      %449 = vst.msk [vmem:[%s447 + $0x8] sm:$0xff] %vm442, 0.0
      %450 = vst.msk [vmem:[%s447 + $0x10] sm:$0x3] %vm445, 0.0
      %s451 = scalar_lea.vmem [#allocation2], 24
      %vm452 = vcmask 57344
      %453 = vst.msk [vmem:[%s451] sm:$0x1] %vm452, 0.0
      %454 = vst.msk [vmem:[%s451 + $0x18] sm:$0x1] %vm452, 0.0
      %455 = vst.msk [vmem:[%s451 + $0x30] sm:$0x1] %vm452, 0.0
      %456 = vst.msk [vmem:[%s451 + $0x48] sm:$0x1] %vm452, 0.0
      %457 = vst.msk [vmem:[%s451 + $0x60] sm:$0x1] %vm452, 0.0
      %458 = vst.msk [vmem:[%s451 + $0x78] sm:$0x1] %vm452, 0.0
      %459 = vst.msk [vmem:[%s451 + $0x90] sm:$0x1] %vm452, 0.0
      %460 = vst.msk [vmem:[%s451 + $0xa8] sm:$0x1] %vm452, 0.0
      %461 = vst.msk [vmem:[%s451 + $0xc0] sm:$0x1] %vm452, 0.0
      %462 = vst.msk [vmem:[%s451 + $0xd8] sm:$0x1] %vm452, 0.0
      %463 = vst.msk [vmem:[%s451 + $0xf0] sm:$0x1] %vm452, 0.0
      %464 = vst.msk [vmem:[%s451 + $0x108] sm:$0x1] %vm452, 0.0
      %465 = vst.msk [vmem:[%s451 + $0x120] sm:$0x1] %vm452, 0.0
      %466 = vst.msk [vmem:[%s451 + $0x138] sm:$0x1] %vm452, 0.0
      %467 = vst.msk [vmem:[%s451 + $0x150] sm:$0x1] %vm452, 0.0
      %468 = vst.msk [vmem:[%s451 + $0x168] sm:$0x1] %vm452, 0.0
      %469 = vst.msk [vmem:[%s451 + $0x11] sm:$0x1] %vm452, 0.0
      %470 = vst.msk [vmem:[%s451 + $0x29] sm:$0x1] %vm452, 0.0
      %471 = vst.msk [vmem:[%s451 + $0x41] sm:$0x1] %vm452, 0.0
      %472 = vst.msk [vmem:[%s451 + $0x59] sm:$0x1] %vm452, 0.0
      %473 = vst.msk [vmem:[%s451 + $0x71] sm:$0x1] %vm452, 0.0
      %474 = vst.msk [vmem:[%s451 + $0x89] sm:$0x1] %vm452, 0.0
      %475 = vst.msk [vmem:[%s451 + $0xa1] sm:$0x1] %vm452, 0.0
      %476 = vst.msk [vmem:[%s451 + $0xb9] sm:$0x1] %vm452, 0.0
      %477 = vst.msk [vmem:[%s451 + $0xd1] sm:$0x1] %vm452, 0.0
      %478 = vst.msk [vmem:[%s451 + $0xe9] sm:$0x1] %vm452, 0.0
      %479 = vst.msk [vmem:[%s451 + $0x101] sm:$0x1] %vm452, 0.0
      %480 = vst.msk [vmem:[%s451 + $0x119] sm:$0x1] %vm452, 0.0
      %481 = vst.msk [vmem:[%s451 + $0x131] sm:$0x1] %vm452, 0.0
      %482 = vst.msk [vmem:[%s451 + $0x149] sm:$0x1] %vm452, 0.0
      %483 = vst.msk [vmem:[%s451 + $0x161] sm:$0x1] %vm452, 0.0
      %484 = vst.msk [vmem:[%s451 + $0x179] sm:$0x1] %vm452, 0.0
      %v485 = vld [vmem:[%s435] sm:$0xff]
      %v486 = vld [vmem:[%s435 + $0x8] sm:$0xff]
      %v487 = vld [vmem:[%s435 + $0x10] sm:$0xff]
      %v488 = vld [vmem:[%s435 + $0x18] sm:$0xff]
      %v489 = vld [vmem:[%s435 + $0x20] sm:$0xff]
      %v490 = vld [vmem:[%s435 + $0x28] sm:$0xff]
      %v491 = vld [vmem:[%s435 + $0x30] sm:$0xff]
      %v492 = vld [vmem:[%s435 + $0x38] sm:$0xff]
      %v493 = vld [vmem:[%s435 + $0x40] sm:$0xff]
      %v494 = vld [vmem:[%s435 + $0x48] sm:$0xff]
      %v495 = vld [vmem:[%s435 + $0x50] sm:$0xff]
      %v496 = vld [vmem:[%s435 + $0x58] sm:$0xff]
      %v497 = vld [vmem:[%s435 + $0x60] sm:$0xff]
      %v498 = vld [vmem:[%s435 + $0x68] sm:$0xff]
      %v499 = vld [vmem:[%s435 + $0x70] sm:$0xff]
      %v500 = vld [vmem:[%s435 + $0x78] sm:$0xff]
      %v501 = vld [vmem:[%s435 + $0x80] sm:$0xff]
      %v502 = vld [vmem:[%s435 + $0x88] sm:$0xff]
      %v503 = vld [vmem:[%s435 + $0x90] sm:$0xff]
      %v504 = vld [vmem:[%s435 + $0x98] sm:$0xff]
      %v505 = vld [vmem:[%s435 + $0xa0] sm:$0xff]
      %v506 = vld [vmem:[%s435 + $0xa8] sm:$0xff]
      %v507 = vld [vmem:[%s435 + $0xb0] sm:$0xff]
      %v508 = vld [vmem:[%s435 + $0xb8] sm:$0xff]
      %v509 = vld [vmem:[%s435 + $0xc0] sm:$0xff]
      %v510 = vld [vmem:[%s435 + $0xc8] sm:$0xff]
      %v511 = vld [vmem:[%s435 + $0xd0] sm:$0xff]
      %v512 = vld [vmem:[%s435 + $0xd8] sm:$0xff]
      %v513 = vld [vmem:[%s435 + $0xe0] sm:$0xff]
      %v514 = vld [vmem:[%s435 + $0xe8] sm:$0xff]
      %v515 = vld [vmem:[%s435 + $0xf0] sm:$0xff]
      %v516 = vld [vmem:[%s435 + $0xf8] sm:$0xff]
      %v517 = vld [vmem:[%s11] sm:$0xf]
      %v518 = vld [vmem:[%s12] sm:$0x1]
      %v520 = vlaneseq
      %v521 = vshrl.u32 %v520, 7
      %v522 = vsub.s32 0, %v521
      %v523 = vrot.slane %v518, %v522
      %vm525 = vcmask 31744
      %v527 = vsel %vm525, %v485, 0
      %v530 = vsel %vm525, %v486, 0
      %v533 = vsel %vm525, %v487, 0
      %v536 = vsel %vm525, %v488, 0
      %v539 = vsel %vm525, %v489, 0
      %v542 = vsel %vm525, %v490, 0
      %v545 = vsel %vm525, %v491, 0
      %v548 = vsel %vm525, %v492, 0
      %v551 = vsel %vm525, %v493, 0
      %v554 = vsel %vm525, %v494, 0
      %v557 = vsel %vm525, %v495, 0
      %v560 = vsel %vm525, %v496, 0
      %v563 = vsel %vm525, %v497, 0
      %v566 = vsel %vm525, %v498, 0
      %v569 = vsel %vm525, %v499, 0
      %v572 = vsel %vm525, %v500, 0
      %v575 = vsel %vm525, %v501, 0
      %v578 = vsel %vm525, %v502, 0
      %v581 = vsel %vm525, %v503, 0
      %v584 = vsel %vm525, %v504, 0
      %v587 = vsel %vm525, %v505, 0
      %v590 = vsel %vm525, %v506, 0
      %v593 = vsel %vm525, %v507, 0
      %v596 = vsel %vm525, %v508, 0
      %v599 = vsel %vm525, %v509, 0
      %v602 = vsel %vm525, %v510, 0
      %v605 = vsel %vm525, %v511, 0
      %v608 = vsel %vm525, %v512, 0
      %v611 = vsel %vm525, %v513, 0
      %v614 = vsel %vm525, %v514, 0
      %v617 = vsel %vm525, %v515, 0
      %v620 = vsel %vm525, %v516, 0
      %vm622 = vcmask 1043456
      %v624 = vsel %vm622, %v517, 0
      %626 = vmatprep.subr.mxu0 0.0
      %627 = vmatpush1.msra.mxu0 0.0
      %628 = vmatprep.subr.mxu0 0.0
      %629 = vmatpush1.msra.mxu0 0.0
      %630 = vmatprep.subr.mxu0 0.0
      %631 = vmatpush1.msra.mxu0 0.0
      %632 = vmatprep.subr.mxu0 0.0
      %633 = vmatpush1.msra.mxu0 0.0
      %634 = vmatprep.subr.mxu0 0.0
      %635 = vmatpush1.msra.mxu0 0.0
      %636 = vmatprep.subr.mxu0 0.0
      %637 = vmatpush1.msra.mxu0 0.0
      %638 = vmatprep.subr.mxu0 0.0
      %639 = vmatpush1.msra.mxu0 0.0
      %640 = vmatprep.subr.mxu0 0.0
      %641 = vmatpush1.msra.mxu0 0.0
      %642 = vmatprep.subr.mxu0 0.0
      %643 = vmatpush1.msra.mxu0 0.0
      %644 = vmatprep.subr.mxu0 0.0
      %645 = vmatpush1.msra.mxu0 0.0
      %646 = vmatprep.subr.mxu0 0.0
      %647 = vmatpush1.msra.mxu0 0.0
      %648 = vmatprep.subr.mxu0 0.0
      %649 = vmatpush1.msra.mxu0 0.0
      %650 = vmatprep.subr.mxu0 0.0
      %651 = vmatpush1.msra.mxu0 0.0
      %652 = vmatprep.subr.mxu0 0.0
      %653 = vmatpush1.msra.mxu0 0.0
      %654 = vmatprep.subr.mxu0 0.0
      %655 = vmatpush1.msra.mxu0 0.0
      %656 = vmatprep.subr.mxu0 0.0
      %657 = vmatpush1.msra.mxu0 %v624
      %658 = vmatprep.subr.mxu0 0.0
      %659 = vmatpush2.msra.mxu0 0.0
      %660 = vmatprep.subr.mxu0 0.0
      %661 = vmatpush2.msra.mxu0 0.0
      %662 = vmatprep.subr.mxu0 0.0
      %663 = vmatpush2.msra.mxu0 0.0
      %664 = vmatprep.subr.mxu0 0.0
      %665 = vmatpush2.msra.mxu0 0.0
      %666 = vmatprep.subr.mxu0 0.0
      %667 = vmatpush2.msra.mxu0 0.0
      %668 = vmatprep.subr.mxu0 0.0
      %669 = vmatpush2.msra.mxu0 0.0
      %670 = vmatprep.subr.mxu0 0.0
      %671 = vmatpush2.msra.mxu0 0.0
      %672 = vmatprep.subr.mxu0 0.0
      %673 = vmatpush2.msra.mxu0 0.0
      %674 = vmatprep.subr.mxu0 0.0
      %675 = vmatpush2.msra.mxu0 0.0
      %676 = vmatprep.subr.mxu0 0.0
      %677 = vmatpush2.msra.mxu0 0.0
      %678 = vmatprep.subr.mxu0 0.0
      %679 = vmatpush2.msra.mxu0 0.0
      %680 = vmatprep.subr.mxu0 0.0
      %681 = vmatpush2.msra.mxu0 0.0
      %682 = vmatprep.subr.mxu0 0.0
      %683 = vmatpush2.msra.mxu0 0.0
      %684 = vmatprep.subr.mxu0 0.0
      %685 = vmatpush2.msra.mxu0 0.0
      %686 = vmatprep.subr.mxu0 0.0
      %687 = vmatpush2.msra.mxu0 0.0
      %688 = vmatprep.subr.mxu0 0.0
      %689 = vmatpush2.msra.mxu0 0.0
      %690 = vmatprep.mubr.f32.mxu0 0.0
      %691 = vmatmul.mubr.f32.gmra.mxu0 %v527
      %v692 = vpop.f32.mrf.mxu0
      %v693 = vadd.f32 %v523, %v692
      %v694 = vpop.f32.mrf.mxu0
      %695 = vmatprep.mubr.f32.mxu0 0.0
      %696 = vmatmul.mubr.f32.gmra.mxu0 %v530
      %v697 = vpop.f32.mrf.mxu0
      %v698 = vadd.f32 %v523, %v697
      %v699 = vpop.f32.mrf.mxu0
      %700 = vmatprep.mubr.f32.mxu0 0.0
      %701 = vmatmul.mubr.f32.gmra.mxu0 %v533
      %v702 = vpop.f32.mrf.mxu0
      %v703 = vadd.f32 %v523, %v702
      %v704 = vpop.f32.mrf.mxu0
      %705 = vmatprep.mubr.f32.mxu0 0.0
      %706 = vmatmul.mubr.f32.gmra.mxu0 %v536
      %v707 = vpop.f32.mrf.mxu0
      %v708 = vadd.f32 %v523, %v707
      %v709 = vpop.f32.mrf.mxu0
      %710 = vmatprep.mubr.f32.mxu0 0.0
      %711 = vmatmul.mubr.f32.gmra.mxu0 %v539
      %v712 = vpop.f32.mrf.mxu0
      %v713 = vadd.f32 %v523, %v712
      %v714 = vpop.f32.mrf.mxu0
      %715 = vmatprep.mubr.f32.mxu0 0.0
      %716 = vmatmul.mubr.f32.gmra.mxu0 %v542
      %v717 = vpop.f32.mrf.mxu0
      %v718 = vadd.f32 %v523, %v717
      %v719 = vpop.f32.mrf.mxu0
      %720 = vmatprep.mubr.f32.mxu0 0.0
      %721 = vmatmul.mubr.f32.gmra.mxu0 %v545
      %v722 = vpop.f32.mrf.mxu0
      %v723 = vadd.f32 %v523, %v722
      %v724 = vpop.f32.mrf.mxu0
      %725 = vmatprep.mubr.f32.mxu0 0.0
      %726 = vmatmul.mubr.f32.gmra.mxu0 %v548
      %v727 = vpop.f32.mrf.mxu0
      %v728 = vadd.f32 %v523, %v727
      %v729 = vpop.f32.mrf.mxu0
      %730 = vmatprep.mubr.f32.mxu0 0.0
      %731 = vmatmul.mubr.f32.gmra.mxu0 %v551
      %v732 = vpop.f32.mrf.mxu0
      %v733 = vadd.f32 %v523, %v732
      %v734 = vpop.f32.mrf.mxu0
      %735 = vmatprep.mubr.f32.mxu0 0.0
      %736 = vmatmul.mubr.f32.gmra.mxu0 %v554
      %v737 = vpop.f32.mrf.mxu0
      %v738 = vadd.f32 %v523, %v737
      %v739 = vpop.f32.mrf.mxu0
      %740 = vmatprep.mubr.f32.mxu0 0.0
      %741 = vmatmul.mubr.f32.gmra.mxu0 %v557
      %v742 = vpop.f32.mrf.mxu0
      %v743 = vadd.f32 %v523, %v742
      %v744 = vpop.f32.mrf.mxu0
      %745 = vmatprep.mubr.f32.mxu0 0.0
      %746 = vmatmul.mubr.f32.gmra.mxu0 %v560
      %v747 = vpop.f32.mrf.mxu0
      %v748 = vadd.f32 %v523, %v747
      %v749 = vpop.f32.mrf.mxu0
      %750 = vmatprep.mubr.f32.mxu0 0.0
      %751 = vmatmul.mubr.f32.gmra.mxu0 %v563
      %v752 = vpop.f32.mrf.mxu0
      %v753 = vadd.f32 %v523, %v752
      %v754 = vpop.f32.mrf.mxu0
      %755 = vmatprep.mubr.f32.mxu0 0.0
      %756 = vmatmul.mubr.f32.gmra.mxu0 %v566
      %v757 = vpop.f32.mrf.mxu0
      %v758 = vadd.f32 %v523, %v757
      %v759 = vpop.f32.mrf.mxu0
      %760 = vmatprep.mubr.f32.mxu0 0.0
      %761 = vmatmul.mubr.f32.gmra.mxu0 %v569
      %v762 = vpop.f32.mrf.mxu0
      %v763 = vadd.f32 %v523, %v762
      %v764 = vpop.f32.mrf.mxu0
      %765 = vmatprep.mubr.f32.mxu0 0.0
      %766 = vmatmul.mubr.f32.gmra.mxu0 %v572
      %v767 = vpop.f32.mrf.mxu0
      %v768 = vadd.f32 %v523, %v767
      %v769 = vpop.f32.mrf.mxu0
      %770 = vmatprep.mubr.f32.mxu0 0.0
      %771 = vmatmul.mubr.f32.gmra.mxu0 %v575
      %v772 = vpop.f32.mrf.mxu0
      %v773 = vadd.f32 %v523, %v772
      %v774 = vpop.f32.mrf.mxu0
      %775 = vmatprep.mubr.f32.mxu0 0.0
      %776 = vmatmul.mubr.f32.gmra.mxu0 %v578
      %v777 = vpop.f32.mrf.mxu0
      %v778 = vadd.f32 %v523, %v777
      %v779 = vpop.f32.mrf.mxu0
      %780 = vmatprep.mubr.f32.mxu0 0.0
      %781 = vmatmul.mubr.f32.gmra.mxu0 %v581
      %v782 = vpop.f32.mrf.mxu0
      %v783 = vadd.f32 %v523, %v782
      %v784 = vpop.f32.mrf.mxu0
      %785 = vmatprep.mubr.f32.mxu0 0.0
      %786 = vmatmul.mubr.f32.gmra.mxu0 %v584
      %v787 = vpop.f32.mrf.mxu0
      %v788 = vadd.f32 %v523, %v787
      %v789 = vpop.f32.mrf.mxu0
      %790 = vmatprep.mubr.f32.mxu0 0.0
      %791 = vmatmul.mubr.f32.gmra.mxu0 %v587
      %v792 = vpop.f32.mrf.mxu0
      %v793 = vadd.f32 %v523, %v792
      %v794 = vpop.f32.mrf.mxu0
      %795 = vmatprep.mubr.f32.mxu0 0.0
      %796 = vmatmul.mubr.f32.gmra.mxu0 %v590
      %v797 = vpop.f32.mrf.mxu0
      %v798 = vadd.f32 %v523, %v797
      %v799 = vpop.f32.mrf.mxu0
      %800 = vmatprep.mubr.f32.mxu0 0.0
      %801 = vmatmul.mubr.f32.gmra.mxu0 %v593
      %v802 = vpop.f32.mrf.mxu0
      %v803 = vadd.f32 %v523, %v802
      %v804 = vpop.f32.mrf.mxu0
      %805 = vmatprep.mubr.f32.mxu0 0.0
      %806 = vmatmul.mubr.f32.gmra.mxu0 %v596
      %v807 = vpop.f32.mrf.mxu0
      %v808 = vadd.f32 %v523, %v807
      %v809 = vpop.f32.mrf.mxu0
      %810 = vmatprep.mubr.f32.mxu0 0.0
      %811 = vmatmul.mubr.f32.gmra.mxu0 %v599
      %v812 = vpop.f32.mrf.mxu0
      %v813 = vadd.f32 %v523, %v812
      %v814 = vpop.f32.mrf.mxu0
      %815 = vmatprep.mubr.f32.mxu0 0.0
      %816 = vmatmul.mubr.f32.gmra.mxu0 %v602
      %v817 = vpop.f32.mrf.mxu0
      %v818 = vadd.f32 %v523, %v817
      %v819 = vpop.f32.mrf.mxu0
      %820 = vmatprep.mubr.f32.mxu0 0.0
      %821 = vmatmul.mubr.f32.gmra.mxu0 %v605
      %v822 = vpop.f32.mrf.mxu0
      %v823 = vadd.f32 %v523, %v822
      %v824 = vpop.f32.mrf.mxu0
      %825 = vmatprep.mubr.f32.mxu0 0.0
      %826 = vmatmul.mubr.f32.gmra.mxu0 %v608
      %v827 = vpop.f32.mrf.mxu0
      %v828 = vadd.f32 %v523, %v827
      %v829 = vpop.f32.mrf.mxu0
      %830 = vmatprep.mubr.f32.mxu0 0.0
      %831 = vmatmul.mubr.f32.gmra.mxu0 %v611
      %v832 = vpop.f32.mrf.mxu0
      %v833 = vadd.f32 %v523, %v832
      %v834 = vpop.f32.mrf.mxu0
      %835 = vmatprep.mubr.f32.mxu0 0.0
      %836 = vmatmul.mubr.f32.gmra.mxu0 %v614
      %v837 = vpop.f32.mrf.mxu0
      %v838 = vadd.f32 %v523, %v837
      %v839 = vpop.f32.mrf.mxu0
      %840 = vmatprep.mubr.f32.mxu0 0.0
      %841 = vmatmul.mubr.f32.gmra.mxu0 %v617
      %v842 = vpop.f32.mrf.mxu0
      %v843 = vadd.f32 %v523, %v842
      %v844 = vpop.f32.mrf.mxu0
      %845 = vmatprep.mubr.f32.mxu0 0.0
      %846 = vmatmul.mubr.f32.gmra.mxu0 %v620
      %v847 = vpop.f32.mrf.mxu0
      %v848 = vadd.f32 %v523, %v847
      %v849 = vpop.f32.mrf.mxu0
      %850 = vdwg.mxu0
      %v851 = vld [vmem:[%s2] sm:$0x1]
      %v852 = vld [vmem:[%s3] sm:$0x1]
      %v853 = vld [vmem:[%s1] sm:$0xf]
      %v854 = vsel %vm525, %v485, 0.0
      %v855 = vsel %vm525, %v486, 0.0
      %v856 = vadd.f32 %v854, %v855
      %v857 = vsel %vm525, %v487, 0.0
      %v858 = vadd.f32 %v856, %v857
      %v859 = vsel %vm525, %v488, 0.0
      %v860 = vadd.f32 %v858, %v859
      %v861 = vsel %vm525, %v489, 0.0
      %v862 = vadd.f32 %v860, %v861
      %v863 = vsel %vm525, %v490, 0.0
      %v864 = vadd.f32 %v862, %v863
      %v865 = vsel %vm525, %v491, 0.0
      %v866 = vadd.f32 %v864, %v865
      %v867 = vsel %vm525, %v492, 0.0
      %v868 = vadd.f32 %v866, %v867
      %v869 = vsel %vm525, %v493, 0.0
      %v870 = vadd.f32 %v868, %v869
      %v871 = vsel %vm525, %v494, 0.0
      %v872 = vadd.f32 %v870, %v871
      %v873 = vsel %vm525, %v495, 0.0
      %v874 = vadd.f32 %v872, %v873
      %v875 = vsel %vm525, %v496, 0.0
      %v876 = vadd.f32 %v874, %v875
      %v877 = vsel %vm525, %v497, 0.0
      %v878 = vadd.f32 %v876, %v877
      %v879 = vsel %vm525, %v498, 0.0
      %v880 = vadd.f32 %v878, %v879
      %v881 = vsel %vm525, %v499, 0.0
      %v882 = vadd.f32 %v880, %v881
      %v883 = vsel %vm525, %v500, 0.0
      %v884 = vadd.f32 %v882, %v883
      %v885 = vsel %vm525, %v501, 0.0
      %v886 = vadd.f32 %v884, %v885
      %v887 = vsel %vm525, %v502, 0.0
      %v888 = vadd.f32 %v886, %v887
      %v889 = vsel %vm525, %v503, 0.0
      %v890 = vadd.f32 %v888, %v889
      %v891 = vsel %vm525, %v504, 0.0
      %v892 = vadd.f32 %v890, %v891
      %v893 = vsel %vm525, %v505, 0.0
      %v894 = vadd.f32 %v892, %v893
      %v895 = vsel %vm525, %v506, 0.0
      %v896 = vadd.f32 %v894, %v895
      %v897 = vsel %vm525, %v507, 0.0
      %v898 = vadd.f32 %v896, %v897
      %v899 = vsel %vm525, %v508, 0.0
      %v900 = vadd.f32 %v898, %v899
      %v901 = vsel %vm525, %v509, 0.0
      %v902 = vadd.f32 %v900, %v901
      %v903 = vsel %vm525, %v510, 0.0
      %v904 = vadd.f32 %v902, %v903
      %v905 = vsel %vm525, %v511, 0.0
      %v906 = vadd.f32 %v904, %v905
      %v907 = vsel %vm525, %v512, 0.0
      %v908 = vadd.f32 %v906, %v907
      %v909 = vsel %vm525, %v513, 0.0
      %v910 = vadd.f32 %v908, %v909
      %v911 = vsel %vm525, %v514, 0.0
      %v912 = vadd.f32 %v910, %v911
      %v913 = vsel %vm525, %v515, 0.0
      %v914 = vadd.f32 %v912, %v913
      %v915 = vsel %vm525, %v516, 0.0
      %v916 = vadd.f32 %v914, %v915
      %v917 = vrot.slane %v916, 4
      %v918 = vadd.f32 %v916, %v917
      %v919 = vrot.slane %v918, 2
      %v920 = vadd.f32 %v918, %v919
      %v921 = vrot.slane %v920, 1
      %v922 = vadd.f32 %v920, %v921
      %v923 = vmul.f32 %v485, %v485
      %v924 = vmul.f32 %v486, %v486
      %v925 = vmul.f32 %v487, %v487
      %v926 = vmul.f32 %v488, %v488
      %v927 = vmul.f32 %v489, %v489
      %v928 = vmul.f32 %v490, %v490
      %v929 = vmul.f32 %v491, %v491
      %v930 = vmul.f32 %v492, %v492
      %v931 = vmul.f32 %v493, %v493
      %v932 = vmul.f32 %v494, %v494
      %v933 = vmul.f32 %v495, %v495
      %v934 = vmul.f32 %v496, %v496
      %v935 = vmul.f32 %v497, %v497
      %v936 = vmul.f32 %v498, %v498
      %v937 = vmul.f32 %v499, %v499
      %v938 = vmul.f32 %v500, %v500
      %v939 = vmul.f32 %v501, %v501
      %v940 = vmul.f32 %v502, %v502
      %v941 = vmul.f32 %v503, %v503
      %v942 = vmul.f32 %v504, %v504
      %v943 = vmul.f32 %v505, %v505
      %v944 = vmul.f32 %v506, %v506
      %v945 = vmul.f32 %v507, %v507
      %v946 = vmul.f32 %v508, %v508
      %v947 = vmul.f32 %v509, %v509
      %v948 = vmul.f32 %v510, %v510
      %v949 = vmul.f32 %v511, %v511
      %v950 = vmul.f32 %v512, %v512
      %v951 = vmul.f32 %v513, %v513
      %v952 = vmul.f32 %v514, %v514
      %v953 = vmul.f32 %v515, %v515
      %v954 = vmul.f32 %v516, %v516
      %v955 = vsel %vm525, %v923, 0.0
      %v956 = vsel %vm525, %v924, 0.0
      %v957 = vadd.f32 %v955, %v956
      %v958 = vsel %vm525, %v925, 0.0
      %v959 = vadd.f32 %v957, %v958
      %v960 = vsel %vm525, %v926, 0.0
      %v961 = vadd.f32 %v959, %v960
      %v962 = vsel %vm525, %v927, 0.0
      %v963 = vadd.f32 %v961, %v962
      %v964 = vsel %vm525, %v928, 0.0
      %v965 = vadd.f32 %v963, %v964
      %v966 = vsel %vm525, %v929, 0.0
      %v967 = vadd.f32 %v965, %v966
      %v968 = vsel %vm525, %v930, 0.0
      %v969 = vadd.f32 %v967, %v968
      %v970 = vsel %vm525, %v931, 0.0
      %v971 = vadd.f32 %v969, %v970
      %v972 = vsel %vm525, %v932, 0.0
      %v973 = vadd.f32 %v971, %v972
      %v974 = vsel %vm525, %v933, 0.0
      %v975 = vadd.f32 %v973, %v974
      %v976 = vsel %vm525, %v934, 0.0
      %v977 = vadd.f32 %v975, %v976
      %v978 = vsel %vm525, %v935, 0.0
      %v979 = vadd.f32 %v977, %v978
      %v980 = vsel %vm525, %v936, 0.0
      %v981 = vadd.f32 %v979, %v980
      %v982 = vsel %vm525, %v937, 0.0
      %v983 = vadd.f32 %v981, %v982
      %v984 = vsel %vm525, %v938, 0.0
      %v985 = vadd.f32 %v983, %v984
      %v986 = vsel %vm525, %v939, 0.0
      %v987 = vadd.f32 %v985, %v986
      %v988 = vsel %vm525, %v940, 0.0
      %v989 = vadd.f32 %v987, %v988
      %v990 = vsel %vm525, %v941, 0.0
      %v991 = vadd.f32 %v989, %v990
      %v992 = vsel %vm525, %v942, 0.0
      %v993 = vadd.f32 %v991, %v992
      %v994 = vsel %vm525, %v943, 0.0
      %v995 = vadd.f32 %v993, %v994
      %v996 = vsel %vm525, %v944, 0.0
      %v997 = vadd.f32 %v995, %v996
      %v998 = vsel %vm525, %v945, 0.0
      %v999 = vadd.f32 %v997, %v998
      %v1000 = vsel %vm525, %v946, 0.0
      %v1001 = vadd.f32 %v999, %v1000
      %v1002 = vsel %vm525, %v947, 0.0
      %v1003 = vadd.f32 %v1001, %v1002
      %v1004 = vsel %vm525, %v948, 0.0
      %v1005 = vadd.f32 %v1003, %v1004
      %v1006 = vsel %vm525, %v949, 0.0
      %v1007 = vadd.f32 %v1005, %v1006
      %v1008 = vsel %vm525, %v950, 0.0
      %v1009 = vadd.f32 %v1007, %v1008
      %v1010 = vsel %vm525, %v951, 0.0
      %v1011 = vadd.f32 %v1009, %v1010
      %v1012 = vsel %vm525, %v952, 0.0
      %v1013 = vadd.f32 %v1011, %v1012
      %v1014 = vsel %vm525, %v953, 0.0
      %v1015 = vadd.f32 %v1013, %v1014
      %v1016 = vsel %vm525, %v954, 0.0
      %v1017 = vadd.f32 %v1015, %v1016
      %v1018 = vrot.slane %v1017, 4
      %v1019 = vadd.f32 %v1017, %v1018
      %v1020 = vrot.slane %v1019, 2
      %v1021 = vadd.f32 %v1019, %v1020
      %v1022 = vrot.slane %v1021, 1
      %v1023 = vadd.f32 %v1021, %v1022
      %v1025 = vsel %vm525, %v922, 0
      %v1028 = vsel %vm622, %v853, 0
      %1030 = vmatprep.subr.mxu0 0.0
      %1031 = vmatpush1.msra.mxu0 0.0
      %1032 = vmatprep.subr.mxu0 0.0
      %1033 = vmatpush1.msra.mxu0 0.0
      %1034 = vmatprep.subr.mxu0 0.0
      %1035 = vmatpush1.msra.mxu0 0.0
      %1036 = vmatprep.subr.mxu0 0.0
      %1037 = vmatpush1.msra.mxu0 0.0
      %1038 = vmatprep.subr.mxu0 0.0
      %1039 = vmatpush1.msra.mxu0 0.0
      %1040 = vmatprep.subr.mxu0 0.0
      %1041 = vmatpush1.msra.mxu0 0.0
      %1042 = vmatprep.subr.mxu0 0.0
      %1043 = vmatpush1.msra.mxu0 0.0
      %1044 = vmatprep.subr.mxu0 0.0
      %1045 = vmatpush1.msra.mxu0 0.0
      %1046 = vmatprep.subr.mxu0 0.0
      %1047 = vmatpush1.msra.mxu0 0.0
      %1048 = vmatprep.subr.mxu0 0.0
      %1049 = vmatpush1.msra.mxu0 0.0
      %1050 = vmatprep.subr.mxu0 0.0
      %1051 = vmatpush1.msra.mxu0 0.0
      %1052 = vmatprep.subr.mxu0 0.0
      %1053 = vmatpush1.msra.mxu0 0.0
      %1054 = vmatprep.subr.mxu0 0.0
      %1055 = vmatpush1.msra.mxu0 0.0
      %1056 = vmatprep.subr.mxu0 0.0
      %1057 = vmatpush1.msra.mxu0 0.0
      %1058 = vmatprep.subr.mxu0 0.0
      %1059 = vmatpush1.msra.mxu0 0.0
      %1060 = vmatprep.subr.mxu0 0.0
      %1061 = vmatpush1.msra.mxu0 %v1028
      %1062 = vmatprep.subr.mxu0 0.0
      %1063 = vmatpush2.msra.mxu0 0.0
      %1064 = vmatprep.subr.mxu0 0.0
      %1065 = vmatpush2.msra.mxu0 0.0
      %1066 = vmatprep.subr.mxu0 0.0
      %1067 = vmatpush2.msra.mxu0 0.0
      %1068 = vmatprep.subr.mxu0 0.0
      %1069 = vmatpush2.msra.mxu0 0.0
      %1070 = vmatprep.subr.mxu0 0.0
      %1071 = vmatpush2.msra.mxu0 0.0
      %1072 = vmatprep.subr.mxu0 0.0
      %1073 = vmatpush2.msra.mxu0 0.0
      %1074 = vmatprep.subr.mxu0 0.0
      %1075 = vmatpush2.msra.mxu0 0.0
      %1076 = vmatprep.subr.mxu0 0.0
      %1077 = vmatpush2.msra.mxu0 0.0
      %1078 = vmatprep.subr.mxu0 0.0
      %1079 = vmatpush2.msra.mxu0 0.0
      %1080 = vmatprep.subr.mxu0 0.0
      %1081 = vmatpush2.msra.mxu0 0.0
      %1082 = vmatprep.subr.mxu0 0.0
      %1083 = vmatpush2.msra.mxu0 0.0
      %1084 = vmatprep.subr.mxu0 0.0
      %1085 = vmatpush2.msra.mxu0 0.0
      %1086 = vmatprep.subr.mxu0 0.0
      %1087 = vmatpush2.msra.mxu0 0.0
      %1088 = vmatprep.subr.mxu0 0.0
      %1089 = vmatpush2.msra.mxu0 0.0
      %1090 = vmatprep.subr.mxu0 0.0
      %1091 = vmatpush2.msra.mxu0 0.0
      %1092 = vmatprep.subr.mxu0 0.0
      %1093 = vmatpush2.msra.mxu0 0.0
      %1094 = vmatprep.mubr.f32.mxu0 0.0
      %1095 = vmatmul.mubr.f32.gmra.mxu0 %v1025
      %v1096 = vpop.f32.mrf.mxu0
      %v1097 = vadd.f32 0.0, %v1096
      %v1098 = vpop.f32.mrf.mxu0
      %1099 = vdwg.mxu0
      %v1101 = vsel %vm525, %v1023, 0
      %1103 = vmatprep.subr.mxu0 0.0
      %1104 = vmatpush1.msra.mxu0 0.0
      %1105 = vmatprep.subr.mxu0 0.0
      %1106 = vmatpush1.msra.mxu0 0.0
      %1107 = vmatprep.subr.mxu0 0.0
      %1108 = vmatpush1.msra.mxu0 0.0
      %1109 = vmatprep.subr.mxu0 0.0
      %1110 = vmatpush1.msra.mxu0 0.0
      %1111 = vmatprep.subr.mxu0 0.0
      %1112 = vmatpush1.msra.mxu0 0.0
      %1113 = vmatprep.subr.mxu0 0.0
      %1114 = vmatpush1.msra.mxu0 0.0
      %1115 = vmatprep.subr.mxu0 0.0
      %1116 = vmatpush1.msra.mxu0 0.0
      %1117 = vmatprep.subr.mxu0 0.0
      %1118 = vmatpush1.msra.mxu0 0.0
      %1119 = vmatprep.subr.mxu0 0.0
      %1120 = vmatpush1.msra.mxu0 0.0
      %1121 = vmatprep.subr.mxu0 0.0
      %1122 = vmatpush1.msra.mxu0 0.0
      %1123 = vmatprep.subr.mxu0 0.0
      %1124 = vmatpush1.msra.mxu0 0.0
      %1125 = vmatprep.subr.mxu0 0.0
      %1126 = vmatpush1.msra.mxu0 0.0
      %1127 = vmatprep.subr.mxu0 0.0
      %1128 = vmatpush1.msra.mxu0 0.0
      %1129 = vmatprep.subr.mxu0 0.0
      %1130 = vmatpush1.msra.mxu0 0.0
      %1131 = vmatprep.subr.mxu0 0.0
      %1132 = vmatpush1.msra.mxu0 0.0
      %1133 = vmatprep.subr.mxu0 0.0
      %1134 = vmatpush1.msra.mxu0 %v1028
      %1135 = vmatprep.subr.mxu0 0.0
      %1136 = vmatpush2.msra.mxu0 0.0
      %1137 = vmatprep.subr.mxu0 0.0
      %1138 = vmatpush2.msra.mxu0 0.0
      %1139 = vmatprep.subr.mxu0 0.0
      %1140 = vmatpush2.msra.mxu0 0.0
      %1141 = vmatprep.subr.mxu0 0.0
      %1142 = vmatpush2.msra.mxu0 0.0
      %1143 = vmatprep.subr.mxu0 0.0
      %1144 = vmatpush2.msra.mxu0 0.0
      %1145 = vmatprep.subr.mxu0 0.0
      %1146 = vmatpush2.msra.mxu0 0.0
      %1147 = vmatprep.subr.mxu0 0.0
      %1148 = vmatpush2.msra.mxu0 0.0
      %1149 = vmatprep.subr.mxu0 0.0
      %1150 = vmatpush2.msra.mxu0 0.0
      %1151 = vmatprep.subr.mxu0 0.0
      %1152 = vmatpush2.msra.mxu0 0.0
      %1153 = vmatprep.subr.mxu0 0.0
      %1154 = vmatpush2.msra.mxu0 0.0
      %1155 = vmatprep.subr.mxu0 0.0
      %1156 = vmatpush2.msra.mxu0 0.0
      %1157 = vmatprep.subr.mxu0 0.0
      %1158 = vmatpush2.msra.mxu0 0.0
      %1159 = vmatprep.subr.mxu0 0.0
      %1160 = vmatpush2.msra.mxu0 0.0
      %1161 = vmatprep.subr.mxu0 0.0
      %1162 = vmatpush2.msra.mxu0 0.0
      %1163 = vmatprep.subr.mxu0 0.0
      %1164 = vmatpush2.msra.mxu0 0.0
      %1165 = vmatprep.subr.mxu0 0.0
      %1166 = vmatpush2.msra.mxu0 0.0
      %1167 = vmatprep.mubr.f32.mxu0 0.0
      %1168 = vmatmul.mubr.f32.gmra.mxu0 %v1101
      %v1169 = vpop.f32.mrf.mxu0
      %v1170 = vadd.f32 0.0, %v1169
      %v1171 = vpop.f32.mrf.mxu0
      %1172 = vdwg.mxu0
      %v1173 = vmul.f32 %v1097, %v1097
      %v1174 = vsub.f32 %v1170, %v1173
      %v1175 = vmax.f32 %v1174, 0.0
      %v1176 = vadd.f32 %v1175, 1e-05
      %v1177 = vrsqrt.pop %v1176
      %v1178 = vmul.f32 %v1177, %v851
      %v1179 = vmul.f32 %v1097, %v1178
      %v1180 = vsub.f32 %v852, %v1179
      %v1181 = vlaneseq
      %v1182 = vshrl.u32 %v1181, 7
      %v1183 = vsub.s32 0, %v1182
      %v1184 = vrot.slane %v1178, %v1183
      %v1185 = vmul.f32 %v485, %v1184
      %v1186 = vmul.f32 %v486, %v1184
      %v1187 = vmul.f32 %v487, %v1184
      %v1188 = vmul.f32 %v488, %v1184
      %v1189 = vmul.f32 %v489, %v1184
      %v1190 = vmul.f32 %v490, %v1184
      %v1191 = vmul.f32 %v491, %v1184
      %v1192 = vmul.f32 %v492, %v1184
      %v1193 = vmul.f32 %v493, %v1184
      %v1194 = vmul.f32 %v494, %v1184
      %v1195 = vmul.f32 %v495, %v1184
      %v1196 = vmul.f32 %v496, %v1184
      %v1197 = vmul.f32 %v497, %v1184
      %v1198 = vmul.f32 %v498, %v1184
      %v1199 = vmul.f32 %v499, %v1184
      %v1200 = vmul.f32 %v500, %v1184
      %v1201 = vmul.f32 %v501, %v1184
      %v1202 = vmul.f32 %v502, %v1184
      %v1203 = vmul.f32 %v503, %v1184
      %v1204 = vmul.f32 %v504, %v1184
      %v1205 = vmul.f32 %v505, %v1184
      %v1206 = vmul.f32 %v506, %v1184
      %v1207 = vmul.f32 %v507, %v1184
      %v1208 = vmul.f32 %v508, %v1184
      %v1209 = vmul.f32 %v509, %v1184
      %v1210 = vmul.f32 %v510, %v1184
      %v1211 = vmul.f32 %v511, %v1184
      %v1212 = vmul.f32 %v512, %v1184
      %v1213 = vmul.f32 %v513, %v1184
      %v1214 = vmul.f32 %v514, %v1184
      %v1215 = vmul.f32 %v515, %v1184
      %v1216 = vmul.f32 %v516, %v1184
      %v1218 = vlaneseq
      %v1219 = vshrl.u32 %v1218, 7
      %v1220 = vsub.s32 0, %v1219
      %v1221 = vrot.slane %v1180, %v1220
      %v1223 = vadd.f32 %v1185, %v1221
      %v1224 = vadd.f32 %v1186, %v1221
      %v1225 = vadd.f32 %v1187, %v1221
      %v1226 = vadd.f32 %v1188, %v1221
      %v1227 = vadd.f32 %v1189, %v1221
      %v1228 = vadd.f32 %v1190, %v1221
      %v1229 = vadd.f32 %v1191, %v1221
      %v1230 = vadd.f32 %v1192, %v1221
      %v1231 = vadd.f32 %v1193, %v1221
      %v1232 = vadd.f32 %v1194, %v1221
      %v1233 = vadd.f32 %v1195, %v1221
      %v1234 = vadd.f32 %v1196, %v1221
      %v1235 = vadd.f32 %v1197, %v1221
      %v1236 = vadd.f32 %v1198, %v1221
      %v1237 = vadd.f32 %v1199, %v1221
      %v1238 = vadd.f32 %v1200, %v1221
      %v1239 = vadd.f32 %v1201, %v1221
      %v1240 = vadd.f32 %v1202, %v1221
      %v1241 = vadd.f32 %v1203, %v1221
      %v1242 = vadd.f32 %v1204, %v1221
      %v1243 = vadd.f32 %v1205, %v1221
      %v1244 = vadd.f32 %v1206, %v1221
      %v1245 = vadd.f32 %v1207, %v1221
      %v1246 = vadd.f32 %v1208, %v1221
      %v1247 = vadd.f32 %v1209, %v1221
      %v1248 = vadd.f32 %v1210, %v1221
      %v1249 = vadd.f32 %v1211, %v1221
      %v1250 = vadd.f32 %v1212, %v1221
      %v1251 = vadd.f32 %v1213, %v1221
      %v1252 = vadd.f32 %v1214, %v1221
      %v1253 = vadd.f32 %v1215, %v1221
      %v1254 = vadd.f32 %v1216, %v1221
      %v1255 = vmax.f32 %v1223, 0.0
      %v1256 = vmax.f32 %v1224, 0.0
      %v1257 = vmax.f32 %v1225, 0.0
      %v1258 = vmax.f32 %v1226, 0.0
      %v1259 = vmax.f32 %v1227, 0.0
      %v1260 = vmax.f32 %v1228, 0.0
      %v1261 = vmax.f32 %v1229, 0.0
      %v1262 = vmax.f32 %v1230, 0.0
      %v1263 = vmax.f32 %v1231, 0.0
      %v1264 = vmax.f32 %v1232, 0.0
      %v1265 = vmax.f32 %v1233, 0.0
      %v1266 = vmax.f32 %v1234, 0.0
      %v1267 = vmax.f32 %v1235, 0.0
      %v1268 = vmax.f32 %v1236, 0.0
      %v1269 = vmax.f32 %v1237, 0.0
      %v1270 = vmax.f32 %v1238, 0.0
      %v1271 = vmax.f32 %v1239, 0.0
      %v1272 = vmax.f32 %v1240, 0.0
      %v1273 = vmax.f32 %v1241, 0.0
      %v1274 = vmax.f32 %v1242, 0.0
      %v1275 = vmax.f32 %v1243, 0.0
      %v1276 = vmax.f32 %v1244, 0.0
      %v1277 = vmax.f32 %v1245, 0.0
      %v1278 = vmax.f32 %v1246, 0.0
      %v1279 = vmax.f32 %v1247, 0.0
      %v1280 = vmax.f32 %v1248, 0.0
      %v1281 = vmax.f32 %v1249, 0.0
      %v1282 = vmax.f32 %v1250, 0.0
      %v1283 = vmax.f32 %v1251, 0.0
      %v1284 = vmax.f32 %v1252, 0.0
      %v1285 = vmax.f32 %v1253, 0.0
      %v1286 = vmax.f32 %v1254, 0.0
      %v1287 = vld [vmem:[%s5] sm:$0x1]
      %1288 = vst.msk [vmem:[%s451 + $0x1] sm:$0xff] %vm525, %v1255
      %1289 = vst.msk [vmem:[%s451 + $0x9] sm:$0xff] %vm525, %v1256
      %1290 = vst.msk [vmem:[%s451 + $0x19] sm:$0xff] %vm525, %v1257
      %1291 = vst.msk [vmem:[%s451 + $0x21] sm:$0xff] %vm525, %v1258
      %1292 = vst.msk [vmem:[%s451 + $0x31] sm:$0xff] %vm525, %v1259
      %1293 = vst.msk [vmem:[%s451 + $0x39] sm:$0xff] %vm525, %v1260
      %1294 = vst.msk [vmem:[%s451 + $0x49] sm:$0xff] %vm525, %v1261
      %1295 = vst.msk [vmem:[%s451 + $0x51] sm:$0xff] %vm525, %v1262
      %1296 = vst.msk [vmem:[%s451 + $0x61] sm:$0xff] %vm525, %v1263
      %1297 = vst.msk [vmem:[%s451 + $0x69] sm:$0xff] %vm525, %v1264
      %1298 = vst.msk [vmem:[%s451 + $0x79] sm:$0xff] %vm525, %v1265
      %1299 = vst.msk [vmem:[%s451 + $0x81] sm:$0xff] %vm525, %v1266
      %1300 = vst.msk [vmem:[%s451 + $0x91] sm:$0xff] %vm525, %v1267
      %1301 = vst.msk [vmem:[%s451 + $0x99] sm:$0xff] %vm525, %v1268
      %1302 = vst.msk [vmem:[%s451 + $0xa9] sm:$0xff] %vm525, %v1269
      %1303 = vst.msk [vmem:[%s451 + $0xb1] sm:$0xff] %vm525, %v1270
      %1304 = vst.msk [vmem:[%s451 + $0xc1] sm:$0xff] %vm525, %v1271
      %1305 = vst.msk [vmem:[%s451 + $0xc9] sm:$0xff] %vm525, %v1272
      %1306 = vst.msk [vmem:[%s451 + $0xd9] sm:$0xff] %vm525, %v1273
      %1307 = vst.msk [vmem:[%s451 + $0xe1] sm:$0xff] %vm525, %v1274
      %1308 = vst.msk [vmem:[%s451 + $0xf1] sm:$0xff] %vm525, %v1275
      %1309 = vst.msk [vmem:[%s451 + $0xf9] sm:$0xff] %vm525, %v1276
      %1310 = vst.msk [vmem:[%s451 + $0x109] sm:$0xff] %vm525, %v1277
      %1311 = vst.msk [vmem:[%s451 + $0x111] sm:$0xff] %vm525, %v1278
      %1312 = vst.msk [vmem:[%s451 + $0x121] sm:$0xff] %vm525, %v1279
      %1313 = vst.msk [vmem:[%s451 + $0x129] sm:$0xff] %vm525, %v1280
      %1314 = vst.msk [vmem:[%s451 + $0x139] sm:$0xff] %vm525, %v1281
      %1315 = vst.msk [vmem:[%s451 + $0x141] sm:$0xff] %vm525, %v1282
      %1316 = vst.msk [vmem:[%s451 + $0x151] sm:$0xff] %vm525, %v1283
      %1317 = vst.msk [vmem:[%s451 + $0x159] sm:$0xff] %vm525, %v1284
      %1318 = vst.msk [vmem:[%s451 + $0x169] sm:$0xff] %vm525, %v1285
      %1319 = vst.msk [vmem:[%s451 + $0x171] sm:$0xff] %vm525, %v1286
      %v1320 = vld [vmem:[#allocation2] sm:$0xff]
      %v1321 = vld [vmem:[#allocation2 + $0x8] sm:$0xff]
      %v1322 = vld [vmem:[#allocation2 + $0x18] sm:$0xff]
      %v1323 = vld [vmem:[#allocation2 + $0x20] sm:$0xff]
      %v1324 = vld [vmem:[#allocation2 + $0x30] sm:$0xff]
      %v1325 = vld [vmem:[#allocation2 + $0x38] sm:$0xff]
      %v1326 = vld [vmem:[#allocation2 + $0x48] sm:$0xff]
      %v1327 = vld [vmem:[#allocation2 + $0x50] sm:$0xff]
      %v1328 = vld [vmem:[#allocation2 + $0x60] sm:$0xff]
      %v1329 = vld [vmem:[#allocation2 + $0x68] sm:$0xff]
      %v1330 = vld [vmem:[#allocation2 + $0x78] sm:$0xff]
      %v1331 = vld [vmem:[#allocation2 + $0x80] sm:$0xff]
      %v1332 = vld [vmem:[#allocation2 + $0x90] sm:$0xff]
      %v1333 = vld [vmem:[#allocation2 + $0x98] sm:$0xff]
      %v1334 = vld [vmem:[#allocation2 + $0xa8] sm:$0xff]
      %v1335 = vld [vmem:[#allocation2 + $0xb0] sm:$0xff]
      %v1336 = vld [vmem:[#allocation2 + $0xc0] sm:$0xff]
      %v1337 = vld [vmem:[#allocation2 + $0xc8] sm:$0xff]
      %v1338 = vld [vmem:[#allocation2 + $0xd8] sm:$0xff]
      %v1339 = vld [vmem:[#allocation2 + $0xe0] sm:$0xff]
      %v1340 = vld [vmem:[#allocation2 + $0xf0] sm:$0xff]
      %v1341 = vld [vmem:[#allocation2 + $0xf8] sm:$0xff]
      %v1342 = vld [vmem:[#allocation2 + $0x108] sm:$0xff]
      %v1343 = vld [vmem:[#allocation2 + $0x110] sm:$0xff]
      %v1344 = vld [vmem:[#allocation2 + $0x120] sm:$0xff]
      %v1345 = vld [vmem:[#allocation2 + $0x128] sm:$0xff]
      %v1346 = vld [vmem:[#allocation2 + $0x138] sm:$0xff]
      %v1347 = vld [vmem:[#allocation2 + $0x140] sm:$0xff]
      %v1348 = vld [vmem:[#allocation2 + $0x150] sm:$0xff]
      %v1349 = vld [vmem:[#allocation2 + $0x158] sm:$0xff]
      %v1350 = vld [vmem:[#allocation2 + $0x168] sm:$0xff]
      %v1351 = vld [vmem:[#allocation2 + $0x170] sm:$0xff]
      %v1352 = vpack.c.bf16 %v1321, %v1320
      %v1353 = vpack.c.bf16 %v1323, %v1322
      %v1354 = vpack.c.bf16 %v1325, %v1324
      %v1355 = vpack.c.bf16 %v1327, %v1326
      %v1356 = vpack.c.bf16 %v1329, %v1328
      %v1357 = vpack.c.bf16 %v1331, %v1330
      %v1358 = vpack.c.bf16 %v1333, %v1332
      %v1359 = vpack.c.bf16 %v1335, %v1334
      %v1360 = vpack.c.bf16 %v1337, %v1336
      %v1361 = vpack.c.bf16 %v1339, %v1338
      %v1362 = vpack.c.bf16 %v1341, %v1340
      %v1363 = vpack.c.bf16 %v1343, %v1342
      %v1364 = vpack.c.bf16 %v1345, %v1344
      %v1365 = vpack.c.bf16 %v1347, %v1346
      %v1366 = vpack.c.bf16 %v1349, %v1348
      %v1367 = vpack.c.bf16 %v1351, %v1350
      %v1368 = vld [vmem:[%s4] sm:$0x3]
      %v1370 = vsel %vm525, %v1352, 0
      %v1373 = vsel %vm525, %v1353, 0
      %v1376 = vsel %vm525, %v1354, 0
      %v1379 = vsel %vm525, %v1355, 0
      %v1382 = vsel %vm525, %v1356, 0
      %v1385 = vsel %vm525, %v1357, 0
      %v1388 = vsel %vm525, %v1358, 0
      %v1391 = vsel %vm525, %v1359, 0
      %v1394 = vsel %vm525, %v1360, 0
      %v1397 = vsel %vm525, %v1361, 0
      %v1400 = vsel %vm525, %v1362, 0
      %v1403 = vsel %vm525, %v1363, 0
      %v1406 = vsel %vm525, %v1364, 0
      %v1409 = vsel %vm525, %v1365, 0
      %v1412 = vsel %vm525, %v1366, 0
      %v1415 = vsel %vm525, %v1367, 0
      %vm1417 = vcmask 1041408
      %v1419 = vsel %vm1417, %v1368, 0
      %1421 = vmatprep.subr.bf16.mxu0 0
      %1422 = vmatpush1.bf16.msra.mxu0 0
      %1423 = vmatprep.subr.bf16.mxu0 0
      %1424 = vmatpush1.bf16.msra.mxu0 0
      %1425 = vmatprep.subr.bf16.mxu0 0
      %1426 = vmatpush1.bf16.msra.mxu0 0
      %1427 = vmatprep.subr.bf16.mxu0 0
      %1428 = vmatpush1.bf16.msra.mxu0 0
      %1429 = vmatprep.subr.bf16.mxu0 0
      %1430 = vmatpush1.bf16.msra.mxu0 0
      %1431 = vmatprep.subr.bf16.mxu0 0
      %1432 = vmatpush1.bf16.msra.mxu0 0
      %1433 = vmatprep.subr.bf16.mxu0 0
      %1434 = vmatpush1.bf16.msra.mxu0 0
      %1435 = vmatprep.subr.bf16.mxu0 0
      %1436 = vmatpush1.bf16.msra.mxu0 %v1419
      %1437 = vmatprep.subr.bf16.mxu0 0
      %1438 = vmatpush2.bf16.msra.mxu0 0
      %1439 = vmatprep.subr.bf16.mxu0 0
      %1440 = vmatpush2.bf16.msra.mxu0 0
      %1441 = vmatprep.subr.bf16.mxu0 0
      %1442 = vmatpush2.bf16.msra.mxu0 0
      %1443 = vmatprep.subr.bf16.mxu0 0
      %1444 = vmatpush2.bf16.msra.mxu0 0
      %1445 = vmatprep.subr.bf16.mxu0 0
      %1446 = vmatpush2.bf16.msra.mxu0 0
      %1447 = vmatprep.subr.bf16.mxu0 0
      %1448 = vmatpush2.bf16.msra.mxu0 0
      %1449 = vmatprep.subr.bf16.mxu0 0
      %1450 = vmatpush2.bf16.msra.mxu0 0
      %1451 = vmatprep.subr.bf16.mxu0 0
      %1452 = vmatpush2.bf16.msra.mxu0 0
      %1453 = vmatprep.mubr.bf16.mxu0 0
      %1454 = vmatmul.mubr.bf16.gmra.mxu0 %v1370
      %v1455 = vpop.f32.mrf.mxu0
      %v1456 = vadd.f32 0.0, %v1455
      %v1457 = vpop.f32.mrf.mxu0
      %v1458 = vpop.f32.mrf.mxu0
      %v1459 = vadd.f32 0.0, %v1458
      %v1460 = vpop.f32.mrf.mxu0
      %1461 = vmatprep.mubr.bf16.mxu0 0
      %1462 = vmatmul.mubr.bf16.gmra.mxu0 %v1373
      %v1463 = vpop.f32.mrf.mxu0
      %v1464 = vadd.f32 0.0, %v1463
      %v1465 = vpop.f32.mrf.mxu0
      %v1466 = vpop.f32.mrf.mxu0
      %v1467 = vadd.f32 0.0, %v1466
      %v1468 = vpop.f32.mrf.mxu0
      %1469 = vmatprep.mubr.bf16.mxu0 0
      %1470 = vmatmul.mubr.bf16.gmra.mxu0 %v1376
      %v1471 = vpop.f32.mrf.mxu0
      %v1472 = vadd.f32 0.0, %v1471
      %v1473 = vpop.f32.mrf.mxu0
      %v1474 = vpop.f32.mrf.mxu0
      %v1475 = vadd.f32 0.0, %v1474
      %v1476 = vpop.f32.mrf.mxu0
      %1477 = vmatprep.mubr.bf16.mxu0 0
      %1478 = vmatmul.mubr.bf16.gmra.mxu0 %v1379
      %v1479 = vpop.f32.mrf.mxu0
      %v1480 = vadd.f32 0.0, %v1479
      %v1481 = vpop.f32.mrf.mxu0
      %v1482 = vpop.f32.mrf.mxu0
      %v1483 = vadd.f32 0.0, %v1482
      %v1484 = vpop.f32.mrf.mxu0
      %1485 = vmatprep.mubr.bf16.mxu0 0
      %1486 = vmatmul.mubr.bf16.gmra.mxu0 %v1382
      %v1487 = vpop.f32.mrf.mxu0
      %v1488 = vadd.f32 0.0, %v1487
      %v1489 = vpop.f32.mrf.mxu0
      %v1490 = vpop.f32.mrf.mxu0
      %v1491 = vadd.f32 0.0, %v1490
      %v1492 = vpop.f32.mrf.mxu0
      %1493 = vmatprep.mubr.bf16.mxu0 0
      %1494 = vmatmul.mubr.bf16.gmra.mxu0 %v1385
      %v1495 = vpop.f32.mrf.mxu0
      %v1496 = vadd.f32 0.0, %v1495
      %v1497 = vpop.f32.mrf.mxu0
      %v1498 = vpop.f32.mrf.mxu0
      %v1499 = vadd.f32 0.0, %v1498
      %v1500 = vpop.f32.mrf.mxu0
      %1501 = vmatprep.mubr.bf16.mxu0 0
      %1502 = vmatmul.mubr.bf16.gmra.mxu0 %v1388
      %v1503 = vpop.f32.mrf.mxu0
      %v1504 = vadd.f32 0.0, %v1503
      %v1505 = vpop.f32.mrf.mxu0
      %v1506 = vpop.f32.mrf.mxu0
      %v1507 = vadd.f32 0.0, %v1506
      %v1508 = vpop.f32.mrf.mxu0
      %1509 = vmatprep.mubr.bf16.mxu0 0
      %1510 = vmatmul.mubr.bf16.gmra.mxu0 %v1391
      %v1511 = vpop.f32.mrf.mxu0
      %v1512 = vadd.f32 0.0, %v1511
      %v1513 = vpop.f32.mrf.mxu0
      %v1514 = vpop.f32.mrf.mxu0
      %v1515 = vadd.f32 0.0, %v1514
      %v1516 = vpop.f32.mrf.mxu0
      %1517 = vmatprep.mubr.bf16.mxu0 0
      %1518 = vmatmul.mubr.bf16.gmra.mxu0 %v1394
      %v1519 = vpop.f32.mrf.mxu0
      %v1520 = vadd.f32 0.0, %v1519
      %v1521 = vpop.f32.mrf.mxu0
      %v1522 = vpop.f32.mrf.mxu0
      %v1523 = vadd.f32 0.0, %v1522
      %v1524 = vpop.f32.mrf.mxu0
      %1525 = vmatprep.mubr.bf16.mxu0 0
      %1526 = vmatmul.mubr.bf16.gmra.mxu0 %v1397
      %v1527 = vpop.f32.mrf.mxu0
      %v1528 = vadd.f32 0.0, %v1527
      %v1529 = vpop.f32.mrf.mxu0
      %v1530 = vpop.f32.mrf.mxu0
      %v1531 = vadd.f32 0.0, %v1530
      %v1532 = vpop.f32.mrf.mxu0
      %1533 = vmatprep.mubr.bf16.mxu0 0
      %1534 = vmatmul.mubr.bf16.gmra.mxu0 %v1400
      %v1535 = vpop.f32.mrf.mxu0
      %v1536 = vadd.f32 0.0, %v1535
      %v1537 = vpop.f32.mrf.mxu0
      %v1538 = vpop.f32.mrf.mxu0
      %v1539 = vadd.f32 0.0, %v1538
      %v1540 = vpop.f32.mrf.mxu0
      %1541 = vmatprep.mubr.bf16.mxu0 0
      %1542 = vmatmul.mubr.bf16.gmra.mxu0 %v1403
      %v1543 = vpop.f32.mrf.mxu0
      %v1544 = vadd.f32 0.0, %v1543
      %v1545 = vpop.f32.mrf.mxu0
      %v1546 = vpop.f32.mrf.mxu0
      %v1547 = vadd.f32 0.0, %v1546
      %v1548 = vpop.f32.mrf.mxu0
      %1549 = vmatprep.mubr.bf16.mxu0 0
      %1550 = vmatmul.mubr.bf16.gmra.mxu0 %v1406
      %v1551 = vpop.f32.mrf.mxu0
      %v1552 = vadd.f32 0.0, %v1551
      %v1553 = vpop.f32.mrf.mxu0
      %v1554 = vpop.f32.mrf.mxu0
      %v1555 = vadd.f32 0.0, %v1554
      %v1556 = vpop.f32.mrf.mxu0
      %1557 = vmatprep.mubr.bf16.mxu0 0
      %1558 = vmatmul.mubr.bf16.gmra.mxu0 %v1409
      %v1559 = vpop.f32.mrf.mxu0
      %v1560 = vadd.f32 0.0, %v1559
      %v1561 = vpop.f32.mrf.mxu0
      %v1562 = vpop.f32.mrf.mxu0
      %v1563 = vadd.f32 0.0, %v1562
      %v1564 = vpop.f32.mrf.mxu0
      %1565 = vmatprep.mubr.bf16.mxu0 0
      %1566 = vmatmul.mubr.bf16.gmra.mxu0 %v1412
      %v1567 = vpop.f32.mrf.mxu0
      %v1568 = vadd.f32 0.0, %v1567
      %v1569 = vpop.f32.mrf.mxu0
      %v1570 = vpop.f32.mrf.mxu0
      %v1571 = vadd.f32 0.0, %v1570
      %v1572 = vpop.f32.mrf.mxu0
      %1573 = vmatprep.mubr.bf16.mxu0 0
      %1574 = vmatmul.mubr.bf16.gmra.mxu0 %v1415
      %v1575 = vpop.f32.mrf.mxu0
      %v1576 = vadd.f32 0.0, %v1575
      %v1577 = vpop.f32.mrf.mxu0
      %v1578 = vpop.f32.mrf.mxu0
      %v1579 = vadd.f32 0.0, %v1578
      %v1580 = vpop.f32.mrf.mxu0
      %1581 = vdwg.mxu0
      %v1583 = vlaneseq
      %v1584 = vshrl.u32 %v1583, 7
      %v1585 = vsub.s32 0, %v1584
      %v1586 = vrot.slane %v1287, %v1585
      %v1588 = vadd.f32 %v1586, %v1456
      %v1589 = vadd.f32 %v1586, %v1459
      %v1590 = vadd.f32 %v1586, %v1464
      %v1591 = vadd.f32 %v1586, %v1467
      %v1592 = vadd.f32 %v1586, %v1472
      %v1593 = vadd.f32 %v1586, %v1475
      %v1594 = vadd.f32 %v1586, %v1480
      %v1595 = vadd.f32 %v1586, %v1483
      %v1596 = vadd.f32 %v1586, %v1488
      %v1597 = vadd.f32 %v1586, %v1491
      %v1598 = vadd.f32 %v1586, %v1496
      %v1599 = vadd.f32 %v1586, %v1499
      %v1600 = vadd.f32 %v1586, %v1504
      %v1601 = vadd.f32 %v1586, %v1507
      %v1602 = vadd.f32 %v1586, %v1512
      %v1603 = vadd.f32 %v1586, %v1515
      %v1604 = vadd.f32 %v1586, %v1520
      %v1605 = vadd.f32 %v1586, %v1523
      %v1606 = vadd.f32 %v1586, %v1528
      %v1607 = vadd.f32 %v1586, %v1531
      %v1608 = vadd.f32 %v1586, %v1536
      %v1609 = vadd.f32 %v1586, %v1539
      %v1610 = vadd.f32 %v1586, %v1544
      %v1611 = vadd.f32 %v1586, %v1547
      %v1612 = vadd.f32 %v1586, %v1552
      %v1613 = vadd.f32 %v1586, %v1555
      %v1614 = vadd.f32 %v1586, %v1560
      %v1615 = vadd.f32 %v1586, %v1563
      %v1616 = vadd.f32 %v1586, %v1568
      %v1617 = vadd.f32 %v1586, %v1571
      %v1618 = vadd.f32 %v1586, %v1576
      %v1619 = vadd.f32 %v1586, %v1579
      %v1620 = vld [vmem:[#allocation2 + $0x1] sm:$0xff]
      %v1621 = vld [vmem:[#allocation2 + $0x9] sm:$0xff]
      %v1622 = vld [vmem:[#allocation2 + $0x19] sm:$0xff]
      %v1623 = vld [vmem:[#allocation2 + $0x21] sm:$0xff]
      %v1624 = vld [vmem:[#allocation2 + $0x31] sm:$0xff]
      %v1625 = vld [vmem:[#allocation2 + $0x39] sm:$0xff]
      %v1626 = vld [vmem:[#allocation2 + $0x49] sm:$0xff]
      %v1627 = vld [vmem:[#allocation2 + $0x51] sm:$0xff]
      %v1628 = vld [vmem:[#allocation2 + $0x61] sm:$0xff]
      %v1629 = vld [vmem:[#allocation2 + $0x69] sm:$0xff]
      %v1630 = vld [vmem:[#allocation2 + $0x79] sm:$0xff]
      %v1631 = vld [vmem:[#allocation2 + $0x81] sm:$0xff]
      %v1632 = vld [vmem:[#allocation2 + $0x91] sm:$0xff]
      %v1633 = vld [vmem:[#allocation2 + $0x99] sm:$0xff]
      %v1634 = vld [vmem:[#allocation2 + $0xa9] sm:$0xff]
      %v1635 = vld [vmem:[#allocation2 + $0xb1] sm:$0xff]
      %v1636 = vld [vmem:[#allocation2 + $0xc1] sm:$0xff]
      %v1637 = vld [vmem:[#allocation2 + $0xc9] sm:$0xff]
      %v1638 = vld [vmem:[#allocation2 + $0xd9] sm:$0xff]
      %v1639 = vld [vmem:[#allocation2 + $0xe1] sm:$0xff]
      %v1640 = vld [vmem:[#allocation2 + $0xf1] sm:$0xff]
      %v1641 = vld [vmem:[#allocation2 + $0xf9] sm:$0xff]
      %v1642 = vld [vmem:[#allocation2 + $0x109] sm:$0xff]
      %v1643 = vld [vmem:[#allocation2 + $0x111] sm:$0xff]
      %v1644 = vld [vmem:[#allocation2 + $0x121] sm:$0xff]
      %v1645 = vld [vmem:[#allocation2 + $0x129] sm:$0xff]
      %v1646 = vld [vmem:[#allocation2 + $0x139] sm:$0xff]
      %v1647 = vld [vmem:[#allocation2 + $0x141] sm:$0xff]
      %v1648 = vld [vmem:[#allocation2 + $0x151] sm:$0xff]
      %v1649 = vld [vmem:[#allocation2 + $0x159] sm:$0xff]
      %v1650 = vld [vmem:[#allocation2 + $0x169] sm:$0xff]
      %v1651 = vld [vmem:[#allocation2 + $0x171] sm:$0xff]
      %v1652 = vpack.c.bf16 %v1621, %v1620
      %v1653 = vpack.c.bf16 %v1623, %v1622
      %v1654 = vpack.c.bf16 %v1625, %v1624
      %v1655 = vpack.c.bf16 %v1627, %v1626
      %v1656 = vpack.c.bf16 %v1629, %v1628
      %v1657 = vpack.c.bf16 %v1631, %v1630
      %v1658 = vpack.c.bf16 %v1633, %v1632
      %v1659 = vpack.c.bf16 %v1635, %v1634
      %v1660 = vpack.c.bf16 %v1637, %v1636
      %v1661 = vpack.c.bf16 %v1639, %v1638
      %v1662 = vpack.c.bf16 %v1641, %v1640
      %v1663 = vpack.c.bf16 %v1643, %v1642
      %v1664 = vpack.c.bf16 %v1645, %v1644
      %v1665 = vpack.c.bf16 %v1647, %v1646
      %v1666 = vpack.c.bf16 %v1649, %v1648
      %v1667 = vpack.c.bf16 %v1651, %v1650
      %s1668 = scalar_lea.vmem %s4, 2
      %v1669 = vld [vmem:[%s1668] sm:$0x3]
      %v1671 = vsel %vm525, %v1652, 0
      %v1674 = vsel %vm525, %v1653, 0
      %v1677 = vsel %vm525, %v1654, 0
      %v1680 = vsel %vm525, %v1655, 0
      %v1683 = vsel %vm525, %v1656, 0
      %v1686 = vsel %vm525, %v1657, 0
      %v1689 = vsel %vm525, %v1658, 0
      %v1692 = vsel %vm525, %v1659, 0
      %v1695 = vsel %vm525, %v1660, 0
      %v1698 = vsel %vm525, %v1661, 0
      %v1701 = vsel %vm525, %v1662, 0
      %v1704 = vsel %vm525, %v1663, 0
      %v1707 = vsel %vm525, %v1664, 0
      %v1710 = vsel %vm525, %v1665, 0
      %v1713 = vsel %vm525, %v1666, 0
      %v1716 = vsel %vm525, %v1667, 0
      %v1719 = vsel %vm1417, %v1669, 0
      %1721 = vmatprep.subr.bf16.mxu0 0
      %1722 = vmatpush1.bf16.msra.mxu0 0
      %1723 = vmatprep.subr.bf16.mxu0 0
      %1724 = vmatpush1.bf16.msra.mxu0 0
      %1725 = vmatprep.subr.bf16.mxu0 0
      %1726 = vmatpush1.bf16.msra.mxu0 0
      %1727 = vmatprep.subr.bf16.mxu0 0
      %1728 = vmatpush1.bf16.msra.mxu0 0
      %1729 = vmatprep.subr.bf16.mxu0 0
      %1730 = vmatpush1.bf16.msra.mxu0 0
      %1731 = vmatprep.subr.bf16.mxu0 0
      %1732 = vmatpush1.bf16.msra.mxu0 0
      %1733 = vmatprep.subr.bf16.mxu0 0
      %1734 = vmatpush1.bf16.msra.mxu0 0
      %1735 = vmatprep.subr.bf16.mxu0 0
      %1736 = vmatpush1.bf16.msra.mxu0 %v1719
      %1737 = vmatprep.subr.bf16.mxu0 0
      %1738 = vmatpush2.bf16.msra.mxu0 0
      %1739 = vmatprep.subr.bf16.mxu0 0
      %1740 = vmatpush2.bf16.msra.mxu0 0
      %1741 = vmatprep.subr.bf16.mxu0 0
      %1742 = vmatpush2.bf16.msra.mxu0 0
      %1743 = vmatprep.subr.bf16.mxu0 0
      %1744 = vmatpush2.bf16.msra.mxu0 0
      %1745 = vmatprep.subr.bf16.mxu0 0
      %1746 = vmatpush2.bf16.msra.mxu0 0
      %1747 = vmatprep.subr.bf16.mxu0 0
      %1748 = vmatpush2.bf16.msra.mxu0 0
      %1749 = vmatprep.subr.bf16.mxu0 0
      %1750 = vmatpush2.bf16.msra.mxu0 0
      %1751 = vmatprep.subr.bf16.mxu0 0
      %1752 = vmatpush2.bf16.msra.mxu0 0
      %1753 = vmatprep.mubr.bf16.mxu0 0
      %1754 = vmatmul.mubr.bf16.gmra.mxu0 %v1671
      %v1755 = vpop.f32.mrf.mxu0
      %v1756 = vadd.f32 0.0, %v1755
      %v1757 = vpop.f32.mrf.mxu0
      %v1758 = vpop.f32.mrf.mxu0
      %v1759 = vadd.f32 0.0, %v1758
      %v1760 = vpop.f32.mrf.mxu0
      %1761 = vmatprep.mubr.bf16.mxu0 0
      %1762 = vmatmul.mubr.bf16.gmra.mxu0 %v1674
      %v1763 = vpop.f32.mrf.mxu0
      %v1764 = vadd.f32 0.0, %v1763
      %v1765 = vpop.f32.mrf.mxu0
      %v1766 = vpop.f32.mrf.mxu0
      %v1767 = vadd.f32 0.0, %v1766
      %v1768 = vpop.f32.mrf.mxu0
      %1769 = vmatprep.mubr.bf16.mxu0 0
      %1770 = vmatmul.mubr.bf16.gmra.mxu0 %v1677
      %v1771 = vpop.f32.mrf.mxu0
      %v1772 = vadd.f32 0.0, %v1771
      %v1773 = vpop.f32.mrf.mxu0
      %v1774 = vpop.f32.mrf.mxu0
      %v1775 = vadd.f32 0.0, %v1774
      %v1776 = vpop.f32.mrf.mxu0
      %1777 = vmatprep.mubr.bf16.mxu0 0
      %1778 = vmatmul.mubr.bf16.gmra.mxu0 %v1680
      %v1779 = vpop.f32.mrf.mxu0
      %v1780 = vadd.f32 0.0, %v1779
      %v1781 = vpop.f32.mrf.mxu0
      %v1782 = vpop.f32.mrf.mxu0
      %v1783 = vadd.f32 0.0, %v1782
      %v1784 = vpop.f32.mrf.mxu0
      %1785 = vmatprep.mubr.bf16.mxu0 0
      %1786 = vmatmul.mubr.bf16.gmra.mxu0 %v1683
      %v1787 = vpop.f32.mrf.mxu0
      %v1788 = vadd.f32 0.0, %v1787
      %v1789 = vpop.f32.mrf.mxu0
      %v1790 = vpop.f32.mrf.mxu0
      %v1791 = vadd.f32 0.0, %v1790
      %v1792 = vpop.f32.mrf.mxu0
      %1793 = vmatprep.mubr.bf16.mxu0 0
      %1794 = vmatmul.mubr.bf16.gmra.mxu0 %v1686
      %v1795 = vpop.f32.mrf.mxu0
      %v1796 = vadd.f32 0.0, %v1795
      %v1797 = vpop.f32.mrf.mxu0
      %v1798 = vpop.f32.mrf.mxu0
      %v1799 = vadd.f32 0.0, %v1798
      %v1800 = vpop.f32.mrf.mxu0
      %1801 = vmatprep.mubr.bf16.mxu0 0
      %1802 = vmatmul.mubr.bf16.gmra.mxu0 %v1689
      %v1803 = vpop.f32.mrf.mxu0
      %v1804 = vadd.f32 0.0, %v1803
      %v1805 = vpop.f32.mrf.mxu0
      %v1806 = vpop.f32.mrf.mxu0
      %v1807 = vadd.f32 0.0, %v1806
      %v1808 = vpop.f32.mrf.mxu0
      %1809 = vmatprep.mubr.bf16.mxu0 0
      %1810 = vmatmul.mubr.bf16.gmra.mxu0 %v1692
      %v1811 = vpop.f32.mrf.mxu0
      %v1812 = vadd.f32 0.0, %v1811
      %v1813 = vpop.f32.mrf.mxu0
      %v1814 = vpop.f32.mrf.mxu0
      %v1815 = vadd.f32 0.0, %v1814
      %v1816 = vpop.f32.mrf.mxu0
      %1817 = vmatprep.mubr.bf16.mxu0 0
      %1818 = vmatmul.mubr.bf16.gmra.mxu0 %v1695
      %v1819 = vpop.f32.mrf.mxu0
      %v1820 = vadd.f32 0.0, %v1819
      %v1821 = vpop.f32.mrf.mxu0
      %v1822 = vpop.f32.mrf.mxu0
      %v1823 = vadd.f32 0.0, %v1822
      %v1824 = vpop.f32.mrf.mxu0
      %1825 = vmatprep.mubr.bf16.mxu0 0
      %1826 = vmatmul.mubr.bf16.gmra.mxu0 %v1698
      %v1827 = vpop.f32.mrf.mxu0
      %v1828 = vadd.f32 0.0, %v1827
      %v1829 = vpop.f32.mrf.mxu0
      %v1830 = vpop.f32.mrf.mxu0
      %v1831 = vadd.f32 0.0, %v1830
      %v1832 = vpop.f32.mrf.mxu0
      %1833 = vmatprep.mubr.bf16.mxu0 0
      %1834 = vmatmul.mubr.bf16.gmra.mxu0 %v1701
      %v1835 = vpop.f32.mrf.mxu0
      %v1836 = vadd.f32 0.0, %v1835
      %v1837 = vpop.f32.mrf.mxu0
      %v1838 = vpop.f32.mrf.mxu0
      %v1839 = vadd.f32 0.0, %v1838
      %v1840 = vpop.f32.mrf.mxu0
      %1841 = vmatprep.mubr.bf16.mxu0 0
      %1842 = vmatmul.mubr.bf16.gmra.mxu0 %v1704
      %v1843 = vpop.f32.mrf.mxu0
      %v1844 = vadd.f32 0.0, %v1843
      %v1845 = vpop.f32.mrf.mxu0
      %v1846 = vpop.f32.mrf.mxu0
      %v1847 = vadd.f32 0.0, %v1846
      %v1848 = vpop.f32.mrf.mxu0
      %1849 = vmatprep.mubr.bf16.mxu0 0
      %1850 = vmatmul.mubr.bf16.gmra.mxu0 %v1707
      %v1851 = vpop.f32.mrf.mxu0
      %v1852 = vadd.f32 0.0, %v1851
      %v1853 = vpop.f32.mrf.mxu0
      %v1854 = vpop.f32.mrf.mxu0
      %v1855 = vadd.f32 0.0, %v1854
      %v1856 = vpop.f32.mrf.mxu0
      %1857 = vmatprep.mubr.bf16.mxu0 0
      %1858 = vmatmul.mubr.bf16.gmra.mxu0 %v1710
      %v1859 = vpop.f32.mrf.mxu0
      %v1860 = vadd.f32 0.0, %v1859
      %v1861 = vpop.f32.mrf.mxu0
      %v1862 = vpop.f32.mrf.mxu0
      %v1863 = vadd.f32 0.0, %v1862
      %v1864 = vpop.f32.mrf.mxu0
      %1865 = vmatprep.mubr.bf16.mxu0 0
      %1866 = vmatmul.mubr.bf16.gmra.mxu0 %v1713
      %v1867 = vpop.f32.mrf.mxu0
      %v1868 = vadd.f32 0.0, %v1867
      %v1869 = vpop.f32.mrf.mxu0
      %v1870 = vpop.f32.mrf.mxu0
      %v1871 = vadd.f32 0.0, %v1870
      %v1872 = vpop.f32.mrf.mxu0
      %1873 = vmatprep.mubr.bf16.mxu0 0
      %1874 = vmatmul.mubr.bf16.gmra.mxu0 %v1716
      %v1875 = vpop.f32.mrf.mxu0
      %v1876 = vadd.f32 0.0, %v1875
      %v1877 = vpop.f32.mrf.mxu0
      %v1878 = vpop.f32.mrf.mxu0
      %v1879 = vadd.f32 0.0, %v1878
      %v1880 = vpop.f32.mrf.mxu0
      %1881 = vdwg.mxu0
      %v1882 = vadd.f32 %v1588, %v1756
      %v1883 = vadd.f32 %v1589, %v1759
      %v1884 = vadd.f32 %v1590, %v1764
      %v1885 = vadd.f32 %v1591, %v1767
      %v1886 = vadd.f32 %v1592, %v1772
      %v1887 = vadd.f32 %v1593, %v1775
      %v1888 = vadd.f32 %v1594, %v1780
      %v1889 = vadd.f32 %v1595, %v1783
      %v1890 = vadd.f32 %v1596, %v1788
      %v1891 = vadd.f32 %v1597, %v1791
      %v1892 = vadd.f32 %v1598, %v1796
      %v1893 = vadd.f32 %v1599, %v1799
      %v1894 = vadd.f32 %v1600, %v1804
      %v1895 = vadd.f32 %v1601, %v1807
      %v1896 = vadd.f32 %v1602, %v1812
      %v1897 = vadd.f32 %v1603, %v1815
      %v1898 = vadd.f32 %v1604, %v1820
      %v1899 = vadd.f32 %v1605, %v1823
      %v1900 = vadd.f32 %v1606, %v1828
      %v1901 = vadd.f32 %v1607, %v1831
      %v1902 = vadd.f32 %v1608, %v1836
      %v1903 = vadd.f32 %v1609, %v1839
      %v1904 = vadd.f32 %v1610, %v1844
      %v1905 = vadd.f32 %v1611, %v1847
      %v1906 = vadd.f32 %v1612, %v1852
      %v1907 = vadd.f32 %v1613, %v1855
      %v1908 = vadd.f32 %v1614, %v1860
      %v1909 = vadd.f32 %v1615, %v1863
      %v1910 = vadd.f32 %v1616, %v1868
      %v1911 = vadd.f32 %v1617, %v1871
      %v1912 = vadd.f32 %v1618, %v1876
      %v1913 = vadd.f32 %v1619, %v1879
      %v1914 = vld [vmem:[#allocation2 + $0x2] sm:$0xff]
      %v1915 = vld [vmem:[#allocation2 + $0xa] sm:$0xff]
      %v1916 = vld [vmem:[#allocation2 + $0x1a] sm:$0xff]
      %v1917 = vld [vmem:[#allocation2 + $0x22] sm:$0xff]
      %v1918 = vld [vmem:[#allocation2 + $0x32] sm:$0xff]
      %v1919 = vld [vmem:[#allocation2 + $0x3a] sm:$0xff]
      %v1920 = vld [vmem:[#allocation2 + $0x4a] sm:$0xff]
      %v1921 = vld [vmem:[#allocation2 + $0x52] sm:$0xff]
      %v1922 = vld [vmem:[#allocation2 + $0x62] sm:$0xff]
      %v1923 = vld [vmem:[#allocation2 + $0x6a] sm:$0xff]
      %v1924 = vld [vmem:[#allocation2 + $0x7a] sm:$0xff]
      %v1925 = vld [vmem:[#allocation2 + $0x82] sm:$0xff]
      %v1926 = vld [vmem:[#allocation2 + $0x92] sm:$0xff]
      %v1927 = vld [vmem:[#allocation2 + $0x9a] sm:$0xff]
      %v1928 = vld [vmem:[#allocation2 + $0xaa] sm:$0xff]
      %v1929 = vld [vmem:[#allocation2 + $0xb2] sm:$0xff]
      %v1930 = vld [vmem:[#allocation2 + $0xc2] sm:$0xff]
      %v1931 = vld [vmem:[#allocation2 + $0xca] sm:$0xff]
      %v1932 = vld [vmem:[#allocation2 + $0xda] sm:$0xff]
      %v1933 = vld [vmem:[#allocation2 + $0xe2] sm:$0xff]
      %v1934 = vld [vmem:[#allocation2 + $0xf2] sm:$0xff]
      %v1935 = vld [vmem:[#allocation2 + $0xfa] sm:$0xff]
      %v1936 = vld [vmem:[#allocation2 + $0x10a] sm:$0xff]
      %v1937 = vld [vmem:[#allocation2 + $0x112] sm:$0xff]
      %v1938 = vld [vmem:[#allocation2 + $0x122] sm:$0xff]
      %v1939 = vld [vmem:[#allocation2 + $0x12a] sm:$0xff]
      %v1940 = vld [vmem:[#allocation2 + $0x13a] sm:$0xff]
      %v1941 = vld [vmem:[#allocation2 + $0x142] sm:$0xff]
      %v1942 = vld [vmem:[#allocation2 + $0x152] sm:$0xff]
      %v1943 = vld [vmem:[#allocation2 + $0x15a] sm:$0xff]
      %v1944 = vld [vmem:[#allocation2 + $0x16a] sm:$0xff]
      %v1945 = vld [vmem:[#allocation2 + $0x172] sm:$0xff]
      %v1946 = vpack.c.bf16 %v1915, %v1914
      %v1947 = vpack.c.bf16 %v1917, %v1916
      %v1948 = vpack.c.bf16 %v1919, %v1918
      %v1949 = vpack.c.bf16 %v1921, %v1920
      %v1950 = vpack.c.bf16 %v1923, %v1922
      %v1951 = vpack.c.bf16 %v1925, %v1924
      %v1952 = vpack.c.bf16 %v1927, %v1926
      %v1953 = vpack.c.bf16 %v1929, %v1928
      %v1954 = vpack.c.bf16 %v1931, %v1930
      %v1955 = vpack.c.bf16 %v1933, %v1932
      %v1956 = vpack.c.bf16 %v1935, %v1934
      %v1957 = vpack.c.bf16 %v1937, %v1936
      %v1958 = vpack.c.bf16 %v1939, %v1938
      %v1959 = vpack.c.bf16 %v1941, %v1940
      %v1960 = vpack.c.bf16 %v1943, %v1942
      %v1961 = vpack.c.bf16 %v1945, %v1944
      %s1962 = scalar_lea.vmem %s4, 4
      %v1963 = vld [vmem:[%s1962] sm:$0x3]
      %v1965 = vsel %vm525, %v1946, 0
      %v1968 = vsel %vm525, %v1947, 0
      %v1971 = vsel %vm525, %v1948, 0
      %v1974 = vsel %vm525, %v1949, 0
      %v1977 = vsel %vm525, %v1950, 0
      %v1980 = vsel %vm525, %v1951, 0
      %v1983 = vsel %vm525, %v1952, 0
      %v1986 = vsel %vm525, %v1953, 0
      %v1989 = vsel %vm525, %v1954, 0
      %v1992 = vsel %vm525, %v1955, 0
      %v1995 = vsel %vm525, %v1956, 0
      %v1998 = vsel %vm525, %v1957, 0
      %v2001 = vsel %vm525, %v1958, 0
      %v2004 = vsel %vm525, %v1959, 0
      %v2007 = vsel %vm525, %v1960, 0
      %v2010 = vsel %vm525, %v1961, 0
      %v2013 = vsel %vm1417, %v1963, 0
      %2015 = vmatprep.subr.bf16.mxu0 0
      %2016 = vmatpush1.bf16.msra.mxu0 0
      %2017 = vmatprep.subr.bf16.mxu0 0
      %2018 = vmatpush1.bf16.msra.mxu0 0
      %2019 = vmatprep.subr.bf16.mxu0 0
      %2020 = vmatpush1.bf16.msra.mxu0 0
      %2021 = vmatprep.subr.bf16.mxu0 0
      %2022 = vmatpush1.bf16.msra.mxu0 0
      %2023 = vmatprep.subr.bf16.mxu0 0
      %2024 = vmatpush1.bf16.msra.mxu0 0
      %2025 = vmatprep.subr.bf16.mxu0 0
      %2026 = vmatpush1.bf16.msra.mxu0 0
      %2027 = vmatprep.subr.bf16.mxu0 0
      %2028 = vmatpush1.bf16.msra.mxu0 0
      %2029 = vmatprep.subr.bf16.mxu0 0
      %2030 = vmatpush1.bf16.msra.mxu0 %v2013
      %2031 = vmatprep.subr.bf16.mxu0 0
      %2032 = vmatpush2.bf16.msra.mxu0 0
      %2033 = vmatprep.subr.bf16.mxu0 0
      %2034 = vmatpush2.bf16.msra.mxu0 0
      %2035 = vmatprep.subr.bf16.mxu0 0
      %2036 = vmatpush2.bf16.msra.mxu0 0
      %2037 = vmatprep.subr.bf16.mxu0 0
      %2038 = vmatpush2.bf16.msra.mxu0 0
      %2039 = vmatprep.subr.bf16.mxu0 0
      %2040 = vmatpush2.bf16.msra.mxu0 0
      %2041 = vmatprep.subr.bf16.mxu0 0
      %2042 = vmatpush2.bf16.msra.mxu0 0
      %2043 = vmatprep.subr.bf16.mxu0 0
      %2044 = vmatpush2.bf16.msra.mxu0 0
      %2045 = vmatprep.subr.bf16.mxu0 0
      %2046 = vmatpush2.bf16.msra.mxu0 0
      %2047 = vmatprep.mubr.bf16.mxu0 0
      %2048 = vmatmul.mubr.bf16.gmra.mxu0 %v1965
      %v2049 = vpop.f32.mrf.mxu0
      %v2050 = vadd.f32 0.0, %v2049
      %v2051 = vpop.f32.mrf.mxu0
      %v2052 = vpop.f32.mrf.mxu0
      %v2053 = vadd.f32 0.0, %v2052
      %v2054 = vpop.f32.mrf.mxu0
      %2055 = vmatprep.mubr.bf16.mxu0 0
      %2056 = vmatmul.mubr.bf16.gmra.mxu0 %v1968
      %v2057 = vpop.f32.mrf.mxu0
      %v2058 = vadd.f32 0.0, %v2057
      %v2059 = vpop.f32.mrf.mxu0
      %v2060 = vpop.f32.mrf.mxu0
      %v2061 = vadd.f32 0.0, %v2060
      %v2062 = vpop.f32.mrf.mxu0
      %2063 = vmatprep.mubr.bf16.mxu0 0
      %2064 = vmatmul.mubr.bf16.gmra.mxu0 %v1971
      %v2065 = vpop.f32.mrf.mxu0
      %v2066 = vadd.f32 0.0, %v2065
      %v2067 = vpop.f32.mrf.mxu0
      %v2068 = vpop.f32.mrf.mxu0
      %v2069 = vadd.f32 0.0, %v2068
      %v2070 = vpop.f32.mrf.mxu0
      %2071 = vmatprep.mubr.bf16.mxu0 0
      %2072 = vmatmul.mubr.bf16.gmra.mxu0 %v1974
      %v2073 = vpop.f32.mrf.mxu0
      %v2074 = vadd.f32 0.0, %v2073
      %v2075 = vpop.f32.mrf.mxu0
      %v2076 = vpop.f32.mrf.mxu0
      %v2077 = vadd.f32 0.0, %v2076
      %v2078 = vpop.f32.mrf.mxu0
      %2079 = vmatprep.mubr.bf16.mxu0 0
      %2080 = vmatmul.mubr.bf16.gmra.mxu0 %v1977
      %v2081 = vpop.f32.mrf.mxu0
      %v2082 = vadd.f32 0.0, %v2081
      %v2083 = vpop.f32.mrf.mxu0
      %v2084 = vpop.f32.mrf.mxu0
      %v2085 = vadd.f32 0.0, %v2084
      %v2086 = vpop.f32.mrf.mxu0
      %2087 = vmatprep.mubr.bf16.mxu0 0
      %2088 = vmatmul.mubr.bf16.gmra.mxu0 %v1980
      %v2089 = vpop.f32.mrf.mxu0
      %v2090 = vadd.f32 0.0, %v2089
      %v2091 = vpop.f32.mrf.mxu0
      %v2092 = vpop.f32.mrf.mxu0
      %v2093 = vadd.f32 0.0, %v2092
      %v2094 = vpop.f32.mrf.mxu0
      %2095 = vmatprep.mubr.bf16.mxu0 0
      %2096 = vmatmul.mubr.bf16.gmra.mxu0 %v1983
      %v2097 = vpop.f32.mrf.mxu0
      %v2098 = vadd.f32 0.0, %v2097
      %v2099 = vpop.f32.mrf.mxu0
      %v2100 = vpop.f32.mrf.mxu0
      %v2101 = vadd.f32 0.0, %v2100
      %v2102 = vpop.f32.mrf.mxu0
      %2103 = vmatprep.mubr.bf16.mxu0 0
      %2104 = vmatmul.mubr.bf16.gmra.mxu0 %v1986
      %v2105 = vpop.f32.mrf.mxu0
      %v2106 = vadd.f32 0.0, %v2105
      %v2107 = vpop.f32.mrf.mxu0
      %v2108 = vpop.f32.mrf.mxu0
      %v2109 = vadd.f32 0.0, %v2108
      %v2110 = vpop.f32.mrf.mxu0
      %2111 = vmatprep.mubr.bf16.mxu0 0
      %2112 = vmatmul.mubr.bf16.gmra.mxu0 %v1989
      %v2113 = vpop.f32.mrf.mxu0
      %v2114 = vadd.f32 0.0, %v2113
      %v2115 = vpop.f32.mrf.mxu0
      %v2116 = vpop.f32.mrf.mxu0
      %v2117 = vadd.f32 0.0, %v2116
      %v2118 = vpop.f32.mrf.mxu0
      %2119 = vmatprep.mubr.bf16.mxu0 0
      %2120 = vmatmul.mubr.bf16.gmra.mxu0 %v1992
      %v2121 = vpop.f32.mrf.mxu0
      %v2122 = vadd.f32 0.0, %v2121
      %v2123 = vpop.f32.mrf.mxu0
      %v2124 = vpop.f32.mrf.mxu0
      %v2125 = vadd.f32 0.0, %v2124
      %v2126 = vpop.f32.mrf.mxu0
      %2127 = vmatprep.mubr.bf16.mxu0 0
      %2128 = vmatmul.mubr.bf16.gmra.mxu0 %v1995
      %v2129 = vpop.f32.mrf.mxu0
      %v2130 = vadd.f32 0.0, %v2129
      %v2131 = vpop.f32.mrf.mxu0
      %v2132 = vpop.f32.mrf.mxu0
      %v2133 = vadd.f32 0.0, %v2132
      %v2134 = vpop.f32.mrf.mxu0
      %2135 = vmatprep.mubr.bf16.mxu0 0
      %2136 = vmatmul.mubr.bf16.gmra.mxu0 %v1998
      %v2137 = vpop.f32.mrf.mxu0
      %v2138 = vadd.f32 0.0, %v2137
      %v2139 = vpop.f32.mrf.mxu0
      %v2140 = vpop.f32.mrf.mxu0
      %v2141 = vadd.f32 0.0, %v2140
      %v2142 = vpop.f32.mrf.mxu0
      %2143 = vmatprep.mubr.bf16.mxu0 0
      %2144 = vmatmul.mubr.bf16.gmra.mxu0 %v2001
      %v2145 = vpop.f32.mrf.mxu0
      %v2146 = vadd.f32 0.0, %v2145
      %v2147 = vpop.f32.mrf.mxu0
      %v2148 = vpop.f32.mrf.mxu0
      %v2149 = vadd.f32 0.0, %v2148
      %v2150 = vpop.f32.mrf.mxu0
      %2151 = vmatprep.mubr.bf16.mxu0 0
      %2152 = vmatmul.mubr.bf16.gmra.mxu0 %v2004
      %v2153 = vpop.f32.mrf.mxu0
      %v2154 = vadd.f32 0.0, %v2153
      %v2155 = vpop.f32.mrf.mxu0
      %v2156 = vpop.f32.mrf.mxu0
      %v2157 = vadd.f32 0.0, %v2156
      %v2158 = vpop.f32.mrf.mxu0
      %2159 = vmatprep.mubr.bf16.mxu0 0
      %2160 = vmatmul.mubr.bf16.gmra.mxu0 %v2007
      %v2161 = vpop.f32.mrf.mxu0
      %v2162 = vadd.f32 0.0, %v2161
      %v2163 = vpop.f32.mrf.mxu0
      %v2164 = vpop.f32.mrf.mxu0
      %v2165 = vadd.f32 0.0, %v2164
      %v2166 = vpop.f32.mrf.mxu0
      %2167 = vmatprep.mubr.bf16.mxu0 0
      %2168 = vmatmul.mubr.bf16.gmra.mxu0 %v2010
      %v2169 = vpop.f32.mrf.mxu0
      %v2170 = vadd.f32 0.0, %v2169
      %v2171 = vpop.f32.mrf.mxu0
      %v2172 = vpop.f32.mrf.mxu0
      %v2173 = vadd.f32 0.0, %v2172
      %v2174 = vpop.f32.mrf.mxu0
      %2175 = vdwg.mxu0
      %v2176 = vadd.f32 %v1882, %v2050
      %v2177 = vadd.f32 %v1883, %v2053
      %v2178 = vadd.f32 %v1884, %v2058
      %v2179 = vadd.f32 %v1885, %v2061
      %v2180 = vadd.f32 %v1886, %v2066
      %v2181 = vadd.f32 %v1887, %v2069
      %v2182 = vadd.f32 %v1888, %v2074
      %v2183 = vadd.f32 %v1889, %v2077
      %v2184 = vadd.f32 %v1890, %v2082
      %v2185 = vadd.f32 %v1891, %v2085
      %v2186 = vadd.f32 %v1892, %v2090
      %v2187 = vadd.f32 %v1893, %v2093
      %v2188 = vadd.f32 %v1894, %v2098
      %v2189 = vadd.f32 %v1895, %v2101
      %v2190 = vadd.f32 %v1896, %v2106
      %v2191 = vadd.f32 %v1897, %v2109
      %v2192 = vadd.f32 %v1898, %v2114
      %v2193 = vadd.f32 %v1899, %v2117
      %v2194 = vadd.f32 %v1900, %v2122
      %v2195 = vadd.f32 %v1901, %v2125
      %v2196 = vadd.f32 %v1902, %v2130
      %v2197 = vadd.f32 %v1903, %v2133
      %v2198 = vadd.f32 %v1904, %v2138
      %v2199 = vadd.f32 %v1905, %v2141
      %v2200 = vadd.f32 %v1906, %v2146
      %v2201 = vadd.f32 %v1907, %v2149
      %v2202 = vadd.f32 %v1908, %v2154
      %v2203 = vadd.f32 %v1909, %v2157
      %v2204 = vadd.f32 %v1910, %v2162
      %v2205 = vadd.f32 %v1911, %v2165
      %v2206 = vadd.f32 %v1912, %v2170
      %v2207 = vadd.f32 %v1913, %v2173
      %v2208 = vld [vmem:[%s451] sm:$0xff]
      %v2209 = vld [vmem:[%s451 + $0x8] sm:$0xff]
      %v2210 = vld [vmem:[%s451 + $0x18] sm:$0xff]
      %v2211 = vld [vmem:[%s451 + $0x20] sm:$0xff]
      %v2212 = vld [vmem:[%s451 + $0x30] sm:$0xff]
      %v2213 = vld [vmem:[%s451 + $0x38] sm:$0xff]
      %v2214 = vld [vmem:[%s451 + $0x48] sm:$0xff]
      %v2215 = vld [vmem:[%s451 + $0x50] sm:$0xff]
      %v2216 = vld [vmem:[%s451 + $0x60] sm:$0xff]
      %v2217 = vld [vmem:[%s451 + $0x68] sm:$0xff]
      %v2218 = vld [vmem:[%s451 + $0x78] sm:$0xff]
      %v2219 = vld [vmem:[%s451 + $0x80] sm:$0xff]
      %v2220 = vld [vmem:[%s451 + $0x90] sm:$0xff]
      %v2221 = vld [vmem:[%s451 + $0x98] sm:$0xff]
      %v2222 = vld [vmem:[%s451 + $0xa8] sm:$0xff]
      %v2223 = vld [vmem:[%s451 + $0xb0] sm:$0xff]
      %v2224 = vld [vmem:[%s451 + $0xc0] sm:$0xff]
      %v2225 = vld [vmem:[%s451 + $0xc8] sm:$0xff]
      %v2226 = vld [vmem:[%s451 + $0xd8] sm:$0xff]
      %v2227 = vld [vmem:[%s451 + $0xe0] sm:$0xff]
      %v2228 = vld [vmem:[%s451 + $0xf0] sm:$0xff]
      %v2229 = vld [vmem:[%s451 + $0xf8] sm:$0xff]
      %v2230 = vld [vmem:[%s451 + $0x108] sm:$0xff]
      %v2231 = vld [vmem:[%s451 + $0x110] sm:$0xff]
      %v2232 = vld [vmem:[%s451 + $0x120] sm:$0xff]
      %v2233 = vld [vmem:[%s451 + $0x128] sm:$0xff]
      %v2234 = vld [vmem:[%s451 + $0x138] sm:$0xff]
      %v2235 = vld [vmem:[%s451 + $0x140] sm:$0xff]
      %v2236 = vld [vmem:[%s451 + $0x150] sm:$0xff]
      %v2237 = vld [vmem:[%s451 + $0x158] sm:$0xff]
      %v2238 = vld [vmem:[%s451 + $0x168] sm:$0xff]
      %v2239 = vld [vmem:[%s451 + $0x170] sm:$0xff]
      %v2240 = vpack.c.bf16 %v2209, %v2208
      %v2241 = vpack.c.bf16 %v2211, %v2210
      %v2242 = vpack.c.bf16 %v2213, %v2212
      %v2243 = vpack.c.bf16 %v2215, %v2214
      %v2244 = vpack.c.bf16 %v2217, %v2216
      %v2245 = vpack.c.bf16 %v2219, %v2218
      %v2246 = vpack.c.bf16 %v2221, %v2220
      %v2247 = vpack.c.bf16 %v2223, %v2222
      %v2248 = vpack.c.bf16 %v2225, %v2224
      %v2249 = vpack.c.bf16 %v2227, %v2226
      %v2250 = vpack.c.bf16 %v2229, %v2228
      %v2251 = vpack.c.bf16 %v2231, %v2230
      %v2252 = vpack.c.bf16 %v2233, %v2232
      %v2253 = vpack.c.bf16 %v2235, %v2234
      %v2254 = vpack.c.bf16 %v2237, %v2236
      %v2255 = vpack.c.bf16 %v2239, %v2238
      %s2256 = scalar_lea.vmem %s4, 6
      %v2257 = vld [vmem:[%s2256] sm:$0x3]
      %v2259 = vsel %vm525, %v2240, 0
      %v2262 = vsel %vm525, %v2241, 0
      %v2265 = vsel %vm525, %v2242, 0
      %v2268 = vsel %vm525, %v2243, 0
      %v2271 = vsel %vm525, %v2244, 0
      %v2274 = vsel %vm525, %v2245, 0
      %v2277 = vsel %vm525, %v2246, 0
      %v2280 = vsel %vm525, %v2247, 0
      %v2283 = vsel %vm525, %v2248, 0
      %v2286 = vsel %vm525, %v2249, 0
      %v2289 = vsel %vm525, %v2250, 0
      %v2292 = vsel %vm525, %v2251, 0
      %v2295 = vsel %vm525, %v2252, 0
      %v2298 = vsel %vm525, %v2253, 0
      %v2301 = vsel %vm525, %v2254, 0
      %v2304 = vsel %vm525, %v2255, 0
      %v2307 = vsel %vm1417, %v2257, 0
      %2309 = vmatprep.subr.bf16.mxu0 0
      %2310 = vmatpush1.bf16.msra.mxu0 0
      %2311 = vmatprep.subr.bf16.mxu0 0
      %2312 = vmatpush1.bf16.msra.mxu0 0
      %2313 = vmatprep.subr.bf16.mxu0 0
      %2314 = vmatpush1.bf16.msra.mxu0 0
      %2315 = vmatprep.subr.bf16.mxu0 0
      %2316 = vmatpush1.bf16.msra.mxu0 0
      %2317 = vmatprep.subr.bf16.mxu0 0
      %2318 = vmatpush1.bf16.msra.mxu0 0
      %2319 = vmatprep.subr.bf16.mxu0 0
      %2320 = vmatpush1.bf16.msra.mxu0 0
      %2321 = vmatprep.subr.bf16.mxu0 0
      %2322 = vmatpush1.bf16.msra.mxu0 0
      %2323 = vmatprep.subr.bf16.mxu0 0
      %2324 = vmatpush1.bf16.msra.mxu0 %v2307
      %2325 = vmatprep.subr.bf16.mxu0 0
      %2326 = vmatpush2.bf16.msra.mxu0 0
      %2327 = vmatprep.subr.bf16.mxu0 0
      %2328 = vmatpush2.bf16.msra.mxu0 0
      %2329 = vmatprep.subr.bf16.mxu0 0
      %2330 = vmatpush2.bf16.msra.mxu0 0
      %2331 = vmatprep.subr.bf16.mxu0 0
      %2332 = vmatpush2.bf16.msra.mxu0 0
      %2333 = vmatprep.subr.bf16.mxu0 0
      %2334 = vmatpush2.bf16.msra.mxu0 0
      %2335 = vmatprep.subr.bf16.mxu0 0
      %2336 = vmatpush2.bf16.msra.mxu0 0
      %2337 = vmatprep.subr.bf16.mxu0 0
      %2338 = vmatpush2.bf16.msra.mxu0 0
      %2339 = vmatprep.subr.bf16.mxu0 0
      %2340 = vmatpush2.bf16.msra.mxu0 0
      %2341 = vmatprep.mubr.bf16.mxu0 0
      %2342 = vmatmul.mubr.bf16.gmra.mxu0 %v2259
      %v2343 = vpop.f32.mrf.mxu0
      %v2344 = vadd.f32 0.0, %v2343
      %v2345 = vpop.f32.mrf.mxu0
      %v2346 = vpop.f32.mrf.mxu0
      %v2347 = vadd.f32 0.0, %v2346
      %v2348 = vpop.f32.mrf.mxu0
      %2349 = vmatprep.mubr.bf16.mxu0 0
      %2350 = vmatmul.mubr.bf16.gmra.mxu0 %v2262
      %v2351 = vpop.f32.mrf.mxu0
      %v2352 = vadd.f32 0.0, %v2351
      %v2353 = vpop.f32.mrf.mxu0
      %v2354 = vpop.f32.mrf.mxu0
      %v2355 = vadd.f32 0.0, %v2354
      %v2356 = vpop.f32.mrf.mxu0
      %2357 = vmatprep.mubr.bf16.mxu0 0
      %2358 = vmatmul.mubr.bf16.gmra.mxu0 %v2265
      %v2359 = vpop.f32.mrf.mxu0
      %v2360 = vadd.f32 0.0, %v2359
      %v2361 = vpop.f32.mrf.mxu0
      %v2362 = vpop.f32.mrf.mxu0
      %v2363 = vadd.f32 0.0, %v2362
      %v2364 = vpop.f32.mrf.mxu0
      %2365 = vmatprep.mubr.bf16.mxu0 0
      %2366 = vmatmul.mubr.bf16.gmra.mxu0 %v2268
      %v2367 = vpop.f32.mrf.mxu0
      %v2368 = vadd.f32 0.0, %v2367
      %v2369 = vpop.f32.mrf.mxu0
      %v2370 = vpop.f32.mrf.mxu0
      %v2371 = vadd.f32 0.0, %v2370
      %v2372 = vpop.f32.mrf.mxu0
      %2373 = vmatprep.mubr.bf16.mxu0 0
      %2374 = vmatmul.mubr.bf16.gmra.mxu0 %v2271
      %v2375 = vpop.f32.mrf.mxu0
      %v2376 = vadd.f32 0.0, %v2375
      %v2377 = vpop.f32.mrf.mxu0
      %v2378 = vpop.f32.mrf.mxu0
      %v2379 = vadd.f32 0.0, %v2378
      %v2380 = vpop.f32.mrf.mxu0
      %2381 = vmatprep.mubr.bf16.mxu0 0
      %2382 = vmatmul.mubr.bf16.gmra.mxu0 %v2274
      %v2383 = vpop.f32.mrf.mxu0
      %v2384 = vadd.f32 0.0, %v2383
      %v2385 = vpop.f32.mrf.mxu0
      %v2386 = vpop.f32.mrf.mxu0
      %v2387 = vadd.f32 0.0, %v2386
      %v2388 = vpop.f32.mrf.mxu0
      %2389 = vmatprep.mubr.bf16.mxu0 0
      %2390 = vmatmul.mubr.bf16.gmra.mxu0 %v2277
      %v2391 = vpop.f32.mrf.mxu0
      %v2392 = vadd.f32 0.0, %v2391
      %v2393 = vpop.f32.mrf.mxu0
      %v2394 = vpop.f32.mrf.mxu0
      %v2395 = vadd.f32 0.0, %v2394
      %v2396 = vpop.f32.mrf.mxu0
      %2397 = vmatprep.mubr.bf16.mxu0 0
      %2398 = vmatmul.mubr.bf16.gmra.mxu0 %v2280
      %v2399 = vpop.f32.mrf.mxu0
      %v2400 = vadd.f32 0.0, %v2399
      %v2401 = vpop.f32.mrf.mxu0
      %v2402 = vpop.f32.mrf.mxu0
      %v2403 = vadd.f32 0.0, %v2402
      %v2404 = vpop.f32.mrf.mxu0
      %2405 = vmatprep.mubr.bf16.mxu0 0
      %2406 = vmatmul.mubr.bf16.gmra.mxu0 %v2283
      %v2407 = vpop.f32.mrf.mxu0
      %v2408 = vadd.f32 0.0, %v2407
      %v2409 = vpop.f32.mrf.mxu0
      %v2410 = vpop.f32.mrf.mxu0
      %v2411 = vadd.f32 0.0, %v2410
      %v2412 = vpop.f32.mrf.mxu0
      %2413 = vmatprep.mubr.bf16.mxu0 0
      %2414 = vmatmul.mubr.bf16.gmra.mxu0 %v2286
      %v2415 = vpop.f32.mrf.mxu0
      %v2416 = vadd.f32 0.0, %v2415
      %v2417 = vpop.f32.mrf.mxu0
      %v2418 = vpop.f32.mrf.mxu0
      %v2419 = vadd.f32 0.0, %v2418
      %v2420 = vpop.f32.mrf.mxu0
      %2421 = vmatprep.mubr.bf16.mxu0 0
      %2422 = vmatmul.mubr.bf16.gmra.mxu0 %v2289
      %v2423 = vpop.f32.mrf.mxu0
      %v2424 = vadd.f32 0.0, %v2423
      %v2425 = vpop.f32.mrf.mxu0
      %v2426 = vpop.f32.mrf.mxu0
      %v2427 = vadd.f32 0.0, %v2426
      %v2428 = vpop.f32.mrf.mxu0
      %2429 = vmatprep.mubr.bf16.mxu0 0
      %2430 = vmatmul.mubr.bf16.gmra.mxu0 %v2292
      %v2431 = vpop.f32.mrf.mxu0
      %v2432 = vadd.f32 0.0, %v2431
      %v2433 = vpop.f32.mrf.mxu0
      %v2434 = vpop.f32.mrf.mxu0
      %v2435 = vadd.f32 0.0, %v2434
      %v2436 = vpop.f32.mrf.mxu0
      %2437 = vmatprep.mubr.bf16.mxu0 0
      %2438 = vmatmul.mubr.bf16.gmra.mxu0 %v2295
      %v2439 = vpop.f32.mrf.mxu0
      %v2440 = vadd.f32 0.0, %v2439
      %v2441 = vpop.f32.mrf.mxu0
      %v2442 = vpop.f32.mrf.mxu0
      %v2443 = vadd.f32 0.0, %v2442
      %v2444 = vpop.f32.mrf.mxu0
      %2445 = vmatprep.mubr.bf16.mxu0 0
      %2446 = vmatmul.mubr.bf16.gmra.mxu0 %v2298
      %v2447 = vpop.f32.mrf.mxu0
      %v2448 = vadd.f32 0.0, %v2447
      %v2449 = vpop.f32.mrf.mxu0
      %v2450 = vpop.f32.mrf.mxu0
      %v2451 = vadd.f32 0.0, %v2450
      %v2452 = vpop.f32.mrf.mxu0
      %2453 = vmatprep.mubr.bf16.mxu0 0
      %2454 = vmatmul.mubr.bf16.gmra.mxu0 %v2301
      %v2455 = vpop.f32.mrf.mxu0
      %v2456 = vadd.f32 0.0, %v2455
      %v2457 = vpop.f32.mrf.mxu0
      %v2458 = vpop.f32.mrf.mxu0
      %v2459 = vadd.f32 0.0, %v2458
      %v2460 = vpop.f32.mrf.mxu0
      %2461 = vmatprep.mubr.bf16.mxu0 0
      %2462 = vmatmul.mubr.bf16.gmra.mxu0 %v2304
      %v2463 = vpop.f32.mrf.mxu0
      %v2464 = vadd.f32 0.0, %v2463
      %v2465 = vpop.f32.mrf.mxu0
      %v2466 = vpop.f32.mrf.mxu0
      %v2467 = vadd.f32 0.0, %v2466
      %v2468 = vpop.f32.mrf.mxu0
      %2469 = vdwg.mxu0
      %v2470 = vadd.f32 %v2176, %v2344
      %v2471 = vadd.f32 %v2177, %v2347
      %v2472 = vadd.f32 %v2178, %v2352
      %v2473 = vadd.f32 %v2179, %v2355
      %v2474 = vadd.f32 %v2180, %v2360
      %v2475 = vadd.f32 %v2181, %v2363
      %v2476 = vadd.f32 %v2182, %v2368
      %v2477 = vadd.f32 %v2183, %v2371
      %v2478 = vadd.f32 %v2184, %v2376
      %v2479 = vadd.f32 %v2185, %v2379
      %v2480 = vadd.f32 %v2186, %v2384
      %v2481 = vadd.f32 %v2187, %v2387
      %v2482 = vadd.f32 %v2188, %v2392
      %v2483 = vadd.f32 %v2189, %v2395
      %v2484 = vadd.f32 %v2190, %v2400
      %v2485 = vadd.f32 %v2191, %v2403
      %v2486 = vadd.f32 %v2192, %v2408
      %v2487 = vadd.f32 %v2193, %v2411
      %v2488 = vadd.f32 %v2194, %v2416
      %v2489 = vadd.f32 %v2195, %v2419
      %v2490 = vadd.f32 %v2196, %v2424
      %v2491 = vadd.f32 %v2197, %v2427
      %v2492 = vadd.f32 %v2198, %v2432
      %v2493 = vadd.f32 %v2199, %v2435
      %v2494 = vadd.f32 %v2200, %v2440
      %v2495 = vadd.f32 %v2201, %v2443
      %v2496 = vadd.f32 %v2202, %v2448
      %v2497 = vadd.f32 %v2203, %v2451
      %v2498 = vadd.f32 %v2204, %v2456
      %v2499 = vadd.f32 %v2205, %v2459
      %v2500 = vadd.f32 %v2206, %v2464
      %v2501 = vadd.f32 %v2207, %v2467
      %v2502 = vld [vmem:[%s451 + $0x1] sm:$0xff]
      %v2503 = vld [vmem:[%s451 + $0x9] sm:$0xff]
      %v2504 = vld [vmem:[%s451 + $0x19] sm:$0xff]
      %v2505 = vld [vmem:[%s451 + $0x21] sm:$0xff]
      %v2506 = vld [vmem:[%s451 + $0x31] sm:$0xff]
      %v2507 = vld [vmem:[%s451 + $0x39] sm:$0xff]
      %v2508 = vld [vmem:[%s451 + $0x49] sm:$0xff]
      %v2509 = vld [vmem:[%s451 + $0x51] sm:$0xff]
      %v2510 = vld [vmem:[%s451 + $0x61] sm:$0xff]
      %v2511 = vld [vmem:[%s451 + $0x69] sm:$0xff]
      %v2512 = vld [vmem:[%s451 + $0x79] sm:$0xff]
      %v2513 = vld [vmem:[%s451 + $0x81] sm:$0xff]
      %v2514 = vld [vmem:[%s451 + $0x91] sm:$0xff]
      %v2515 = vld [vmem:[%s451 + $0x99] sm:$0xff]
      %v2516 = vld [vmem:[%s451 + $0xa9] sm:$0xff]
      %v2517 = vld [vmem:[%s451 + $0xb1] sm:$0xff]
      %v2518 = vld [vmem:[%s451 + $0xc1] sm:$0xff]
      %v2519 = vld [vmem:[%s451 + $0xc9] sm:$0xff]
      %v2520 = vld [vmem:[%s451 + $0xd9] sm:$0xff]
      %v2521 = vld [vmem:[%s451 + $0xe1] sm:$0xff]
      %v2522 = vld [vmem:[%s451 + $0xf1] sm:$0xff]
      %v2523 = vld [vmem:[%s451 + $0xf9] sm:$0xff]
      %v2524 = vld [vmem:[%s451 + $0x109] sm:$0xff]
      %v2525 = vld [vmem:[%s451 + $0x111] sm:$0xff]
      %v2526 = vld [vmem:[%s451 + $0x121] sm:$0xff]
      %v2527 = vld [vmem:[%s451 + $0x129] sm:$0xff]
      %v2528 = vld [vmem:[%s451 + $0x139] sm:$0xff]
      %v2529 = vld [vmem:[%s451 + $0x141] sm:$0xff]
      %v2530 = vld [vmem:[%s451 + $0x151] sm:$0xff]
      %v2531 = vld [vmem:[%s451 + $0x159] sm:$0xff]
      %v2532 = vld [vmem:[%s451 + $0x169] sm:$0xff]
      %v2533 = vld [vmem:[%s451 + $0x171] sm:$0xff]
      %v2534 = vpack.c.bf16 %v2503, %v2502
      %v2535 = vpack.c.bf16 %v2505, %v2504
      %v2536 = vpack.c.bf16 %v2507, %v2506
      %v2537 = vpack.c.bf16 %v2509, %v2508
      %v2538 = vpack.c.bf16 %v2511, %v2510
      %v2539 = vpack.c.bf16 %v2513, %v2512
      %v2540 = vpack.c.bf16 %v2515, %v2514
      %v2541 = vpack.c.bf16 %v2517, %v2516
      %v2542 = vpack.c.bf16 %v2519, %v2518
      %v2543 = vpack.c.bf16 %v2521, %v2520
      %v2544 = vpack.c.bf16 %v2523, %v2522
      %v2545 = vpack.c.bf16 %v2525, %v2524
      %v2546 = vpack.c.bf16 %v2527, %v2526
      %v2547 = vpack.c.bf16 %v2529, %v2528
      %v2548 = vpack.c.bf16 %v2531, %v2530
      %v2549 = vpack.c.bf16 %v2533, %v2532
      %s2550 = scalar_lea.vmem %s4, 8
      %v2551 = vld [vmem:[%s2550] sm:$0x3]
      %v2553 = vsel %vm525, %v2534, 0
      %v2556 = vsel %vm525, %v2535, 0
      %v2559 = vsel %vm525, %v2536, 0
      %v2562 = vsel %vm525, %v2537, 0
      %v2565 = vsel %vm525, %v2538, 0
      %v2568 = vsel %vm525, %v2539, 0
      %v2571 = vsel %vm525, %v2540, 0
      %v2574 = vsel %vm525, %v2541, 0
      %v2577 = vsel %vm525, %v2542, 0
      %v2580 = vsel %vm525, %v2543, 0
      %v2583 = vsel %vm525, %v2544, 0
      %v2586 = vsel %vm525, %v2545, 0
      %v2589 = vsel %vm525, %v2546, 0
      %v2592 = vsel %vm525, %v2547, 0
      %v2595 = vsel %vm525, %v2548, 0
      %v2598 = vsel %vm525, %v2549, 0
      %v2601 = vsel %vm1417, %v2551, 0
      %2603 = vmatprep.subr.bf16.mxu0 0
      %2604 = vmatpush1.bf16.msra.mxu0 0
      %2605 = vmatprep.subr.bf16.mxu0 0
      %2606 = vmatpush1.bf16.msra.mxu0 0
      %2607 = vmatprep.subr.bf16.mxu0 0
      %2608 = vmatpush1.bf16.msra.mxu0 0
      %2609 = vmatprep.subr.bf16.mxu0 0
      %2610 = vmatpush1.bf16.msra.mxu0 0
      %2611 = vmatprep.subr.bf16.mxu0 0
      %2612 = vmatpush1.bf16.msra.mxu0 0
      %2613 = vmatprep.subr.bf16.mxu0 0
      %2614 = vmatpush1.bf16.msra.mxu0 0
      %2615 = vmatprep.subr.bf16.mxu0 0
      %2616 = vmatpush1.bf16.msra.mxu0 0
      %2617 = vmatprep.subr.bf16.mxu0 0
      %2618 = vmatpush1.bf16.msra.mxu0 %v2601
      %2619 = vmatprep.subr.bf16.mxu0 0
      %2620 = vmatpush2.bf16.msra.mxu0 0
      %2621 = vmatprep.subr.bf16.mxu0 0
      %2622 = vmatpush2.bf16.msra.mxu0 0
      %2623 = vmatprep.subr.bf16.mxu0 0
      %2624 = vmatpush2.bf16.msra.mxu0 0
      %2625 = vmatprep.subr.bf16.mxu0 0
      %2626 = vmatpush2.bf16.msra.mxu0 0
      %2627 = vmatprep.subr.bf16.mxu0 0
      %2628 = vmatpush2.bf16.msra.mxu0 0
      %2629 = vmatprep.subr.bf16.mxu0 0
      %2630 = vmatpush2.bf16.msra.mxu0 0
      %2631 = vmatprep.subr.bf16.mxu0 0
      %2632 = vmatpush2.bf16.msra.mxu0 0
      %2633 = vmatprep.subr.bf16.mxu0 0
      %2634 = vmatpush2.bf16.msra.mxu0 0
      %2635 = vmatprep.mubr.bf16.mxu0 0
      %2636 = vmatmul.mubr.bf16.gmra.mxu0 %v2553
      %v2637 = vpop.f32.mrf.mxu0
      %v2638 = vadd.f32 0.0, %v2637
      %v2639 = vpop.f32.mrf.mxu0
      %v2640 = vpop.f32.mrf.mxu0
      %v2641 = vadd.f32 0.0, %v2640
      %v2642 = vpop.f32.mrf.mxu0
      %2643 = vmatprep.mubr.bf16.mxu0 0
      %2644 = vmatmul.mubr.bf16.gmra.mxu0 %v2556
      %v2645 = vpop.f32.mrf.mxu0
      %v2646 = vadd.f32 0.0, %v2645
      %v2647 = vpop.f32.mrf.mxu0
      %v2648 = vpop.f32.mrf.mxu0
      %v2649 = vadd.f32 0.0, %v2648
      %v2650 = vpop.f32.mrf.mxu0
      %2651 = vmatprep.mubr.bf16.mxu0 0
      %2652 = vmatmul.mubr.bf16.gmra.mxu0 %v2559
      %v2653 = vpop.f32.mrf.mxu0
      %v2654 = vadd.f32 0.0, %v2653
      %v2655 = vpop.f32.mrf.mxu0
      %v2656 = vpop.f32.mrf.mxu0
      %v2657 = vadd.f32 0.0, %v2656
      %v2658 = vpop.f32.mrf.mxu0
      %2659 = vmatprep.mubr.bf16.mxu0 0
      %2660 = vmatmul.mubr.bf16.gmra.mxu0 %v2562
      %v2661 = vpop.f32.mrf.mxu0
      %v2662 = vadd.f32 0.0, %v2661
      %v2663 = vpop.f32.mrf.mxu0
      %v2664 = vpop.f32.mrf.mxu0
      %v2665 = vadd.f32 0.0, %v2664
      %v2666 = vpop.f32.mrf.mxu0
      %2667 = vmatprep.mubr.bf16.mxu0 0
      %2668 = vmatmul.mubr.bf16.gmra.mxu0 %v2565
      %v2669 = vpop.f32.mrf.mxu0
      %v2670 = vadd.f32 0.0, %v2669
      %v2671 = vpop.f32.mrf.mxu0
      %v2672 = vpop.f32.mrf.mxu0
      %v2673 = vadd.f32 0.0, %v2672
      %v2674 = vpop.f32.mrf.mxu0
      %2675 = vmatprep.mubr.bf16.mxu0 0
      %2676 = vmatmul.mubr.bf16.gmra.mxu0 %v2568
      %v2677 = vpop.f32.mrf.mxu0
      %v2678 = vadd.f32 0.0, %v2677
      %v2679 = vpop.f32.mrf.mxu0
      %v2680 = vpop.f32.mrf.mxu0
      %v2681 = vadd.f32 0.0, %v2680
      %v2682 = vpop.f32.mrf.mxu0
      %2683 = vmatprep.mubr.bf16.mxu0 0
      %2684 = vmatmul.mubr.bf16.gmra.mxu0 %v2571
      %v2685 = vpop.f32.mrf.mxu0
      %v2686 = vadd.f32 0.0, %v2685
      %v2687 = vpop.f32.mrf.mxu0
      %v2688 = vpop.f32.mrf.mxu0
      %v2689 = vadd.f32 0.0, %v2688
      %v2690 = vpop.f32.mrf.mxu0
      %2691 = vmatprep.mubr.bf16.mxu0 0
      %2692 = vmatmul.mubr.bf16.gmra.mxu0 %v2574
      %v2693 = vpop.f32.mrf.mxu0
      %v2694 = vadd.f32 0.0, %v2693
      %v2695 = vpop.f32.mrf.mxu0
      %v2696 = vpop.f32.mrf.mxu0
      %v2697 = vadd.f32 0.0, %v2696
      %v2698 = vpop.f32.mrf.mxu0
      %2699 = vmatprep.mubr.bf16.mxu0 0
      %2700 = vmatmul.mubr.bf16.gmra.mxu0 %v2577
      %v2701 = vpop.f32.mrf.mxu0
      %v2702 = vadd.f32 0.0, %v2701
      %v2703 = vpop.f32.mrf.mxu0
      %v2704 = vpop.f32.mrf.mxu0
      %v2705 = vadd.f32 0.0, %v2704
      %v2706 = vpop.f32.mrf.mxu0
      %2707 = vmatprep.mubr.bf16.mxu0 0
      %2708 = vmatmul.mubr.bf16.gmra.mxu0 %v2580
      %v2709 = vpop.f32.mrf.mxu0
      %v2710 = vadd.f32 0.0, %v2709
      %v2711 = vpop.f32.mrf.mxu0
      %v2712 = vpop.f32.mrf.mxu0
      %v2713 = vadd.f32 0.0, %v2712
      %v2714 = vpop.f32.mrf.mxu0
      %2715 = vmatprep.mubr.bf16.mxu0 0
      %2716 = vmatmul.mubr.bf16.gmra.mxu0 %v2583
      %v2717 = vpop.f32.mrf.mxu0
      %v2718 = vadd.f32 0.0, %v2717
      %v2719 = vpop.f32.mrf.mxu0
      %v2720 = vpop.f32.mrf.mxu0
      %v2721 = vadd.f32 0.0, %v2720
      %v2722 = vpop.f32.mrf.mxu0
      %2723 = vmatprep.mubr.bf16.mxu0 0
      %2724 = vmatmul.mubr.bf16.gmra.mxu0 %v2586
      %v2725 = vpop.f32.mrf.mxu0
      %v2726 = vadd.f32 0.0, %v2725
      %v2727 = vpop.f32.mrf.mxu0
      %v2728 = vpop.f32.mrf.mxu0
      %v2729 = vadd.f32 0.0, %v2728
      %v2730 = vpop.f32.mrf.mxu0
      %2731 = vmatprep.mubr.bf16.mxu0 0
      %2732 = vmatmul.mubr.bf16.gmra.mxu0 %v2589
      %v2733 = vpop.f32.mrf.mxu0
      %v2734 = vadd.f32 0.0, %v2733
      %v2735 = vpop.f32.mrf.mxu0
      %v2736 = vpop.f32.mrf.mxu0
      %v2737 = vadd.f32 0.0, %v2736
      %v2738 = vpop.f32.mrf.mxu0
      %2739 = vmatprep.mubr.bf16.mxu0 0
      %2740 = vmatmul.mubr.bf16.gmra.mxu0 %v2592
      %v2741 = vpop.f32.mrf.mxu0
      %v2742 = vadd.f32 0.0, %v2741
      %v2743 = vpop.f32.mrf.mxu0
      %v2744 = vpop.f32.mrf.mxu0
      %v2745 = vadd.f32 0.0, %v2744
      %v2746 = vpop.f32.mrf.mxu0
      %2747 = vmatprep.mubr.bf16.mxu0 0
      %2748 = vmatmul.mubr.bf16.gmra.mxu0 %v2595
      %v2749 = vpop.f32.mrf.mxu0
      %v2750 = vadd.f32 0.0, %v2749
      %v2751 = vpop.f32.mrf.mxu0
      %v2752 = vpop.f32.mrf.mxu0
      %v2753 = vadd.f32 0.0, %v2752
      %v2754 = vpop.f32.mrf.mxu0
      %2755 = vmatprep.mubr.bf16.mxu0 0
      %2756 = vmatmul.mubr.bf16.gmra.mxu0 %v2598
      %v2757 = vpop.f32.mrf.mxu0
      %v2758 = vadd.f32 0.0, %v2757
      %v2759 = vpop.f32.mrf.mxu0
      %v2760 = vpop.f32.mrf.mxu0
      %v2761 = vadd.f32 0.0, %v2760
      %v2762 = vpop.f32.mrf.mxu0
      %2763 = vdwg.mxu0
      %v2764 = vadd.f32 %v2470, %v2638
      %v2765 = vadd.f32 %v2471, %v2641
      %v2766 = vadd.f32 %v2472, %v2646
      %v2767 = vadd.f32 %v2473, %v2649
      %v2768 = vadd.f32 %v2474, %v2654
      %v2769 = vadd.f32 %v2475, %v2657
      %v2770 = vadd.f32 %v2476, %v2662
      %v2771 = vadd.f32 %v2477, %v2665
      %v2772 = vadd.f32 %v2478, %v2670
      %v2773 = vadd.f32 %v2479, %v2673
      %v2774 = vadd.f32 %v2480, %v2678
      %v2775 = vadd.f32 %v2481, %v2681
      %v2776 = vadd.f32 %v2482, %v2686
      %v2777 = vadd.f32 %v2483, %v2689
      %v2778 = vadd.f32 %v2484, %v2694
      %v2779 = vadd.f32 %v2485, %v2697
      %v2780 = vadd.f32 %v2486, %v2702
      %v2781 = vadd.f32 %v2487, %v2705
      %v2782 = vadd.f32 %v2488, %v2710
      %v2783 = vadd.f32 %v2489, %v2713
      %v2784 = vadd.f32 %v2490, %v2718
      %v2785 = vadd.f32 %v2491, %v2721
      %v2786 = vadd.f32 %v2492, %v2726
      %v2787 = vadd.f32 %v2493, %v2729
      %v2788 = vadd.f32 %v2494, %v2734
      %v2789 = vadd.f32 %v2495, %v2737
      %v2790 = vadd.f32 %v2496, %v2742
      %v2791 = vadd.f32 %v2497, %v2745
      %v2792 = vadd.f32 %v2498, %v2750
      %v2793 = vadd.f32 %v2499, %v2753
      %v2794 = vadd.f32 %v2500, %v2758
      %v2795 = vadd.f32 %v2501, %v2761
      %v2796 = vld [vmem:[%s451 + $0x2] sm:$0xff]
      %v2797 = vld [vmem:[%s451 + $0xa] sm:$0xff]
      %v2798 = vld [vmem:[%s451 + $0x1a] sm:$0xff]
      %v2799 = vld [vmem:[%s451 + $0x22] sm:$0xff]
      %v2800 = vld [vmem:[%s451 + $0x32] sm:$0xff]
      %v2801 = vld [vmem:[%s451 + $0x3a] sm:$0xff]
      %v2802 = vld [vmem:[%s451 + $0x4a] sm:$0xff]
      %v2803 = vld [vmem:[%s451 + $0x52] sm:$0xff]
      %v2804 = vld [vmem:[%s451 + $0x62] sm:$0xff]
      %v2805 = vld [vmem:[%s451 + $0x6a] sm:$0xff]
      %v2806 = vld [vmem:[%s451 + $0x7a] sm:$0xff]
      %v2807 = vld [vmem:[%s451 + $0x82] sm:$0xff]
      %v2808 = vld [vmem:[%s451 + $0x92] sm:$0xff]
      %v2809 = vld [vmem:[%s451 + $0x9a] sm:$0xff]
      %v2810 = vld [vmem:[%s451 + $0xaa] sm:$0xff]
      %v2811 = vld [vmem:[%s451 + $0xb2] sm:$0xff]
      %v2812 = vld [vmem:[%s451 + $0xc2] sm:$0xff]
      %v2813 = vld [vmem:[%s451 + $0xca] sm:$0xff]
      %v2814 = vld [vmem:[%s451 + $0xda] sm:$0xff]
      %v2815 = vld [vmem:[%s451 + $0xe2] sm:$0xff]
      %v2816 = vld [vmem:[%s451 + $0xf2] sm:$0xff]
      %v2817 = vld [vmem:[%s451 + $0xfa] sm:$0xff]
      %v2818 = vld [vmem:[%s451 + $0x10a] sm:$0xff]
      %v2819 = vld [vmem:[%s451 + $0x112] sm:$0xff]
      %v2820 = vld [vmem:[%s451 + $0x122] sm:$0xff]
      %v2821 = vld [vmem:[%s451 + $0x12a] sm:$0xff]
      %v2822 = vld [vmem:[%s451 + $0x13a] sm:$0xff]
      %v2823 = vld [vmem:[%s451 + $0x142] sm:$0xff]
      %v2824 = vld [vmem:[%s451 + $0x152] sm:$0xff]
      %v2825 = vld [vmem:[%s451 + $0x15a] sm:$0xff]
      %v2826 = vld [vmem:[%s451 + $0x16a] sm:$0xff]
      %v2827 = vld [vmem:[%s451 + $0x172] sm:$0xff]
      %v2828 = vpack.c.bf16 %v2797, %v2796
      %v2829 = vpack.c.bf16 %v2799, %v2798
      %v2830 = vpack.c.bf16 %v2801, %v2800
      %v2831 = vpack.c.bf16 %v2803, %v2802
      %v2832 = vpack.c.bf16 %v2805, %v2804
      %v2833 = vpack.c.bf16 %v2807, %v2806
      %v2834 = vpack.c.bf16 %v2809, %v2808
      %v2835 = vpack.c.bf16 %v2811, %v2810
      %v2836 = vpack.c.bf16 %v2813, %v2812
      %v2837 = vpack.c.bf16 %v2815, %v2814
      %v2838 = vpack.c.bf16 %v2817, %v2816
      %v2839 = vpack.c.bf16 %v2819, %v2818
      %v2840 = vpack.c.bf16 %v2821, %v2820
      %v2841 = vpack.c.bf16 %v2823, %v2822
      %v2842 = vpack.c.bf16 %v2825, %v2824
      %v2843 = vpack.c.bf16 %v2827, %v2826
      %s2844 = scalar_lea.vmem %s4, 10
      %v2845 = vld [vmem:[%s2844] sm:$0x3]
      %v2847 = vsel %vm525, %v2828, 0
      %v2850 = vsel %vm525, %v2829, 0
      %v2853 = vsel %vm525, %v2830, 0
      %v2856 = vsel %vm525, %v2831, 0
      %v2859 = vsel %vm525, %v2832, 0
      %v2862 = vsel %vm525, %v2833, 0
      %v2865 = vsel %vm525, %v2834, 0
      %v2868 = vsel %vm525, %v2835, 0
      %v2871 = vsel %vm525, %v2836, 0
      %v2874 = vsel %vm525, %v2837, 0
      %v2877 = vsel %vm525, %v2838, 0
      %v2880 = vsel %vm525, %v2839, 0
      %v2883 = vsel %vm525, %v2840, 0
      %v2886 = vsel %vm525, %v2841, 0
      %v2889 = vsel %vm525, %v2842, 0
      %v2892 = vsel %vm525, %v2843, 0
      %v2895 = vsel %vm1417, %v2845, 0
      %2897 = vmatprep.subr.bf16.mxu0 0
      %2898 = vmatpush1.bf16.msra.mxu0 0
      %2899 = vmatprep.subr.bf16.mxu0 0
      %2900 = vmatpush1.bf16.msra.mxu0 0
      %2901 = vmatprep.subr.bf16.mxu0 0
      %2902 = vmatpush1.bf16.msra.mxu0 0
      %2903 = vmatprep.subr.bf16.mxu0 0
      %2904 = vmatpush1.bf16.msra.mxu0 0
      %2905 = vmatprep.subr.bf16.mxu0 0
      %2906 = vmatpush1.bf16.msra.mxu0 0
      %2907 = vmatprep.subr.bf16.mxu0 0
      %2908 = vmatpush1.bf16.msra.mxu0 0
      %2909 = vmatprep.subr.bf16.mxu0 0
      %2910 = vmatpush1.bf16.msra.mxu0 0
      %2911 = vmatprep.subr.bf16.mxu0 0
      %2912 = vmatpush1.bf16.msra.mxu0 %v2895
      %2913 = vmatprep.subr.bf16.mxu0 0
      %2914 = vmatpush2.bf16.msra.mxu0 0
      %2915 = vmatprep.subr.bf16.mxu0 0
      %2916 = vmatpush2.bf16.msra.mxu0 0
      %2917 = vmatprep.subr.bf16.mxu0 0
      %2918 = vmatpush2.bf16.msra.mxu0 0
      %2919 = vmatprep.subr.bf16.mxu0 0
      %2920 = vmatpush2.bf16.msra.mxu0 0
      %2921 = vmatprep.subr.bf16.mxu0 0
      %2922 = vmatpush2.bf16.msra.mxu0 0
      %2923 = vmatprep.subr.bf16.mxu0 0
      %2924 = vmatpush2.bf16.msra.mxu0 0
      %2925 = vmatprep.subr.bf16.mxu0 0
      %2926 = vmatpush2.bf16.msra.mxu0 0
      %2927 = vmatprep.subr.bf16.mxu0 0
      %2928 = vmatpush2.bf16.msra.mxu0 0
      %2929 = vmatprep.mubr.bf16.mxu0 0
      %2930 = vmatmul.mubr.bf16.gmra.mxu0 %v2847
      %v2931 = vpop.f32.mrf.mxu0
      %v2932 = vadd.f32 0.0, %v2931
      %v2933 = vpop.f32.mrf.mxu0
      %v2934 = vpop.f32.mrf.mxu0
      %v2935 = vadd.f32 0.0, %v2934
      %v2936 = vpop.f32.mrf.mxu0
      %2937 = vmatprep.mubr.bf16.mxu0 0
      %2938 = vmatmul.mubr.bf16.gmra.mxu0 %v2850
      %v2939 = vpop.f32.mrf.mxu0
      %v2940 = vadd.f32 0.0, %v2939
      %v2941 = vpop.f32.mrf.mxu0
      %v2942 = vpop.f32.mrf.mxu0
      %v2943 = vadd.f32 0.0, %v2942
      %v2944 = vpop.f32.mrf.mxu0
      %2945 = vmatprep.mubr.bf16.mxu0 0
      %2946 = vmatmul.mubr.bf16.gmra.mxu0 %v2853
      %v2947 = vpop.f32.mrf.mxu0
      %v2948 = vadd.f32 0.0, %v2947
      %v2949 = vpop.f32.mrf.mxu0
      %v2950 = vpop.f32.mrf.mxu0
      %v2951 = vadd.f32 0.0, %v2950
      %v2952 = vpop.f32.mrf.mxu0
      %2953 = vmatprep.mubr.bf16.mxu0 0
      %2954 = vmatmul.mubr.bf16.gmra.mxu0 %v2856
      %v2955 = vpop.f32.mrf.mxu0
      %v2956 = vadd.f32 0.0, %v2955
      %v2957 = vpop.f32.mrf.mxu0
      %v2958 = vpop.f32.mrf.mxu0
      %v2959 = vadd.f32 0.0, %v2958
      %v2960 = vpop.f32.mrf.mxu0
      %2961 = vmatprep.mubr.bf16.mxu0 0
      %2962 = vmatmul.mubr.bf16.gmra.mxu0 %v2859
      %v2963 = vpop.f32.mrf.mxu0
      %v2964 = vadd.f32 0.0, %v2963
      %v2965 = vpop.f32.mrf.mxu0
      %v2966 = vpop.f32.mrf.mxu0
      %v2967 = vadd.f32 0.0, %v2966
      %v2968 = vpop.f32.mrf.mxu0
      %2969 = vmatprep.mubr.bf16.mxu0 0
      %2970 = vmatmul.mubr.bf16.gmra.mxu0 %v2862
      %v2971 = vpop.f32.mrf.mxu0
      %v2972 = vadd.f32 0.0, %v2971
      %v2973 = vpop.f32.mrf.mxu0
      %v2974 = vpop.f32.mrf.mxu0
      %v2975 = vadd.f32 0.0, %v2974
      %v2976 = vpop.f32.mrf.mxu0
      %2977 = vmatprep.mubr.bf16.mxu0 0
      %2978 = vmatmul.mubr.bf16.gmra.mxu0 %v2865
      %v2979 = vpop.f32.mrf.mxu0
      %v2980 = vadd.f32 0.0, %v2979
      %v2981 = vpop.f32.mrf.mxu0
      %v2982 = vpop.f32.mrf.mxu0
      %v2983 = vadd.f32 0.0, %v2982
      %v2984 = vpop.f32.mrf.mxu0
      %2985 = vmatprep.mubr.bf16.mxu0 0
      %2986 = vmatmul.mubr.bf16.gmra.mxu0 %v2868
      %v2987 = vpop.f32.mrf.mxu0
      %v2988 = vadd.f32 0.0, %v2987
      %v2989 = vpop.f32.mrf.mxu0
      %v2990 = vpop.f32.mrf.mxu0
      %v2991 = vadd.f32 0.0, %v2990
      %v2992 = vpop.f32.mrf.mxu0
      %2993 = vmatprep.mubr.bf16.mxu0 0
      %2994 = vmatmul.mubr.bf16.gmra.mxu0 %v2871
      %v2995 = vpop.f32.mrf.mxu0
      %v2996 = vadd.f32 0.0, %v2995
      %v2997 = vpop.f32.mrf.mxu0
      %v2998 = vpop.f32.mrf.mxu0
      %v2999 = vadd.f32 0.0, %v2998
      %v3000 = vpop.f32.mrf.mxu0
      %3001 = vmatprep.mubr.bf16.mxu0 0
      %3002 = vmatmul.mubr.bf16.gmra.mxu0 %v2874
      %v3003 = vpop.f32.mrf.mxu0
      %v3004 = vadd.f32 0.0, %v3003
      %v3005 = vpop.f32.mrf.mxu0
      %v3006 = vpop.f32.mrf.mxu0
      %v3007 = vadd.f32 0.0, %v3006
      %v3008 = vpop.f32.mrf.mxu0
      %3009 = vmatprep.mubr.bf16.mxu0 0
      %3010 = vmatmul.mubr.bf16.gmra.mxu0 %v2877
      %v3011 = vpop.f32.mrf.mxu0
      %v3012 = vadd.f32 0.0, %v3011
      %v3013 = vpop.f32.mrf.mxu0
      %v3014 = vpop.f32.mrf.mxu0
      %v3015 = vadd.f32 0.0, %v3014
      %v3016 = vpop.f32.mrf.mxu0
      %3017 = vmatprep.mubr.bf16.mxu0 0
      %3018 = vmatmul.mubr.bf16.gmra.mxu0 %v2880
      %v3019 = vpop.f32.mrf.mxu0
      %v3020 = vadd.f32 0.0, %v3019
      %v3021 = vpop.f32.mrf.mxu0
      %v3022 = vpop.f32.mrf.mxu0
      %v3023 = vadd.f32 0.0, %v3022
      %v3024 = vpop.f32.mrf.mxu0
      %3025 = vmatprep.mubr.bf16.mxu0 0
      %3026 = vmatmul.mubr.bf16.gmra.mxu0 %v2883
      %v3027 = vpop.f32.mrf.mxu0
      %v3028 = vadd.f32 0.0, %v3027
      %v3029 = vpop.f32.mrf.mxu0
      %v3030 = vpop.f32.mrf.mxu0
      %v3031 = vadd.f32 0.0, %v3030
      %v3032 = vpop.f32.mrf.mxu0
      %3033 = vmatprep.mubr.bf16.mxu0 0
      %3034 = vmatmul.mubr.bf16.gmra.mxu0 %v2886
      %v3035 = vpop.f32.mrf.mxu0
      %v3036 = vadd.f32 0.0, %v3035
      %v3037 = vpop.f32.mrf.mxu0
      %v3038 = vpop.f32.mrf.mxu0
      %v3039 = vadd.f32 0.0, %v3038
      %v3040 = vpop.f32.mrf.mxu0
      %3041 = vmatprep.mubr.bf16.mxu0 0
      %3042 = vmatmul.mubr.bf16.gmra.mxu0 %v2889
      %v3043 = vpop.f32.mrf.mxu0
      %v3044 = vadd.f32 0.0, %v3043
      %v3045 = vpop.f32.mrf.mxu0
      %v3046 = vpop.f32.mrf.mxu0
      %v3047 = vadd.f32 0.0, %v3046
      %v3048 = vpop.f32.mrf.mxu0
      %3049 = vmatprep.mubr.bf16.mxu0 0
      %3050 = vmatmul.mubr.bf16.gmra.mxu0 %v2892
      %v3051 = vpop.f32.mrf.mxu0
      %v3052 = vadd.f32 0.0, %v3051
      %v3053 = vpop.f32.mrf.mxu0
      %v3054 = vpop.f32.mrf.mxu0
      %v3055 = vadd.f32 0.0, %v3054
      %v3056 = vpop.f32.mrf.mxu0
      %3057 = vdwg.mxu0
      %v3058 = vadd.f32 %v2764, %v2932
      %v3059 = vadd.f32 %v2765, %v2935
      %v3060 = vadd.f32 %v2766, %v2940
      %v3061 = vadd.f32 %v2767, %v2943
      %v3062 = vadd.f32 %v2768, %v2948
      %v3063 = vadd.f32 %v2769, %v2951
      %v3064 = vadd.f32 %v2770, %v2956
      %v3065 = vadd.f32 %v2771, %v2959
      %v3066 = vadd.f32 %v2772, %v2964
      %v3067 = vadd.f32 %v2773, %v2967
      %v3068 = vadd.f32 %v2774, %v2972
      %v3069 = vadd.f32 %v2775, %v2975
      %v3070 = vadd.f32 %v2776, %v2980
      %v3071 = vadd.f32 %v2777, %v2983
      %v3072 = vadd.f32 %v2778, %v2988
      %v3073 = vadd.f32 %v2779, %v2991
      %v3074 = vadd.f32 %v2780, %v2996
      %v3075 = vadd.f32 %v2781, %v2999
      %v3076 = vadd.f32 %v2782, %v3004
      %v3077 = vadd.f32 %v2783, %v3007
      %v3078 = vadd.f32 %v2784, %v3012
      %v3079 = vadd.f32 %v2785, %v3015
      %v3080 = vadd.f32 %v2786, %v3020
      %v3081 = vadd.f32 %v2787, %v3023
      %v3082 = vadd.f32 %v2788, %v3028
      %v3083 = vadd.f32 %v2789, %v3031
      %v3084 = vadd.f32 %v2790, %v3036
      %v3085 = vadd.f32 %v2791, %v3039
      %v3086 = vadd.f32 %v2792, %v3044
      %v3087 = vadd.f32 %v2793, %v3047
      %v3088 = vadd.f32 %v2794, %v3052
      %v3089 = vadd.f32 %v2795, %v3055
      %s3090 = scalar_lea.vmem [#allocation2], 48
      %v3091 = vld [vmem:[%s3090] sm:$0xff]
      %v3092 = vld [vmem:[%s3090 + $0x8] sm:$0xff]
      %v3093 = vld [vmem:[%s3090 + $0x18] sm:$0xff]
      %v3094 = vld [vmem:[%s3090 + $0x20] sm:$0xff]
      %v3095 = vld [vmem:[%s3090 + $0x30] sm:$0xff]
      %v3096 = vld [vmem:[%s3090 + $0x38] sm:$0xff]
      %v3097 = vld [vmem:[%s3090 + $0x48] sm:$0xff]
      %v3098 = vld [vmem:[%s3090 + $0x50] sm:$0xff]
      %v3099 = vld [vmem:[%s3090 + $0x60] sm:$0xff]
      %v3100 = vld [vmem:[%s3090 + $0x68] sm:$0xff]
      %v3101 = vld [vmem:[%s3090 + $0x78] sm:$0xff]
      %v3102 = vld [vmem:[%s3090 + $0x80] sm:$0xff]
      %v3103 = vld [vmem:[%s3090 + $0x90] sm:$0xff]
      %v3104 = vld [vmem:[%s3090 + $0x98] sm:$0xff]
      %v3105 = vld [vmem:[%s3090 + $0xa8] sm:$0xff]
      %v3106 = vld [vmem:[%s3090 + $0xb0] sm:$0xff]
      %v3107 = vld [vmem:[%s3090 + $0xc0] sm:$0xff]
      %v3108 = vld [vmem:[%s3090 + $0xc8] sm:$0xff]
      %v3109 = vld [vmem:[%s3090 + $0xd8] sm:$0xff]
      %v3110 = vld [vmem:[%s3090 + $0xe0] sm:$0xff]
      %v3111 = vld [vmem:[%s3090 + $0xf0] sm:$0xff]
      %v3112 = vld [vmem:[%s3090 + $0xf8] sm:$0xff]
      %v3113 = vld [vmem:[%s3090 + $0x108] sm:$0xff]
      %v3114 = vld [vmem:[%s3090 + $0x110] sm:$0xff]
      %v3115 = vld [vmem:[%s3090 + $0x120] sm:$0xff]
      %v3116 = vld [vmem:[%s3090 + $0x128] sm:$0xff]
      %v3117 = vld [vmem:[%s3090 + $0x138] sm:$0xff]
      %v3118 = vld [vmem:[%s3090 + $0x140] sm:$0xff]
      %v3119 = vld [vmem:[%s3090 + $0x150] sm:$0xff]
      %v3120 = vld [vmem:[%s3090 + $0x158] sm:$0xff]
      %v3121 = vld [vmem:[%s3090 + $0x168] sm:$0xff]
      %v3122 = vld [vmem:[%s3090 + $0x170] sm:$0xff]
      %v3123 = vpack.c.bf16 %v3092, %v3091
      %v3124 = vpack.c.bf16 %v3094, %v3093
      %v3125 = vpack.c.bf16 %v3096, %v3095
      %v3126 = vpack.c.bf16 %v3098, %v3097
      %v3127 = vpack.c.bf16 %v3100, %v3099
      %v3128 = vpack.c.bf16 %v3102, %v3101
      %v3129 = vpack.c.bf16 %v3104, %v3103
      %v3130 = vpack.c.bf16 %v3106, %v3105
      %v3131 = vpack.c.bf16 %v3108, %v3107
      %v3132 = vpack.c.bf16 %v3110, %v3109
      %v3133 = vpack.c.bf16 %v3112, %v3111
      %v3134 = vpack.c.bf16 %v3114, %v3113
      %v3135 = vpack.c.bf16 %v3116, %v3115
      %v3136 = vpack.c.bf16 %v3118, %v3117
      %v3137 = vpack.c.bf16 %v3120, %v3119
      %v3138 = vpack.c.bf16 %v3122, %v3121
      %s3139 = scalar_lea.vmem %s4, 12
      %v3140 = vld [vmem:[%s3139] sm:$0x3]
      %v3142 = vsel %vm525, %v3123, 0
      %v3145 = vsel %vm525, %v3124, 0
      %v3148 = vsel %vm525, %v3125, 0
      %v3151 = vsel %vm525, %v3126, 0
      %v3154 = vsel %vm525, %v3127, 0
      %v3157 = vsel %vm525, %v3128, 0
      %v3160 = vsel %vm525, %v3129, 0
      %v3163 = vsel %vm525, %v3130, 0
      %v3166 = vsel %vm525, %v3131, 0
      %v3169 = vsel %vm525, %v3132, 0
      %v3172 = vsel %vm525, %v3133, 0
      %v3175 = vsel %vm525, %v3134, 0
      %v3178 = vsel %vm525, %v3135, 0
      %v3181 = vsel %vm525, %v3136, 0
      %v3184 = vsel %vm525, %v3137, 0
      %v3187 = vsel %vm525, %v3138, 0
      %v3190 = vsel %vm1417, %v3140, 0
      %3192 = vmatprep.subr.bf16.mxu0 0
      %3193 = vmatpush1.bf16.msra.mxu0 0
      %3194 = vmatprep.subr.bf16.mxu0 0
      %3195 = vmatpush1.bf16.msra.mxu0 0
      %3196 = vmatprep.subr.bf16.mxu0 0
      %3197 = vmatpush1.bf16.msra.mxu0 0
      %3198 = vmatprep.subr.bf16.mxu0 0
      %3199 = vmatpush1.bf16.msra.mxu0 0
      %3200 = vmatprep.subr.bf16.mxu0 0
      %3201 = vmatpush1.bf16.msra.mxu0 0
      %3202 = vmatprep.subr.bf16.mxu0 0
      %3203 = vmatpush1.bf16.msra.mxu0 0
      %3204 = vmatprep.subr.bf16.mxu0 0
      %3205 = vmatpush1.bf16.msra.mxu0 0
      %3206 = vmatprep.subr.bf16.mxu0 0
      %3207 = vmatpush1.bf16.msra.mxu0 %v3190
      %3208 = vmatprep.subr.bf16.mxu0 0
      %3209 = vmatpush2.bf16.msra.mxu0 0
      %3210 = vmatprep.subr.bf16.mxu0 0
      %3211 = vmatpush2.bf16.msra.mxu0 0
      %3212 = vmatprep.subr.bf16.mxu0 0
      %3213 = vmatpush2.bf16.msra.mxu0 0
      %3214 = vmatprep.subr.bf16.mxu0 0
      %3215 = vmatpush2.bf16.msra.mxu0 0
      %3216 = vmatprep.subr.bf16.mxu0 0
      %3217 = vmatpush2.bf16.msra.mxu0 0
      %3218 = vmatprep.subr.bf16.mxu0 0
      %3219 = vmatpush2.bf16.msra.mxu0 0
      %3220 = vmatprep.subr.bf16.mxu0 0
      %3221 = vmatpush2.bf16.msra.mxu0 0
      %3222 = vmatprep.subr.bf16.mxu0 0
      %3223 = vmatpush2.bf16.msra.mxu0 0
      %3224 = vmatprep.mubr.bf16.mxu0 0
      %3225 = vmatmul.mubr.bf16.gmra.mxu0 %v3142
      %v3226 = vpop.f32.mrf.mxu0
      %v3227 = vadd.f32 0.0, %v3226
      %v3228 = vpop.f32.mrf.mxu0
      %v3229 = vpop.f32.mrf.mxu0
      %v3230 = vadd.f32 0.0, %v3229
      %v3231 = vpop.f32.mrf.mxu0
      %3232 = vmatprep.mubr.bf16.mxu0 0
      %3233 = vmatmul.mubr.bf16.gmra.mxu0 %v3145
      %v3234 = vpop.f32.mrf.mxu0
      %v3235 = vadd.f32 0.0, %v3234
      %v3236 = vpop.f32.mrf.mxu0
      %v3237 = vpop.f32.mrf.mxu0
      %v3238 = vadd.f32 0.0, %v3237
      %v3239 = vpop.f32.mrf.mxu0
      %3240 = vmatprep.mubr.bf16.mxu0 0
      %3241 = vmatmul.mubr.bf16.gmra.mxu0 %v3148
      %v3242 = vpop.f32.mrf.mxu0
      %v3243 = vadd.f32 0.0, %v3242
      %v3244 = vpop.f32.mrf.mxu0
      %v3245 = vpop.f32.mrf.mxu0
      %v3246 = vadd.f32 0.0, %v3245
      %v3247 = vpop.f32.mrf.mxu0
      %3248 = vmatprep.mubr.bf16.mxu0 0
      %3249 = vmatmul.mubr.bf16.gmra.mxu0 %v3151
      %v3250 = vpop.f32.mrf.mxu0
      %v3251 = vadd.f32 0.0, %v3250
      %v3252 = vpop.f32.mrf.mxu0
      %v3253 = vpop.f32.mrf.mxu0
      %v3254 = vadd.f32 0.0, %v3253
      %v3255 = vpop.f32.mrf.mxu0
      %3256 = vmatprep.mubr.bf16.mxu0 0
      %3257 = vmatmul.mubr.bf16.gmra.mxu0 %v3154
      %v3258 = vpop.f32.mrf.mxu0
      %v3259 = vadd.f32 0.0, %v3258
      %v3260 = vpop.f32.mrf.mxu0
      %v3261 = vpop.f32.mrf.mxu0
      %v3262 = vadd.f32 0.0, %v3261
      %v3263 = vpop.f32.mrf.mxu0
      %3264 = vmatprep.mubr.bf16.mxu0 0
      %3265 = vmatmul.mubr.bf16.gmra.mxu0 %v3157
      %v3266 = vpop.f32.mrf.mxu0
      %v3267 = vadd.f32 0.0, %v3266
      %v3268 = vpop.f32.mrf.mxu0
      %v3269 = vpop.f32.mrf.mxu0
      %v3270 = vadd.f32 0.0, %v3269
      %v3271 = vpop.f32.mrf.mxu0
      %3272 = vmatprep.mubr.bf16.mxu0 0
      %3273 = vmatmul.mubr.bf16.gmra.mxu0 %v3160
      %v3274 = vpop.f32.mrf.mxu0
      %v3275 = vadd.f32 0.0, %v3274
      %v3276 = vpop.f32.mrf.mxu0
      %v3277 = vpop.f32.mrf.mxu0
      %v3278 = vadd.f32 0.0, %v3277
      %v3279 = vpop.f32.mrf.mxu0
      %3280 = vmatprep.mubr.bf16.mxu0 0
      %3281 = vmatmul.mubr.bf16.gmra.mxu0 %v3163
      %v3282 = vpop.f32.mrf.mxu0
      %v3283 = vadd.f32 0.0, %v3282
      %v3284 = vpop.f32.mrf.mxu0
      %v3285 = vpop.f32.mrf.mxu0
      %v3286 = vadd.f32 0.0, %v3285
      %v3287 = vpop.f32.mrf.mxu0
      %3288 = vmatprep.mubr.bf16.mxu0 0
      %3289 = vmatmul.mubr.bf16.gmra.mxu0 %v3166
      %v3290 = vpop.f32.mrf.mxu0
      %v3291 = vadd.f32 0.0, %v3290
      %v3292 = vpop.f32.mrf.mxu0
      %v3293 = vpop.f32.mrf.mxu0
      %v3294 = vadd.f32 0.0, %v3293
      %v3295 = vpop.f32.mrf.mxu0
      %3296 = vmatprep.mubr.bf16.mxu0 0
      %3297 = vmatmul.mubr.bf16.gmra.mxu0 %v3169
      %v3298 = vpop.f32.mrf.mxu0
      %v3299 = vadd.f32 0.0, %v3298
      %v3300 = vpop.f32.mrf.mxu0
      %v3301 = vpop.f32.mrf.mxu0
      %v3302 = vadd.f32 0.0, %v3301
      %v3303 = vpop.f32.mrf.mxu0
      %3304 = vmatprep.mubr.bf16.mxu0 0
      %3305 = vmatmul.mubr.bf16.gmra.mxu0 %v3172
      %v3306 = vpop.f32.mrf.mxu0
      %v3307 = vadd.f32 0.0, %v3306
      %v3308 = vpop.f32.mrf.mxu0
      %v3309 = vpop.f32.mrf.mxu0
      %v3310 = vadd.f32 0.0, %v3309
      %v3311 = vpop.f32.mrf.mxu0
      %3312 = vmatprep.mubr.bf16.mxu0 0
      %3313 = vmatmul.mubr.bf16.gmra.mxu0 %v3175
      %v3314 = vpop.f32.mrf.mxu0
      %v3315 = vadd.f32 0.0, %v3314
      %v3316 = vpop.f32.mrf.mxu0
      %v3317 = vpop.f32.mrf.mxu0
      %v3318 = vadd.f32 0.0, %v3317
      %v3319 = vpop.f32.mrf.mxu0
      %3320 = vmatprep.mubr.bf16.mxu0 0
      %3321 = vmatmul.mubr.bf16.gmra.mxu0 %v3178
      %v3322 = vpop.f32.mrf.mxu0
      %v3323 = vadd.f32 0.0, %v3322
      %v3324 = vpop.f32.mrf.mxu0
      %v3325 = vpop.f32.mrf.mxu0
      %v3326 = vadd.f32 0.0, %v3325
      %v3327 = vpop.f32.mrf.mxu0
      %3328 = vmatprep.mubr.bf16.mxu0 0
      %3329 = vmatmul.mubr.bf16.gmra.mxu0 %v3181
      %v3330 = vpop.f32.mrf.mxu0
      %v3331 = vadd.f32 0.0, %v3330
      %v3332 = vpop.f32.mrf.mxu0
      %v3333 = vpop.f32.mrf.mxu0
      %v3334 = vadd.f32 0.0, %v3333
      %v3335 = vpop.f32.mrf.mxu0
      %3336 = vmatprep.mubr.bf16.mxu0 0
      %3337 = vmatmul.mubr.bf16.gmra.mxu0 %v3184
      %v3338 = vpop.f32.mrf.mxu0
      %v3339 = vadd.f32 0.0, %v3338
      %v3340 = vpop.f32.mrf.mxu0
      %v3341 = vpop.f32.mrf.mxu0
      %v3342 = vadd.f32 0.0, %v3341
      %v3343 = vpop.f32.mrf.mxu0
      %3344 = vmatprep.mubr.bf16.mxu0 0
      %3345 = vmatmul.mubr.bf16.gmra.mxu0 %v3187
      %v3346 = vpop.f32.mrf.mxu0
      %v3347 = vadd.f32 0.0, %v3346
      %v3348 = vpop.f32.mrf.mxu0
      %v3349 = vpop.f32.mrf.mxu0
      %v3350 = vadd.f32 0.0, %v3349
      %v3351 = vpop.f32.mrf.mxu0
      %3352 = vdwg.mxu0
      %v3353 = vadd.f32 %v3058, %v3227
      %v3354 = vadd.f32 %v3059, %v3230
      %v3355 = vadd.f32 %v3060, %v3235
      %v3356 = vadd.f32 %v3061, %v3238
      %v3357 = vadd.f32 %v3062, %v3243
      %v3358 = vadd.f32 %v3063, %v3246
      %v3359 = vadd.f32 %v3064, %v3251
      %v3360 = vadd.f32 %v3065, %v3254
      %v3361 = vadd.f32 %v3066, %v3259
      %v3362 = vadd.f32 %v3067, %v3262
      %v3363 = vadd.f32 %v3068, %v3267
      %v3364 = vadd.f32 %v3069, %v3270
      %v3365 = vadd.f32 %v3070, %v3275
      %v3366 = vadd.f32 %v3071, %v3278
      %v3367 = vadd.f32 %v3072, %v3283
      %v3368 = vadd.f32 %v3073, %v3286
      %v3369 = vadd.f32 %v3074, %v3291
      %v3370 = vadd.f32 %v3075, %v3294
      %v3371 = vadd.f32 %v3076, %v3299
      %v3372 = vadd.f32 %v3077, %v3302
      %v3373 = vadd.f32 %v3078, %v3307
      %v3374 = vadd.f32 %v3079, %v3310
      %v3375 = vadd.f32 %v3080, %v3315
      %v3376 = vadd.f32 %v3081, %v3318
      %v3377 = vadd.f32 %v3082, %v3323
      %v3378 = vadd.f32 %v3083, %v3326
      %v3379 = vadd.f32 %v3084, %v3331
      %v3380 = vadd.f32 %v3085, %v3334
      %v3381 = vadd.f32 %v3086, %v3339
      %v3382 = vadd.f32 %v3087, %v3342
      %v3383 = vadd.f32 %v3088, %v3347
      %v3384 = vadd.f32 %v3089, %v3350
      %v3385 = vld [vmem:[%s3090 + $0x1] sm:$0xff]
      %v3386 = vld [vmem:[%s3090 + $0x9] sm:$0xff]
      %v3387 = vld [vmem:[%s3090 + $0x19] sm:$0xff]
      %v3388 = vld [vmem:[%s3090 + $0x21] sm:$0xff]
      %v3389 = vld [vmem:[%s3090 + $0x31] sm:$0xff]
      %v3390 = vld [vmem:[%s3090 + $0x39] sm:$0xff]
      %v3391 = vld [vmem:[%s3090 + $0x49] sm:$0xff]
      %v3392 = vld [vmem:[%s3090 + $0x51] sm:$0xff]
      %v3393 = vld [vmem:[%s3090 + $0x61] sm:$0xff]
      %v3394 = vld [vmem:[%s3090 + $0x69] sm:$0xff]
      %v3395 = vld [vmem:[%s3090 + $0x79] sm:$0xff]
      %v3396 = vld [vmem:[%s3090 + $0x81] sm:$0xff]
      %v3397 = vld [vmem:[%s3090 + $0x91] sm:$0xff]
      %v3398 = vld [vmem:[%s3090 + $0x99] sm:$0xff]
      %v3399 = vld [vmem:[%s3090 + $0xa9] sm:$0xff]
      %v3400 = vld [vmem:[%s3090 + $0xb1] sm:$0xff]
      %v3401 = vld [vmem:[%s3090 + $0xc1] sm:$0xff]
      %v3402 = vld [vmem:[%s3090 + $0xc9] sm:$0xff]
      %v3403 = vld [vmem:[%s3090 + $0xd9] sm:$0xff]
      %v3404 = vld [vmem:[%s3090 + $0xe1] sm:$0xff]
      %v3405 = vld [vmem:[%s3090 + $0xf1] sm:$0xff]
      %v3406 = vld [vmem:[%s3090 + $0xf9] sm:$0xff]
      %v3407 = vld [vmem:[%s3090 + $0x109] sm:$0xff]
      %v3408 = vld [vmem:[%s3090 + $0x111] sm:$0xff]
      %v3409 = vld [vmem:[%s3090 + $0x121] sm:$0xff]
      %v3410 = vld [vmem:[%s3090 + $0x129] sm:$0xff]
      %v3411 = vld [vmem:[%s3090 + $0x139] sm:$0xff]
      %v3412 = vld [vmem:[%s3090 + $0x141] sm:$0xff]
      %v3413 = vld [vmem:[%s3090 + $0x151] sm:$0xff]
      %v3414 = vld [vmem:[%s3090 + $0x159] sm:$0xff]
      %v3415 = vld [vmem:[%s3090 + $0x169] sm:$0xff]
      %v3416 = vld [vmem:[%s3090 + $0x171] sm:$0xff]
      %v3417 = vpack.c.bf16 %v3386, %v3385
      %v3418 = vpack.c.bf16 %v3388, %v3387
      %v3419 = vpack.c.bf16 %v3390, %v3389
      %v3420 = vpack.c.bf16 %v3392, %v3391
      %v3421 = vpack.c.bf16 %v3394, %v3393
      %v3422 = vpack.c.bf16 %v3396, %v3395
      %v3423 = vpack.c.bf16 %v3398, %v3397
      %v3424 = vpack.c.bf16 %v3400, %v3399
      %v3425 = vpack.c.bf16 %v3402, %v3401
      %v3426 = vpack.c.bf16 %v3404, %v3403
      %v3427 = vpack.c.bf16 %v3406, %v3405
      %v3428 = vpack.c.bf16 %v3408, %v3407
      %v3429 = vpack.c.bf16 %v3410, %v3409
      %v3430 = vpack.c.bf16 %v3412, %v3411
      %v3431 = vpack.c.bf16 %v3414, %v3413
      %v3432 = vpack.c.bf16 %v3416, %v3415
      %s3433 = scalar_lea.vmem %s4, 14
      %v3434 = vld [vmem:[%s3433] sm:$0x3]
      %v3436 = vsel %vm525, %v3417, 0
      %v3439 = vsel %vm525, %v3418, 0
      %v3442 = vsel %vm525, %v3419, 0
      %v3445 = vsel %vm525, %v3420, 0
      %v3448 = vsel %vm525, %v3421, 0
      %v3451 = vsel %vm525, %v3422, 0
      %v3454 = vsel %vm525, %v3423, 0
      %v3457 = vsel %vm525, %v3424, 0
      %v3460 = vsel %vm525, %v3425, 0
      %v3463 = vsel %vm525, %v3426, 0
      %v3466 = vsel %vm525, %v3427, 0
      %v3469 = vsel %vm525, %v3428, 0
      %v3472 = vsel %vm525, %v3429, 0
      %v3475 = vsel %vm525, %v3430, 0
      %v3478 = vsel %vm525, %v3431, 0
      %v3481 = vsel %vm525, %v3432, 0
      %v3484 = vsel %vm1417, %v3434, 0
      %3486 = vmatprep.subr.bf16.mxu0 0
      %3487 = vmatpush1.bf16.msra.mxu0 0
      %3488 = vmatprep.subr.bf16.mxu0 0
      %3489 = vmatpush1.bf16.msra.mxu0 0
      %3490 = vmatprep.subr.bf16.mxu0 0
      %3491 = vmatpush1.bf16.msra.mxu0 0
      %3492 = vmatprep.subr.bf16.mxu0 0
      %3493 = vmatpush1.bf16.msra.mxu0 0
      %3494 = vmatprep.subr.bf16.mxu0 0
      %3495 = vmatpush1.bf16.msra.mxu0 0
      %3496 = vmatprep.subr.bf16.mxu0 0
      %3497 = vmatpush1.bf16.msra.mxu0 0
      %3498 = vmatprep.subr.bf16.mxu0 0
      %3499 = vmatpush1.bf16.msra.mxu0 0
      %3500 = vmatprep.subr.bf16.mxu0 0
      %3501 = vmatpush1.bf16.msra.mxu0 %v3484
      %3502 = vmatprep.subr.bf16.mxu0 0
      %3503 = vmatpush2.bf16.msra.mxu0 0
      %3504 = vmatprep.subr.bf16.mxu0 0
      %3505 = vmatpush2.bf16.msra.mxu0 0
      %3506 = vmatprep.subr.bf16.mxu0 0
      %3507 = vmatpush2.bf16.msra.mxu0 0
      %3508 = vmatprep.subr.bf16.mxu0 0
      %3509 = vmatpush2.bf16.msra.mxu0 0
      %3510 = vmatprep.subr.bf16.mxu0 0
      %3511 = vmatpush2.bf16.msra.mxu0 0
      %3512 = vmatprep.subr.bf16.mxu0 0
      %3513 = vmatpush2.bf16.msra.mxu0 0
      %3514 = vmatprep.subr.bf16.mxu0 0
      %3515 = vmatpush2.bf16.msra.mxu0 0
      %3516 = vmatprep.subr.bf16.mxu0 0
      %3517 = vmatpush2.bf16.msra.mxu0 0
      %3518 = vmatprep.mubr.bf16.mxu0 0
      %3519 = vmatmul.mubr.bf16.gmra.mxu0 %v3436
      %v3520 = vpop.f32.mrf.mxu0
      %v3521 = vadd.f32 0.0, %v3520
      %v3522 = vpop.f32.mrf.mxu0
      %v3523 = vpop.f32.mrf.mxu0
      %v3524 = vadd.f32 0.0, %v3523
      %v3525 = vpop.f32.mrf.mxu0
      %3526 = vmatprep.mubr.bf16.mxu0 0
      %3527 = vmatmul.mubr.bf16.gmra.mxu0 %v3439
      %v3528 = vpop.f32.mrf.mxu0
      %v3529 = vadd.f32 0.0, %v3528
      %v3530 = vpop.f32.mrf.mxu0
      %v3531 = vpop.f32.mrf.mxu0
      %v3532 = vadd.f32 0.0, %v3531
      %v3533 = vpop.f32.mrf.mxu0
      %3534 = vmatprep.mubr.bf16.mxu0 0
      %3535 = vmatmul.mubr.bf16.gmra.mxu0 %v3442
      %v3536 = vpop.f32.mrf.mxu0
      %v3537 = vadd.f32 0.0, %v3536
      %v3538 = vpop.f32.mrf.mxu0
      %v3539 = vpop.f32.mrf.mxu0
      %v3540 = vadd.f32 0.0, %v3539
      %v3541 = vpop.f32.mrf.mxu0
      %3542 = vmatprep.mubr.bf16.mxu0 0
      %3543 = vmatmul.mubr.bf16.gmra.mxu0 %v3445
      %v3544 = vpop.f32.mrf.mxu0
      %v3545 = vadd.f32 0.0, %v3544
      %v3546 = vpop.f32.mrf.mxu0
      %v3547 = vpop.f32.mrf.mxu0
      %v3548 = vadd.f32 0.0, %v3547
      %v3549 = vpop.f32.mrf.mxu0
      %3550 = vmatprep.mubr.bf16.mxu0 0
      %3551 = vmatmul.mubr.bf16.gmra.mxu0 %v3448
      %v3552 = vpop.f32.mrf.mxu0
      %v3553 = vadd.f32 0.0, %v3552
      %v3554 = vpop.f32.mrf.mxu0
      %v3555 = vpop.f32.mrf.mxu0
      %v3556 = vadd.f32 0.0, %v3555
      %v3557 = vpop.f32.mrf.mxu0
      %3558 = vmatprep.mubr.bf16.mxu0 0
      %3559 = vmatmul.mubr.bf16.gmra.mxu0 %v3451
      %v3560 = vpop.f32.mrf.mxu0
      %v3561 = vadd.f32 0.0, %v3560
      %v3562 = vpop.f32.mrf.mxu0
      %v3563 = vpop.f32.mrf.mxu0
      %v3564 = vadd.f32 0.0, %v3563
      %v3565 = vpop.f32.mrf.mxu0
      %3566 = vmatprep.mubr.bf16.mxu0 0
      %3567 = vmatmul.mubr.bf16.gmra.mxu0 %v3454
      %v3568 = vpop.f32.mrf.mxu0
      %v3569 = vadd.f32 0.0, %v3568
      %v3570 = vpop.f32.mrf.mxu0
      %v3571 = vpop.f32.mrf.mxu0
      %v3572 = vadd.f32 0.0, %v3571
      %v3573 = vpop.f32.mrf.mxu0
      %3574 = vmatprep.mubr.bf16.mxu0 0
      %3575 = vmatmul.mubr.bf16.gmra.mxu0 %v3457
      %v3576 = vpop.f32.mrf.mxu0
      %v3577 = vadd.f32 0.0, %v3576
      %v3578 = vpop.f32.mrf.mxu0
      %v3579 = vpop.f32.mrf.mxu0
      %v3580 = vadd.f32 0.0, %v3579
      %v3581 = vpop.f32.mrf.mxu0
      %3582 = vmatprep.mubr.bf16.mxu0 0
      %3583 = vmatmul.mubr.bf16.gmra.mxu0 %v3460
      %v3584 = vpop.f32.mrf.mxu0
      %v3585 = vadd.f32 0.0, %v3584
      %v3586 = vpop.f32.mrf.mxu0
      %v3587 = vpop.f32.mrf.mxu0
      %v3588 = vadd.f32 0.0, %v3587
      %v3589 = vpop.f32.mrf.mxu0
      %3590 = vmatprep.mubr.bf16.mxu0 0
      %3591 = vmatmul.mubr.bf16.gmra.mxu0 %v3463
      %v3592 = vpop.f32.mrf.mxu0
      %v3593 = vadd.f32 0.0, %v3592
      %v3594 = vpop.f32.mrf.mxu0
      %v3595 = vpop.f32.mrf.mxu0
      %v3596 = vadd.f32 0.0, %v3595
      %v3597 = vpop.f32.mrf.mxu0
      %3598 = vmatprep.mubr.bf16.mxu0 0
      %3599 = vmatmul.mubr.bf16.gmra.mxu0 %v3466
      %v3600 = vpop.f32.mrf.mxu0
      %v3601 = vadd.f32 0.0, %v3600
      %v3602 = vpop.f32.mrf.mxu0
      %v3603 = vpop.f32.mrf.mxu0
      %v3604 = vadd.f32 0.0, %v3603
      %v3605 = vpop.f32.mrf.mxu0
      %3606 = vmatprep.mubr.bf16.mxu0 0
      %3607 = vmatmul.mubr.bf16.gmra.mxu0 %v3469
      %v3608 = vpop.f32.mrf.mxu0
      %v3609 = vadd.f32 0.0, %v3608
      %v3610 = vpop.f32.mrf.mxu0
      %v3611 = vpop.f32.mrf.mxu0
      %v3612 = vadd.f32 0.0, %v3611
      %v3613 = vpop.f32.mrf.mxu0
      %3614 = vmatprep.mubr.bf16.mxu0 0
      %3615 = vmatmul.mubr.bf16.gmra.mxu0 %v3472
      %v3616 = vpop.f32.mrf.mxu0
      %v3617 = vadd.f32 0.0, %v3616
      %v3618 = vpop.f32.mrf.mxu0
      %v3619 = vpop.f32.mrf.mxu0
      %v3620 = vadd.f32 0.0, %v3619
      %v3621 = vpop.f32.mrf.mxu0
      %3622 = vmatprep.mubr.bf16.mxu0 0
      %3623 = vmatmul.mubr.bf16.gmra.mxu0 %v3475
      %v3624 = vpop.f32.mrf.mxu0
      %v3625 = vadd.f32 0.0, %v3624
      %v3626 = vpop.f32.mrf.mxu0
      %v3627 = vpop.f32.mrf.mxu0
      %v3628 = vadd.f32 0.0, %v3627
      %v3629 = vpop.f32.mrf.mxu0
      %3630 = vmatprep.mubr.bf16.mxu0 0
      %3631 = vmatmul.mubr.bf16.gmra.mxu0 %v3478
      %v3632 = vpop.f32.mrf.mxu0
      %v3633 = vadd.f32 0.0, %v3632
      %v3634 = vpop.f32.mrf.mxu0
      %v3635 = vpop.f32.mrf.mxu0
      %v3636 = vadd.f32 0.0, %v3635
      %v3637 = vpop.f32.mrf.mxu0
      %3638 = vmatprep.mubr.bf16.mxu0 0
      %3639 = vmatmul.mubr.bf16.gmra.mxu0 %v3481
      %v3640 = vpop.f32.mrf.mxu0
      %v3641 = vadd.f32 0.0, %v3640
      %v3642 = vpop.f32.mrf.mxu0
      %v3643 = vpop.f32.mrf.mxu0
      %v3644 = vadd.f32 0.0, %v3643
      %v3645 = vpop.f32.mrf.mxu0
      %3646 = vdwg.mxu0
      %v3647 = vadd.f32 %v3353, %v3521
      %v3648 = vadd.f32 %v3354, %v3524
      %v3649 = vadd.f32 %v3355, %v3529
      %v3650 = vadd.f32 %v3356, %v3532
      %v3651 = vadd.f32 %v3357, %v3537
      %v3652 = vadd.f32 %v3358, %v3540
      %v3653 = vadd.f32 %v3359, %v3545
      %v3654 = vadd.f32 %v3360, %v3548
      %v3655 = vadd.f32 %v3361, %v3553
      %v3656 = vadd.f32 %v3362, %v3556
      %v3657 = vadd.f32 %v3363, %v3561
      %v3658 = vadd.f32 %v3364, %v3564
      %v3659 = vadd.f32 %v3365, %v3569
      %v3660 = vadd.f32 %v3366, %v3572
      %v3661 = vadd.f32 %v3367, %v3577
      %v3662 = vadd.f32 %v3368, %v3580
      %v3663 = vadd.f32 %v3369, %v3585
      %v3664 = vadd.f32 %v3370, %v3588
      %v3665 = vadd.f32 %v3371, %v3593
      %v3666 = vadd.f32 %v3372, %v3596
      %v3667 = vadd.f32 %v3373, %v3601
      %v3668 = vadd.f32 %v3374, %v3604
      %v3669 = vadd.f32 %v3375, %v3609
      %v3670 = vadd.f32 %v3376, %v3612
      %v3671 = vadd.f32 %v3377, %v3617
      %v3672 = vadd.f32 %v3378, %v3620
      %v3673 = vadd.f32 %v3379, %v3625
      %v3674 = vadd.f32 %v3380, %v3628
      %v3675 = vadd.f32 %v3381, %v3633
      %v3676 = vadd.f32 %v3382, %v3636
      %v3677 = vadd.f32 %v3383, %v3641
      %v3678 = vadd.f32 %v3384, %v3644
      %v3679 = vld [vmem:[%s3090 + $0x2] sm:$0xff]
      %v3680 = vld [vmem:[%s3090 + $0xa] sm:$0xff]
      %v3681 = vld [vmem:[%s3090 + $0x1a] sm:$0xff]
      %v3682 = vld [vmem:[%s3090 + $0x22] sm:$0xff]
      %v3683 = vld [vmem:[%s3090 + $0x32] sm:$0xff]
      %v3684 = vld [vmem:[%s3090 + $0x3a] sm:$0xff]
      %v3685 = vld [vmem:[%s3090 + $0x4a] sm:$0xff]
      %v3686 = vld [vmem:[%s3090 + $0x52] sm:$0xff]
      %v3687 = vld [vmem:[%s3090 + $0x62] sm:$0xff]
      %v3688 = vld [vmem:[%s3090 + $0x6a] sm:$0xff]
      %v3689 = vld [vmem:[%s3090 + $0x7a] sm:$0xff]
      %v3690 = vld [vmem:[%s3090 + $0x82] sm:$0xff]
      %v3691 = vld [vmem:[%s3090 + $0x92] sm:$0xff]
      %v3692 = vld [vmem:[%s3090 + $0x9a] sm:$0xff]
      %v3693 = vld [vmem:[%s3090 + $0xaa] sm:$0xff]
      %v3694 = vld [vmem:[%s3090 + $0xb2] sm:$0xff]
      %v3695 = vld [vmem:[%s3090 + $0xc2] sm:$0xff]
      %v3696 = vld [vmem:[%s3090 + $0xca] sm:$0xff]
      %v3697 = vld [vmem:[%s3090 + $0xda] sm:$0xff]
      %v3698 = vld [vmem:[%s3090 + $0xe2] sm:$0xff]
      %v3699 = vld [vmem:[%s3090 + $0xf2] sm:$0xff]
      %v3700 = vld [vmem:[%s3090 + $0xfa] sm:$0xff]
      %v3701 = vld [vmem:[%s3090 + $0x10a] sm:$0xff]
      %v3702 = vld [vmem:[%s3090 + $0x112] sm:$0xff]
      %v3703 = vld [vmem:[%s3090 + $0x122] sm:$0xff]
      %v3704 = vld [vmem:[%s3090 + $0x12a] sm:$0xff]
      %v3705 = vld [vmem:[%s3090 + $0x13a] sm:$0xff]
      %v3706 = vld [vmem:[%s3090 + $0x142] sm:$0xff]
      %v3707 = vld [vmem:[%s3090 + $0x152] sm:$0xff]
      %v3708 = vld [vmem:[%s3090 + $0x15a] sm:$0xff]
      %v3709 = vld [vmem:[%s3090 + $0x16a] sm:$0xff]
      %v3710 = vld [vmem:[%s3090 + $0x172] sm:$0xff]
      %v3711 = vpack.c.bf16 %v3680, %v3679
      %v3712 = vpack.c.bf16 %v3682, %v3681
      %v3713 = vpack.c.bf16 %v3684, %v3683
      %v3714 = vpack.c.bf16 %v3686, %v3685
      %v3715 = vpack.c.bf16 %v3688, %v3687
      %v3716 = vpack.c.bf16 %v3690, %v3689
      %v3717 = vpack.c.bf16 %v3692, %v3691
      %v3718 = vpack.c.bf16 %v3694, %v3693
      %v3719 = vpack.c.bf16 %v3696, %v3695
      %v3720 = vpack.c.bf16 %v3698, %v3697
      %v3721 = vpack.c.bf16 %v3700, %v3699
      %v3722 = vpack.c.bf16 %v3702, %v3701
      %v3723 = vpack.c.bf16 %v3704, %v3703
      %v3724 = vpack.c.bf16 %v3706, %v3705
      %v3725 = vpack.c.bf16 %v3708, %v3707
      %v3726 = vpack.c.bf16 %v3710, %v3709
      %s3727 = scalar_lea.vmem %s4, 16
      %v3728 = vld [vmem:[%s3727] sm:$0x3]
      %v3730 = vsel %vm525, %v3711, 0
      %v3733 = vsel %vm525, %v3712, 0
      %v3736 = vsel %vm525, %v3713, 0
      %v3739 = vsel %vm525, %v3714, 0
      %v3742 = vsel %vm525, %v3715, 0
      %v3745 = vsel %vm525, %v3716, 0
      %v3748 = vsel %vm525, %v3717, 0
      %v3751 = vsel %vm525, %v3718, 0
      %v3754 = vsel %vm525, %v3719, 0
      %v3757 = vsel %vm525, %v3720, 0
      %v3760 = vsel %vm525, %v3721, 0
      %v3763 = vsel %vm525, %v3722, 0
      %v3766 = vsel %vm525, %v3723, 0
      %v3769 = vsel %vm525, %v3724, 0
      %v3772 = vsel %vm525, %v3725, 0
      %v3775 = vsel %vm525, %v3726, 0
      %v3778 = vsel %vm1417, %v3728, 0
      %3780 = vmatprep.subr.bf16.mxu0 0
      %3781 = vmatpush1.bf16.msra.mxu0 0
      %3782 = vmatprep.subr.bf16.mxu0 0
      %3783 = vmatpush1.bf16.msra.mxu0 0
      %3784 = vmatprep.subr.bf16.mxu0 0
      %3785 = vmatpush1.bf16.msra.mxu0 0
      %3786 = vmatprep.subr.bf16.mxu0 0
      %3787 = vmatpush1.bf16.msra.mxu0 0
      %3788 = vmatprep.subr.bf16.mxu0 0
      %3789 = vmatpush1.bf16.msra.mxu0 0
      %3790 = vmatprep.subr.bf16.mxu0 0
      %3791 = vmatpush1.bf16.msra.mxu0 0
      %3792 = vmatprep.subr.bf16.mxu0 0
      %3793 = vmatpush1.bf16.msra.mxu0 0
      %3794 = vmatprep.subr.bf16.mxu0 0
      %3795 = vmatpush1.bf16.msra.mxu0 %v3778
      %3796 = vmatprep.subr.bf16.mxu0 0
      %3797 = vmatpush2.bf16.msra.mxu0 0
      %3798 = vmatprep.subr.bf16.mxu0 0
      %3799 = vmatpush2.bf16.msra.mxu0 0
      %3800 = vmatprep.subr.bf16.mxu0 0
      %3801 = vmatpush2.bf16.msra.mxu0 0
      %3802 = vmatprep.subr.bf16.mxu0 0
      %3803 = vmatpush2.bf16.msra.mxu0 0
      %3804 = vmatprep.subr.bf16.mxu0 0
      %3805 = vmatpush2.bf16.msra.mxu0 0
      %3806 = vmatprep.subr.bf16.mxu0 0
      %3807 = vmatpush2.bf16.msra.mxu0 0
      %3808 = vmatprep.subr.bf16.mxu0 0
      %3809 = vmatpush2.bf16.msra.mxu0 0
      %3810 = vmatprep.subr.bf16.mxu0 0
      %3811 = vmatpush2.bf16.msra.mxu0 0
      %3812 = vmatprep.mubr.bf16.mxu0 0
      %3813 = vmatmul.mubr.bf16.gmra.mxu0 %v3730
      %v3814 = vpop.f32.mrf.mxu0
      %v3815 = vadd.f32 0.0, %v3814
      %v3816 = vpop.f32.mrf.mxu0
      %v3817 = vpop.f32.mrf.mxu0
      %v3818 = vadd.f32 0.0, %v3817
      %v3819 = vpop.f32.mrf.mxu0
      %3820 = vmatprep.mubr.bf16.mxu0 0
      %3821 = vmatmul.mubr.bf16.gmra.mxu0 %v3733
      %v3822 = vpop.f32.mrf.mxu0
      %v3823 = vadd.f32 0.0, %v3822
      %v3824 = vpop.f32.mrf.mxu0
      %v3825 = vpop.f32.mrf.mxu0
      %v3826 = vadd.f32 0.0, %v3825
      %v3827 = vpop.f32.mrf.mxu0
      %3828 = vmatprep.mubr.bf16.mxu0 0
      %3829 = vmatmul.mubr.bf16.gmra.mxu0 %v3736
      %v3830 = vpop.f32.mrf.mxu0
      %v3831 = vadd.f32 0.0, %v3830
      %v3832 = vpop.f32.mrf.mxu0
      %v3833 = vpop.f32.mrf.mxu0
      %v3834 = vadd.f32 0.0, %v3833
      %v3835 = vpop.f32.mrf.mxu0
      %3836 = vmatprep.mubr.bf16.mxu0 0
      %3837 = vmatmul.mubr.bf16.gmra.mxu0 %v3739
      %v3838 = vpop.f32.mrf.mxu0
      %v3839 = vadd.f32 0.0, %v3838
      %v3840 = vpop.f32.mrf.mxu0
      %v3841 = vpop.f32.mrf.mxu0
      %v3842 = vadd.f32 0.0, %v3841
      %v3843 = vpop.f32.mrf.mxu0
      %3844 = vmatprep.mubr.bf16.mxu0 0
      %3845 = vmatmul.mubr.bf16.gmra.mxu0 %v3742
      %v3846 = vpop.f32.mrf.mxu0
      %v3847 = vadd.f32 0.0, %v3846
      %v3848 = vpop.f32.mrf.mxu0
      %v3849 = vpop.f32.mrf.mxu0
      %v3850 = vadd.f32 0.0, %v3849
      %v3851 = vpop.f32.mrf.mxu0
      %3852 = vmatprep.mubr.bf16.mxu0 0
      %3853 = vmatmul.mubr.bf16.gmra.mxu0 %v3745
      %v3854 = vpop.f32.mrf.mxu0
      %v3855 = vadd.f32 0.0, %v3854
      %v3856 = vpop.f32.mrf.mxu0
      %v3857 = vpop.f32.mrf.mxu0
      %v3858 = vadd.f32 0.0, %v3857
      %v3859 = vpop.f32.mrf.mxu0
      %3860 = vmatprep.mubr.bf16.mxu0 0
      %3861 = vmatmul.mubr.bf16.gmra.mxu0 %v3748
      %v3862 = vpop.f32.mrf.mxu0
      %v3863 = vadd.f32 0.0, %v3862
      %v3864 = vpop.f32.mrf.mxu0
      %v3865 = vpop.f32.mrf.mxu0
      %v3866 = vadd.f32 0.0, %v3865
      %v3867 = vpop.f32.mrf.mxu0
      %3868 = vmatprep.mubr.bf16.mxu0 0
      %3869 = vmatmul.mubr.bf16.gmra.mxu0 %v3751
      %v3870 = vpop.f32.mrf.mxu0
      %v3871 = vadd.f32 0.0, %v3870
      %v3872 = vpop.f32.mrf.mxu0
      %v3873 = vpop.f32.mrf.mxu0
      %v3874 = vadd.f32 0.0, %v3873
      %v3875 = vpop.f32.mrf.mxu0
      %3876 = vmatprep.mubr.bf16.mxu0 0
      %3877 = vmatmul.mubr.bf16.gmra.mxu0 %v3754
      %v3878 = vpop.f32.mrf.mxu0
      %v3879 = vadd.f32 0.0, %v3878
      %v3880 = vpop.f32.mrf.mxu0
      %v3881 = vpop.f32.mrf.mxu0
      %v3882 = vadd.f32 0.0, %v3881
      %v3883 = vpop.f32.mrf.mxu0
      %3884 = vmatprep.mubr.bf16.mxu0 0
      %3885 = vmatmul.mubr.bf16.gmra.mxu0 %v3757
      %v3886 = vpop.f32.mrf.mxu0
      %v3887 = vadd.f32 0.0, %v3886
      %v3888 = vpop.f32.mrf.mxu0
      %v3889 = vpop.f32.mrf.mxu0
      %v3890 = vadd.f32 0.0, %v3889
      %v3891 = vpop.f32.mrf.mxu0
      %3892 = vmatprep.mubr.bf16.mxu0 0
      %3893 = vmatmul.mubr.bf16.gmra.mxu0 %v3760
      %v3894 = vpop.f32.mrf.mxu0
      %v3895 = vadd.f32 0.0, %v3894
      %v3896 = vpop.f32.mrf.mxu0
      %v3897 = vpop.f32.mrf.mxu0
      %v3898 = vadd.f32 0.0, %v3897
      %v3899 = vpop.f32.mrf.mxu0
      %3900 = vmatprep.mubr.bf16.mxu0 0
      %3901 = vmatmul.mubr.bf16.gmra.mxu0 %v3763
      %v3902 = vpop.f32.mrf.mxu0
      %v3903 = vadd.f32 0.0, %v3902
      %v3904 = vpop.f32.mrf.mxu0
      %v3905 = vpop.f32.mrf.mxu0
      %v3906 = vadd.f32 0.0, %v3905
      %v3907 = vpop.f32.mrf.mxu0
      %3908 = vmatprep.mubr.bf16.mxu0 0
      %3909 = vmatmul.mubr.bf16.gmra.mxu0 %v3766
      %v3910 = vpop.f32.mrf.mxu0
      %v3911 = vadd.f32 0.0, %v3910
      %v3912 = vpop.f32.mrf.mxu0
      %v3913 = vpop.f32.mrf.mxu0
      %v3914 = vadd.f32 0.0, %v3913
      %v3915 = vpop.f32.mrf.mxu0
      %3916 = vmatprep.mubr.bf16.mxu0 0
      %3917 = vmatmul.mubr.bf16.gmra.mxu0 %v3769
      %v3918 = vpop.f32.mrf.mxu0
      %v3919 = vadd.f32 0.0, %v3918
      %v3920 = vpop.f32.mrf.mxu0
      %v3921 = vpop.f32.mrf.mxu0
      %v3922 = vadd.f32 0.0, %v3921
      %v3923 = vpop.f32.mrf.mxu0
      %3924 = vmatprep.mubr.bf16.mxu0 0
      %3925 = vmatmul.mubr.bf16.gmra.mxu0 %v3772
      %v3926 = vpop.f32.mrf.mxu0
      %v3927 = vadd.f32 0.0, %v3926
      %v3928 = vpop.f32.mrf.mxu0
      %v3929 = vpop.f32.mrf.mxu0
      %v3930 = vadd.f32 0.0, %v3929
      %v3931 = vpop.f32.mrf.mxu0
      %3932 = vmatprep.mubr.bf16.mxu0 0
      %3933 = vmatmul.mubr.bf16.gmra.mxu0 %v3775
      %v3934 = vpop.f32.mrf.mxu0
      %v3935 = vadd.f32 0.0, %v3934
      %v3936 = vpop.f32.mrf.mxu0
      %v3937 = vpop.f32.mrf.mxu0
      %v3938 = vadd.f32 0.0, %v3937
      %v3939 = vpop.f32.mrf.mxu0
      %3940 = vdwg.mxu0
      %v3941 = vadd.f32 %v3647, %v3815
      %v3942 = vadd.f32 %v3648, %v3818
      %v3943 = vadd.f32 %v3649, %v3823
      %v3944 = vadd.f32 %v3650, %v3826
      %v3945 = vadd.f32 %v3651, %v3831
      %v3946 = vadd.f32 %v3652, %v3834
      %v3947 = vadd.f32 %v3653, %v3839
      %v3948 = vadd.f32 %v3654, %v3842
      %v3949 = vadd.f32 %v3655, %v3847
      %v3950 = vadd.f32 %v3656, %v3850
      %v3951 = vadd.f32 %v3657, %v3855
      %v3952 = vadd.f32 %v3658, %v3858
      %v3953 = vadd.f32 %v3659, %v3863
      %v3954 = vadd.f32 %v3660, %v3866
      %v3955 = vadd.f32 %v3661, %v3871
      %v3956 = vadd.f32 %v3662, %v3874
      %v3957 = vadd.f32 %v3663, %v3879
      %v3958 = vadd.f32 %v3664, %v3882
      %v3959 = vadd.f32 %v3665, %v3887
      %v3960 = vadd.f32 %v3666, %v3890
      %v3961 = vadd.f32 %v3667, %v3895
      %v3962 = vadd.f32 %v3668, %v3898
      %v3963 = vadd.f32 %v3669, %v3903
      %v3964 = vadd.f32 %v3670, %v3906
      %v3965 = vadd.f32 %v3671, %v3911
      %v3966 = vadd.f32 %v3672, %v3914
      %v3967 = vadd.f32 %v3673, %v3919
      %v3968 = vadd.f32 %v3674, %v3922
      %v3969 = vadd.f32 %v3675, %v3927
      %v3970 = vadd.f32 %v3676, %v3930
      %v3971 = vadd.f32 %v3677, %v3935
      %v3972 = vadd.f32 %v3678, %v3938
      %v3973 = vld [vmem:[%s7] sm:$0x1]
      %v3974 = vld [vmem:[%s8] sm:$0x1]
      %v3975 = vld [vmem:[%s6] sm:$0xff]
      %v3976 = vsel %vm442, %v3941, 0.0
      %v3977 = vsel %vm442, %v3942, 0.0
      %v3978 = vadd.f32 %v3976, %v3977
      %v3979 = vsel %vm442, %v3943, 0.0
      %v3980 = vadd.f32 %v3978, %v3979
      %v3981 = vsel %vm442, %v3944, 0.0
      %v3982 = vadd.f32 %v3980, %v3981
      %v3983 = vsel %vm442, %v3945, 0.0
      %v3984 = vadd.f32 %v3982, %v3983
      %v3985 = vsel %vm442, %v3946, 0.0
      %v3986 = vadd.f32 %v3984, %v3985
      %v3987 = vsel %vm442, %v3947, 0.0
      %v3988 = vadd.f32 %v3986, %v3987
      %v3989 = vsel %vm442, %v3948, 0.0
      %v3990 = vadd.f32 %v3988, %v3989
      %v3991 = vsel %vm442, %v3949, 0.0
      %v3992 = vadd.f32 %v3990, %v3991
      %v3993 = vsel %vm442, %v3950, 0.0
      %v3994 = vadd.f32 %v3992, %v3993
      %v3995 = vsel %vm442, %v3951, 0.0
      %v3996 = vadd.f32 %v3994, %v3995
      %v3997 = vsel %vm442, %v3952, 0.0
      %v3998 = vadd.f32 %v3996, %v3997
      %v3999 = vsel %vm442, %v3953, 0.0
      %v4000 = vadd.f32 %v3998, %v3999
      %v4001 = vsel %vm442, %v3954, 0.0
      %v4002 = vadd.f32 %v4000, %v4001
      %v4003 = vsel %vm442, %v3955, 0.0
      %v4004 = vadd.f32 %v4002, %v4003
      %v4005 = vsel %vm442, %v3956, 0.0
      %v4006 = vadd.f32 %v4004, %v4005
      %v4007 = vsel %vm442, %v3957, 0.0
      %v4008 = vadd.f32 %v4006, %v4007
      %v4009 = vsel %vm442, %v3958, 0.0
      %v4010 = vadd.f32 %v4008, %v4009
      %v4011 = vsel %vm442, %v3959, 0.0
      %v4012 = vadd.f32 %v4010, %v4011
      %v4013 = vsel %vm442, %v3960, 0.0
      %v4014 = vadd.f32 %v4012, %v4013
      %v4015 = vsel %vm442, %v3961, 0.0
      %v4016 = vadd.f32 %v4014, %v4015
      %v4017 = vsel %vm442, %v3962, 0.0
      %v4018 = vadd.f32 %v4016, %v4017
      %v4019 = vsel %vm442, %v3963, 0.0
      %v4020 = vadd.f32 %v4018, %v4019
      %v4021 = vsel %vm442, %v3964, 0.0
      %v4022 = vadd.f32 %v4020, %v4021
      %v4023 = vsel %vm442, %v3965, 0.0
      %v4024 = vadd.f32 %v4022, %v4023
      %v4025 = vsel %vm442, %v3966, 0.0
      %v4026 = vadd.f32 %v4024, %v4025
      %v4027 = vsel %vm442, %v3967, 0.0
      %v4028 = vadd.f32 %v4026, %v4027
      %v4029 = vsel %vm442, %v3968, 0.0
      %v4030 = vadd.f32 %v4028, %v4029
      %v4031 = vsel %vm442, %v3969, 0.0
      %v4032 = vadd.f32 %v4030, %v4031
      %v4033 = vsel %vm442, %v3970, 0.0
      %v4034 = vadd.f32 %v4032, %v4033
      %v4035 = vsel %vm442, %v3971, 0.0
      %v4036 = vadd.f32 %v4034, %v4035
      %v4037 = vsel %vm442, %v3972, 0.0
      %v4038 = vadd.f32 %v4036, %v4037
      %v4039 = vrot.slane %v4038, 4
      %v4040 = vadd.f32 %v4038, %v4039
      %v4041 = vrot.slane %v4040, 2
      %v4042 = vadd.f32 %v4040, %v4041
      %v4043 = vrot.slane %v4042, 1
      %v4044 = vadd.f32 %v4042, %v4043
      %v4045 = vmul.f32 %v3941, %v3941
      %v4046 = vmul.f32 %v3942, %v3942
      %v4047 = vmul.f32 %v3943, %v3943
      %v4048 = vmul.f32 %v3944, %v3944
      %v4049 = vmul.f32 %v3945, %v3945
      %v4050 = vmul.f32 %v3946, %v3946
      %v4051 = vmul.f32 %v3947, %v3947
      %v4052 = vmul.f32 %v3948, %v3948
      %v4053 = vmul.f32 %v3949, %v3949
      %v4054 = vmul.f32 %v3950, %v3950
      %v4055 = vmul.f32 %v3951, %v3951
      %v4056 = vmul.f32 %v3952, %v3952
      %v4057 = vmul.f32 %v3953, %v3953
      %v4058 = vmul.f32 %v3954, %v3954
      %v4059 = vmul.f32 %v3955, %v3955
      %v4060 = vmul.f32 %v3956, %v3956
      %v4061 = vmul.f32 %v3957, %v3957
      %v4062 = vmul.f32 %v3958, %v3958
      %v4063 = vmul.f32 %v3959, %v3959
      %v4064 = vmul.f32 %v3960, %v3960
      %v4065 = vmul.f32 %v3961, %v3961
      %v4066 = vmul.f32 %v3962, %v3962
      %v4067 = vmul.f32 %v3963, %v3963
      %v4068 = vmul.f32 %v3964, %v3964
      %v4069 = vmul.f32 %v3965, %v3965
      %v4070 = vmul.f32 %v3966, %v3966
      %v4071 = vmul.f32 %v3967, %v3967
      %v4072 = vmul.f32 %v3968, %v3968
      %v4073 = vmul.f32 %v3969, %v3969
      %v4074 = vmul.f32 %v3970, %v3970
      %v4075 = vmul.f32 %v3971, %v3971
      %v4076 = vmul.f32 %v3972, %v3972
      %v4077 = vsel %vm442, %v4045, 0.0
      %v4078 = vsel %vm442, %v4046, 0.0
      %v4079 = vadd.f32 %v4077, %v4078
      %v4080 = vsel %vm442, %v4047, 0.0
      %v4081 = vadd.f32 %v4079, %v4080
      %v4082 = vsel %vm442, %v4048, 0.0
      %v4083 = vadd.f32 %v4081, %v4082
      %v4084 = vsel %vm442, %v4049, 0.0
      %v4085 = vadd.f32 %v4083, %v4084
      %v4086 = vsel %vm442, %v4050, 0.0
      %v4087 = vadd.f32 %v4085, %v4086
      %v4088 = vsel %vm442, %v4051, 0.0
      %v4089 = vadd.f32 %v4087, %v4088
      %v4090 = vsel %vm442, %v4052, 0.0
      %v4091 = vadd.f32 %v4089, %v4090
      %v4092 = vsel %vm442, %v4053, 0.0
      %v4093 = vadd.f32 %v4091, %v4092
      %v4094 = vsel %vm442, %v4054, 0.0
      %v4095 = vadd.f32 %v4093, %v4094
      %v4096 = vsel %vm442, %v4055, 0.0
      %v4097 = vadd.f32 %v4095, %v4096
      %v4098 = vsel %vm442, %v4056, 0.0
      %v4099 = vadd.f32 %v4097, %v4098
      %v4100 = vsel %vm442, %v4057, 0.0
      %v4101 = vadd.f32 %v4099, %v4100
      %v4102 = vsel %vm442, %v4058, 0.0
      %v4103 = vadd.f32 %v4101, %v4102
      %v4104 = vsel %vm442, %v4059, 0.0
      %v4105 = vadd.f32 %v4103, %v4104
      %v4106 = vsel %vm442, %v4060, 0.0
      %v4107 = vadd.f32 %v4105, %v4106
      %v4108 = vsel %vm442, %v4061, 0.0
      %v4109 = vadd.f32 %v4107, %v4108
      %v4110 = vsel %vm442, %v4062, 0.0
      %v4111 = vadd.f32 %v4109, %v4110
      %v4112 = vsel %vm442, %v4063, 0.0
      %v4113 = vadd.f32 %v4111, %v4112
      %v4114 = vsel %vm442, %v4064, 0.0
      %v4115 = vadd.f32 %v4113, %v4114
      %v4116 = vsel %vm442, %v4065, 0.0
      %v4117 = vadd.f32 %v4115, %v4116
      %v4118 = vsel %vm442, %v4066, 0.0
      %v4119 = vadd.f32 %v4117, %v4118
      %v4120 = vsel %vm442, %v4067, 0.0
      %v4121 = vadd.f32 %v4119, %v4120
      %v4122 = vsel %vm442, %v4068, 0.0
      %v4123 = vadd.f32 %v4121, %v4122
      %v4124 = vsel %vm442, %v4069, 0.0
      %v4125 = vadd.f32 %v4123, %v4124
      %v4126 = vsel %vm442, %v4070, 0.0
      %v4127 = vadd.f32 %v4125, %v4126
      %v4128 = vsel %vm442, %v4071, 0.0
      %v4129 = vadd.f32 %v4127, %v4128
      %v4130 = vsel %vm442, %v4072, 0.0
      %v4131 = vadd.f32 %v4129, %v4130
      %v4132 = vsel %vm442, %v4073, 0.0
      %v4133 = vadd.f32 %v4131, %v4132
      %v4134 = vsel %vm442, %v4074, 0.0
      %v4135 = vadd.f32 %v4133, %v4134
      %v4136 = vsel %vm442, %v4075, 0.0
      %v4137 = vadd.f32 %v4135, %v4136
      %v4138 = vsel %vm442, %v4076, 0.0
      %v4139 = vadd.f32 %v4137, %v4138
      %v4140 = vrot.slane %v4139, 4
      %v4141 = vadd.f32 %v4139, %v4140
      %v4142 = vrot.slane %v4141, 2
      %v4143 = vadd.f32 %v4141, %v4142
      %v4144 = vrot.slane %v4143, 1
      %v4145 = vadd.f32 %v4143, %v4144
      %v4147 = vsel %vm442, %v4044, 0
      %4149 = vmatprep.subr.mxu0 0.0
      %4150 = vmatpush1.msra.mxu0 0.0
      %4151 = vmatprep.subr.mxu0 0.0
      %4152 = vmatpush1.msra.mxu0 0.0
      %4153 = vmatprep.subr.mxu0 0.0
      %4154 = vmatpush1.msra.mxu0 0.0
      %4155 = vmatprep.subr.mxu0 0.0
      %4156 = vmatpush1.msra.mxu0 0.0
      %4157 = vmatprep.subr.mxu0 0.0
      %4158 = vmatpush1.msra.mxu0 0.0
      %4159 = vmatprep.subr.mxu0 0.0
      %4160 = vmatpush1.msra.mxu0 0.0
      %4161 = vmatprep.subr.mxu0 0.0
      %4162 = vmatpush1.msra.mxu0 0.0
      %4163 = vmatprep.subr.mxu0 0.0
      %4164 = vmatpush1.msra.mxu0 0.0
      %4165 = vmatprep.subr.mxu0 0.0
      %4166 = vmatpush1.msra.mxu0 0.0
      %4167 = vmatprep.subr.mxu0 0.0
      %4168 = vmatpush1.msra.mxu0 0.0
      %4169 = vmatprep.subr.mxu0 0.0
      %4170 = vmatpush1.msra.mxu0 0.0
      %4171 = vmatprep.subr.mxu0 0.0
      %4172 = vmatpush1.msra.mxu0 0.0
      %4173 = vmatprep.subr.mxu0 0.0
      %4174 = vmatpush1.msra.mxu0 0.0
      %4175 = vmatprep.subr.mxu0 0.0
      %4176 = vmatpush1.msra.mxu0 0.0
      %4177 = vmatprep.subr.mxu0 0.0
      %4178 = vmatpush1.msra.mxu0 0.0
      %4179 = vmatprep.subr.mxu0 0.0
      %4180 = vmatpush1.msra.mxu0 %v3975
      %4181 = vmatprep.subr.mxu0 0.0
      %4182 = vmatpush2.msra.mxu0 0.0
      %4183 = vmatprep.subr.mxu0 0.0
      %4184 = vmatpush2.msra.mxu0 0.0
      %4185 = vmatprep.subr.mxu0 0.0
      %4186 = vmatpush2.msra.mxu0 0.0
      %4187 = vmatprep.subr.mxu0 0.0
      %4188 = vmatpush2.msra.mxu0 0.0
      %4189 = vmatprep.subr.mxu0 0.0
      %4190 = vmatpush2.msra.mxu0 0.0
      %4191 = vmatprep.subr.mxu0 0.0
      %4192 = vmatpush2.msra.mxu0 0.0
      %4193 = vmatprep.subr.mxu0 0.0
      %4194 = vmatpush2.msra.mxu0 0.0
      %4195 = vmatprep.subr.mxu0 0.0
      %4196 = vmatpush2.msra.mxu0 0.0
      %4197 = vmatprep.subr.mxu0 0.0
      %4198 = vmatpush2.msra.mxu0 0.0
      %4199 = vmatprep.subr.mxu0 0.0
      %4200 = vmatpush2.msra.mxu0 0.0
      %4201 = vmatprep.subr.mxu0 0.0
      %4202 = vmatpush2.msra.mxu0 0.0
      %4203 = vmatprep.subr.mxu0 0.0
      %4204 = vmatpush2.msra.mxu0 0.0
      %4205 = vmatprep.subr.mxu0 0.0
      %4206 = vmatpush2.msra.mxu0 0.0
      %4207 = vmatprep.subr.mxu0 0.0
      %4208 = vmatpush2.msra.mxu0 0.0
      %4209 = vmatprep.subr.mxu0 0.0
      %4210 = vmatpush2.msra.mxu0 0.0
      %4211 = vmatprep.subr.mxu0 0.0
      %4212 = vmatpush2.msra.mxu0 0.0
      %4213 = vmatprep.mubr.f32.mxu0 0.0
      %4214 = vmatmul.mubr.f32.gmra.mxu0 %v4147
      %v4215 = vpop.f32.mrf.mxu0
      %v4216 = vadd.f32 0.0, %v4215
      %v4217 = vpop.f32.mrf.mxu0
      %4218 = vdwg.mxu0
      %v4220 = vsel %vm442, %v4145, 0
      %4222 = vmatprep.subr.mxu0 0.0
      %4223 = vmatpush1.msra.mxu0 0.0
      %4224 = vmatprep.subr.mxu0 0.0
      %4225 = vmatpush1.msra.mxu0 0.0
      %4226 = vmatprep.subr.mxu0 0.0
      %4227 = vmatpush1.msra.mxu0 0.0
      %4228 = vmatprep.subr.mxu0 0.0
      %4229 = vmatpush1.msra.mxu0 0.0
      %4230 = vmatprep.subr.mxu0 0.0
      %4231 = vmatpush1.msra.mxu0 0.0
      %4232 = vmatprep.subr.mxu0 0.0
      %4233 = vmatpush1.msra.mxu0 0.0
      %4234 = vmatprep.subr.mxu0 0.0
      %4235 = vmatpush1.msra.mxu0 0.0
      %4236 = vmatprep.subr.mxu0 0.0
      %4237 = vmatpush1.msra.mxu0 0.0
      %4238 = vmatprep.subr.mxu0 0.0
      %4239 = vmatpush1.msra.mxu0 0.0
      %4240 = vmatprep.subr.mxu0 0.0
      %4241 = vmatpush1.msra.mxu0 0.0
      %4242 = vmatprep.subr.mxu0 0.0
      %4243 = vmatpush1.msra.mxu0 0.0
      %4244 = vmatprep.subr.mxu0 0.0
      %4245 = vmatpush1.msra.mxu0 0.0
      %4246 = vmatprep.subr.mxu0 0.0
      %4247 = vmatpush1.msra.mxu0 0.0
      %4248 = vmatprep.subr.mxu0 0.0
      %4249 = vmatpush1.msra.mxu0 0.0
      %4250 = vmatprep.subr.mxu0 0.0
      %4251 = vmatpush1.msra.mxu0 0.0
      %4252 = vmatprep.subr.mxu0 0.0
      %4253 = vmatpush1.msra.mxu0 %v3975
      %4254 = vmatprep.subr.mxu0 0.0
      %4255 = vmatpush2.msra.mxu0 0.0
      %4256 = vmatprep.subr.mxu0 0.0
      %4257 = vmatpush2.msra.mxu0 0.0
      %4258 = vmatprep.subr.mxu0 0.0
      %4259 = vmatpush2.msra.mxu0 0.0
      %4260 = vmatprep.subr.mxu0 0.0
      %4261 = vmatpush2.msra.mxu0 0.0
      %4262 = vmatprep.subr.mxu0 0.0
      %4263 = vmatpush2.msra.mxu0 0.0
      %4264 = vmatprep.subr.mxu0 0.0
      %4265 = vmatpush2.msra.mxu0 0.0
      %4266 = vmatprep.subr.mxu0 0.0
      %4267 = vmatpush2.msra.mxu0 0.0
      %4268 = vmatprep.subr.mxu0 0.0
      %4269 = vmatpush2.msra.mxu0 0.0
      %4270 = vmatprep.subr.mxu0 0.0
      %4271 = vmatpush2.msra.mxu0 0.0
      %4272 = vmatprep.subr.mxu0 0.0
      %4273 = vmatpush2.msra.mxu0 0.0
      %4274 = vmatprep.subr.mxu0 0.0
      %4275 = vmatpush2.msra.mxu0 0.0
      %4276 = vmatprep.subr.mxu0 0.0
      %4277 = vmatpush2.msra.mxu0 0.0
      %4278 = vmatprep.subr.mxu0 0.0
      %4279 = vmatpush2.msra.mxu0 0.0
      %4280 = vmatprep.subr.mxu0 0.0
      %4281 = vmatpush2.msra.mxu0 0.0
      %4282 = vmatprep.subr.mxu0 0.0
      %4283 = vmatpush2.msra.mxu0 0.0
      %4284 = vmatprep.subr.mxu0 0.0
      %4285 = vmatpush2.msra.mxu0 0.0
      %4286 = vmatprep.mubr.f32.mxu0 0.0
      %4287 = vmatmul.mubr.f32.gmra.mxu0 %v4220
      %v4288 = vpop.f32.mrf.mxu0
      %v4289 = vadd.f32 0.0, %v4288
      %v4290 = vpop.f32.mrf.mxu0
      %4291 = vdwg.mxu0
      %v4292 = vmul.f32 %v4216, %v4216
      %v4293 = vsub.f32 %v4289, %v4292
      %v4294 = vmax.f32 %v4293, 0.0
      %v4295 = vadd.f32 %v4294, 1e-05
      %v4296 = vrsqrt.pop %v4295
      %v4297 = vmul.f32 %v4296, %v3973
      %v4298 = vmul.f32 %v4216, %v4297
      %v4299 = vsub.f32 %v3974, %v4298
      %v4300 = vlaneseq
      %v4301 = vshrl.u32 %v4300, 7
      %v4302 = vsub.s32 0, %v4301
      %v4303 = vrot.slane %v4297, %v4302
      %v4304 = vmul.f32 %v3941, %v4303
      %v4305 = vmul.f32 %v3942, %v4303
      %v4306 = vmul.f32 %v3943, %v4303
      %v4307 = vmul.f32 %v3944, %v4303
      %v4308 = vmul.f32 %v3945, %v4303
      %v4309 = vmul.f32 %v3946, %v4303
      %v4310 = vmul.f32 %v3947, %v4303
      %v4311 = vmul.f32 %v3948, %v4303
      %v4312 = vmul.f32 %v3949, %v4303
      %v4313 = vmul.f32 %v3950, %v4303
      %v4314 = vmul.f32 %v3951, %v4303
      %v4315 = vmul.f32 %v3952, %v4303
      %v4316 = vmul.f32 %v3953, %v4303
      %v4317 = vmul.f32 %v3954, %v4303
      %v4318 = vmul.f32 %v3955, %v4303
      %v4319 = vmul.f32 %v3956, %v4303
      %v4320 = vmul.f32 %v3957, %v4303
      %v4321 = vmul.f32 %v3958, %v4303
      %v4322 = vmul.f32 %v3959, %v4303
      %v4323 = vmul.f32 %v3960, %v4303
      %v4324 = vmul.f32 %v3961, %v4303
      %v4325 = vmul.f32 %v3962, %v4303
      %v4326 = vmul.f32 %v3963, %v4303
      %v4327 = vmul.f32 %v3964, %v4303
      %v4328 = vmul.f32 %v3965, %v4303
      %v4329 = vmul.f32 %v3966, %v4303
      %v4330 = vmul.f32 %v3967, %v4303
      %v4331 = vmul.f32 %v3968, %v4303
      %v4332 = vmul.f32 %v3969, %v4303
      %v4333 = vmul.f32 %v3970, %v4303
      %v4334 = vmul.f32 %v3971, %v4303
      %v4335 = vmul.f32 %v3972, %v4303
      %v4337 = vlaneseq
      %v4338 = vshrl.u32 %v4337, 7
      %v4339 = vsub.s32 0, %v4338
      %v4340 = vrot.slane %v4299, %v4339
      %v4342 = vadd.f32 %v4304, %v4340
      %v4343 = vadd.f32 %v4305, %v4340
      %v4344 = vadd.f32 %v4306, %v4340
      %v4345 = vadd.f32 %v4307, %v4340
      %v4346 = vadd.f32 %v4308, %v4340
      %v4347 = vadd.f32 %v4309, %v4340
      %v4348 = vadd.f32 %v4310, %v4340
      %v4349 = vadd.f32 %v4311, %v4340
      %v4350 = vadd.f32 %v4312, %v4340
      %v4351 = vadd.f32 %v4313, %v4340
      %v4352 = vadd.f32 %v4314, %v4340
      %v4353 = vadd.f32 %v4315, %v4340
      %v4354 = vadd.f32 %v4316, %v4340
      %v4355 = vadd.f32 %v4317, %v4340
      %v4356 = vadd.f32 %v4318, %v4340
      %v4357 = vadd.f32 %v4319, %v4340
      %v4358 = vadd.f32 %v4320, %v4340
      %v4359 = vadd.f32 %v4321, %v4340
      %v4360 = vadd.f32 %v4322, %v4340
      %v4361 = vadd.f32 %v4323, %v4340
      %v4362 = vadd.f32 %v4324, %v4340
      %v4363 = vadd.f32 %v4325, %v4340
      %v4364 = vadd.f32 %v4326, %v4340
      %v4365 = vadd.f32 %v4327, %v4340
      %v4366 = vadd.f32 %v4328, %v4340
      %v4367 = vadd.f32 %v4329, %v4340
      %v4368 = vadd.f32 %v4330, %v4340
      %v4369 = vadd.f32 %v4331, %v4340
      %v4370 = vadd.f32 %v4332, %v4340
      %v4371 = vadd.f32 %v4333, %v4340
      %v4372 = vadd.f32 %v4334, %v4340
      %v4373 = vadd.f32 %v4335, %v4340
      %v4374 = vmax.f32 %v4342, 0.0
      %v4375 = vmax.f32 %v4343, 0.0
      %v4376 = vmax.f32 %v4344, 0.0
      %v4377 = vmax.f32 %v4345, 0.0
      %v4378 = vmax.f32 %v4346, 0.0
      %v4379 = vmax.f32 %v4347, 0.0
      %v4380 = vmax.f32 %v4348, 0.0
      %v4381 = vmax.f32 %v4349, 0.0
      %v4382 = vmax.f32 %v4350, 0.0
      %v4383 = vmax.f32 %v4351, 0.0
      %v4384 = vmax.f32 %v4352, 0.0
      %v4385 = vmax.f32 %v4353, 0.0
      %v4386 = vmax.f32 %v4354, 0.0
      %v4387 = vmax.f32 %v4355, 0.0
      %v4388 = vmax.f32 %v4356, 0.0
      %v4389 = vmax.f32 %v4357, 0.0
      %v4390 = vmax.f32 %v4358, 0.0
      %v4391 = vmax.f32 %v4359, 0.0
      %v4392 = vmax.f32 %v4360, 0.0
      %v4393 = vmax.f32 %v4361, 0.0
      %v4394 = vmax.f32 %v4362, 0.0
      %v4395 = vmax.f32 %v4363, 0.0
      %v4396 = vmax.f32 %v4364, 0.0
      %v4397 = vmax.f32 %v4365, 0.0
      %v4398 = vmax.f32 %v4366, 0.0
      %v4399 = vmax.f32 %v4367, 0.0
      %v4400 = vmax.f32 %v4368, 0.0
      %v4401 = vmax.f32 %v4369, 0.0
      %v4402 = vmax.f32 %v4370, 0.0
      %v4403 = vmax.f32 %v4371, 0.0
      %v4404 = vmax.f32 %v4372, 0.0
      %v4405 = vmax.f32 %v4373, 0.0
      %v4406 = vld [vmem:[%s10] sm:$0x1]
      %v4408 = vlaneseq
      %v4409 = vshrl.u32 %v4408, 7
      %v4410 = vsub.s32 0, %v4409
      %v4411 = vrot.slane %v4406, %v4410
      %v4413 = vadd.f32 %v693, %v4411
      %v4414 = vadd.f32 %v698, %v4411
      %v4415 = vadd.f32 %v703, %v4411
      %v4416 = vadd.f32 %v708, %v4411
      %v4417 = vadd.f32 %v713, %v4411
      %v4418 = vadd.f32 %v718, %v4411
      %v4419 = vadd.f32 %v723, %v4411
      %v4420 = vadd.f32 %v728, %v4411
      %v4421 = vadd.f32 %v733, %v4411
      %v4422 = vadd.f32 %v738, %v4411
      %v4423 = vadd.f32 %v743, %v4411
      %v4424 = vadd.f32 %v748, %v4411
      %v4425 = vadd.f32 %v753, %v4411
      %v4426 = vadd.f32 %v758, %v4411
      %v4427 = vadd.f32 %v763, %v4411
      %v4428 = vadd.f32 %v768, %v4411
      %v4429 = vadd.f32 %v773, %v4411
      %v4430 = vadd.f32 %v778, %v4411
      %v4431 = vadd.f32 %v783, %v4411
      %v4432 = vadd.f32 %v788, %v4411
      %v4433 = vadd.f32 %v793, %v4411
      %v4434 = vadd.f32 %v798, %v4411
      %v4435 = vadd.f32 %v803, %v4411
      %v4436 = vadd.f32 %v808, %v4411
      %v4437 = vadd.f32 %v813, %v4411
      %v4438 = vadd.f32 %v818, %v4411
      %v4439 = vadd.f32 %v823, %v4411
      %v4440 = vadd.f32 %v828, %v4411
      %v4441 = vadd.f32 %v833, %v4411
      %v4442 = vadd.f32 %v838, %v4411
      %v4443 = vadd.f32 %v843, %v4411
      %v4444 = vadd.f32 %v848, %v4411
      %4445 = vst.msk [vmem:[%s451 + $0x1] sm:$0xff] %vm442, %v4374
      %4446 = vst.msk [vmem:[%s451 + $0x9] sm:$0xff] %vm442, %v4375
      %4447 = vst.msk [vmem:[%s451 + $0x19] sm:$0xff] %vm442, %v4376
      %4448 = vst.msk [vmem:[%s451 + $0x21] sm:$0xff] %vm442, %v4377
      %4449 = vst.msk [vmem:[%s451 + $0x31] sm:$0xff] %vm442, %v4378
      %4450 = vst.msk [vmem:[%s451 + $0x39] sm:$0xff] %vm442, %v4379
      %4451 = vst.msk [vmem:[%s451 + $0x49] sm:$0xff] %vm442, %v4380
      %4452 = vst.msk [vmem:[%s451 + $0x51] sm:$0xff] %vm442, %v4381
      %4453 = vst.msk [vmem:[%s451 + $0x61] sm:$0xff] %vm442, %v4382
      %4454 = vst.msk [vmem:[%s451 + $0x69] sm:$0xff] %vm442, %v4383
      %4455 = vst.msk [vmem:[%s451 + $0x79] sm:$0xff] %vm442, %v4384
      %4456 = vst.msk [vmem:[%s451 + $0x81] sm:$0xff] %vm442, %v4385
      %4457 = vst.msk [vmem:[%s451 + $0x91] sm:$0xff] %vm442, %v4386
      %4458 = vst.msk [vmem:[%s451 + $0x99] sm:$0xff] %vm442, %v4387
      %4459 = vst.msk [vmem:[%s451 + $0xa9] sm:$0xff] %vm442, %v4388
      %4460 = vst.msk [vmem:[%s451 + $0xb1] sm:$0xff] %vm442, %v4389
      %4461 = vst.msk [vmem:[%s451 + $0xc1] sm:$0xff] %vm442, %v4390
      %4462 = vst.msk [vmem:[%s451 + $0xc9] sm:$0xff] %vm442, %v4391
      %4463 = vst.msk [vmem:[%s451 + $0xd9] sm:$0xff] %vm442, %v4392
      %4464 = vst.msk [vmem:[%s451 + $0xe1] sm:$0xff] %vm442, %v4393
      %4465 = vst.msk [vmem:[%s451 + $0xf1] sm:$0xff] %vm442, %v4394
      %4466 = vst.msk [vmem:[%s451 + $0xf9] sm:$0xff] %vm442, %v4395
      %4467 = vst.msk [vmem:[%s451 + $0x109] sm:$0xff] %vm442, %v4396
      %4468 = vst.msk [vmem:[%s451 + $0x111] sm:$0xff] %vm442, %v4397
      %4469 = vst.msk [vmem:[%s451 + $0x121] sm:$0xff] %vm442, %v4398
      %4470 = vst.msk [vmem:[%s451 + $0x129] sm:$0xff] %vm442, %v4399
      %4471 = vst.msk [vmem:[%s451 + $0x139] sm:$0xff] %vm442, %v4400
      %4472 = vst.msk [vmem:[%s451 + $0x141] sm:$0xff] %vm442, %v4401
      %4473 = vst.msk [vmem:[%s451 + $0x151] sm:$0xff] %vm442, %v4402
      %4474 = vst.msk [vmem:[%s451 + $0x159] sm:$0xff] %vm442, %v4403
      %4475 = vst.msk [vmem:[%s451 + $0x169] sm:$0xff] %vm442, %v4404
      %4476 = vst.msk [vmem:[%s451 + $0x171] sm:$0xff] %vm442, %v4405
      %v4477 = vld [vmem:[#allocation2] sm:$0xff]
      %v4478 = vld [vmem:[#allocation2 + $0x8] sm:$0xff]
      %v4479 = vld [vmem:[#allocation2 + $0x18] sm:$0xff]
      %v4480 = vld [vmem:[#allocation2 + $0x20] sm:$0xff]
      %v4481 = vld [vmem:[#allocation2 + $0x30] sm:$0xff]
      %v4482 = vld [vmem:[#allocation2 + $0x38] sm:$0xff]
      %v4483 = vld [vmem:[#allocation2 + $0x48] sm:$0xff]
      %v4484 = vld [vmem:[#allocation2 + $0x50] sm:$0xff]
      %v4485 = vld [vmem:[#allocation2 + $0x60] sm:$0xff]
      %v4486 = vld [vmem:[#allocation2 + $0x68] sm:$0xff]
      %v4487 = vld [vmem:[#allocation2 + $0x78] sm:$0xff]
      %v4488 = vld [vmem:[#allocation2 + $0x80] sm:$0xff]
      %v4489 = vld [vmem:[#allocation2 + $0x90] sm:$0xff]
      %v4490 = vld [vmem:[#allocation2 + $0x98] sm:$0xff]
      %v4491 = vld [vmem:[#allocation2 + $0xa8] sm:$0xff]
      %v4492 = vld [vmem:[#allocation2 + $0xb0] sm:$0xff]
      %v4493 = vld [vmem:[#allocation2 + $0xc0] sm:$0xff]
      %v4494 = vld [vmem:[#allocation2 + $0xc8] sm:$0xff]
      %v4495 = vld [vmem:[#allocation2 + $0xd8] sm:$0xff]
      %v4496 = vld [vmem:[#allocation2 + $0xe0] sm:$0xff]
      %v4497 = vld [vmem:[#allocation2 + $0xf0] sm:$0xff]
      %v4498 = vld [vmem:[#allocation2 + $0xf8] sm:$0xff]
      %v4499 = vld [vmem:[#allocation2 + $0x108] sm:$0xff]
      %v4500 = vld [vmem:[#allocation2 + $0x110] sm:$0xff]
      %v4501 = vld [vmem:[#allocation2 + $0x120] sm:$0xff]
      %v4502 = vld [vmem:[#allocation2 + $0x128] sm:$0xff]
      %v4503 = vld [vmem:[#allocation2 + $0x138] sm:$0xff]
      %v4504 = vld [vmem:[#allocation2 + $0x140] sm:$0xff]
      %v4505 = vld [vmem:[#allocation2 + $0x150] sm:$0xff]
      %v4506 = vld [vmem:[#allocation2 + $0x158] sm:$0xff]
      %v4507 = vld [vmem:[#allocation2 + $0x168] sm:$0xff]
      %v4508 = vld [vmem:[#allocation2 + $0x170] sm:$0xff]
      %v4509 = vpack.c.bf16 %v4478, %v4477
      %v4510 = vpack.c.bf16 %v4480, %v4479
      %v4511 = vpack.c.bf16 %v4482, %v4481
      %v4512 = vpack.c.bf16 %v4484, %v4483
      %v4513 = vpack.c.bf16 %v4486, %v4485
      %v4514 = vpack.c.bf16 %v4488, %v4487
      %v4515 = vpack.c.bf16 %v4490, %v4489
      %v4516 = vpack.c.bf16 %v4492, %v4491
      %v4517 = vpack.c.bf16 %v4494, %v4493
      %v4518 = vpack.c.bf16 %v4496, %v4495
      %v4519 = vpack.c.bf16 %v4498, %v4497
      %v4520 = vpack.c.bf16 %v4500, %v4499
      %v4521 = vpack.c.bf16 %v4502, %v4501
      %v4522 = vpack.c.bf16 %v4504, %v4503
      %v4523 = vpack.c.bf16 %v4506, %v4505
      %v4524 = vpack.c.bf16 %v4508, %v4507
      %v4525 = vld [vmem:[%s9] sm:$0xf]
      %v4527 = vsel %vm442, %v4509, 0
      %v4530 = vsel %vm442, %v4510, 0
      %v4533 = vsel %vm442, %v4511, 0
      %v4536 = vsel %vm442, %v4512, 0
      %v4539 = vsel %vm442, %v4513, 0
      %v4542 = vsel %vm442, %v4514, 0
      %v4545 = vsel %vm442, %v4515, 0
      %v4548 = vsel %vm442, %v4516, 0
      %v4551 = vsel %vm442, %v4517, 0
      %v4554 = vsel %vm442, %v4518, 0
      %v4557 = vsel %vm442, %v4519, 0
      %v4560 = vsel %vm442, %v4520, 0
      %v4563 = vsel %vm442, %v4521, 0
      %v4566 = vsel %vm442, %v4522, 0
      %v4569 = vsel %vm442, %v4523, 0
      %v4572 = vsel %vm442, %v4524, 0
      %v4575 = vsel %vm622, %v4525, 0
      %4577 = vmatprep.subr.bf16.mxu0 0
      %4578 = vmatpush1.bf16.msra.mxu0 0
      %4579 = vmatprep.subr.bf16.mxu0 0
      %4580 = vmatpush1.bf16.msra.mxu0 0
      %4581 = vmatprep.subr.bf16.mxu0 0
      %4582 = vmatpush1.bf16.msra.mxu0 0
      %4583 = vmatprep.subr.bf16.mxu0 0
      %4584 = vmatpush1.bf16.msra.mxu0 0
      %4585 = vmatprep.subr.bf16.mxu0 0
      %4586 = vmatpush1.bf16.msra.mxu0 0
      %4587 = vmatprep.subr.bf16.mxu0 0
      %4588 = vmatpush1.bf16.msra.mxu0 0
      %4589 = vmatprep.subr.bf16.mxu0 0
      %4590 = vmatpush1.bf16.msra.mxu0 0
      %4591 = vmatprep.subr.bf16.mxu0 0
      %4592 = vmatpush1.bf16.msra.mxu0 %v4575
      %4593 = vmatprep.subr.bf16.mxu0 0
      %4594 = vmatpush2.bf16.msra.mxu0 0
      %4595 = vmatprep.subr.bf16.mxu0 0
      %4596 = vmatpush2.bf16.msra.mxu0 0
      %4597 = vmatprep.subr.bf16.mxu0 0
      %4598 = vmatpush2.bf16.msra.mxu0 0
      %4599 = vmatprep.subr.bf16.mxu0 0
      %4600 = vmatpush2.bf16.msra.mxu0 0
      %4601 = vmatprep.subr.bf16.mxu0 0
      %4602 = vmatpush2.bf16.msra.mxu0 0
      %4603 = vmatprep.subr.bf16.mxu0 0
      %4604 = vmatpush2.bf16.msra.mxu0 0
      %4605 = vmatprep.subr.bf16.mxu0 0
      %4606 = vmatpush2.bf16.msra.mxu0 0
      %4607 = vmatprep.subr.bf16.mxu0 0
      %4608 = vmatpush2.bf16.msra.mxu0 0
      %4609 = vmatprep.mubr.bf16.mxu0 0
      %4610 = vmatmul.mubr.bf16.gmra.mxu0 %v4527
      %v4611 = vpop.f32.mrf.mxu0
      %v4612 = vadd.f32 0.0, %v4611
      %v4613 = vpop.f32.mrf.mxu0
      %v4614 = vpop.f32.mrf.mxu0
      %v4615 = vadd.f32 0.0, %v4614
      %v4616 = vpop.f32.mrf.mxu0
      %4617 = vmatprep.mubr.bf16.mxu0 0
      %4618 = vmatmul.mubr.bf16.gmra.mxu0 %v4530
      %v4619 = vpop.f32.mrf.mxu0
      %v4620 = vadd.f32 0.0, %v4619
      %v4621 = vpop.f32.mrf.mxu0
      %v4622 = vpop.f32.mrf.mxu0
      %v4623 = vadd.f32 0.0, %v4622
      %v4624 = vpop.f32.mrf.mxu0
      %4625 = vmatprep.mubr.bf16.mxu0 0
      %4626 = vmatmul.mubr.bf16.gmra.mxu0 %v4533
      %v4627 = vpop.f32.mrf.mxu0
      %v4628 = vadd.f32 0.0, %v4627
      %v4629 = vpop.f32.mrf.mxu0
      %v4630 = vpop.f32.mrf.mxu0
      %v4631 = vadd.f32 0.0, %v4630
      %v4632 = vpop.f32.mrf.mxu0
      %4633 = vmatprep.mubr.bf16.mxu0 0
      %4634 = vmatmul.mubr.bf16.gmra.mxu0 %v4536
      %v4635 = vpop.f32.mrf.mxu0
      %v4636 = vadd.f32 0.0, %v4635
      %v4637 = vpop.f32.mrf.mxu0
      %v4638 = vpop.f32.mrf.mxu0
      %v4639 = vadd.f32 0.0, %v4638
      %v4640 = vpop.f32.mrf.mxu0
      %4641 = vmatprep.mubr.bf16.mxu0 0
      %4642 = vmatmul.mubr.bf16.gmra.mxu0 %v4539
      %v4643 = vpop.f32.mrf.mxu0
      %v4644 = vadd.f32 0.0, %v4643
      %v4645 = vpop.f32.mrf.mxu0
      %v4646 = vpop.f32.mrf.mxu0
      %v4647 = vadd.f32 0.0, %v4646
      %v4648 = vpop.f32.mrf.mxu0
      %4649 = vmatprep.mubr.bf16.mxu0 0
      %4650 = vmatmul.mubr.bf16.gmra.mxu0 %v4542
      %v4651 = vpop.f32.mrf.mxu0
      %v4652 = vadd.f32 0.0, %v4651
      %v4653 = vpop.f32.mrf.mxu0
      %v4654 = vpop.f32.mrf.mxu0
      %v4655 = vadd.f32 0.0, %v4654
      %v4656 = vpop.f32.mrf.mxu0
      %4657 = vmatprep.mubr.bf16.mxu0 0
      %4658 = vmatmul.mubr.bf16.gmra.mxu0 %v4545
      %v4659 = vpop.f32.mrf.mxu0
      %v4660 = vadd.f32 0.0, %v4659
      %v4661 = vpop.f32.mrf.mxu0
      %v4662 = vpop.f32.mrf.mxu0
      %v4663 = vadd.f32 0.0, %v4662
      %v4664 = vpop.f32.mrf.mxu0
      %4665 = vmatprep.mubr.bf16.mxu0 0
      %4666 = vmatmul.mubr.bf16.gmra.mxu0 %v4548
      %v4667 = vpop.f32.mrf.mxu0
      %v4668 = vadd.f32 0.0, %v4667
      %v4669 = vpop.f32.mrf.mxu0
      %v4670 = vpop.f32.mrf.mxu0
      %v4671 = vadd.f32 0.0, %v4670
      %v4672 = vpop.f32.mrf.mxu0
      %4673 = vmatprep.mubr.bf16.mxu0 0
      %4674 = vmatmul.mubr.bf16.gmra.mxu0 %v4551
      %v4675 = vpop.f32.mrf.mxu0
      %v4676 = vadd.f32 0.0, %v4675
      %v4677 = vpop.f32.mrf.mxu0
      %v4678 = vpop.f32.mrf.mxu0
      %v4679 = vadd.f32 0.0, %v4678
      %v4680 = vpop.f32.mrf.mxu0
      %4681 = vmatprep.mubr.bf16.mxu0 0
      %4682 = vmatmul.mubr.bf16.gmra.mxu0 %v4554
      %v4683 = vpop.f32.mrf.mxu0
      %v4684 = vadd.f32 0.0, %v4683
      %v4685 = vpop.f32.mrf.mxu0
      %v4686 = vpop.f32.mrf.mxu0
      %v4687 = vadd.f32 0.0, %v4686
      %v4688 = vpop.f32.mrf.mxu0
      %4689 = vmatprep.mubr.bf16.mxu0 0
      %4690 = vmatmul.mubr.bf16.gmra.mxu0 %v4557
      %v4691 = vpop.f32.mrf.mxu0
      %v4692 = vadd.f32 0.0, %v4691
      %v4693 = vpop.f32.mrf.mxu0
      %v4694 = vpop.f32.mrf.mxu0
      %v4695 = vadd.f32 0.0, %v4694
      %v4696 = vpop.f32.mrf.mxu0
      %4697 = vmatprep.mubr.bf16.mxu0 0
      %4698 = vmatmul.mubr.bf16.gmra.mxu0 %v4560
      %v4699 = vpop.f32.mrf.mxu0
      %v4700 = vadd.f32 0.0, %v4699
      %v4701 = vpop.f32.mrf.mxu0
      %v4702 = vpop.f32.mrf.mxu0
      %v4703 = vadd.f32 0.0, %v4702
      %v4704 = vpop.f32.mrf.mxu0
      %4705 = vmatprep.mubr.bf16.mxu0 0
      %4706 = vmatmul.mubr.bf16.gmra.mxu0 %v4563
      %v4707 = vpop.f32.mrf.mxu0
      %v4708 = vadd.f32 0.0, %v4707
      %v4709 = vpop.f32.mrf.mxu0
      %v4710 = vpop.f32.mrf.mxu0
      %v4711 = vadd.f32 0.0, %v4710
      %v4712 = vpop.f32.mrf.mxu0
      %4713 = vmatprep.mubr.bf16.mxu0 0
      %4714 = vmatmul.mubr.bf16.gmra.mxu0 %v4566
      %v4715 = vpop.f32.mrf.mxu0
      %v4716 = vadd.f32 0.0, %v4715
      %v4717 = vpop.f32.mrf.mxu0
      %v4718 = vpop.f32.mrf.mxu0
      %v4719 = vadd.f32 0.0, %v4718
      %v4720 = vpop.f32.mrf.mxu0
      %4721 = vmatprep.mubr.bf16.mxu0 0
      %4722 = vmatmul.mubr.bf16.gmra.mxu0 %v4569
      %v4723 = vpop.f32.mrf.mxu0
      %v4724 = vadd.f32 0.0, %v4723
      %v4725 = vpop.f32.mrf.mxu0
      %v4726 = vpop.f32.mrf.mxu0
      %v4727 = vadd.f32 0.0, %v4726
      %v4728 = vpop.f32.mrf.mxu0
      %4729 = vmatprep.mubr.bf16.mxu0 0
      %4730 = vmatmul.mubr.bf16.gmra.mxu0 %v4572
      %v4731 = vpop.f32.mrf.mxu0
      %v4732 = vadd.f32 0.0, %v4731
      %v4733 = vpop.f32.mrf.mxu0
      %v4734 = vpop.f32.mrf.mxu0
      %v4735 = vadd.f32 0.0, %v4734
      %v4736 = vpop.f32.mrf.mxu0
      %4737 = vdwg.mxu0
      %v4738 = vadd.f32 %v4413, %v4612
      %v4739 = vadd.f32 %v4414, %v4615
      %v4740 = vadd.f32 %v4415, %v4620
      %v4741 = vadd.f32 %v4416, %v4623
      %v4742 = vadd.f32 %v4417, %v4628
      %v4743 = vadd.f32 %v4418, %v4631
      %v4744 = vadd.f32 %v4419, %v4636
      %v4745 = vadd.f32 %v4420, %v4639
      %v4746 = vadd.f32 %v4421, %v4644
      %v4747 = vadd.f32 %v4422, %v4647
      %v4748 = vadd.f32 %v4423, %v4652
      %v4749 = vadd.f32 %v4424, %v4655
      %v4750 = vadd.f32 %v4425, %v4660
      %v4751 = vadd.f32 %v4426, %v4663
      %v4752 = vadd.f32 %v4427, %v4668
      %v4753 = vadd.f32 %v4428, %v4671
      %v4754 = vadd.f32 %v4429, %v4676
      %v4755 = vadd.f32 %v4430, %v4679
      %v4756 = vadd.f32 %v4431, %v4684
      %v4757 = vadd.f32 %v4432, %v4687
      %v4758 = vadd.f32 %v4433, %v4692
      %v4759 = vadd.f32 %v4434, %v4695
      %v4760 = vadd.f32 %v4435, %v4700
      %v4761 = vadd.f32 %v4436, %v4703
      %v4762 = vadd.f32 %v4437, %v4708
      %v4763 = vadd.f32 %v4438, %v4711
      %v4764 = vadd.f32 %v4439, %v4716
      %v4765 = vadd.f32 %v4440, %v4719
      %v4766 = vadd.f32 %v4441, %v4724
      %v4767 = vadd.f32 %v4442, %v4727
      %v4768 = vadd.f32 %v4443, %v4732
      %v4769 = vadd.f32 %v4444, %v4735
      %v4770 = vld [vmem:[#allocation2 + $0x1] sm:$0xff]
      %v4771 = vld [vmem:[#allocation2 + $0x9] sm:$0xff]
      %v4772 = vld [vmem:[#allocation2 + $0x19] sm:$0xff]
      %v4773 = vld [vmem:[#allocation2 + $0x21] sm:$0xff]
      %v4774 = vld [vmem:[#allocation2 + $0x31] sm:$0xff]
      %v4775 = vld [vmem:[#allocation2 + $0x39] sm:$0xff]
      %v4776 = vld [vmem:[#allocation2 + $0x49] sm:$0xff]
      %v4777 = vld [vmem:[#allocation2 + $0x51] sm:$0xff]
      %v4778 = vld [vmem:[#allocation2 + $0x61] sm:$0xff]
      %v4779 = vld [vmem:[#allocation2 + $0x69] sm:$0xff]
      %v4780 = vld [vmem:[#allocation2 + $0x79] sm:$0xff]
      %v4781 = vld [vmem:[#allocation2 + $0x81] sm:$0xff]
      %v4782 = vld [vmem:[#allocation2 + $0x91] sm:$0xff]
      %v4783 = vld [vmem:[#allocation2 + $0x99] sm:$0xff]
      %v4784 = vld [vmem:[#allocation2 + $0xa9] sm:$0xff]
      %v4785 = vld [vmem:[#allocation2 + $0xb1] sm:$0xff]
      %v4786 = vld [vmem:[#allocation2 + $0xc1] sm:$0xff]
      %v4787 = vld [vmem:[#allocation2 + $0xc9] sm:$0xff]
      %v4788 = vld [vmem:[#allocation2 + $0xd9] sm:$0xff]
      %v4789 = vld [vmem:[#allocation2 + $0xe1] sm:$0xff]
      %v4790 = vld [vmem:[#allocation2 + $0xf1] sm:$0xff]
      %v4791 = vld [vmem:[#allocation2 + $0xf9] sm:$0xff]
      %v4792 = vld [vmem:[#allocation2 + $0x109] sm:$0xff]
      %v4793 = vld [vmem:[#allocation2 + $0x111] sm:$0xff]
      %v4794 = vld [vmem:[#allocation2 + $0x121] sm:$0xff]
      %v4795 = vld [vmem:[#allocation2 + $0x129] sm:$0xff]
      %v4796 = vld [vmem:[#allocation2 + $0x139] sm:$0xff]
      %v4797 = vld [vmem:[#allocation2 + $0x141] sm:$0xff]
      %v4798 = vld [vmem:[#allocation2 + $0x151] sm:$0xff]
      %v4799 = vld [vmem:[#allocation2 + $0x159] sm:$0xff]
      %v4800 = vld [vmem:[#allocation2 + $0x169] sm:$0xff]
      %v4801 = vld [vmem:[#allocation2 + $0x171] sm:$0xff]
      %v4802 = vpack.c.bf16 %v4771, %v4770
      %v4803 = vpack.c.bf16 %v4773, %v4772
      %v4804 = vpack.c.bf16 %v4775, %v4774
      %v4805 = vpack.c.bf16 %v4777, %v4776
      %v4806 = vpack.c.bf16 %v4779, %v4778
      %v4807 = vpack.c.bf16 %v4781, %v4780
      %v4808 = vpack.c.bf16 %v4783, %v4782
      %v4809 = vpack.c.bf16 %v4785, %v4784
      %v4810 = vpack.c.bf16 %v4787, %v4786
      %v4811 = vpack.c.bf16 %v4789, %v4788
      %v4812 = vpack.c.bf16 %v4791, %v4790
      %v4813 = vpack.c.bf16 %v4793, %v4792
      %v4814 = vpack.c.bf16 %v4795, %v4794
      %v4815 = vpack.c.bf16 %v4797, %v4796
      %v4816 = vpack.c.bf16 %v4799, %v4798
      %v4817 = vpack.c.bf16 %v4801, %v4800
      %s4818 = scalar_lea.vmem %s9, 4
      %v4819 = vld [vmem:[%s4818] sm:$0xf]
      %v4821 = vsel %vm442, %v4802, 0
      %v4824 = vsel %vm442, %v4803, 0
      %v4827 = vsel %vm442, %v4804, 0
      %v4830 = vsel %vm442, %v4805, 0
      %v4833 = vsel %vm442, %v4806, 0
      %v4836 = vsel %vm442, %v4807, 0
      %v4839 = vsel %vm442, %v4808, 0
      %v4842 = vsel %vm442, %v4809, 0
      %v4845 = vsel %vm442, %v4810, 0
      %v4848 = vsel %vm442, %v4811, 0
      %v4851 = vsel %vm442, %v4812, 0
      %v4854 = vsel %vm442, %v4813, 0
      %v4857 = vsel %vm442, %v4814, 0
      %v4860 = vsel %vm442, %v4815, 0
      %v4863 = vsel %vm442, %v4816, 0
      %v4866 = vsel %vm442, %v4817, 0
      %v4869 = vsel %vm622, %v4819, 0
      %4871 = vmatprep.subr.bf16.mxu0 0
      %4872 = vmatpush1.bf16.msra.mxu0 0
      %4873 = vmatprep.subr.bf16.mxu0 0
      %4874 = vmatpush1.bf16.msra.mxu0 0
      %4875 = vmatprep.subr.bf16.mxu0 0
      %4876 = vmatpush1.bf16.msra.mxu0 0
      %4877 = vmatprep.subr.bf16.mxu0 0
      %4878 = vmatpush1.bf16.msra.mxu0 0
      %4879 = vmatprep.subr.bf16.mxu0 0
      %4880 = vmatpush1.bf16.msra.mxu0 0
      %4881 = vmatprep.subr.bf16.mxu0 0
      %4882 = vmatpush1.bf16.msra.mxu0 0
      %4883 = vmatprep.subr.bf16.mxu0 0
      %4884 = vmatpush1.bf16.msra.mxu0 0
      %4885 = vmatprep.subr.bf16.mxu0 0
      %4886 = vmatpush1.bf16.msra.mxu0 %v4869
      %4887 = vmatprep.subr.bf16.mxu0 0
      %4888 = vmatpush2.bf16.msra.mxu0 0
      %4889 = vmatprep.subr.bf16.mxu0 0
      %4890 = vmatpush2.bf16.msra.mxu0 0
      %4891 = vmatprep.subr.bf16.mxu0 0
      %4892 = vmatpush2.bf16.msra.mxu0 0
      %4893 = vmatprep.subr.bf16.mxu0 0
      %4894 = vmatpush2.bf16.msra.mxu0 0
      %4895 = vmatprep.subr.bf16.mxu0 0
      %4896 = vmatpush2.bf16.msra.mxu0 0
      %4897 = vmatprep.subr.bf16.mxu0 0
      %4898 = vmatpush2.bf16.msra.mxu0 0
      %4899 = vmatprep.subr.bf16.mxu0 0
      %4900 = vmatpush2.bf16.msra.mxu0 0
      %4901 = vmatprep.subr.bf16.mxu0 0
      %4902 = vmatpush2.bf16.msra.mxu0 0
      %4903 = vmatprep.mubr.bf16.mxu0 0
      %4904 = vmatmul.mubr.bf16.gmra.mxu0 %v4821
      %v4905 = vpop.f32.mrf.mxu0
      %v4906 = vadd.f32 0.0, %v4905
      %v4907 = vpop.f32.mrf.mxu0
      %v4908 = vpop.f32.mrf.mxu0
      %v4909 = vadd.f32 0.0, %v4908
      %v4910 = vpop.f32.mrf.mxu0
      %4911 = vmatprep.mubr.bf16.mxu0 0
      %4912 = vmatmul.mubr.bf16.gmra.mxu0 %v4824
      %v4913 = vpop.f32.mrf.mxu0
      %v4914 = vadd.f32 0.0, %v4913
      %v4915 = vpop.f32.mrf.mxu0
      %v4916 = vpop.f32.mrf.mxu0
      %v4917 = vadd.f32 0.0, %v4916
      %v4918 = vpop.f32.mrf.mxu0
      %4919 = vmatprep.mubr.bf16.mxu0 0
      %4920 = vmatmul.mubr.bf16.gmra.mxu0 %v4827
      %v4921 = vpop.f32.mrf.mxu0
      %v4922 = vadd.f32 0.0, %v4921
      %v4923 = vpop.f32.mrf.mxu0
      %v4924 = vpop.f32.mrf.mxu0
      %v4925 = vadd.f32 0.0, %v4924
      %v4926 = vpop.f32.mrf.mxu0
      %4927 = vmatprep.mubr.bf16.mxu0 0
      %4928 = vmatmul.mubr.bf16.gmra.mxu0 %v4830
      %v4929 = vpop.f32.mrf.mxu0
      %v4930 = vadd.f32 0.0, %v4929
      %v4931 = vpop.f32.mrf.mxu0
      %v4932 = vpop.f32.mrf.mxu0
      %v4933 = vadd.f32 0.0, %v4932
      %v4934 = vpop.f32.mrf.mxu0
      %4935 = vmatprep.mubr.bf16.mxu0 0
      %4936 = vmatmul.mubr.bf16.gmra.mxu0 %v4833
      %v4937 = vpop.f32.mrf.mxu0
      %v4938 = vadd.f32 0.0, %v4937
      %v4939 = vpop.f32.mrf.mxu0
      %v4940 = vpop.f32.mrf.mxu0
      %v4941 = vadd.f32 0.0, %v4940
      %v4942 = vpop.f32.mrf.mxu0
      %4943 = vmatprep.mubr.bf16.mxu0 0
      %4944 = vmatmul.mubr.bf16.gmra.mxu0 %v4836
      %v4945 = vpop.f32.mrf.mxu0
      %v4946 = vadd.f32 0.0, %v4945
      %v4947 = vpop.f32.mrf.mxu0
      %v4948 = vpop.f32.mrf.mxu0
      %v4949 = vadd.f32 0.0, %v4948
      %v4950 = vpop.f32.mrf.mxu0
      %4951 = vmatprep.mubr.bf16.mxu0 0
      %4952 = vmatmul.mubr.bf16.gmra.mxu0 %v4839
      %v4953 = vpop.f32.mrf.mxu0
      %v4954 = vadd.f32 0.0, %v4953
      %v4955 = vpop.f32.mrf.mxu0
      %v4956 = vpop.f32.mrf.mxu0
      %v4957 = vadd.f32 0.0, %v4956
      %v4958 = vpop.f32.mrf.mxu0
      %4959 = vmatprep.mubr.bf16.mxu0 0
      %4960 = vmatmul.mubr.bf16.gmra.mxu0 %v4842
      %v4961 = vpop.f32.mrf.mxu0
      %v4962 = vadd.f32 0.0, %v4961
      %v4963 = vpop.f32.mrf.mxu0
      %v4964 = vpop.f32.mrf.mxu0
      %v4965 = vadd.f32 0.0, %v4964
      %v4966 = vpop.f32.mrf.mxu0
      %4967 = vmatprep.mubr.bf16.mxu0 0
      %4968 = vmatmul.mubr.bf16.gmra.mxu0 %v4845
      %v4969 = vpop.f32.mrf.mxu0
      %v4970 = vadd.f32 0.0, %v4969
      %v4971 = vpop.f32.mrf.mxu0
      %v4972 = vpop.f32.mrf.mxu0
      %v4973 = vadd.f32 0.0, %v4972
      %v4974 = vpop.f32.mrf.mxu0
      %4975 = vmatprep.mubr.bf16.mxu0 0
      %4976 = vmatmul.mubr.bf16.gmra.mxu0 %v4848
      %v4977 = vpop.f32.mrf.mxu0
      %v4978 = vadd.f32 0.0, %v4977
      %v4979 = vpop.f32.mrf.mxu0
      %v4980 = vpop.f32.mrf.mxu0
      %v4981 = vadd.f32 0.0, %v4980
      %v4982 = vpop.f32.mrf.mxu0
      %4983 = vmatprep.mubr.bf16.mxu0 0
      %4984 = vmatmul.mubr.bf16.gmra.mxu0 %v4851
      %v4985 = vpop.f32.mrf.mxu0
      %v4986 = vadd.f32 0.0, %v4985
      %v4987 = vpop.f32.mrf.mxu0
      %v4988 = vpop.f32.mrf.mxu0
      %v4989 = vadd.f32 0.0, %v4988
      %v4990 = vpop.f32.mrf.mxu0
      %4991 = vmatprep.mubr.bf16.mxu0 0
      %4992 = vmatmul.mubr.bf16.gmra.mxu0 %v4854
      %v4993 = vpop.f32.mrf.mxu0
      %v4994 = vadd.f32 0.0, %v4993
      %v4995 = vpop.f32.mrf.mxu0
      %v4996 = vpop.f32.mrf.mxu0
      %v4997 = vadd.f32 0.0, %v4996
      %v4998 = vpop.f32.mrf.mxu0
      %4999 = vmatprep.mubr.bf16.mxu0 0
      %5000 = vmatmul.mubr.bf16.gmra.mxu0 %v4857
      %v5001 = vpop.f32.mrf.mxu0
      %v5002 = vadd.f32 0.0, %v5001
      %v5003 = vpop.f32.mrf.mxu0
      %v5004 = vpop.f32.mrf.mxu0
      %v5005 = vadd.f32 0.0, %v5004
      %v5006 = vpop.f32.mrf.mxu0
      %5007 = vmatprep.mubr.bf16.mxu0 0
      %5008 = vmatmul.mubr.bf16.gmra.mxu0 %v4860
      %v5009 = vpop.f32.mrf.mxu0
      %v5010 = vadd.f32 0.0, %v5009
      %v5011 = vpop.f32.mrf.mxu0
      %v5012 = vpop.f32.mrf.mxu0
      %v5013 = vadd.f32 0.0, %v5012
      %v5014 = vpop.f32.mrf.mxu0
      %5015 = vmatprep.mubr.bf16.mxu0 0
      %5016 = vmatmul.mubr.bf16.gmra.mxu0 %v4863
      %v5017 = vpop.f32.mrf.mxu0
      %v5018 = vadd.f32 0.0, %v5017
      %v5019 = vpop.f32.mrf.mxu0
      %v5020 = vpop.f32.mrf.mxu0
      %v5021 = vadd.f32 0.0, %v5020
      %v5022 = vpop.f32.mrf.mxu0
      %5023 = vmatprep.mubr.bf16.mxu0 0
      %5024 = vmatmul.mubr.bf16.gmra.mxu0 %v4866
      %v5025 = vpop.f32.mrf.mxu0
      %v5026 = vadd.f32 0.0, %v5025
      %v5027 = vpop.f32.mrf.mxu0
      %v5028 = vpop.f32.mrf.mxu0
      %v5029 = vadd.f32 0.0, %v5028
      %v5030 = vpop.f32.mrf.mxu0
      %5031 = vdwg.mxu0
      %v5032 = vadd.f32 %v4738, %v4906
      %v5033 = vadd.f32 %v4739, %v4909
      %v5034 = vadd.f32 %v4740, %v4914
      %v5035 = vadd.f32 %v4741, %v4917
      %v5036 = vadd.f32 %v4742, %v4922
      %v5037 = vadd.f32 %v4743, %v4925
      %v5038 = vadd.f32 %v4744, %v4930
      %v5039 = vadd.f32 %v4745, %v4933
      %v5040 = vadd.f32 %v4746, %v4938
      %v5041 = vadd.f32 %v4747, %v4941
      %v5042 = vadd.f32 %v4748, %v4946
      %v5043 = vadd.f32 %v4749, %v4949
      %v5044 = vadd.f32 %v4750, %v4954
      %v5045 = vadd.f32 %v4751, %v4957
      %v5046 = vadd.f32 %v4752, %v4962
      %v5047 = vadd.f32 %v4753, %v4965
      %v5048 = vadd.f32 %v4754, %v4970
      %v5049 = vadd.f32 %v4755, %v4973
      %v5050 = vadd.f32 %v4756, %v4978
      %v5051 = vadd.f32 %v4757, %v4981
      %v5052 = vadd.f32 %v4758, %v4986
      %v5053 = vadd.f32 %v4759, %v4989
      %v5054 = vadd.f32 %v4760, %v4994
      %v5055 = vadd.f32 %v4761, %v4997
      %v5056 = vadd.f32 %v4762, %v5002
      %v5057 = vadd.f32 %v4763, %v5005
      %v5058 = vadd.f32 %v4764, %v5010
      %v5059 = vadd.f32 %v4765, %v5013
      %v5060 = vadd.f32 %v4766, %v5018
      %v5061 = vadd.f32 %v4767, %v5021
      %v5062 = vadd.f32 %v4768, %v5026
      %v5063 = vadd.f32 %v4769, %v5029
      %v5064 = vld [vmem:[#allocation2 + $0x2] sm:$0xff]
      %v5065 = vld [vmem:[#allocation2 + $0xa] sm:$0xff]
      %v5066 = vld [vmem:[#allocation2 + $0x1a] sm:$0xff]
      %v5067 = vld [vmem:[#allocation2 + $0x22] sm:$0xff]
      %v5068 = vld [vmem:[#allocation2 + $0x32] sm:$0xff]
      %v5069 = vld [vmem:[#allocation2 + $0x3a] sm:$0xff]
      %v5070 = vld [vmem:[#allocation2 + $0x4a] sm:$0xff]
      %v5071 = vld [vmem:[#allocation2 + $0x52] sm:$0xff]
      %v5072 = vld [vmem:[#allocation2 + $0x62] sm:$0xff]
      %v5073 = vld [vmem:[#allocation2 + $0x6a] sm:$0xff]
      %v5074 = vld [vmem:[#allocation2 + $0x7a] sm:$0xff]
      %v5075 = vld [vmem:[#allocation2 + $0x82] sm:$0xff]
      %v5076 = vld [vmem:[#allocation2 + $0x92] sm:$0xff]
      %v5077 = vld [vmem:[#allocation2 + $0x9a] sm:$0xff]
      %v5078 = vld [vmem:[#allocation2 + $0xaa] sm:$0xff]
      %v5079 = vld [vmem:[#allocation2 + $0xb2] sm:$0xff]
      %v5080 = vld [vmem:[#allocation2 + $0xc2] sm:$0xff]
      %v5081 = vld [vmem:[#allocation2 + $0xca] sm:$0xff]
      %v5082 = vld [vmem:[#allocation2 + $0xda] sm:$0xff]
      %v5083 = vld [vmem:[#allocation2 + $0xe2] sm:$0xff]
      %v5084 = vld [vmem:[#allocation2 + $0xf2] sm:$0xff]
      %v5085 = vld [vmem:[#allocation2 + $0xfa] sm:$0xff]
      %v5086 = vld [vmem:[#allocation2 + $0x10a] sm:$0xff]
      %v5087 = vld [vmem:[#allocation2 + $0x112] sm:$0xff]
      %v5088 = vld [vmem:[#allocation2 + $0x122] sm:$0xff]
      %v5089 = vld [vmem:[#allocation2 + $0x12a] sm:$0xff]
      %v5090 = vld [vmem:[#allocation2 + $0x13a] sm:$0xff]
      %v5091 = vld [vmem:[#allocation2 + $0x142] sm:$0xff]
      %v5092 = vld [vmem:[#allocation2 + $0x152] sm:$0xff]
      %v5093 = vld [vmem:[#allocation2 + $0x15a] sm:$0xff]
      %v5094 = vld [vmem:[#allocation2 + $0x16a] sm:$0xff]
      %v5095 = vld [vmem:[#allocation2 + $0x172] sm:$0xff]
      %v5096 = vpack.c.bf16 %v5065, %v5064
      %v5097 = vpack.c.bf16 %v5067, %v5066
      %v5098 = vpack.c.bf16 %v5069, %v5068
      %v5099 = vpack.c.bf16 %v5071, %v5070
      %v5100 = vpack.c.bf16 %v5073, %v5072
      %v5101 = vpack.c.bf16 %v5075, %v5074
      %v5102 = vpack.c.bf16 %v5077, %v5076
      %v5103 = vpack.c.bf16 %v5079, %v5078
      %v5104 = vpack.c.bf16 %v5081, %v5080
      %v5105 = vpack.c.bf16 %v5083, %v5082
      %v5106 = vpack.c.bf16 %v5085, %v5084
      %v5107 = vpack.c.bf16 %v5087, %v5086
      %v5108 = vpack.c.bf16 %v5089, %v5088
      %v5109 = vpack.c.bf16 %v5091, %v5090
      %v5110 = vpack.c.bf16 %v5093, %v5092
      %v5111 = vpack.c.bf16 %v5095, %v5094
      %s5112 = scalar_lea.vmem %s9, 8
      %v5113 = vld [vmem:[%s5112] sm:$0xf]
      %v5115 = vsel %vm442, %v5096, 0
      %v5118 = vsel %vm442, %v5097, 0
      %v5121 = vsel %vm442, %v5098, 0
      %v5124 = vsel %vm442, %v5099, 0
      %v5127 = vsel %vm442, %v5100, 0
      %v5130 = vsel %vm442, %v5101, 0
      %v5133 = vsel %vm442, %v5102, 0
      %v5136 = vsel %vm442, %v5103, 0
      %v5139 = vsel %vm442, %v5104, 0
      %v5142 = vsel %vm442, %v5105, 0
      %v5145 = vsel %vm442, %v5106, 0
      %v5148 = vsel %vm442, %v5107, 0
      %v5151 = vsel %vm442, %v5108, 0
      %v5154 = vsel %vm442, %v5109, 0
      %v5157 = vsel %vm442, %v5110, 0
      %v5160 = vsel %vm442, %v5111, 0
      %v5163 = vsel %vm622, %v5113, 0
      %5165 = vmatprep.subr.bf16.mxu0 0
      %5166 = vmatpush1.bf16.msra.mxu0 0
      %5167 = vmatprep.subr.bf16.mxu0 0
      %5168 = vmatpush1.bf16.msra.mxu0 0
      %5169 = vmatprep.subr.bf16.mxu0 0
      %5170 = vmatpush1.bf16.msra.mxu0 0
      %5171 = vmatprep.subr.bf16.mxu0 0
      %5172 = vmatpush1.bf16.msra.mxu0 0
      %5173 = vmatprep.subr.bf16.mxu0 0
      %5174 = vmatpush1.bf16.msra.mxu0 0
      %5175 = vmatprep.subr.bf16.mxu0 0
      %5176 = vmatpush1.bf16.msra.mxu0 0
      %5177 = vmatprep.subr.bf16.mxu0 0
      %5178 = vmatpush1.bf16.msra.mxu0 0
      %5179 = vmatprep.subr.bf16.mxu0 0
      %5180 = vmatpush1.bf16.msra.mxu0 %v5163
      %5181 = vmatprep.subr.bf16.mxu0 0
      %5182 = vmatpush2.bf16.msra.mxu0 0
      %5183 = vmatprep.subr.bf16.mxu0 0
      %5184 = vmatpush2.bf16.msra.mxu0 0
      %5185 = vmatprep.subr.bf16.mxu0 0
      %5186 = vmatpush2.bf16.msra.mxu0 0
      %5187 = vmatprep.subr.bf16.mxu0 0
      %5188 = vmatpush2.bf16.msra.mxu0 0
      %5189 = vmatprep.subr.bf16.mxu0 0
      %5190 = vmatpush2.bf16.msra.mxu0 0
      %5191 = vmatprep.subr.bf16.mxu0 0
      %5192 = vmatpush2.bf16.msra.mxu0 0
      %5193 = vmatprep.subr.bf16.mxu0 0
      %5194 = vmatpush2.bf16.msra.mxu0 0
      %5195 = vmatprep.subr.bf16.mxu0 0
      %5196 = vmatpush2.bf16.msra.mxu0 0
      %5197 = vmatprep.mubr.bf16.mxu0 0
      %5198 = vmatmul.mubr.bf16.gmra.mxu0 %v5115
      %v5199 = vpop.f32.mrf.mxu0
      %v5200 = vadd.f32 0.0, %v5199
      %v5201 = vpop.f32.mrf.mxu0
      %v5202 = vpop.f32.mrf.mxu0
      %v5203 = vadd.f32 0.0, %v5202
      %v5204 = vpop.f32.mrf.mxu0
      %5205 = vmatprep.mubr.bf16.mxu0 0
      %5206 = vmatmul.mubr.bf16.gmra.mxu0 %v5118
      %v5207 = vpop.f32.mrf.mxu0
      %v5208 = vadd.f32 0.0, %v5207
      %v5209 = vpop.f32.mrf.mxu0
      %v5210 = vpop.f32.mrf.mxu0
      %v5211 = vadd.f32 0.0, %v5210
      %v5212 = vpop.f32.mrf.mxu0
      %5213 = vmatprep.mubr.bf16.mxu0 0
      %5214 = vmatmul.mubr.bf16.gmra.mxu0 %v5121
      %v5215 = vpop.f32.mrf.mxu0
      %v5216 = vadd.f32 0.0, %v5215
      %v5217 = vpop.f32.mrf.mxu0
      %v5218 = vpop.f32.mrf.mxu0
      %v5219 = vadd.f32 0.0, %v5218
      %v5220 = vpop.f32.mrf.mxu0
      %5221 = vmatprep.mubr.bf16.mxu0 0
      %5222 = vmatmul.mubr.bf16.gmra.mxu0 %v5124
      %v5223 = vpop.f32.mrf.mxu0
      %v5224 = vadd.f32 0.0, %v5223
      %v5225 = vpop.f32.mrf.mxu0
      %v5226 = vpop.f32.mrf.mxu0
      %v5227 = vadd.f32 0.0, %v5226
      %v5228 = vpop.f32.mrf.mxu0
      %5229 = vmatprep.mubr.bf16.mxu0 0
      %5230 = vmatmul.mubr.bf16.gmra.mxu0 %v5127
      %v5231 = vpop.f32.mrf.mxu0
      %v5232 = vadd.f32 0.0, %v5231
      %v5233 = vpop.f32.mrf.mxu0
      %v5234 = vpop.f32.mrf.mxu0
      %v5235 = vadd.f32 0.0, %v5234
      %v5236 = vpop.f32.mrf.mxu0
      %5237 = vmatprep.mubr.bf16.mxu0 0
      %5238 = vmatmul.mubr.bf16.gmra.mxu0 %v5130
      %v5239 = vpop.f32.mrf.mxu0
      %v5240 = vadd.f32 0.0, %v5239
      %v5241 = vpop.f32.mrf.mxu0
      %v5242 = vpop.f32.mrf.mxu0
      %v5243 = vadd.f32 0.0, %v5242
      %v5244 = vpop.f32.mrf.mxu0
      %5245 = vmatprep.mubr.bf16.mxu0 0
      %5246 = vmatmul.mubr.bf16.gmra.mxu0 %v5133
      %v5247 = vpop.f32.mrf.mxu0
      %v5248 = vadd.f32 0.0, %v5247
      %v5249 = vpop.f32.mrf.mxu0
      %v5250 = vpop.f32.mrf.mxu0
      %v5251 = vadd.f32 0.0, %v5250
      %v5252 = vpop.f32.mrf.mxu0
      %5253 = vmatprep.mubr.bf16.mxu0 0
      %5254 = vmatmul.mubr.bf16.gmra.mxu0 %v5136
      %v5255 = vpop.f32.mrf.mxu0
      %v5256 = vadd.f32 0.0, %v5255
      %v5257 = vpop.f32.mrf.mxu0
      %v5258 = vpop.f32.mrf.mxu0
      %v5259 = vadd.f32 0.0, %v5258
      %v5260 = vpop.f32.mrf.mxu0
      %5261 = vmatprep.mubr.bf16.mxu0 0
      %5262 = vmatmul.mubr.bf16.gmra.mxu0 %v5139
      %v5263 = vpop.f32.mrf.mxu0
      %v5264 = vadd.f32 0.0, %v5263
      %v5265 = vpop.f32.mrf.mxu0
      %v5266 = vpop.f32.mrf.mxu0
      %v5267 = vadd.f32 0.0, %v5266
      %v5268 = vpop.f32.mrf.mxu0
      %5269 = vmatprep.mubr.bf16.mxu0 0
      %5270 = vmatmul.mubr.bf16.gmra.mxu0 %v5142
      %v5271 = vpop.f32.mrf.mxu0
      %v5272 = vadd.f32 0.0, %v5271
      %v5273 = vpop.f32.mrf.mxu0
      %v5274 = vpop.f32.mrf.mxu0
      %v5275 = vadd.f32 0.0, %v5274
      %v5276 = vpop.f32.mrf.mxu0
      %5277 = vmatprep.mubr.bf16.mxu0 0
      %5278 = vmatmul.mubr.bf16.gmra.mxu0 %v5145
      %v5279 = vpop.f32.mrf.mxu0
      %v5280 = vadd.f32 0.0, %v5279
      %v5281 = vpop.f32.mrf.mxu0
      %v5282 = vpop.f32.mrf.mxu0
      %v5283 = vadd.f32 0.0, %v5282
      %v5284 = vpop.f32.mrf.mxu0
      %5285 = vmatprep.mubr.bf16.mxu0 0
      %5286 = vmatmul.mubr.bf16.gmra.mxu0 %v5148
      %v5287 = vpop.f32.mrf.mxu0
      %v5288 = vadd.f32 0.0, %v5287
      %v5289 = vpop.f32.mrf.mxu0
      %v5290 = vpop.f32.mrf.mxu0
      %v5291 = vadd.f32 0.0, %v5290
      %v5292 = vpop.f32.mrf.mxu0
      %5293 = vmatprep.mubr.bf16.mxu0 0
      %5294 = vmatmul.mubr.bf16.gmra.mxu0 %v5151
      %v5295 = vpop.f32.mrf.mxu0
      %v5296 = vadd.f32 0.0, %v5295
      %v5297 = vpop.f32.mrf.mxu0
      %v5298 = vpop.f32.mrf.mxu0
      %v5299 = vadd.f32 0.0, %v5298
      %v5300 = vpop.f32.mrf.mxu0
      %5301 = vmatprep.mubr.bf16.mxu0 0
      %5302 = vmatmul.mubr.bf16.gmra.mxu0 %v5154
      %v5303 = vpop.f32.mrf.mxu0
      %v5304 = vadd.f32 0.0, %v5303
      %v5305 = vpop.f32.mrf.mxu0
      %v5306 = vpop.f32.mrf.mxu0
      %v5307 = vadd.f32 0.0, %v5306
      %v5308 = vpop.f32.mrf.mxu0
      %5309 = vmatprep.mubr.bf16.mxu0 0
      %5310 = vmatmul.mubr.bf16.gmra.mxu0 %v5157
      %v5311 = vpop.f32.mrf.mxu0
      %v5312 = vadd.f32 0.0, %v5311
      %v5313 = vpop.f32.mrf.mxu0
      %v5314 = vpop.f32.mrf.mxu0
      %v5315 = vadd.f32 0.0, %v5314
      %v5316 = vpop.f32.mrf.mxu0
      %5317 = vmatprep.mubr.bf16.mxu0 0
      %5318 = vmatmul.mubr.bf16.gmra.mxu0 %v5160
      %v5319 = vpop.f32.mrf.mxu0
      %v5320 = vadd.f32 0.0, %v5319
      %v5321 = vpop.f32.mrf.mxu0
      %v5322 = vpop.f32.mrf.mxu0
      %v5323 = vadd.f32 0.0, %v5322
      %v5324 = vpop.f32.mrf.mxu0
      %5325 = vdwg.mxu0
      %v5326 = vadd.f32 %v5032, %v5200
      %v5327 = vadd.f32 %v5033, %v5203
      %v5328 = vadd.f32 %v5034, %v5208
      %v5329 = vadd.f32 %v5035, %v5211
      %v5330 = vadd.f32 %v5036, %v5216
      %v5331 = vadd.f32 %v5037, %v5219
      %v5332 = vadd.f32 %v5038, %v5224
      %v5333 = vadd.f32 %v5039, %v5227
      %v5334 = vadd.f32 %v5040, %v5232
      %v5335 = vadd.f32 %v5041, %v5235
      %v5336 = vadd.f32 %v5042, %v5240
      %v5337 = vadd.f32 %v5043, %v5243
      %v5338 = vadd.f32 %v5044, %v5248
      %v5339 = vadd.f32 %v5045, %v5251
      %v5340 = vadd.f32 %v5046, %v5256
      %v5341 = vadd.f32 %v5047, %v5259
      %v5342 = vadd.f32 %v5048, %v5264
      %v5343 = vadd.f32 %v5049, %v5267
      %v5344 = vadd.f32 %v5050, %v5272
      %v5345 = vadd.f32 %v5051, %v5275
      %v5346 = vadd.f32 %v5052, %v5280
      %v5347 = vadd.f32 %v5053, %v5283
      %v5348 = vadd.f32 %v5054, %v5288
      %v5349 = vadd.f32 %v5055, %v5291
      %v5350 = vadd.f32 %v5056, %v5296
      %v5351 = vadd.f32 %v5057, %v5299
      %v5352 = vadd.f32 %v5058, %v5304
      %v5353 = vadd.f32 %v5059, %v5307
      %v5354 = vadd.f32 %v5060, %v5312
      %v5355 = vadd.f32 %v5061, %v5315
      %v5356 = vadd.f32 %v5062, %v5320
      %v5357 = vadd.f32 %v5063, %v5323
      %v5358 = vld [vmem:[%s451] sm:$0xff]
      %v5359 = vld [vmem:[%s451 + $0x8] sm:$0xff]
      %v5360 = vld [vmem:[%s451 + $0x18] sm:$0xff]
      %v5361 = vld [vmem:[%s451 + $0x20] sm:$0xff]
      %v5362 = vld [vmem:[%s451 + $0x30] sm:$0xff]
      %v5363 = vld [vmem:[%s451 + $0x38] sm:$0xff]
      %v5364 = vld [vmem:[%s451 + $0x48] sm:$0xff]
      %v5365 = vld [vmem:[%s451 + $0x50] sm:$0xff]
      %v5366 = vld [vmem:[%s451 + $0x60] sm:$0xff]
      %v5367 = vld [vmem:[%s451 + $0x68] sm:$0xff]
      %v5368 = vld [vmem:[%s451 + $0x78] sm:$0xff]
      %v5369 = vld [vmem:[%s451 + $0x80] sm:$0xff]
      %v5370 = vld [vmem:[%s451 + $0x90] sm:$0xff]
      %v5371 = vld [vmem:[%s451 + $0x98] sm:$0xff]
      %v5372 = vld [vmem:[%s451 + $0xa8] sm:$0xff]
      %v5373 = vld [vmem:[%s451 + $0xb0] sm:$0xff]
      %v5374 = vld [vmem:[%s451 + $0xc0] sm:$0xff]
      %v5375 = vld [vmem:[%s451 + $0xc8] sm:$0xff]
      %v5376 = vld [vmem:[%s451 + $0xd8] sm:$0xff]
      %v5377 = vld [vmem:[%s451 + $0xe0] sm:$0xff]
      %v5378 = vld [vmem:[%s451 + $0xf0] sm:$0xff]
      %v5379 = vld [vmem:[%s451 + $0xf8] sm:$0xff]
      %v5380 = vld [vmem:[%s451 + $0x108] sm:$0xff]
      %v5381 = vld [vmem:[%s451 + $0x110] sm:$0xff]
      %v5382 = vld [vmem:[%s451 + $0x120] sm:$0xff]
      %v5383 = vld [vmem:[%s451 + $0x128] sm:$0xff]
      %v5384 = vld [vmem:[%s451 + $0x138] sm:$0xff]
      %v5385 = vld [vmem:[%s451 + $0x140] sm:$0xff]
      %v5386 = vld [vmem:[%s451 + $0x150] sm:$0xff]
      %v5387 = vld [vmem:[%s451 + $0x158] sm:$0xff]
      %v5388 = vld [vmem:[%s451 + $0x168] sm:$0xff]
      %v5389 = vld [vmem:[%s451 + $0x170] sm:$0xff]
      %v5390 = vpack.c.bf16 %v5359, %v5358
      %v5391 = vpack.c.bf16 %v5361, %v5360
      %v5392 = vpack.c.bf16 %v5363, %v5362
      %v5393 = vpack.c.bf16 %v5365, %v5364
      %v5394 = vpack.c.bf16 %v5367, %v5366
      %v5395 = vpack.c.bf16 %v5369, %v5368
      %v5396 = vpack.c.bf16 %v5371, %v5370
      %v5397 = vpack.c.bf16 %v5373, %v5372
      %v5398 = vpack.c.bf16 %v5375, %v5374
      %v5399 = vpack.c.bf16 %v5377, %v5376
      %v5400 = vpack.c.bf16 %v5379, %v5378
      %v5401 = vpack.c.bf16 %v5381, %v5380
      %v5402 = vpack.c.bf16 %v5383, %v5382
      %v5403 = vpack.c.bf16 %v5385, %v5384
      %v5404 = vpack.c.bf16 %v5387, %v5386
      %v5405 = vpack.c.bf16 %v5389, %v5388
      %s5406 = scalar_lea.vmem %s9, 12
      %v5407 = vld [vmem:[%s5406] sm:$0xf]
      %v5409 = vsel %vm442, %v5390, 0
      %v5412 = vsel %vm442, %v5391, 0
      %v5415 = vsel %vm442, %v5392, 0
      %v5418 = vsel %vm442, %v5393, 0
      %v5421 = vsel %vm442, %v5394, 0
      %v5424 = vsel %vm442, %v5395, 0
      %v5427 = vsel %vm442, %v5396, 0
      %v5430 = vsel %vm442, %v5397, 0
      %v5433 = vsel %vm442, %v5398, 0
      %v5436 = vsel %vm442, %v5399, 0
      %v5439 = vsel %vm442, %v5400, 0
      %v5442 = vsel %vm442, %v5401, 0
      %v5445 = vsel %vm442, %v5402, 0
      %v5448 = vsel %vm442, %v5403, 0
      %v5451 = vsel %vm442, %v5404, 0
      %v5454 = vsel %vm442, %v5405, 0
      %v5457 = vsel %vm622, %v5407, 0
      %5459 = vmatprep.subr.bf16.mxu0 0
      %5460 = vmatpush1.bf16.msra.mxu0 0
      %5461 = vmatprep.subr.bf16.mxu0 0
      %5462 = vmatpush1.bf16.msra.mxu0 0
      %5463 = vmatprep.subr.bf16.mxu0 0
      %5464 = vmatpush1.bf16.msra.mxu0 0
      %5465 = vmatprep.subr.bf16.mxu0 0
      %5466 = vmatpush1.bf16.msra.mxu0 0
      %5467 = vmatprep.subr.bf16.mxu0 0
      %5468 = vmatpush1.bf16.msra.mxu0 0
      %5469 = vmatprep.subr.bf16.mxu0 0
      %5470 = vmatpush1.bf16.msra.mxu0 0
      %5471 = vmatprep.subr.bf16.mxu0 0
      %5472 = vmatpush1.bf16.msra.mxu0 0
      %5473 = vmatprep.subr.bf16.mxu0 0
      %5474 = vmatpush1.bf16.msra.mxu0 %v5457
      %5475 = vmatprep.subr.bf16.mxu0 0
      %5476 = vmatpush2.bf16.msra.mxu0 0
      %5477 = vmatprep.subr.bf16.mxu0 0
      %5478 = vmatpush2.bf16.msra.mxu0 0
      %5479 = vmatprep.subr.bf16.mxu0 0
      %5480 = vmatpush2.bf16.msra.mxu0 0
      %5481 = vmatprep.subr.bf16.mxu0 0
      %5482 = vmatpush2.bf16.msra.mxu0 0
      %5483 = vmatprep.subr.bf16.mxu0 0
      %5484 = vmatpush2.bf16.msra.mxu0 0
      %5485 = vmatprep.subr.bf16.mxu0 0
      %5486 = vmatpush2.bf16.msra.mxu0 0
      %5487 = vmatprep.subr.bf16.mxu0 0
      %5488 = vmatpush2.bf16.msra.mxu0 0
      %5489 = vmatprep.subr.bf16.mxu0 0
      %5490 = vmatpush2.bf16.msra.mxu0 0
      %5491 = vmatprep.mubr.bf16.mxu0 0
      %5492 = vmatmul.mubr.bf16.gmra.mxu0 %v5409
      %v5493 = vpop.f32.mrf.mxu0
      %v5494 = vadd.f32 0.0, %v5493
      %v5495 = vpop.f32.mrf.mxu0
      %v5496 = vpop.f32.mrf.mxu0
      %v5497 = vadd.f32 0.0, %v5496
      %v5498 = vpop.f32.mrf.mxu0
      %5499 = vmatprep.mubr.bf16.mxu0 0
      %5500 = vmatmul.mubr.bf16.gmra.mxu0 %v5412
      %v5501 = vpop.f32.mrf.mxu0
      %v5502 = vadd.f32 0.0, %v5501
      %v5503 = vpop.f32.mrf.mxu0
      %v5504 = vpop.f32.mrf.mxu0
      %v5505 = vadd.f32 0.0, %v5504
      %v5506 = vpop.f32.mrf.mxu0
      %5507 = vmatprep.mubr.bf16.mxu0 0
      %5508 = vmatmul.mubr.bf16.gmra.mxu0 %v5415
      %v5509 = vpop.f32.mrf.mxu0
      %v5510 = vadd.f32 0.0, %v5509
      %v5511 = vpop.f32.mrf.mxu0
      %v5512 = vpop.f32.mrf.mxu0
      %v5513 = vadd.f32 0.0, %v5512
      %v5514 = vpop.f32.mrf.mxu0
      %5515 = vmatprep.mubr.bf16.mxu0 0
      %5516 = vmatmul.mubr.bf16.gmra.mxu0 %v5418
      %v5517 = vpop.f32.mrf.mxu0
      %v5518 = vadd.f32 0.0, %v5517
      %v5519 = vpop.f32.mrf.mxu0
      %v5520 = vpop.f32.mrf.mxu0
      %v5521 = vadd.f32 0.0, %v5520
      %v5522 = vpop.f32.mrf.mxu0
      %5523 = vmatprep.mubr.bf16.mxu0 0
      %5524 = vmatmul.mubr.bf16.gmra.mxu0 %v5421
      %v5525 = vpop.f32.mrf.mxu0
      %v5526 = vadd.f32 0.0, %v5525
      %v5527 = vpop.f32.mrf.mxu0
      %v5528 = vpop.f32.mrf.mxu0
      %v5529 = vadd.f32 0.0, %v5528
      %v5530 = vpop.f32.mrf.mxu0
      %5531 = vmatprep.mubr.bf16.mxu0 0
      %5532 = vmatmul.mubr.bf16.gmra.mxu0 %v5424
      %v5533 = vpop.f32.mrf.mxu0
      %v5534 = vadd.f32 0.0, %v5533
      %v5535 = vpop.f32.mrf.mxu0
      %v5536 = vpop.f32.mrf.mxu0
      %v5537 = vadd.f32 0.0, %v5536
      %v5538 = vpop.f32.mrf.mxu0
      %5539 = vmatprep.mubr.bf16.mxu0 0
      %5540 = vmatmul.mubr.bf16.gmra.mxu0 %v5427
      %v5541 = vpop.f32.mrf.mxu0
      %v5542 = vadd.f32 0.0, %v5541
      %v5543 = vpop.f32.mrf.mxu0
      %v5544 = vpop.f32.mrf.mxu0
      %v5545 = vadd.f32 0.0, %v5544
      %v5546 = vpop.f32.mrf.mxu0
      %5547 = vmatprep.mubr.bf16.mxu0 0
      %5548 = vmatmul.mubr.bf16.gmra.mxu0 %v5430
      %v5549 = vpop.f32.mrf.mxu0
      %v5550 = vadd.f32 0.0, %v5549
      %v5551 = vpop.f32.mrf.mxu0
      %v5552 = vpop.f32.mrf.mxu0
      %v5553 = vadd.f32 0.0, %v5552
      %v5554 = vpop.f32.mrf.mxu0
      %5555 = vmatprep.mubr.bf16.mxu0 0
      %5556 = vmatmul.mubr.bf16.gmra.mxu0 %v5433
      %v5557 = vpop.f32.mrf.mxu0
      %v5558 = vadd.f32 0.0, %v5557
      %v5559 = vpop.f32.mrf.mxu0
      %v5560 = vpop.f32.mrf.mxu0
      %v5561 = vadd.f32 0.0, %v5560
      %v5562 = vpop.f32.mrf.mxu0
      %5563 = vmatprep.mubr.bf16.mxu0 0
      %5564 = vmatmul.mubr.bf16.gmra.mxu0 %v5436
      %v5565 = vpop.f32.mrf.mxu0
      %v5566 = vadd.f32 0.0, %v5565
      %v5567 = vpop.f32.mrf.mxu0
      %v5568 = vpop.f32.mrf.mxu0
      %v5569 = vadd.f32 0.0, %v5568
      %v5570 = vpop.f32.mrf.mxu0
      %5571 = vmatprep.mubr.bf16.mxu0 0
      %5572 = vmatmul.mubr.bf16.gmra.mxu0 %v5439
      %v5573 = vpop.f32.mrf.mxu0
      %v5574 = vadd.f32 0.0, %v5573
      %v5575 = vpop.f32.mrf.mxu0
      %v5576 = vpop.f32.mrf.mxu0
      %v5577 = vadd.f32 0.0, %v5576
      %v5578 = vpop.f32.mrf.mxu0
      %5579 = vmatprep.mubr.bf16.mxu0 0
      %5580 = vmatmul.mubr.bf16.gmra.mxu0 %v5442
      %v5581 = vpop.f32.mrf.mxu0
      %v5582 = vadd.f32 0.0, %v5581
      %v5583 = vpop.f32.mrf.mxu0
      %v5584 = vpop.f32.mrf.mxu0
      %v5585 = vadd.f32 0.0, %v5584
      %v5586 = vpop.f32.mrf.mxu0
      %5587 = vmatprep.mubr.bf16.mxu0 0
      %5588 = vmatmul.mubr.bf16.gmra.mxu0 %v5445
      %v5589 = vpop.f32.mrf.mxu0
      %v5590 = vadd.f32 0.0, %v5589
      %v5591 = vpop.f32.mrf.mxu0
      %v5592 = vpop.f32.mrf.mxu0
      %v5593 = vadd.f32 0.0, %v5592
      %v5594 = vpop.f32.mrf.mxu0
      %5595 = vmatprep.mubr.bf16.mxu0 0
      %5596 = vmatmul.mubr.bf16.gmra.mxu0 %v5448
      %v5597 = vpop.f32.mrf.mxu0
      %v5598 = vadd.f32 0.0, %v5597
      %v5599 = vpop.f32.mrf.mxu0
      %v5600 = vpop.f32.mrf.mxu0
      %v5601 = vadd.f32 0.0, %v5600
      %v5602 = vpop.f32.mrf.mxu0
      %5603 = vmatprep.mubr.bf16.mxu0 0
      %5604 = vmatmul.mubr.bf16.gmra.mxu0 %v5451
      %v5605 = vpop.f32.mrf.mxu0
      %v5606 = vadd.f32 0.0, %v5605
      %v5607 = vpop.f32.mrf.mxu0
      %v5608 = vpop.f32.mrf.mxu0
      %v5609 = vadd.f32 0.0, %v5608
      %v5610 = vpop.f32.mrf.mxu0
      %5611 = vmatprep.mubr.bf16.mxu0 0
      %5612 = vmatmul.mubr.bf16.gmra.mxu0 %v5454
      %v5613 = vpop.f32.mrf.mxu0
      %v5614 = vadd.f32 0.0, %v5613
      %v5615 = vpop.f32.mrf.mxu0
      %v5616 = vpop.f32.mrf.mxu0
      %v5617 = vadd.f32 0.0, %v5616
      %v5618 = vpop.f32.mrf.mxu0
      %5619 = vdwg.mxu0
      %v5620 = vadd.f32 %v5326, %v5494
      %v5621 = vadd.f32 %v5327, %v5497
      %v5622 = vadd.f32 %v5328, %v5502
      %v5623 = vadd.f32 %v5329, %v5505
      %v5624 = vadd.f32 %v5330, %v5510
      %v5625 = vadd.f32 %v5331, %v5513
      %v5626 = vadd.f32 %v5332, %v5518
      %v5627 = vadd.f32 %v5333, %v5521
      %v5628 = vadd.f32 %v5334, %v5526
      %v5629 = vadd.f32 %v5335, %v5529
      %v5630 = vadd.f32 %v5336, %v5534
      %v5631 = vadd.f32 %v5337, %v5537
      %v5632 = vadd.f32 %v5338, %v5542
      %v5633 = vadd.f32 %v5339, %v5545
      %v5634 = vadd.f32 %v5340, %v5550
      %v5635 = vadd.f32 %v5341, %v5553
      %v5636 = vadd.f32 %v5342, %v5558
      %v5637 = vadd.f32 %v5343, %v5561
      %v5638 = vadd.f32 %v5344, %v5566
      %v5639 = vadd.f32 %v5345, %v5569
      %v5640 = vadd.f32 %v5346, %v5574
      %v5641 = vadd.f32 %v5347, %v5577
      %v5642 = vadd.f32 %v5348, %v5582
      %v5643 = vadd.f32 %v5349, %v5585
      %v5644 = vadd.f32 %v5350, %v5590
      %v5645 = vadd.f32 %v5351, %v5593
      %v5646 = vadd.f32 %v5352, %v5598
      %v5647 = vadd.f32 %v5353, %v5601
      %v5648 = vadd.f32 %v5354, %v5606
      %v5649 = vadd.f32 %v5355, %v5609
      %v5650 = vadd.f32 %v5356, %v5614
      %v5651 = vadd.f32 %v5357, %v5617
      %v5652 = vld [vmem:[%s451 + $0x1] sm:$0xff]
      %v5653 = vld [vmem:[%s451 + $0x9] sm:$0xff]
      %v5654 = vld [vmem:[%s451 + $0x19] sm:$0xff]
      %v5655 = vld [vmem:[%s451 + $0x21] sm:$0xff]
      %v5656 = vld [vmem:[%s451 + $0x31] sm:$0xff]
      %v5657 = vld [vmem:[%s451 + $0x39] sm:$0xff]
      %v5658 = vld [vmem:[%s451 + $0x49] sm:$0xff]
      %v5659 = vld [vmem:[%s451 + $0x51] sm:$0xff]
      %v5660 = vld [vmem:[%s451 + $0x61] sm:$0xff]
      %v5661 = vld [vmem:[%s451 + $0x69] sm:$0xff]
      %v5662 = vld [vmem:[%s451 + $0x79] sm:$0xff]
      %v5663 = vld [vmem:[%s451 + $0x81] sm:$0xff]
      %v5664 = vld [vmem:[%s451 + $0x91] sm:$0xff]
      %v5665 = vld [vmem:[%s451 + $0x99] sm:$0xff]
      %v5666 = vld [vmem:[%s451 + $0xa9] sm:$0xff]
      %v5667 = vld [vmem:[%s451 + $0xb1] sm:$0xff]
      %v5668 = vld [vmem:[%s451 + $0xc1] sm:$0xff]
      %v5669 = vld [vmem:[%s451 + $0xc9] sm:$0xff]
      %v5670 = vld [vmem:[%s451 + $0xd9] sm:$0xff]
      %v5671 = vld [vmem:[%s451 + $0xe1] sm:$0xff]
      %v5672 = vld [vmem:[%s451 + $0xf1] sm:$0xff]
      %v5673 = vld [vmem:[%s451 + $0xf9] sm:$0xff]
      %v5674 = vld [vmem:[%s451 + $0x109] sm:$0xff]
      %v5675 = vld [vmem:[%s451 + $0x111] sm:$0xff]
      %v5676 = vld [vmem:[%s451 + $0x121] sm:$0xff]
      %v5677 = vld [vmem:[%s451 + $0x129] sm:$0xff]
      %v5678 = vld [vmem:[%s451 + $0x139] sm:$0xff]
      %v5679 = vld [vmem:[%s451 + $0x141] sm:$0xff]
      %v5680 = vld [vmem:[%s451 + $0x151] sm:$0xff]
      %v5681 = vld [vmem:[%s451 + $0x159] sm:$0xff]
      %v5682 = vld [vmem:[%s451 + $0x169] sm:$0xff]
      %v5683 = vld [vmem:[%s451 + $0x171] sm:$0xff]
      %v5684 = vpack.c.bf16 %v5653, %v5652
      %v5685 = vpack.c.bf16 %v5655, %v5654
      %v5686 = vpack.c.bf16 %v5657, %v5656
      %v5687 = vpack.c.bf16 %v5659, %v5658
      %v5688 = vpack.c.bf16 %v5661, %v5660
      %v5689 = vpack.c.bf16 %v5663, %v5662
      %v5690 = vpack.c.bf16 %v5665, %v5664
      %v5691 = vpack.c.bf16 %v5667, %v5666
      %v5692 = vpack.c.bf16 %v5669, %v5668
      %v5693 = vpack.c.bf16 %v5671, %v5670
      %v5694 = vpack.c.bf16 %v5673, %v5672
      %v5695 = vpack.c.bf16 %v5675, %v5674
      %v5696 = vpack.c.bf16 %v5677, %v5676
      %v5697 = vpack.c.bf16 %v5679, %v5678
      %v5698 = vpack.c.bf16 %v5681, %v5680
      %v5699 = vpack.c.bf16 %v5683, %v5682
      %s5700 = scalar_lea.vmem %s9, 16
      %v5701 = vld [vmem:[%s5700] sm:$0xf]
      %v5703 = vsel %vm442, %v5684, 0
      %v5706 = vsel %vm442, %v5685, 0
      %v5709 = vsel %vm442, %v5686, 0
      %v5712 = vsel %vm442, %v5687, 0
      %v5715 = vsel %vm442, %v5688, 0
      %v5718 = vsel %vm442, %v5689, 0
      %v5721 = vsel %vm442, %v5690, 0
      %v5724 = vsel %vm442, %v5691, 0
      %v5727 = vsel %vm442, %v5692, 0
      %v5730 = vsel %vm442, %v5693, 0
      %v5733 = vsel %vm442, %v5694, 0
      %v5736 = vsel %vm442, %v5695, 0
      %v5739 = vsel %vm442, %v5696, 0
      %v5742 = vsel %vm442, %v5697, 0
      %v5745 = vsel %vm442, %v5698, 0
      %v5748 = vsel %vm442, %v5699, 0
      %v5751 = vsel %vm622, %v5701, 0
      %5753 = vmatprep.subr.bf16.mxu0 0
      %5754 = vmatpush1.bf16.msra.mxu0 0
      %5755 = vmatprep.subr.bf16.mxu0 0
      %5756 = vmatpush1.bf16.msra.mxu0 0
      %5757 = vmatprep.subr.bf16.mxu0 0
      %5758 = vmatpush1.bf16.msra.mxu0 0
      %5759 = vmatprep.subr.bf16.mxu0 0
      %5760 = vmatpush1.bf16.msra.mxu0 0
      %5761 = vmatprep.subr.bf16.mxu0 0
      %5762 = vmatpush1.bf16.msra.mxu0 0
      %5763 = vmatprep.subr.bf16.mxu0 0
      %5764 = vmatpush1.bf16.msra.mxu0 0
      %5765 = vmatprep.subr.bf16.mxu0 0
      %5766 = vmatpush1.bf16.msra.mxu0 0
      %5767 = vmatprep.subr.bf16.mxu0 0
      %5768 = vmatpush1.bf16.msra.mxu0 %v5751
      %5769 = vmatprep.subr.bf16.mxu0 0
      %5770 = vmatpush2.bf16.msra.mxu0 0
      %5771 = vmatprep.subr.bf16.mxu0 0
      %5772 = vmatpush2.bf16.msra.mxu0 0
      %5773 = vmatprep.subr.bf16.mxu0 0
      %5774 = vmatpush2.bf16.msra.mxu0 0
      %5775 = vmatprep.subr.bf16.mxu0 0
      %5776 = vmatpush2.bf16.msra.mxu0 0
      %5777 = vmatprep.subr.bf16.mxu0 0
      %5778 = vmatpush2.bf16.msra.mxu0 0
      %5779 = vmatprep.subr.bf16.mxu0 0
      %5780 = vmatpush2.bf16.msra.mxu0 0
      %5781 = vmatprep.subr.bf16.mxu0 0
      %5782 = vmatpush2.bf16.msra.mxu0 0
      %5783 = vmatprep.subr.bf16.mxu0 0
      %5784 = vmatpush2.bf16.msra.mxu0 0
      %5785 = vmatprep.mubr.bf16.mxu0 0
      %5786 = vmatmul.mubr.bf16.gmra.mxu0 %v5703
      %v5787 = vpop.f32.mrf.mxu0
      %v5788 = vadd.f32 0.0, %v5787
      %v5789 = vpop.f32.mrf.mxu0
      %v5790 = vpop.f32.mrf.mxu0
      %v5791 = vadd.f32 0.0, %v5790
      %v5792 = vpop.f32.mrf.mxu0
      %5793 = vmatprep.mubr.bf16.mxu0 0
      %5794 = vmatmul.mubr.bf16.gmra.mxu0 %v5706
      %v5795 = vpop.f32.mrf.mxu0
      %v5796 = vadd.f32 0.0, %v5795
      %v5797 = vpop.f32.mrf.mxu0
      %v5798 = vpop.f32.mrf.mxu0
      %v5799 = vadd.f32 0.0, %v5798
      %v5800 = vpop.f32.mrf.mxu0
      %5801 = vmatprep.mubr.bf16.mxu0 0
      %5802 = vmatmul.mubr.bf16.gmra.mxu0 %v5709
      %v5803 = vpop.f32.mrf.mxu0
      %v5804 = vadd.f32 0.0, %v5803
      %v5805 = vpop.f32.mrf.mxu0
      %v5806 = vpop.f32.mrf.mxu0
      %v5807 = vadd.f32 0.0, %v5806
      %v5808 = vpop.f32.mrf.mxu0
      %5809 = vmatprep.mubr.bf16.mxu0 0
      %5810 = vmatmul.mubr.bf16.gmra.mxu0 %v5712
      %v5811 = vpop.f32.mrf.mxu0
      %v5812 = vadd.f32 0.0, %v5811
      %v5813 = vpop.f32.mrf.mxu0
      %v5814 = vpop.f32.mrf.mxu0
      %v5815 = vadd.f32 0.0, %v5814
      %v5816 = vpop.f32.mrf.mxu0
      %5817 = vmatprep.mubr.bf16.mxu0 0
      %5818 = vmatmul.mubr.bf16.gmra.mxu0 %v5715
      %v5819 = vpop.f32.mrf.mxu0
      %v5820 = vadd.f32 0.0, %v5819
      %v5821 = vpop.f32.mrf.mxu0
      %v5822 = vpop.f32.mrf.mxu0
      %v5823 = vadd.f32 0.0, %v5822
      %v5824 = vpop.f32.mrf.mxu0
      %5825 = vmatprep.mubr.bf16.mxu0 0
      %5826 = vmatmul.mubr.bf16.gmra.mxu0 %v5718
      %v5827 = vpop.f32.mrf.mxu0
      %v5828 = vadd.f32 0.0, %v5827
      %v5829 = vpop.f32.mrf.mxu0
      %v5830 = vpop.f32.mrf.mxu0
      %v5831 = vadd.f32 0.0, %v5830
      %v5832 = vpop.f32.mrf.mxu0
      %5833 = vmatprep.mubr.bf16.mxu0 0
      %5834 = vmatmul.mubr.bf16.gmra.mxu0 %v5721
      %v5835 = vpop.f32.mrf.mxu0
      %v5836 = vadd.f32 0.0, %v5835
      %v5837 = vpop.f32.mrf.mxu0
      %v5838 = vpop.f32.mrf.mxu0
      %v5839 = vadd.f32 0.0, %v5838
      %v5840 = vpop.f32.mrf.mxu0
      %5841 = vmatprep.mubr.bf16.mxu0 0
      %5842 = vmatmul.mubr.bf16.gmra.mxu0 %v5724
      %v5843 = vpop.f32.mrf.mxu0
      %v5844 = vadd.f32 0.0, %v5843
      %v5845 = vpop.f32.mrf.mxu0
      %v5846 = vpop.f32.mrf.mxu0
      %v5847 = vadd.f32 0.0, %v5846
      %v5848 = vpop.f32.mrf.mxu0
      %5849 = vmatprep.mubr.bf16.mxu0 0
      %5850 = vmatmul.mubr.bf16.gmra.mxu0 %v5727
      %v5851 = vpop.f32.mrf.mxu0
      %v5852 = vadd.f32 0.0, %v5851
      %v5853 = vpop.f32.mrf.mxu0
      %v5854 = vpop.f32.mrf.mxu0
      %v5855 = vadd.f32 0.0, %v5854
      %v5856 = vpop.f32.mrf.mxu0
      %5857 = vmatprep.mubr.bf16.mxu0 0
      %5858 = vmatmul.mubr.bf16.gmra.mxu0 %v5730
      %v5859 = vpop.f32.mrf.mxu0
      %v5860 = vadd.f32 0.0, %v5859
      %v5861 = vpop.f32.mrf.mxu0
      %v5862 = vpop.f32.mrf.mxu0
      %v5863 = vadd.f32 0.0, %v5862
      %v5864 = vpop.f32.mrf.mxu0
      %5865 = vmatprep.mubr.bf16.mxu0 0
      %5866 = vmatmul.mubr.bf16.gmra.mxu0 %v5733
      %v5867 = vpop.f32.mrf.mxu0
      %v5868 = vadd.f32 0.0, %v5867
      %v5869 = vpop.f32.mrf.mxu0
      %v5870 = vpop.f32.mrf.mxu0
      %v5871 = vadd.f32 0.0, %v5870
      %v5872 = vpop.f32.mrf.mxu0
      %5873 = vmatprep.mubr.bf16.mxu0 0
      %5874 = vmatmul.mubr.bf16.gmra.mxu0 %v5736
      %v5875 = vpop.f32.mrf.mxu0
      %v5876 = vadd.f32 0.0, %v5875
      %v5877 = vpop.f32.mrf.mxu0
      %v5878 = vpop.f32.mrf.mxu0
      %v5879 = vadd.f32 0.0, %v5878
      %v5880 = vpop.f32.mrf.mxu0
      %5881 = vmatprep.mubr.bf16.mxu0 0
      %5882 = vmatmul.mubr.bf16.gmra.mxu0 %v5739
      %v5883 = vpop.f32.mrf.mxu0
      %v5884 = vadd.f32 0.0, %v5883
      %v5885 = vpop.f32.mrf.mxu0
      %v5886 = vpop.f32.mrf.mxu0
      %v5887 = vadd.f32 0.0, %v5886
      %v5888 = vpop.f32.mrf.mxu0
      %5889 = vmatprep.mubr.bf16.mxu0 0
      %5890 = vmatmul.mubr.bf16.gmra.mxu0 %v5742
      %v5891 = vpop.f32.mrf.mxu0
      %v5892 = vadd.f32 0.0, %v5891
      %v5893 = vpop.f32.mrf.mxu0
      %v5894 = vpop.f32.mrf.mxu0
      %v5895 = vadd.f32 0.0, %v5894
      %v5896 = vpop.f32.mrf.mxu0
      %5897 = vmatprep.mubr.bf16.mxu0 0
      %5898 = vmatmul.mubr.bf16.gmra.mxu0 %v5745
      %v5899 = vpop.f32.mrf.mxu0
      %v5900 = vadd.f32 0.0, %v5899
      %v5901 = vpop.f32.mrf.mxu0
      %v5902 = vpop.f32.mrf.mxu0
      %v5903 = vadd.f32 0.0, %v5902
      %v5904 = vpop.f32.mrf.mxu0
      %5905 = vmatprep.mubr.bf16.mxu0 0
      %5906 = vmatmul.mubr.bf16.gmra.mxu0 %v5748
      %v5907 = vpop.f32.mrf.mxu0
      %v5908 = vadd.f32 0.0, %v5907
      %v5909 = vpop.f32.mrf.mxu0
      %v5910 = vpop.f32.mrf.mxu0
      %v5911 = vadd.f32 0.0, %v5910
      %v5912 = vpop.f32.mrf.mxu0
      %5913 = vdwg.mxu0
      %v5914 = vadd.f32 %v5620, %v5788
      %v5915 = vadd.f32 %v5621, %v5791
      %v5916 = vadd.f32 %v5622, %v5796
      %v5917 = vadd.f32 %v5623, %v5799
      %v5918 = vadd.f32 %v5624, %v5804
      %v5919 = vadd.f32 %v5625, %v5807
      %v5920 = vadd.f32 %v5626, %v5812
      %v5921 = vadd.f32 %v5627, %v5815
      %v5922 = vadd.f32 %v5628, %v5820
      %v5923 = vadd.f32 %v5629, %v5823
      %v5924 = vadd.f32 %v5630, %v5828
      %v5925 = vadd.f32 %v5631, %v5831
      %v5926 = vadd.f32 %v5632, %v5836
      %v5927 = vadd.f32 %v5633, %v5839
      %v5928 = vadd.f32 %v5634, %v5844
      %v5929 = vadd.f32 %v5635, %v5847
      %v5930 = vadd.f32 %v5636, %v5852
      %v5931 = vadd.f32 %v5637, %v5855
      %v5932 = vadd.f32 %v5638, %v5860
      %v5933 = vadd.f32 %v5639, %v5863
      %v5934 = vadd.f32 %v5640, %v5868
      %v5935 = vadd.f32 %v5641, %v5871
      %v5936 = vadd.f32 %v5642, %v5876
      %v5937 = vadd.f32 %v5643, %v5879
      %v5938 = vadd.f32 %v5644, %v5884
      %v5939 = vadd.f32 %v5645, %v5887
      %v5940 = vadd.f32 %v5646, %v5892
      %v5941 = vadd.f32 %v5647, %v5895
      %v5942 = vadd.f32 %v5648, %v5900
      %v5943 = vadd.f32 %v5649, %v5903
      %v5944 = vadd.f32 %v5650, %v5908
      %v5945 = vadd.f32 %v5651, %v5911
      %v5946 = vld [vmem:[%s451 + $0x2] sm:$0xff]
      %v5947 = vld [vmem:[%s451 + $0xa] sm:$0xff]
      %v5948 = vld [vmem:[%s451 + $0x1a] sm:$0xff]
      %v5949 = vld [vmem:[%s451 + $0x22] sm:$0xff]
      %v5950 = vld [vmem:[%s451 + $0x32] sm:$0xff]
      %v5951 = vld [vmem:[%s451 + $0x3a] sm:$0xff]
      %v5952 = vld [vmem:[%s451 + $0x4a] sm:$0xff]
      %v5953 = vld [vmem:[%s451 + $0x52] sm:$0xff]
      %v5954 = vld [vmem:[%s451 + $0x62] sm:$0xff]
      %v5955 = vld [vmem:[%s451 + $0x6a] sm:$0xff]
      %v5956 = vld [vmem:[%s451 + $0x7a] sm:$0xff]
      %v5957 = vld [vmem:[%s451 + $0x82] sm:$0xff]
      %v5958 = vld [vmem:[%s451 + $0x92] sm:$0xff]
      %v5959 = vld [vmem:[%s451 + $0x9a] sm:$0xff]
      %v5960 = vld [vmem:[%s451 + $0xaa] sm:$0xff]
      %v5961 = vld [vmem:[%s451 + $0xb2] sm:$0xff]
      %v5962 = vld [vmem:[%s451 + $0xc2] sm:$0xff]
      %v5963 = vld [vmem:[%s451 + $0xca] sm:$0xff]
      %v5964 = vld [vmem:[%s451 + $0xda] sm:$0xff]
      %v5965 = vld [vmem:[%s451 + $0xe2] sm:$0xff]
      %v5966 = vld [vmem:[%s451 + $0xf2] sm:$0xff]
      %v5967 = vld [vmem:[%s451 + $0xfa] sm:$0xff]
      %v5968 = vld [vmem:[%s451 + $0x10a] sm:$0xff]
      %v5969 = vld [vmem:[%s451 + $0x112] sm:$0xff]
      %v5970 = vld [vmem:[%s451 + $0x122] sm:$0xff]
      %v5971 = vld [vmem:[%s451 + $0x12a] sm:$0xff]
      %v5972 = vld [vmem:[%s451 + $0x13a] sm:$0xff]
      %v5973 = vld [vmem:[%s451 + $0x142] sm:$0xff]
      %v5974 = vld [vmem:[%s451 + $0x152] sm:$0xff]
      %v5975 = vld [vmem:[%s451 + $0x15a] sm:$0xff]
      %v5976 = vld [vmem:[%s451 + $0x16a] sm:$0xff]
      %v5977 = vld [vmem:[%s451 + $0x172] sm:$0xff]
      %v5978 = vpack.c.bf16 %v5947, %v5946
      %v5979 = vpack.c.bf16 %v5949, %v5948
      %v5980 = vpack.c.bf16 %v5951, %v5950
      %v5981 = vpack.c.bf16 %v5953, %v5952
      %v5982 = vpack.c.bf16 %v5955, %v5954
      %v5983 = vpack.c.bf16 %v5957, %v5956
      %v5984 = vpack.c.bf16 %v5959, %v5958
      %v5985 = vpack.c.bf16 %v5961, %v5960
      %v5986 = vpack.c.bf16 %v5963, %v5962
      %v5987 = vpack.c.bf16 %v5965, %v5964
      %v5988 = vpack.c.bf16 %v5967, %v5966
      %v5989 = vpack.c.bf16 %v5969, %v5968
      %v5990 = vpack.c.bf16 %v5971, %v5970
      %v5991 = vpack.c.bf16 %v5973, %v5972
      %v5992 = vpack.c.bf16 %v5975, %v5974
      %v5993 = vpack.c.bf16 %v5977, %v5976
      %s5994 = scalar_lea.vmem %s9, 20
      %v5995 = vld [vmem:[%s5994] sm:$0xf]
      %v5997 = vsel %vm442, %v5978, 0
      %v6000 = vsel %vm442, %v5979, 0
      %v6003 = vsel %vm442, %v5980, 0
      %v6006 = vsel %vm442, %v5981, 0
      %v6009 = vsel %vm442, %v5982, 0
      %v6012 = vsel %vm442, %v5983, 0
      %v6015 = vsel %vm442, %v5984, 0
      %v6018 = vsel %vm442, %v5985, 0
      %v6021 = vsel %vm442, %v5986, 0
      %v6024 = vsel %vm442, %v5987, 0
      %v6027 = vsel %vm442, %v5988, 0
      %v6030 = vsel %vm442, %v5989, 0
      %v6033 = vsel %vm442, %v5990, 0
      %v6036 = vsel %vm442, %v5991, 0
      %v6039 = vsel %vm442, %v5992, 0
      %v6042 = vsel %vm442, %v5993, 0
      %v6045 = vsel %vm622, %v5995, 0
      %6047 = vmatprep.subr.bf16.mxu0 0
      %6048 = vmatpush1.bf16.msra.mxu0 0
      %6049 = vmatprep.subr.bf16.mxu0 0
      %6050 = vmatpush1.bf16.msra.mxu0 0
      %6051 = vmatprep.subr.bf16.mxu0 0
      %6052 = vmatpush1.bf16.msra.mxu0 0
      %6053 = vmatprep.subr.bf16.mxu0 0
      %6054 = vmatpush1.bf16.msra.mxu0 0
      %6055 = vmatprep.subr.bf16.mxu0 0
      %6056 = vmatpush1.bf16.msra.mxu0 0
      %6057 = vmatprep.subr.bf16.mxu0 0
      %6058 = vmatpush1.bf16.msra.mxu0 0
      %6059 = vmatprep.subr.bf16.mxu0 0
      %6060 = vmatpush1.bf16.msra.mxu0 0
      %6061 = vmatprep.subr.bf16.mxu0 0
      %6062 = vmatpush1.bf16.msra.mxu0 %v6045
      %6063 = vmatprep.subr.bf16.mxu0 0
      %6064 = vmatpush2.bf16.msra.mxu0 0
      %6065 = vmatprep.subr.bf16.mxu0 0
      %6066 = vmatpush2.bf16.msra.mxu0 0
      %6067 = vmatprep.subr.bf16.mxu0 0
      %6068 = vmatpush2.bf16.msra.mxu0 0
      %6069 = vmatprep.subr.bf16.mxu0 0
      %6070 = vmatpush2.bf16.msra.mxu0 0
      %6071 = vmatprep.subr.bf16.mxu0 0
      %6072 = vmatpush2.bf16.msra.mxu0 0
      %6073 = vmatprep.subr.bf16.mxu0 0
      %6074 = vmatpush2.bf16.msra.mxu0 0
      %6075 = vmatprep.subr.bf16.mxu0 0
      %6076 = vmatpush2.bf16.msra.mxu0 0
      %6077 = vmatprep.subr.bf16.mxu0 0
      %6078 = vmatpush2.bf16.msra.mxu0 0
      %6079 = vmatprep.mubr.bf16.mxu0 0
      %6080 = vmatmul.mubr.bf16.gmra.mxu0 %v5997
      %v6081 = vpop.f32.mrf.mxu0
      %v6082 = vadd.f32 0.0, %v6081
      %v6083 = vpop.f32.mrf.mxu0
      %v6084 = vpop.f32.mrf.mxu0
      %v6085 = vadd.f32 0.0, %v6084
      %v6086 = vpop.f32.mrf.mxu0
      %6087 = vmatprep.mubr.bf16.mxu0 0
      %6088 = vmatmul.mubr.bf16.gmra.mxu0 %v6000
      %v6089 = vpop.f32.mrf.mxu0
      %v6090 = vadd.f32 0.0, %v6089
      %v6091 = vpop.f32.mrf.mxu0
      %v6092 = vpop.f32.mrf.mxu0
      %v6093 = vadd.f32 0.0, %v6092
      %v6094 = vpop.f32.mrf.mxu0
      %6095 = vmatprep.mubr.bf16.mxu0 0
      %6096 = vmatmul.mubr.bf16.gmra.mxu0 %v6003
      %v6097 = vpop.f32.mrf.mxu0
      %v6098 = vadd.f32 0.0, %v6097
      %v6099 = vpop.f32.mrf.mxu0
      %v6100 = vpop.f32.mrf.mxu0
      %v6101 = vadd.f32 0.0, %v6100
      %v6102 = vpop.f32.mrf.mxu0
      %6103 = vmatprep.mubr.bf16.mxu0 0
      %6104 = vmatmul.mubr.bf16.gmra.mxu0 %v6006
      %v6105 = vpop.f32.mrf.mxu0
      %v6106 = vadd.f32 0.0, %v6105
      %v6107 = vpop.f32.mrf.mxu0
      %v6108 = vpop.f32.mrf.mxu0
      %v6109 = vadd.f32 0.0, %v6108
      %v6110 = vpop.f32.mrf.mxu0
      %6111 = vmatprep.mubr.bf16.mxu0 0
      %6112 = vmatmul.mubr.bf16.gmra.mxu0 %v6009
      %v6113 = vpop.f32.mrf.mxu0
      %v6114 = vadd.f32 0.0, %v6113
      %v6115 = vpop.f32.mrf.mxu0
      %v6116 = vpop.f32.mrf.mxu0
      %v6117 = vadd.f32 0.0, %v6116
      %v6118 = vpop.f32.mrf.mxu0
      %6119 = vmatprep.mubr.bf16.mxu0 0
      %6120 = vmatmul.mubr.bf16.gmra.mxu0 %v6012
      %v6121 = vpop.f32.mrf.mxu0
      %v6122 = vadd.f32 0.0, %v6121
      %v6123 = vpop.f32.mrf.mxu0
      %v6124 = vpop.f32.mrf.mxu0
      %v6125 = vadd.f32 0.0, %v6124
      %v6126 = vpop.f32.mrf.mxu0
      %6127 = vmatprep.mubr.bf16.mxu0 0
      %6128 = vmatmul.mubr.bf16.gmra.mxu0 %v6015
      %v6129 = vpop.f32.mrf.mxu0
      %v6130 = vadd.f32 0.0, %v6129
      %v6131 = vpop.f32.mrf.mxu0
      %v6132 = vpop.f32.mrf.mxu0
      %v6133 = vadd.f32 0.0, %v6132
      %v6134 = vpop.f32.mrf.mxu0
      %6135 = vmatprep.mubr.bf16.mxu0 0
      %6136 = vmatmul.mubr.bf16.gmra.mxu0 %v6018
      %v6137 = vpop.f32.mrf.mxu0
      %v6138 = vadd.f32 0.0, %v6137
      %v6139 = vpop.f32.mrf.mxu0
      %v6140 = vpop.f32.mrf.mxu0
      %v6141 = vadd.f32 0.0, %v6140
      %v6142 = vpop.f32.mrf.mxu0
      %6143 = vmatprep.mubr.bf16.mxu0 0
      %6144 = vmatmul.mubr.bf16.gmra.mxu0 %v6021
      %v6145 = vpop.f32.mrf.mxu0
      %v6146 = vadd.f32 0.0, %v6145
      %v6147 = vpop.f32.mrf.mxu0
      %v6148 = vpop.f32.mrf.mxu0
      %v6149 = vadd.f32 0.0, %v6148
      %v6150 = vpop.f32.mrf.mxu0
      %6151 = vmatprep.mubr.bf16.mxu0 0
      %6152 = vmatmul.mubr.bf16.gmra.mxu0 %v6024
      %v6153 = vpop.f32.mrf.mxu0
      %v6154 = vadd.f32 0.0, %v6153
      %v6155 = vpop.f32.mrf.mxu0
      %v6156 = vpop.f32.mrf.mxu0
      %v6157 = vadd.f32 0.0, %v6156
      %v6158 = vpop.f32.mrf.mxu0
      %6159 = vmatprep.mubr.bf16.mxu0 0
      %6160 = vmatmul.mubr.bf16.gmra.mxu0 %v6027
      %v6161 = vpop.f32.mrf.mxu0
      %v6162 = vadd.f32 0.0, %v6161
      %v6163 = vpop.f32.mrf.mxu0
      %v6164 = vpop.f32.mrf.mxu0
      %v6165 = vadd.f32 0.0, %v6164
      %v6166 = vpop.f32.mrf.mxu0
      %6167 = vmatprep.mubr.bf16.mxu0 0
      %6168 = vmatmul.mubr.bf16.gmra.mxu0 %v6030
      %v6169 = vpop.f32.mrf.mxu0
      %v6170 = vadd.f32 0.0, %v6169
      %v6171 = vpop.f32.mrf.mxu0
      %v6172 = vpop.f32.mrf.mxu0
      %v6173 = vadd.f32 0.0, %v6172
      %v6174 = vpop.f32.mrf.mxu0
      %6175 = vmatprep.mubr.bf16.mxu0 0
      %6176 = vmatmul.mubr.bf16.gmra.mxu0 %v6033
      %v6177 = vpop.f32.mrf.mxu0
      %v6178 = vadd.f32 0.0, %v6177
      %v6179 = vpop.f32.mrf.mxu0
      %v6180 = vpop.f32.mrf.mxu0
      %v6181 = vadd.f32 0.0, %v6180
      %v6182 = vpop.f32.mrf.mxu0
      %6183 = vmatprep.mubr.bf16.mxu0 0
      %6184 = vmatmul.mubr.bf16.gmra.mxu0 %v6036
      %v6185 = vpop.f32.mrf.mxu0
      %v6186 = vadd.f32 0.0, %v6185
      %v6187 = vpop.f32.mrf.mxu0
      %v6188 = vpop.f32.mrf.mxu0
      %v6189 = vadd.f32 0.0, %v6188
      %v6190 = vpop.f32.mrf.mxu0
      %6191 = vmatprep.mubr.bf16.mxu0 0
      %6192 = vmatmul.mubr.bf16.gmra.mxu0 %v6039
      %v6193 = vpop.f32.mrf.mxu0
      %v6194 = vadd.f32 0.0, %v6193
      %v6195 = vpop.f32.mrf.mxu0
      %v6196 = vpop.f32.mrf.mxu0
      %v6197 = vadd.f32 0.0, %v6196
      %v6198 = vpop.f32.mrf.mxu0
      %6199 = vmatprep.mubr.bf16.mxu0 0
      %6200 = vmatmul.mubr.bf16.gmra.mxu0 %v6042
      %v6201 = vpop.f32.mrf.mxu0
      %v6202 = vadd.f32 0.0, %v6201
      %v6203 = vpop.f32.mrf.mxu0
      %v6204 = vpop.f32.mrf.mxu0
      %v6205 = vadd.f32 0.0, %v6204
      %v6206 = vpop.f32.mrf.mxu0
      %6207 = vdwg.mxu0
      %v6208 = vadd.f32 %v5914, %v6082
      %v6209 = vadd.f32 %v5915, %v6085
      %v6210 = vadd.f32 %v5916, %v6090
      %v6211 = vadd.f32 %v5917, %v6093
      %v6212 = vadd.f32 %v5918, %v6098
      %v6213 = vadd.f32 %v5919, %v6101
      %v6214 = vadd.f32 %v5920, %v6106
      %v6215 = vadd.f32 %v5921, %v6109
      %v6216 = vadd.f32 %v5922, %v6114
      %v6217 = vadd.f32 %v5923, %v6117
      %v6218 = vadd.f32 %v5924, %v6122
      %v6219 = vadd.f32 %v5925, %v6125
      %v6220 = vadd.f32 %v5926, %v6130
      %v6221 = vadd.f32 %v5927, %v6133
      %v6222 = vadd.f32 %v5928, %v6138
      %v6223 = vadd.f32 %v5929, %v6141
      %v6224 = vadd.f32 %v5930, %v6146
      %v6225 = vadd.f32 %v5931, %v6149
      %v6226 = vadd.f32 %v5932, %v6154
      %v6227 = vadd.f32 %v5933, %v6157
      %v6228 = vadd.f32 %v5934, %v6162
      %v6229 = vadd.f32 %v5935, %v6165
      %v6230 = vadd.f32 %v5936, %v6170
      %v6231 = vadd.f32 %v5937, %v6173
      %v6232 = vadd.f32 %v5938, %v6178
      %v6233 = vadd.f32 %v5939, %v6181
      %v6234 = vadd.f32 %v5940, %v6186
      %v6235 = vadd.f32 %v5941, %v6189
      %v6236 = vadd.f32 %v5942, %v6194
      %v6237 = vadd.f32 %v5943, %v6197
      %v6238 = vadd.f32 %v5944, %v6202
      %v6239 = vadd.f32 %v5945, %v6205
      %v6240 = vld [vmem:[%s3090] sm:$0xff]
      %v6241 = vld [vmem:[%s3090 + $0x8] sm:$0xff]
      %v6242 = vld [vmem:[%s3090 + $0x18] sm:$0xff]
      %v6243 = vld [vmem:[%s3090 + $0x20] sm:$0xff]
      %v6244 = vld [vmem:[%s3090 + $0x30] sm:$0xff]
      %v6245 = vld [vmem:[%s3090 + $0x38] sm:$0xff]
      %v6246 = vld [vmem:[%s3090 + $0x48] sm:$0xff]
      %v6247 = vld [vmem:[%s3090 + $0x50] sm:$0xff]
      %v6248 = vld [vmem:[%s3090 + $0x60] sm:$0xff]
      %v6249 = vld [vmem:[%s3090 + $0x68] sm:$0xff]
      %v6250 = vld [vmem:[%s3090 + $0x78] sm:$0xff]
      %v6251 = vld [vmem:[%s3090 + $0x80] sm:$0xff]
      %v6252 = vld [vmem:[%s3090 + $0x90] sm:$0xff]
      %v6253 = vld [vmem:[%s3090 + $0x98] sm:$0xff]
      %v6254 = vld [vmem:[%s3090 + $0xa8] sm:$0xff]
      %v6255 = vld [vmem:[%s3090 + $0xb0] sm:$0xff]
      %v6256 = vld [vmem:[%s3090 + $0xc0] sm:$0xff]
      %v6257 = vld [vmem:[%s3090 + $0xc8] sm:$0xff]
      %v6258 = vld [vmem:[%s3090 + $0xd8] sm:$0xff]
      %v6259 = vld [vmem:[%s3090 + $0xe0] sm:$0xff]
      %v6260 = vld [vmem:[%s3090 + $0xf0] sm:$0xff]
      %v6261 = vld [vmem:[%s3090 + $0xf8] sm:$0xff]
      %v6262 = vld [vmem:[%s3090 + $0x108] sm:$0xff]
      %v6263 = vld [vmem:[%s3090 + $0x110] sm:$0xff]
      %v6264 = vld [vmem:[%s3090 + $0x120] sm:$0xff]
      %v6265 = vld [vmem:[%s3090 + $0x128] sm:$0xff]
      %v6266 = vld [vmem:[%s3090 + $0x138] sm:$0xff]
      %v6267 = vld [vmem:[%s3090 + $0x140] sm:$0xff]
      %v6268 = vld [vmem:[%s3090 + $0x150] sm:$0xff]
      %v6269 = vld [vmem:[%s3090 + $0x158] sm:$0xff]
      %v6270 = vld [vmem:[%s3090 + $0x168] sm:$0xff]
      %v6271 = vld [vmem:[%s3090 + $0x170] sm:$0xff]
      %v6272 = vpack.c.bf16 %v6241, %v6240
      %v6273 = vpack.c.bf16 %v6243, %v6242
      %v6274 = vpack.c.bf16 %v6245, %v6244
      %v6275 = vpack.c.bf16 %v6247, %v6246
      %v6276 = vpack.c.bf16 %v6249, %v6248
      %v6277 = vpack.c.bf16 %v6251, %v6250
      %v6278 = vpack.c.bf16 %v6253, %v6252
      %v6279 = vpack.c.bf16 %v6255, %v6254
      %v6280 = vpack.c.bf16 %v6257, %v6256
      %v6281 = vpack.c.bf16 %v6259, %v6258
      %v6282 = vpack.c.bf16 %v6261, %v6260
      %v6283 = vpack.c.bf16 %v6263, %v6262
      %v6284 = vpack.c.bf16 %v6265, %v6264
      %v6285 = vpack.c.bf16 %v6267, %v6266
      %v6286 = vpack.c.bf16 %v6269, %v6268
      %v6287 = vpack.c.bf16 %v6271, %v6270
      %s6288 = scalar_lea.vmem %s9, 24
      %v6289 = vld [vmem:[%s6288] sm:$0xf]
      %v6291 = vsel %vm442, %v6272, 0
      %v6294 = vsel %vm442, %v6273, 0
      %v6297 = vsel %vm442, %v6274, 0
      %v6300 = vsel %vm442, %v6275, 0
      %v6303 = vsel %vm442, %v6276, 0
      %v6306 = vsel %vm442, %v6277, 0
      %v6309 = vsel %vm442, %v6278, 0
      %v6312 = vsel %vm442, %v6279, 0
      %v6315 = vsel %vm442, %v6280, 0
      %v6318 = vsel %vm442, %v6281, 0
      %v6321 = vsel %vm442, %v6282, 0
      %v6324 = vsel %vm442, %v6283, 0
      %v6327 = vsel %vm442, %v6284, 0
      %v6330 = vsel %vm442, %v6285, 0
      %v6333 = vsel %vm442, %v6286, 0
      %v6336 = vsel %vm442, %v6287, 0
      %v6339 = vsel %vm622, %v6289, 0
      %6341 = vmatprep.subr.bf16.mxu0 0
      %6342 = vmatpush1.bf16.msra.mxu0 0
      %6343 = vmatprep.subr.bf16.mxu0 0
      %6344 = vmatpush1.bf16.msra.mxu0 0
      %6345 = vmatprep.subr.bf16.mxu0 0
      %6346 = vmatpush1.bf16.msra.mxu0 0
      %6347 = vmatprep.subr.bf16.mxu0 0
      %6348 = vmatpush1.bf16.msra.mxu0 0
      %6349 = vmatprep.subr.bf16.mxu0 0
      %6350 = vmatpush1.bf16.msra.mxu0 0
      %6351 = vmatprep.subr.bf16.mxu0 0
      %6352 = vmatpush1.bf16.msra.mxu0 0
      %6353 = vmatprep.subr.bf16.mxu0 0
      %6354 = vmatpush1.bf16.msra.mxu0 0
      %6355 = vmatprep.subr.bf16.mxu0 0
      %6356 = vmatpush1.bf16.msra.mxu0 %v6339
      %6357 = vmatprep.subr.bf16.mxu0 0
      %6358 = vmatpush2.bf16.msra.mxu0 0
      %6359 = vmatprep.subr.bf16.mxu0 0
      %6360 = vmatpush2.bf16.msra.mxu0 0
      %6361 = vmatprep.subr.bf16.mxu0 0
      %6362 = vmatpush2.bf16.msra.mxu0 0
      %6363 = vmatprep.subr.bf16.mxu0 0
      %6364 = vmatpush2.bf16.msra.mxu0 0
      %6365 = vmatprep.subr.bf16.mxu0 0
      %6366 = vmatpush2.bf16.msra.mxu0 0
      %6367 = vmatprep.subr.bf16.mxu0 0
      %6368 = vmatpush2.bf16.msra.mxu0 0
      %6369 = vmatprep.subr.bf16.mxu0 0
      %6370 = vmatpush2.bf16.msra.mxu0 0
      %6371 = vmatprep.subr.bf16.mxu0 0
      %6372 = vmatpush2.bf16.msra.mxu0 0
      %6373 = vmatprep.mubr.bf16.mxu0 0
      %6374 = vmatmul.mubr.bf16.gmra.mxu0 %v6291
      %v6375 = vpop.f32.mrf.mxu0
      %v6376 = vadd.f32 0.0, %v6375
      %v6377 = vpop.f32.mrf.mxu0
      %v6378 = vpop.f32.mrf.mxu0
      %v6379 = vadd.f32 0.0, %v6378
      %v6380 = vpop.f32.mrf.mxu0
      %6381 = vmatprep.mubr.bf16.mxu0 0
      %6382 = vmatmul.mubr.bf16.gmra.mxu0 %v6294
      %v6383 = vpop.f32.mrf.mxu0
      %v6384 = vadd.f32 0.0, %v6383
      %v6385 = vpop.f32.mrf.mxu0
      %v6386 = vpop.f32.mrf.mxu0
      %v6387 = vadd.f32 0.0, %v6386
      %v6388 = vpop.f32.mrf.mxu0
      %6389 = vmatprep.mubr.bf16.mxu0 0
      %6390 = vmatmul.mubr.bf16.gmra.mxu0 %v6297
      %v6391 = vpop.f32.mrf.mxu0
      %v6392 = vadd.f32 0.0, %v6391
      %v6393 = vpop.f32.mrf.mxu0
      %v6394 = vpop.f32.mrf.mxu0
      %v6395 = vadd.f32 0.0, %v6394
      %v6396 = vpop.f32.mrf.mxu0
      %6397 = vmatprep.mubr.bf16.mxu0 0
      %6398 = vmatmul.mubr.bf16.gmra.mxu0 %v6300
      %v6399 = vpop.f32.mrf.mxu0
      %v6400 = vadd.f32 0.0, %v6399
      %v6401 = vpop.f32.mrf.mxu0
      %v6402 = vpop.f32.mrf.mxu0
      %v6403 = vadd.f32 0.0, %v6402
      %v6404 = vpop.f32.mrf.mxu0
      %6405 = vmatprep.mubr.bf16.mxu0 0
      %6406 = vmatmul.mubr.bf16.gmra.mxu0 %v6303
      %v6407 = vpop.f32.mrf.mxu0
      %v6408 = vadd.f32 0.0, %v6407
      %v6409 = vpop.f32.mrf.mxu0
      %v6410 = vpop.f32.mrf.mxu0
      %v6411 = vadd.f32 0.0, %v6410
      %v6412 = vpop.f32.mrf.mxu0
      %6413 = vmatprep.mubr.bf16.mxu0 0
      %6414 = vmatmul.mubr.bf16.gmra.mxu0 %v6306
      %v6415 = vpop.f32.mrf.mxu0
      %v6416 = vadd.f32 0.0, %v6415
      %v6417 = vpop.f32.mrf.mxu0
      %v6418 = vpop.f32.mrf.mxu0
      %v6419 = vadd.f32 0.0, %v6418
      %v6420 = vpop.f32.mrf.mxu0
      %6421 = vmatprep.mubr.bf16.mxu0 0
      %6422 = vmatmul.mubr.bf16.gmra.mxu0 %v6309
      %v6423 = vpop.f32.mrf.mxu0
      %v6424 = vadd.f32 0.0, %v6423
      %v6425 = vpop.f32.mrf.mxu0
      %v6426 = vpop.f32.mrf.mxu0
      %v6427 = vadd.f32 0.0, %v6426
      %v6428 = vpop.f32.mrf.mxu0
      %6429 = vmatprep.mubr.bf16.mxu0 0
      %6430 = vmatmul.mubr.bf16.gmra.mxu0 %v6312
      %v6431 = vpop.f32.mrf.mxu0
      %v6432 = vadd.f32 0.0, %v6431
      %v6433 = vpop.f32.mrf.mxu0
      %v6434 = vpop.f32.mrf.mxu0
      %v6435 = vadd.f32 0.0, %v6434
      %v6436 = vpop.f32.mrf.mxu0
      %6437 = vmatprep.mubr.bf16.mxu0 0
      %6438 = vmatmul.mubr.bf16.gmra.mxu0 %v6315
      %v6439 = vpop.f32.mrf.mxu0
      %v6440 = vadd.f32 0.0, %v6439
      %v6441 = vpop.f32.mrf.mxu0
      %v6442 = vpop.f32.mrf.mxu0
      %v6443 = vadd.f32 0.0, %v6442
      %v6444 = vpop.f32.mrf.mxu0
      %6445 = vmatprep.mubr.bf16.mxu0 0
      %6446 = vmatmul.mubr.bf16.gmra.mxu0 %v6318
      %v6447 = vpop.f32.mrf.mxu0
      %v6448 = vadd.f32 0.0, %v6447
      %v6449 = vpop.f32.mrf.mxu0
      %v6450 = vpop.f32.mrf.mxu0
      %v6451 = vadd.f32 0.0, %v6450
      %v6452 = vpop.f32.mrf.mxu0
      %6453 = vmatprep.mubr.bf16.mxu0 0
      %6454 = vmatmul.mubr.bf16.gmra.mxu0 %v6321
      %v6455 = vpop.f32.mrf.mxu0
      %v6456 = vadd.f32 0.0, %v6455
      %v6457 = vpop.f32.mrf.mxu0
      %v6458 = vpop.f32.mrf.mxu0
      %v6459 = vadd.f32 0.0, %v6458
      %v6460 = vpop.f32.mrf.mxu0
      %6461 = vmatprep.mubr.bf16.mxu0 0
      %6462 = vmatmul.mubr.bf16.gmra.mxu0 %v6324
      %v6463 = vpop.f32.mrf.mxu0
      %v6464 = vadd.f32 0.0, %v6463
      %v6465 = vpop.f32.mrf.mxu0
      %v6466 = vpop.f32.mrf.mxu0
      %v6467 = vadd.f32 0.0, %v6466
      %v6468 = vpop.f32.mrf.mxu0
      %6469 = vmatprep.mubr.bf16.mxu0 0
      %6470 = vmatmul.mubr.bf16.gmra.mxu0 %v6327
      %v6471 = vpop.f32.mrf.mxu0
      %v6472 = vadd.f32 0.0, %v6471
      %v6473 = vpop.f32.mrf.mxu0
      %v6474 = vpop.f32.mrf.mxu0
      %v6475 = vadd.f32 0.0, %v6474
      %v6476 = vpop.f32.mrf.mxu0
      %6477 = vmatprep.mubr.bf16.mxu0 0
      %6478 = vmatmul.mubr.bf16.gmra.mxu0 %v6330
      %v6479 = vpop.f32.mrf.mxu0
      %v6480 = vadd.f32 0.0, %v6479
      %v6481 = vpop.f32.mrf.mxu0
      %v6482 = vpop.f32.mrf.mxu0
      %v6483 = vadd.f32 0.0, %v6482
      %v6484 = vpop.f32.mrf.mxu0
      %6485 = vmatprep.mubr.bf16.mxu0 0
      %6486 = vmatmul.mubr.bf16.gmra.mxu0 %v6333
      %v6487 = vpop.f32.mrf.mxu0
      %v6488 = vadd.f32 0.0, %v6487
      %v6489 = vpop.f32.mrf.mxu0
      %v6490 = vpop.f32.mrf.mxu0
      %v6491 = vadd.f32 0.0, %v6490
      %v6492 = vpop.f32.mrf.mxu0
      %6493 = vmatprep.mubr.bf16.mxu0 0
      %6494 = vmatmul.mubr.bf16.gmra.mxu0 %v6336
      %v6495 = vpop.f32.mrf.mxu0
      %v6496 = vadd.f32 0.0, %v6495
      %v6497 = vpop.f32.mrf.mxu0
      %v6498 = vpop.f32.mrf.mxu0
      %v6499 = vadd.f32 0.0, %v6498
      %v6500 = vpop.f32.mrf.mxu0
      %6501 = vdwg.mxu0
      %v6502 = vadd.f32 %v6208, %v6376
      %v6503 = vadd.f32 %v6209, %v6379
      %v6504 = vadd.f32 %v6210, %v6384
      %v6505 = vadd.f32 %v6211, %v6387
      %v6506 = vadd.f32 %v6212, %v6392
      %v6507 = vadd.f32 %v6213, %v6395
      %v6508 = vadd.f32 %v6214, %v6400
      %v6509 = vadd.f32 %v6215, %v6403
      %v6510 = vadd.f32 %v6216, %v6408
      %v6511 = vadd.f32 %v6217, %v6411
      %v6512 = vadd.f32 %v6218, %v6416
      %v6513 = vadd.f32 %v6219, %v6419
      %v6514 = vadd.f32 %v6220, %v6424
      %v6515 = vadd.f32 %v6221, %v6427
      %v6516 = vadd.f32 %v6222, %v6432
      %v6517 = vadd.f32 %v6223, %v6435
      %v6518 = vadd.f32 %v6224, %v6440
      %v6519 = vadd.f32 %v6225, %v6443
      %v6520 = vadd.f32 %v6226, %v6448
      %v6521 = vadd.f32 %v6227, %v6451
      %v6522 = vadd.f32 %v6228, %v6456
      %v6523 = vadd.f32 %v6229, %v6459
      %v6524 = vadd.f32 %v6230, %v6464
      %v6525 = vadd.f32 %v6231, %v6467
      %v6526 = vadd.f32 %v6232, %v6472
      %v6527 = vadd.f32 %v6233, %v6475
      %v6528 = vadd.f32 %v6234, %v6480
      %v6529 = vadd.f32 %v6235, %v6483
      %v6530 = vadd.f32 %v6236, %v6488
      %v6531 = vadd.f32 %v6237, %v6491
      %v6532 = vadd.f32 %v6238, %v6496
      %v6533 = vadd.f32 %v6239, %v6499
      %v6534 = vld [vmem:[%s3090 + $0x1] sm:$0xff]
      %v6535 = vld [vmem:[%s3090 + $0x9] sm:$0xff]
      %v6536 = vld [vmem:[%s3090 + $0x19] sm:$0xff]
      %v6537 = vld [vmem:[%s3090 + $0x21] sm:$0xff]
      %v6538 = vld [vmem:[%s3090 + $0x31] sm:$0xff]
      %v6539 = vld [vmem:[%s3090 + $0x39] sm:$0xff]
      %v6540 = vld [vmem:[%s3090 + $0x49] sm:$0xff]
      %v6541 = vld [vmem:[%s3090 + $0x51] sm:$0xff]
      %v6542 = vld [vmem:[%s3090 + $0x61] sm:$0xff]
      %v6543 = vld [vmem:[%s3090 + $0x69] sm:$0xff]
      %v6544 = vld [vmem:[%s3090 + $0x79] sm:$0xff]
      %v6545 = vld [vmem:[%s3090 + $0x81] sm:$0xff]
      %v6546 = vld [vmem:[%s3090 + $0x91] sm:$0xff]
      %v6547 = vld [vmem:[%s3090 + $0x99] sm:$0xff]
      %v6548 = vld [vmem:[%s3090 + $0xa9] sm:$0xff]
      %v6549 = vld [vmem:[%s3090 + $0xb1] sm:$0xff]
      %v6550 = vld [vmem:[%s3090 + $0xc1] sm:$0xff]
      %v6551 = vld [vmem:[%s3090 + $0xc9] sm:$0xff]
      %v6552 = vld [vmem:[%s3090 + $0xd9] sm:$0xff]
      %v6553 = vld [vmem:[%s3090 + $0xe1] sm:$0xff]
      %v6554 = vld [vmem:[%s3090 + $0xf1] sm:$0xff]
      %v6555 = vld [vmem:[%s3090 + $0xf9] sm:$0xff]
      %v6556 = vld [vmem:[%s3090 + $0x109] sm:$0xff]
      %v6557 = vld [vmem:[%s3090 + $0x111] sm:$0xff]
      %v6558 = vld [vmem:[%s3090 + $0x121] sm:$0xff]
      %v6559 = vld [vmem:[%s3090 + $0x129] sm:$0xff]
      %v6560 = vld [vmem:[%s3090 + $0x139] sm:$0xff]
      %v6561 = vld [vmem:[%s3090 + $0x141] sm:$0xff]
      %v6562 = vld [vmem:[%s3090 + $0x151] sm:$0xff]
      %v6563 = vld [vmem:[%s3090 + $0x159] sm:$0xff]
      %v6564 = vld [vmem:[%s3090 + $0x169] sm:$0xff]
      %v6565 = vld [vmem:[%s3090 + $0x171] sm:$0xff]
      %v6566 = vpack.c.bf16 %v6535, %v6534
      %v6567 = vpack.c.bf16 %v6537, %v6536
      %v6568 = vpack.c.bf16 %v6539, %v6538
      %v6569 = vpack.c.bf16 %v6541, %v6540
      %v6570 = vpack.c.bf16 %v6543, %v6542
      %v6571 = vpack.c.bf16 %v6545, %v6544
      %v6572 = vpack.c.bf16 %v6547, %v6546
      %v6573 = vpack.c.bf16 %v6549, %v6548
      %v6574 = vpack.c.bf16 %v6551, %v6550
      %v6575 = vpack.c.bf16 %v6553, %v6552
      %v6576 = vpack.c.bf16 %v6555, %v6554
      %v6577 = vpack.c.bf16 %v6557, %v6556
      %v6578 = vpack.c.bf16 %v6559, %v6558
      %v6579 = vpack.c.bf16 %v6561, %v6560
      %v6580 = vpack.c.bf16 %v6563, %v6562
      %v6581 = vpack.c.bf16 %v6565, %v6564
      %s6582 = scalar_lea.vmem %s9, 28
      %v6583 = vld [vmem:[%s6582] sm:$0xf]
      %v6585 = vsel %vm442, %v6566, 0
      %v6588 = vsel %vm442, %v6567, 0
      %v6591 = vsel %vm442, %v6568, 0
      %v6594 = vsel %vm442, %v6569, 0
      %v6597 = vsel %vm442, %v6570, 0
      %v6600 = vsel %vm442, %v6571, 0
      %v6603 = vsel %vm442, %v6572, 0
      %v6606 = vsel %vm442, %v6573, 0
      %v6609 = vsel %vm442, %v6574, 0
      %v6612 = vsel %vm442, %v6575, 0
      %v6615 = vsel %vm442, %v6576, 0
      %v6618 = vsel %vm442, %v6577, 0
      %v6621 = vsel %vm442, %v6578, 0
      %v6624 = vsel %vm442, %v6579, 0
      %v6627 = vsel %vm442, %v6580, 0
      %v6630 = vsel %vm442, %v6581, 0
      %v6633 = vsel %vm622, %v6583, 0
      %6635 = vmatprep.subr.bf16.mxu0 0
      %6636 = vmatpush1.bf16.msra.mxu0 0
      %6637 = vmatprep.subr.bf16.mxu0 0
      %6638 = vmatpush1.bf16.msra.mxu0 0
      %6639 = vmatprep.subr.bf16.mxu0 0
      %6640 = vmatpush1.bf16.msra.mxu0 0
      %6641 = vmatprep.subr.bf16.mxu0 0
      %6642 = vmatpush1.bf16.msra.mxu0 0
      %6643 = vmatprep.subr.bf16.mxu0 0
      %6644 = vmatpush1.bf16.msra.mxu0 0
      %6645 = vmatprep.subr.bf16.mxu0 0
      %6646 = vmatpush1.bf16.msra.mxu0 0
      %6647 = vmatprep.subr.bf16.mxu0 0
      %6648 = vmatpush1.bf16.msra.mxu0 0
      %6649 = vmatprep.subr.bf16.mxu0 0
      %6650 = vmatpush1.bf16.msra.mxu0 %v6633
      %6651 = vmatprep.subr.bf16.mxu0 0
      %6652 = vmatpush2.bf16.msra.mxu0 0
      %6653 = vmatprep.subr.bf16.mxu0 0
      %6654 = vmatpush2.bf16.msra.mxu0 0
      %6655 = vmatprep.subr.bf16.mxu0 0
      %6656 = vmatpush2.bf16.msra.mxu0 0
      %6657 = vmatprep.subr.bf16.mxu0 0
      %6658 = vmatpush2.bf16.msra.mxu0 0
      %6659 = vmatprep.subr.bf16.mxu0 0
      %6660 = vmatpush2.bf16.msra.mxu0 0
      %6661 = vmatprep.subr.bf16.mxu0 0
      %6662 = vmatpush2.bf16.msra.mxu0 0
      %6663 = vmatprep.subr.bf16.mxu0 0
      %6664 = vmatpush2.bf16.msra.mxu0 0
      %6665 = vmatprep.subr.bf16.mxu0 0
      %6666 = vmatpush2.bf16.msra.mxu0 0
      %6667 = vmatprep.mubr.bf16.mxu0 0
      %6668 = vmatmul.mubr.bf16.gmra.mxu0 %v6585
      %v6669 = vpop.f32.mrf.mxu0
      %v6670 = vadd.f32 0.0, %v6669
      %v6671 = vpop.f32.mrf.mxu0
      %v6672 = vpop.f32.mrf.mxu0
      %v6673 = vadd.f32 0.0, %v6672
      %v6674 = vpop.f32.mrf.mxu0
      %6675 = vmatprep.mubr.bf16.mxu0 0
      %6676 = vmatmul.mubr.bf16.gmra.mxu0 %v6588
      %v6677 = vpop.f32.mrf.mxu0
      %v6678 = vadd.f32 0.0, %v6677
      %v6679 = vpop.f32.mrf.mxu0
      %v6680 = vpop.f32.mrf.mxu0
      %v6681 = vadd.f32 0.0, %v6680
      %v6682 = vpop.f32.mrf.mxu0
      %6683 = vmatprep.mubr.bf16.mxu0 0
      %6684 = vmatmul.mubr.bf16.gmra.mxu0 %v6591
      %v6685 = vpop.f32.mrf.mxu0
      %v6686 = vadd.f32 0.0, %v6685
      %v6687 = vpop.f32.mrf.mxu0
      %v6688 = vpop.f32.mrf.mxu0
      %v6689 = vadd.f32 0.0, %v6688
      %v6690 = vpop.f32.mrf.mxu0
      %6691 = vmatprep.mubr.bf16.mxu0 0
      %6692 = vmatmul.mubr.bf16.gmra.mxu0 %v6594
      %v6693 = vpop.f32.mrf.mxu0
      %v6694 = vadd.f32 0.0, %v6693
      %v6695 = vpop.f32.mrf.mxu0
      %v6696 = vpop.f32.mrf.mxu0
      %v6697 = vadd.f32 0.0, %v6696
      %v6698 = vpop.f32.mrf.mxu0
      %6699 = vmatprep.mubr.bf16.mxu0 0
      %6700 = vmatmul.mubr.bf16.gmra.mxu0 %v6597
      %v6701 = vpop.f32.mrf.mxu0
      %v6702 = vadd.f32 0.0, %v6701
      %v6703 = vpop.f32.mrf.mxu0
      %v6704 = vpop.f32.mrf.mxu0
      %v6705 = vadd.f32 0.0, %v6704
      %v6706 = vpop.f32.mrf.mxu0
      %6707 = vmatprep.mubr.bf16.mxu0 0
      %6708 = vmatmul.mubr.bf16.gmra.mxu0 %v6600
      %v6709 = vpop.f32.mrf.mxu0
      %v6710 = vadd.f32 0.0, %v6709
      %v6711 = vpop.f32.mrf.mxu0
      %v6712 = vpop.f32.mrf.mxu0
      %v6713 = vadd.f32 0.0, %v6712
      %v6714 = vpop.f32.mrf.mxu0
      %6715 = vmatprep.mubr.bf16.mxu0 0
      %6716 = vmatmul.mubr.bf16.gmra.mxu0 %v6603
      %v6717 = vpop.f32.mrf.mxu0
      %v6718 = vadd.f32 0.0, %v6717
      %v6719 = vpop.f32.mrf.mxu0
      %v6720 = vpop.f32.mrf.mxu0
      %v6721 = vadd.f32 0.0, %v6720
      %v6722 = vpop.f32.mrf.mxu0
      %6723 = vmatprep.mubr.bf16.mxu0 0
      %6724 = vmatmul.mubr.bf16.gmra.mxu0 %v6606
      %v6725 = vpop.f32.mrf.mxu0
      %v6726 = vadd.f32 0.0, %v6725
      %v6727 = vpop.f32.mrf.mxu0
      %v6728 = vpop.f32.mrf.mxu0
      %v6729 = vadd.f32 0.0, %v6728
      %v6730 = vpop.f32.mrf.mxu0
      %6731 = vmatprep.mubr.bf16.mxu0 0
      %6732 = vmatmul.mubr.bf16.gmra.mxu0 %v6609
      %v6733 = vpop.f32.mrf.mxu0
      %v6734 = vadd.f32 0.0, %v6733
      %v6735 = vpop.f32.mrf.mxu0
      %v6736 = vpop.f32.mrf.mxu0
      %v6737 = vadd.f32 0.0, %v6736
      %v6738 = vpop.f32.mrf.mxu0
      %6739 = vmatprep.mubr.bf16.mxu0 0
      %6740 = vmatmul.mubr.bf16.gmra.mxu0 %v6612
      %v6741 = vpop.f32.mrf.mxu0
      %v6742 = vadd.f32 0.0, %v6741
      %v6743 = vpop.f32.mrf.mxu0
      %v6744 = vpop.f32.mrf.mxu0
      %v6745 = vadd.f32 0.0, %v6744
      %v6746 = vpop.f32.mrf.mxu0
      %6747 = vmatprep.mubr.bf16.mxu0 0
      %6748 = vmatmul.mubr.bf16.gmra.mxu0 %v6615
      %v6749 = vpop.f32.mrf.mxu0
      %v6750 = vadd.f32 0.0, %v6749
      %v6751 = vpop.f32.mrf.mxu0
      %v6752 = vpop.f32.mrf.mxu0
      %v6753 = vadd.f32 0.0, %v6752
      %v6754 = vpop.f32.mrf.mxu0
      %6755 = vmatprep.mubr.bf16.mxu0 0
      %6756 = vmatmul.mubr.bf16.gmra.mxu0 %v6618
      %v6757 = vpop.f32.mrf.mxu0
      %v6758 = vadd.f32 0.0, %v6757
      %v6759 = vpop.f32.mrf.mxu0
      %v6760 = vpop.f32.mrf.mxu0
      %v6761 = vadd.f32 0.0, %v6760
      %v6762 = vpop.f32.mrf.mxu0
      %6763 = vmatprep.mubr.bf16.mxu0 0
      %6764 = vmatmul.mubr.bf16.gmra.mxu0 %v6621
      %v6765 = vpop.f32.mrf.mxu0
      %v6766 = vadd.f32 0.0, %v6765
      %v6767 = vpop.f32.mrf.mxu0
      %v6768 = vpop.f32.mrf.mxu0
      %v6769 = vadd.f32 0.0, %v6768
      %v6770 = vpop.f32.mrf.mxu0
      %6771 = vmatprep.mubr.bf16.mxu0 0
      %6772 = vmatmul.mubr.bf16.gmra.mxu0 %v6624
      %v6773 = vpop.f32.mrf.mxu0
      %v6774 = vadd.f32 0.0, %v6773
      %v6775 = vpop.f32.mrf.mxu0
      %v6776 = vpop.f32.mrf.mxu0
      %v6777 = vadd.f32 0.0, %v6776
      %v6778 = vpop.f32.mrf.mxu0
      %6779 = vmatprep.mubr.bf16.mxu0 0
      %6780 = vmatmul.mubr.bf16.gmra.mxu0 %v6627
      %v6781 = vpop.f32.mrf.mxu0
      %v6782 = vadd.f32 0.0, %v6781
      %v6783 = vpop.f32.mrf.mxu0
      %v6784 = vpop.f32.mrf.mxu0
      %v6785 = vadd.f32 0.0, %v6784
      %v6786 = vpop.f32.mrf.mxu0
      %6787 = vmatprep.mubr.bf16.mxu0 0
      %6788 = vmatmul.mubr.bf16.gmra.mxu0 %v6630
      %v6789 = vpop.f32.mrf.mxu0
      %v6790 = vadd.f32 0.0, %v6789
      %v6791 = vpop.f32.mrf.mxu0
      %v6792 = vpop.f32.mrf.mxu0
      %v6793 = vadd.f32 0.0, %v6792
      %v6794 = vpop.f32.mrf.mxu0
      %6795 = vdwg.mxu0
      %v6796 = vadd.f32 %v6502, %v6670
      %v6797 = vadd.f32 %v6503, %v6673
      %v6798 = vadd.f32 %v6504, %v6678
      %v6799 = vadd.f32 %v6505, %v6681
      %v6800 = vadd.f32 %v6506, %v6686
      %v6801 = vadd.f32 %v6507, %v6689
      %v6802 = vadd.f32 %v6508, %v6694
      %v6803 = vadd.f32 %v6509, %v6697
      %v6804 = vadd.f32 %v6510, %v6702
      %v6805 = vadd.f32 %v6511, %v6705
      %v6806 = vadd.f32 %v6512, %v6710
      %v6807 = vadd.f32 %v6513, %v6713
      %v6808 = vadd.f32 %v6514, %v6718
      %v6809 = vadd.f32 %v6515, %v6721
      %v6810 = vadd.f32 %v6516, %v6726
      %v6811 = vadd.f32 %v6517, %v6729
      %v6812 = vadd.f32 %v6518, %v6734
      %v6813 = vadd.f32 %v6519, %v6737
      %v6814 = vadd.f32 %v6520, %v6742
      %v6815 = vadd.f32 %v6521, %v6745
      %v6816 = vadd.f32 %v6522, %v6750
      %v6817 = vadd.f32 %v6523, %v6753
      %v6818 = vadd.f32 %v6524, %v6758
      %v6819 = vadd.f32 %v6525, %v6761
      %v6820 = vadd.f32 %v6526, %v6766
      %v6821 = vadd.f32 %v6527, %v6769
      %v6822 = vadd.f32 %v6528, %v6774
      %v6823 = vadd.f32 %v6529, %v6777
      %v6824 = vadd.f32 %v6530, %v6782
      %v6825 = vadd.f32 %v6531, %v6785
      %v6826 = vadd.f32 %v6532, %v6790
      %v6827 = vadd.f32 %v6533, %v6793
      %v6828 = vld [vmem:[%s3090 + $0x2] sm:$0xff]
      %v6829 = vld [vmem:[%s3090 + $0xa] sm:$0xff]
      %v6830 = vld [vmem:[%s3090 + $0x1a] sm:$0xff]
      %v6831 = vld [vmem:[%s3090 + $0x22] sm:$0xff]
      %v6832 = vld [vmem:[%s3090 + $0x32] sm:$0xff]
      %v6833 = vld [vmem:[%s3090 + $0x3a] sm:$0xff]
      %v6834 = vld [vmem:[%s3090 + $0x4a] sm:$0xff]
      %v6835 = vld [vmem:[%s3090 + $0x52] sm:$0xff]
      %v6836 = vld [vmem:[%s3090 + $0x62] sm:$0xff]
      %v6837 = vld [vmem:[%s3090 + $0x6a] sm:$0xff]
      %v6838 = vld [vmem:[%s3090 + $0x7a] sm:$0xff]
      %v6839 = vld [vmem:[%s3090 + $0x82] sm:$0xff]
      %v6840 = vld [vmem:[%s3090 + $0x92] sm:$0xff]
      %v6841 = vld [vmem:[%s3090 + $0x9a] sm:$0xff]
      %v6842 = vld [vmem:[%s3090 + $0xaa] sm:$0xff]
      %v6843 = vld [vmem:[%s3090 + $0xb2] sm:$0xff]
      %v6844 = vld [vmem:[%s3090 + $0xc2] sm:$0xff]
      %v6845 = vld [vmem:[%s3090 + $0xca] sm:$0xff]
      %v6846 = vld [vmem:[%s3090 + $0xda] sm:$0xff]
      %v6847 = vld [vmem:[%s3090 + $0xe2] sm:$0xff]
      %v6848 = vld [vmem:[%s3090 + $0xf2] sm:$0xff]
      %v6849 = vld [vmem:[%s3090 + $0xfa] sm:$0xff]
      %v6850 = vld [vmem:[%s3090 + $0x10a] sm:$0xff]
      %v6851 = vld [vmem:[%s3090 + $0x112] sm:$0xff]
      %v6852 = vld [vmem:[%s3090 + $0x122] sm:$0xff]
      %v6853 = vld [vmem:[%s3090 + $0x12a] sm:$0xff]
      %v6854 = vld [vmem:[%s3090 + $0x13a] sm:$0xff]
      %v6855 = vld [vmem:[%s3090 + $0x142] sm:$0xff]
      %v6856 = vld [vmem:[%s3090 + $0x152] sm:$0xff]
      %v6857 = vld [vmem:[%s3090 + $0x15a] sm:$0xff]
      %v6858 = vld [vmem:[%s3090 + $0x16a] sm:$0xff]
      %v6859 = vld [vmem:[%s3090 + $0x172] sm:$0xff]
      %v6860 = vpack.c.bf16 %v6829, %v6828
      %v6861 = vpack.c.bf16 %v6831, %v6830
      %v6862 = vpack.c.bf16 %v6833, %v6832
      %v6863 = vpack.c.bf16 %v6835, %v6834
      %v6864 = vpack.c.bf16 %v6837, %v6836
      %v6865 = vpack.c.bf16 %v6839, %v6838
      %v6866 = vpack.c.bf16 %v6841, %v6840
      %v6867 = vpack.c.bf16 %v6843, %v6842
      %v6868 = vpack.c.bf16 %v6845, %v6844
      %v6869 = vpack.c.bf16 %v6847, %v6846
      %v6870 = vpack.c.bf16 %v6849, %v6848
      %v6871 = vpack.c.bf16 %v6851, %v6850
      %v6872 = vpack.c.bf16 %v6853, %v6852
      %v6873 = vpack.c.bf16 %v6855, %v6854
      %v6874 = vpack.c.bf16 %v6857, %v6856
      %v6875 = vpack.c.bf16 %v6859, %v6858
      %s6876 = scalar_lea.vmem %s9, 32
      %v6877 = vld [vmem:[%s6876] sm:$0xf]
      %v6879 = vsel %vm442, %v6860, 0
      %v6882 = vsel %vm442, %v6861, 0
      %v6885 = vsel %vm442, %v6862, 0
      %v6888 = vsel %vm442, %v6863, 0
      %v6891 = vsel %vm442, %v6864, 0
      %v6894 = vsel %vm442, %v6865, 0
      %v6897 = vsel %vm442, %v6866, 0
      %v6900 = vsel %vm442, %v6867, 0
      %v6903 = vsel %vm442, %v6868, 0
      %v6906 = vsel %vm442, %v6869, 0
      %v6909 = vsel %vm442, %v6870, 0
      %v6912 = vsel %vm442, %v6871, 0
      %v6915 = vsel %vm442, %v6872, 0
      %v6918 = vsel %vm442, %v6873, 0
      %v6921 = vsel %vm442, %v6874, 0
      %v6924 = vsel %vm442, %v6875, 0
      %v6927 = vsel %vm622, %v6877, 0
      %6929 = vmatprep.subr.bf16.mxu0 0
      %6930 = vmatpush1.bf16.msra.mxu0 0
      %6931 = vmatprep.subr.bf16.mxu0 0
      %6932 = vmatpush1.bf16.msra.mxu0 0
      %6933 = vmatprep.subr.bf16.mxu0 0
      %6934 = vmatpush1.bf16.msra.mxu0 0
      %6935 = vmatprep.subr.bf16.mxu0 0
      %6936 = vmatpush1.bf16.msra.mxu0 0
      %6937 = vmatprep.subr.bf16.mxu0 0
      %6938 = vmatpush1.bf16.msra.mxu0 0
      %6939 = vmatprep.subr.bf16.mxu0 0
      %6940 = vmatpush1.bf16.msra.mxu0 0
      %6941 = vmatprep.subr.bf16.mxu0 0
      %6942 = vmatpush1.bf16.msra.mxu0 0
      %6943 = vmatprep.subr.bf16.mxu0 0
      %6944 = vmatpush1.bf16.msra.mxu0 %v6927
      %6945 = vmatprep.subr.bf16.mxu0 0
      %6946 = vmatpush2.bf16.msra.mxu0 0
      %6947 = vmatprep.subr.bf16.mxu0 0
      %6948 = vmatpush2.bf16.msra.mxu0 0
      %6949 = vmatprep.subr.bf16.mxu0 0
      %6950 = vmatpush2.bf16.msra.mxu0 0
      %6951 = vmatprep.subr.bf16.mxu0 0
      %6952 = vmatpush2.bf16.msra.mxu0 0
      %6953 = vmatprep.subr.bf16.mxu0 0
      %6954 = vmatpush2.bf16.msra.mxu0 0
      %6955 = vmatprep.subr.bf16.mxu0 0
      %6956 = vmatpush2.bf16.msra.mxu0 0
      %6957 = vmatprep.subr.bf16.mxu0 0
      %6958 = vmatpush2.bf16.msra.mxu0 0
      %6959 = vmatprep.subr.bf16.mxu0 0
      %6960 = vmatpush2.bf16.msra.mxu0 0
      %6961 = vmatprep.mubr.bf16.mxu0 0
      %6962 = vmatmul.mubr.bf16.gmra.mxu0 %v6879
      %v6963 = vpop.f32.mrf.mxu0
      %v6964 = vadd.f32 0.0, %v6963
      %v6965 = vpop.f32.mrf.mxu0
      %v6966 = vpop.f32.mrf.mxu0
      %v6967 = vadd.f32 0.0, %v6966
      %v6968 = vpop.f32.mrf.mxu0
      %6969 = vmatprep.mubr.bf16.mxu0 0
      %6970 = vmatmul.mubr.bf16.gmra.mxu0 %v6882
      %v6971 = vpop.f32.mrf.mxu0
      %v6972 = vadd.f32 0.0, %v6971
      %v6973 = vpop.f32.mrf.mxu0
      %v6974 = vpop.f32.mrf.mxu0
      %v6975 = vadd.f32 0.0, %v6974
      %v6976 = vpop.f32.mrf.mxu0
      %6977 = vmatprep.mubr.bf16.mxu0 0
      %6978 = vmatmul.mubr.bf16.gmra.mxu0 %v6885
      %v6979 = vpop.f32.mrf.mxu0
      %v6980 = vadd.f32 0.0, %v6979
      %v6981 = vpop.f32.mrf.mxu0
      %v6982 = vpop.f32.mrf.mxu0
      %v6983 = vadd.f32 0.0, %v6982
      %v6984 = vpop.f32.mrf.mxu0
      %6985 = vmatprep.mubr.bf16.mxu0 0
      %6986 = vmatmul.mubr.bf16.gmra.mxu0 %v6888
      %v6987 = vpop.f32.mrf.mxu0
      %v6988 = vadd.f32 0.0, %v6987
      %v6989 = vpop.f32.mrf.mxu0
      %v6990 = vpop.f32.mrf.mxu0
      %v6991 = vadd.f32 0.0, %v6990
      %v6992 = vpop.f32.mrf.mxu0
      %6993 = vmatprep.mubr.bf16.mxu0 0
      %6994 = vmatmul.mubr.bf16.gmra.mxu0 %v6891
      %v6995 = vpop.f32.mrf.mxu0
      %v6996 = vadd.f32 0.0, %v6995
      %v6997 = vpop.f32.mrf.mxu0
      %v6998 = vpop.f32.mrf.mxu0
      %v6999 = vadd.f32 0.0, %v6998
      %v7000 = vpop.f32.mrf.mxu0
      %7001 = vmatprep.mubr.bf16.mxu0 0
      %7002 = vmatmul.mubr.bf16.gmra.mxu0 %v6894
      %v7003 = vpop.f32.mrf.mxu0
      %v7004 = vadd.f32 0.0, %v7003
      %v7005 = vpop.f32.mrf.mxu0
      %v7006 = vpop.f32.mrf.mxu0
      %v7007 = vadd.f32 0.0, %v7006
      %v7008 = vpop.f32.mrf.mxu0
      %7009 = vmatprep.mubr.bf16.mxu0 0
      %7010 = vmatmul.mubr.bf16.gmra.mxu0 %v6897
      %v7011 = vpop.f32.mrf.mxu0
      %v7012 = vadd.f32 0.0, %v7011
      %v7013 = vpop.f32.mrf.mxu0
      %v7014 = vpop.f32.mrf.mxu0
      %v7015 = vadd.f32 0.0, %v7014
      %v7016 = vpop.f32.mrf.mxu0
      %7017 = vmatprep.mubr.bf16.mxu0 0
      %7018 = vmatmul.mubr.bf16.gmra.mxu0 %v6900
      %v7019 = vpop.f32.mrf.mxu0
      %v7020 = vadd.f32 0.0, %v7019
      %v7021 = vpop.f32.mrf.mxu0
      %v7022 = vpop.f32.mrf.mxu0
      %v7023 = vadd.f32 0.0, %v7022
      %v7024 = vpop.f32.mrf.mxu0
      %7025 = vmatprep.mubr.bf16.mxu0 0
      %7026 = vmatmul.mubr.bf16.gmra.mxu0 %v6903
      %v7027 = vpop.f32.mrf.mxu0
      %v7028 = vadd.f32 0.0, %v7027
      %v7029 = vpop.f32.mrf.mxu0
      %v7030 = vpop.f32.mrf.mxu0
      %v7031 = vadd.f32 0.0, %v7030
      %v7032 = vpop.f32.mrf.mxu0
      %7033 = vmatprep.mubr.bf16.mxu0 0
      %7034 = vmatmul.mubr.bf16.gmra.mxu0 %v6906
      %v7035 = vpop.f32.mrf.mxu0
      %v7036 = vadd.f32 0.0, %v7035
      %v7037 = vpop.f32.mrf.mxu0
      %v7038 = vpop.f32.mrf.mxu0
      %v7039 = vadd.f32 0.0, %v7038
      %v7040 = vpop.f32.mrf.mxu0
      %7041 = vmatprep.mubr.bf16.mxu0 0
      %7042 = vmatmul.mubr.bf16.gmra.mxu0 %v6909
      %v7043 = vpop.f32.mrf.mxu0
      %v7044 = vadd.f32 0.0, %v7043
      %v7045 = vpop.f32.mrf.mxu0
      %v7046 = vpop.f32.mrf.mxu0
      %v7047 = vadd.f32 0.0, %v7046
      %v7048 = vpop.f32.mrf.mxu0
      %7049 = vmatprep.mubr.bf16.mxu0 0
      %7050 = vmatmul.mubr.bf16.gmra.mxu0 %v6912
      %v7051 = vpop.f32.mrf.mxu0
      %v7052 = vadd.f32 0.0, %v7051
      %v7053 = vpop.f32.mrf.mxu0
      %v7054 = vpop.f32.mrf.mxu0
      %v7055 = vadd.f32 0.0, %v7054
      %v7056 = vpop.f32.mrf.mxu0
      %7057 = vmatprep.mubr.bf16.mxu0 0
      %7058 = vmatmul.mubr.bf16.gmra.mxu0 %v6915
      %v7059 = vpop.f32.mrf.mxu0
      %v7060 = vadd.f32 0.0, %v7059
      %v7061 = vpop.f32.mrf.mxu0
      %v7062 = vpop.f32.mrf.mxu0
      %v7063 = vadd.f32 0.0, %v7062
      %v7064 = vpop.f32.mrf.mxu0
      %7065 = vmatprep.mubr.bf16.mxu0 0
      %7066 = vmatmul.mubr.bf16.gmra.mxu0 %v6918
      %v7067 = vpop.f32.mrf.mxu0
      %v7068 = vadd.f32 0.0, %v7067
      %v7069 = vpop.f32.mrf.mxu0
      %v7070 = vpop.f32.mrf.mxu0
      %v7071 = vadd.f32 0.0, %v7070
      %v7072 = vpop.f32.mrf.mxu0
      %7073 = vmatprep.mubr.bf16.mxu0 0
      %7074 = vmatmul.mubr.bf16.gmra.mxu0 %v6921
      %v7075 = vpop.f32.mrf.mxu0
      %v7076 = vadd.f32 0.0, %v7075
      %v7077 = vpop.f32.mrf.mxu0
      %v7078 = vpop.f32.mrf.mxu0
      %v7079 = vadd.f32 0.0, %v7078
      %v7080 = vpop.f32.mrf.mxu0
      %7081 = vmatprep.mubr.bf16.mxu0 0
      %7082 = vmatmul.mubr.bf16.gmra.mxu0 %v6924
      %v7083 = vpop.f32.mrf.mxu0
      %v7084 = vadd.f32 0.0, %v7083
      %v7085 = vpop.f32.mrf.mxu0
      %v7086 = vpop.f32.mrf.mxu0
      %v7087 = vadd.f32 0.0, %v7086
      %v7088 = vpop.f32.mrf.mxu0
      %7089 = vdwg.mxu0
      %v7090 = vadd.f32 %v6796, %v6964
      %v7091 = vadd.f32 %v6797, %v6967
      %v7092 = vadd.f32 %v6798, %v6972
      %v7093 = vadd.f32 %v6799, %v6975
      %v7094 = vadd.f32 %v6800, %v6980
      %v7095 = vadd.f32 %v6801, %v6983
      %v7096 = vadd.f32 %v6802, %v6988
      %v7097 = vadd.f32 %v6803, %v6991
      %v7098 = vadd.f32 %v6804, %v6996
      %v7099 = vadd.f32 %v6805, %v6999
      %v7100 = vadd.f32 %v6806, %v7004
      %v7101 = vadd.f32 %v6807, %v7007
      %v7102 = vadd.f32 %v6808, %v7012
      %v7103 = vadd.f32 %v6809, %v7015
      %v7104 = vadd.f32 %v6810, %v7020
      %v7105 = vadd.f32 %v6811, %v7023
      %v7106 = vadd.f32 %v6812, %v7028
      %v7107 = vadd.f32 %v6813, %v7031
      %v7108 = vadd.f32 %v6814, %v7036
      %v7109 = vadd.f32 %v6815, %v7039
      %v7110 = vadd.f32 %v6816, %v7044
      %v7111 = vadd.f32 %v6817, %v7047
      %v7112 = vadd.f32 %v6818, %v7052
      %v7113 = vadd.f32 %v6819, %v7055
      %v7114 = vadd.f32 %v6820, %v7060
      %v7115 = vadd.f32 %v6821, %v7063
      %v7116 = vadd.f32 %v6822, %v7068
      %v7117 = vadd.f32 %v6823, %v7071
      %v7118 = vadd.f32 %v6824, %v7076
      %v7119 = vadd.f32 %v6825, %v7079
      %v7120 = vadd.f32 %v6826, %v7084
      %v7121 = vadd.f32 %v6827, %v7087
      %7122 = vst.msk [vmem:[%s440] sm:$0xff] %vm442, %v7090
      %7123 = vst.msk [vmem:[%s440 + $0x8] sm:$0xff] %vm442, %v7091
      %7124 = vst.msk [vmem:[%s440 + $0x10] sm:$0xff] %vm442, %v7092
      %7125 = vst.msk [vmem:[%s440 + $0x18] sm:$0xff] %vm442, %v7093
      %7126 = vst.msk [vmem:[%s440 + $0x20] sm:$0xff] %vm442, %v7094
      %7127 = vst.msk [vmem:[%s440 + $0x28] sm:$0xff] %vm442, %v7095
      %7128 = vst.msk [vmem:[%s440 + $0x30] sm:$0xff] %vm442, %v7096
      %7129 = vst.msk [vmem:[%s440 + $0x38] sm:$0xff] %vm442, %v7097
      %7130 = vst.msk [vmem:[%s440 + $0x40] sm:$0xff] %vm442, %v7098
      %7131 = vst.msk [vmem:[%s440 + $0x48] sm:$0xff] %vm442, %v7099
      %7132 = vst.msk [vmem:[%s440 + $0x50] sm:$0xff] %vm442, %v7100
      %7133 = vst.msk [vmem:[%s440 + $0x58] sm:$0xff] %vm442, %v7101
      %7134 = vst.msk [vmem:[%s440 + $0x60] sm:$0xff] %vm442, %v7102
      %7135 = vst.msk [vmem:[%s440 + $0x68] sm:$0xff] %vm442, %v7103
      %7136 = vst.msk [vmem:[%s440 + $0x70] sm:$0xff] %vm442, %v7104
      %7137 = vst.msk [vmem:[%s440 + $0x78] sm:$0xff] %vm442, %v7105
      %7138 = vst.msk [vmem:[%s440 + $0x80] sm:$0xff] %vm442, %v7106
      %7139 = vst.msk [vmem:[%s440 + $0x88] sm:$0xff] %vm442, %v7107
      %7140 = vst.msk [vmem:[%s440 + $0x90] sm:$0xff] %vm442, %v7108
      %7141 = vst.msk [vmem:[%s440 + $0x98] sm:$0xff] %vm442, %v7109
      %7142 = vst.msk [vmem:[%s440 + $0xa0] sm:$0xff] %vm442, %v7110
      %7143 = vst.msk [vmem:[%s440 + $0xa8] sm:$0xff] %vm442, %v7111
      %7144 = vst.msk [vmem:[%s440 + $0xb0] sm:$0xff] %vm442, %v7112
      %7145 = vst.msk [vmem:[%s440 + $0xb8] sm:$0xff] %vm442, %v7113
      %7146 = vst.msk [vmem:[%s440 + $0xc0] sm:$0xff] %vm442, %v7114
      %7147 = vst.msk [vmem:[%s440 + $0xc8] sm:$0xff] %vm442, %v7115
      %7148 = vst.msk [vmem:[%s440 + $0xd0] sm:$0xff] %vm442, %v7116
      %7149 = vst.msk [vmem:[%s440 + $0xd8] sm:$0xff] %vm442, %v7117
      %7150 = vst.msk [vmem:[%s440 + $0xe0] sm:$0xff] %vm442, %v7118
      %7151 = vst.msk [vmem:[%s440 + $0xe8] sm:$0xff] %vm442, %v7119
      %7152 = vst.msk [vmem:[%s440 + $0xf0] sm:$0xff] %vm442, %v7120
      %7153 = vst.msk [vmem:[%s440 + $0xf8] sm:$0xff] %vm442, %v7121
      %p7154 = scmp.lt.s32.totalorder %s24, 1
      %s7155 = scalar_select %p7154, %s24, 1
      %s7156 = smul.addr %s7155, 32
      %s7157 = smul.addr %s7156, 8
      %s7158 = scalar_lea.vmem %s13, %s7157
      // Predicated region
      $region73: #{tpu_custom_call.1} parent=71 // pred_check
        %p7159 = pneg %p320
      $region74: #{tpu_custom_call.1} parent=71 // pred_check_branch
        %7161 = sbr.rel (%p7159) target = $region76
      $region75: #{tpu_custom_call.1} parent=71 // pred_region
        _
      $region76: #{tpu_custom_call.1} parent=71 // pred_fallthru
        _
    $region72: #{tpu_custom_call.1} parent=5 // pred_fallthru
      _
    %p7162 = scmp.le.s32.totalorder 2, %s19
    // Predicated region
    $region77: #{tpu_custom_call.1} parent=5 // pred_check
      %p7163 = pneg %p7162
    $region78: #{tpu_custom_call.1} parent=5 // pred_check_branch
      %7165 = sbr.rel (%p7163) target = $region80
    $region79: #{tpu_custom_call.1} parent=5 // pred_region
      %s7166 = ssub.s32 %s19, 2
      // Predicated region
      $region81: #{tpu_custom_call.1} parent=79 // pred_check
        %p7167 = pneg %p326
      $region82: #{tpu_custom_call.1} parent=79 // pred_check_branch
        %7169 = sbr.rel (%p7167) target = $region84
      $region83: #{tpu_custom_call.1} parent=79 // pred_region
        %p7170 = scmp.lt.s32.totalorder %s25, 1
        %s7171 = scalar_select %p7170, %s25, 1
        %s7172 = smul.addr %s7171, 32
        %s7173 = smul.addr %s7172, 8
        %s7174 = scalar_lea.vmem %s13, %s7173
      $region84: #{tpu_custom_call.1} parent=79 // pred_fallthru
        _
    $region80: #{tpu_custom_call.1} parent=5 // pred_fallthru
      _
  $region6: #{tpu_custom_call.1} parent=0 // loop_footer
    %s23 = sadd.s32 1, %s19
  $region7: #{tpu_custom_call.1} parent=0 // loop_footer_branch
    %18 = sbr.rel target = $region3
  $region8: #{tpu_custom_call.1} parent=0 // loop_exit
    _

</llo_original>
